<compile_context>
chip_gen: v7x
topology: tpu7x:2x2x1
jax: 0.10.0
libtpu: 0.0.40
codegen_flags: <defaults>
</compile_context>

<pallas_src>
import math

import jax
import jax.numpy as jnp
from jax.experimental import pallas as pl
from jax.experimental.pallas import tpu as pltpu

MODEL_DIM = 768
COATTN_HEAD = 2
COATTN_SIZE = 64
DIM = COATTN_HEAD * COATTN_SIZE          # 128
LEFT = 8                                 # args.left_len  (qa part)
RIGHT = 8                                # args.right_len (passage part)
SEG = LEFT                               # per-sample segment length
NUM_CHOICES = 4
LN_EPS = 1e-5

# The original mask-expansion code already requires Lq == Lk.
assert LEFT == RIGHT
_SEG_SHIFT = int(math.log2(SEG))
_CHOICE_SHIFT = int(math.log2(NUM_CHOICES))
assert (1 << _SEG_SHIFT) == SEG and (1 << _CHOICE_SHIFT) == NUM_CHOICES


# ---------------------------------------------------------------------------
# Fused kernel: 4x CoAttention + seq-mean pool + dense(1536->1) + choice softmax
# ---------------------------------------------------------------------------
def duma_kernel(passage_ref, qa_ref, pmask_ref, qmask_ref,
                wq1_ref, bq1_ref, wkv1_ref, bkv1_ref, wo1_ref, bo1_ref,
                wq2_hbm, wkv2_hbm, wo2_hbm,
                bq2_ref, bkv2_ref, bo2_ref,
                dw1_ref, dw2_ref, db_ref,
                out_ref,
                wq2_vmem, wkv2_vmem, wo2_vmem, dma_sem):
    f32 = jnp.float32
    bf16 = jnp.bfloat16
    N = passage_ref.shape[0]                 # Bn * SEG = 64
    BN = N // SEG                            # Bn = 8

    # Kick off mha2's big weight DMAs immediately so they overlap with the
    # first CoAttention layer (which only needs mha1 weights).
    cp_wq2 = pltpu.make_async_copy(wq2_hbm, wq2_vmem, dma_sem.at[0])
    cp_wkv2 = pltpu.make_async_copy(wkv2_hbm, wkv2_vmem, dma_sem.at[1])
    cp_wo2 = pltpu.make_async_copy(wo2_hbm, wo2_vmem, dma_sem.at[2])
    cp_wq2.start()
    cp_wkv2.start()
    cp_wo2.start()

    # Block-diagonal batching mask as an ADDITIVE bias (stays in f32; the -1e30
    # fill must never be applied to a bf16 tensor or it overflows to -inf).
    row_b = jnp.right_shift(jax.lax.broadcasted_iota(jnp.int32, (N, N), 0), _SEG_SHIFT)
    col_b = jnp.right_shift(jax.lax.broadcasted_iota(jnp.int32, (N, N), 1), _SEG_SHIFT)
    cross_bias = jnp.where(row_b != col_b, f32(-1e30), f32(0.0))        # [N, N]

    qa_pad = qmask_ref[...] == f32(0.0)      # [1, N] True at padded qa keys
    ps_pad = pmask_ref[...] == f32(0.0)      # [1, N] True at padded passage keys

    def coattn(Q_bf, Q_res, KV_bf, key_pad, wq, bq, wkv, bkv, wo, bo):
        # One CoAttention layer over all Bn samples at once (block-diagonal).
        # Wide projections: one matmul per source tensor (both heads together).
        q_wide = jnp.dot(Q_bf, wq[...], preferred_element_type=f32) + bq[...]      # [N, 128]
        kv_wide = jnp.dot(KV_bf, wkv[...], preferred_element_type=f32) + bkv[...]  # [N, 256]
        ctxs = []
        for h in range(COATTN_HEAD):                                    # static, 2 heads
            lo, hi = h * COATTN_SIZE, (h + 1) * COATTN_SIZE
            qh = q_wide[:, lo:hi].astype(bf16)                          # [N, 64]
            kh = kv_wide[:, lo:hi].astype(bf16)                         # already has 1/sqrt(d) folded in
            vh = kv_wide[:, DIM + lo:DIM + hi].astype(bf16)
            scores = jax.lax.dot_general(                               # q @ k^T, bf16 x bf16 -> f32
                qh, kh, (((1,), (1,)), ((), ())),
                preferred_element_type=f32)                             # [N, N]
            # masked_fill_(attn_mask, 1e-9): the value (not -inf), as in the original.
            # Cross-batch positions are a pure batching artifact -> excluded entirely.
            scores = jnp.where(key_pad, f32(1e-9), scores) + cross_bias
            m = jnp.max(scores, axis=-1, keepdims=True)
            e = jnp.exp(scores - m)
            attn = e * pl.reciprocal(jnp.sum(e, axis=-1, keepdims=True), approx=True)
            ctxs.append(jnp.dot(attn.astype(bf16), vh,
                                preferred_element_type=f32))            # [N, 64]
        ctx = jnp.concatenate(ctxs, axis=-1).astype(bf16)               # [N, 128] head-concat
        out = jnp.dot(ctx, wo[...], preferred_element_type=f32) + bo[...] + Q_res
        mu = jnp.mean(out, axis=-1, keepdims=True)                      # LayerNorm (gamma=1, beta=0)
        var = jnp.mean(jnp.square(out - mu), axis=-1, keepdims=True)
        return (out - mu) * jax.lax.rsqrt(var + f32(LN_EPS))

    passage_bf = passage_ref[...]            # [N, 768] bf16
    qa_bf = qa_ref[...]                      # [N, 768] bf16
    passage_f = passage_bf.astype(f32)       # residual path in f32
    qa_f = qa_bf.astype(f32)

    # Layer 1 (mha1 weights already VMEM-resident via BlockSpec auto-DMA).
    mh1 = coattn(passage_bf, passage_f, qa_bf, qa_pad,
                 wq1_ref, bq1_ref, wkv1_ref, bkv1_ref, wo1_ref, bo1_ref)

    # mha2 weights were prefetched during layer 1; block only now.
    cp_wq2.wait()
    cp_wkv2.wait()
    cp_wo2.wait()

    mh2 = coattn(qa_bf, qa_f, passage_bf, ps_pad,
                 wq2_vmem, bq2_ref, wkv2_vmem, bkv2_ref, wo2_vmem, bo2_ref)

    mh1b = mh1.astype(bf16)
    mh2b = mh2.astype(bf16)
    mh1 = coattn(mh1b, mh1, mh2b, qa_pad,
                 wq1_ref, bq1_ref, wkv1_ref, bkv1_ref, wo1_ref, bo1_ref)
    mh1b = mh1.astype(bf16)
    mh2 = coattn(mh2b, mh2, mh1b, ps_pad,
                 wq2_vmem, bq2_ref, wkv2_vmem, bkv2_ref, wo2_vmem, bo2_ref)

    # adaptive_avg_pool over seq == block-averaging matmul  [BN, N] @ [N, 768]
    prow = jax.lax.broadcasted_iota(jnp.int32, (BN, N), 0)
    pcol = jnp.right_shift(jax.lax.broadcasted_iota(jnp.int32, (BN, N), 1), _SEG_SHIFT)
    pool = jnp.where(prow == pcol, f32(1.0 / SEG), f32(0.0)).astype(bf16)
    p1 = jnp.dot(pool, mh1b, preferred_element_type=f32)                # [BN, 768]
    p2 = jnp.dot(pool, mh2.astype(bf16), preferred_element_type=f32)    # [BN, 768]

    # dense(1536 -> 1) as VPU multiply + lane reduce (no N=1 MXU matmul).
    logits = (jnp.sum(p1 * dw1_ref[...], axis=-1, keepdims=True)
              + jnp.sum(p2 * dw2_ref[...], axis=-1, keepdims=True)
              + db_ref[...])                                            # [BN, 1]

    # Softmax over each sample's NUM_CHOICES rows.  Softmax is shift-invariant
    # per group, so subtracting the single global max is exact and stable.
    mx = jnp.max(logits, axis=0, keepdims=True)                         # [1, 1]
    e = jnp.exp(logits - mx)                                            # [BN, 1]
    grow = jnp.right_shift(jax.lax.broadcasted_iota(jnp.int32, (BN, BN), 0), _CHOICE_SHIFT)
    gcol = jnp.right_shift(jax.lax.broadcasted_iota(jnp.int32, (BN, BN), 1), _CHOICE_SHIFT)
    G = jnp.where(grow == gcol, f32(1.0), f32(0.0))                     # per-sample indicator
    # Tiny group-sum matmul kept (8 values on the serial tail, negligible);
    # final normalization uses an EXACT divide so probabilities sum to 1.
    gsum = jnp.dot(G, e, preferred_element_type=f32)                    # [BN, 1]
    out_ref[...] = (e / gsum).astype(out_ref.dtype)


# ---------------------------------------------------------------------------
# Parameter packing: wide bf16 matmul weights (scale folded into W_K / b_K),
# f32 biases.  Column/row layouts match PyTorch's head-split conventions.
# ---------------------------------------------------------------------------
def _pack_coattention(p):
    inv_sqrt = 1.0 / math.sqrt(COATTN_SIZE)          # 0.125 — exact power of two
    wq = p['wq'].astype(jnp.bfloat16)                                    # [768, 128]
    bq = p['bq'].reshape(1, DIM).astype(jnp.float32)                     # [1, 128]
    wkv = jnp.concatenate([p['wk'] * inv_sqrt, p['wv']],
                          axis=1).astype(jnp.bfloat16)                   # [768, 256]  (K‖V)
    bkv = jnp.concatenate([p['bk'] * inv_sqrt, p['bv']]
                          ).reshape(1, 2 * DIM).astype(jnp.float32)      # [1, 256]
    wo = p['wo'].astype(jnp.bfloat16)                                    # [128, 768]
    bo = p['bo'].reshape(1, MODEL_DIM).astype(jnp.float32)               # [1, 768]
    return wq, bq, wkv, bkv, wo, bo


# ---------------------------------------------------------------------------
# DUMA forward (post-BERT part) — single fused pallas_call.
# ---------------------------------------------------------------------------
def duma_forward(last_hidden_state, attention_mask, params):
    # TODO(synk): BertModel encoder not implemented in Pallas; pipeline starts
    # from its last_hidden_state.
    Bn, L, D = last_hidden_state.shape
    assert L == LEFT + RIGHT and D == MODEL_DIM

    # Activations enter the kernel as bf16 (every matmul uses bf16 operands);
    # the residual / LayerNorm path upcasts once in-kernel.
    passage = last_hidden_state[:, :RIGHT, :].reshape(Bn * RIGHT, D).astype(jnp.bfloat16)
    qa = last_hidden_state[:, RIGHT:, :].reshape(Bn * LEFT, D).astype(jnp.bfloat16)
    pmask = attention_mask[:, :RIGHT].reshape(1, Bn * RIGHT).astype(jnp.float32)
    qmask = attention_mask[:, RIGHT:].reshape(1, Bn * LEFT).astype(jnp.float32)

    wq1, bq1, wkv1, bkv1, wo1, bo1 = _pack_coattention(params['mha1'])
    wq2, bq2, wkv2, bkv2, wo2, bo2 = _pack_coattention(params['mha2'])
    dw1 = params['dense_w'][:MODEL_DIM, 0].reshape(1, MODEL_DIM).astype(jnp.float32)
    dw2 = params['dense_w'][MODEL_DIM:, 0].reshape(1, MODEL_DIM).astype(jnp.float32)
    db = params['dense_b'].reshape(1, 1).astype(jnp.float32)

    # Auto-pipelined (VMEM) inputs, then manually-copied (HBM/ANY) mha2 weights,
    # then small auto inputs.
    vmem_args = (passage, qa, pmask, qmask, wq1, bq1, wkv1, bkv1, wo1, bo1)
    hbm_args = (wq2, wkv2, wo2)
    tail_args = (bq2, bkv2, bo2, dw1, dw2, db)

    def full_spec(a):
        nd = a.ndim
        return pl.BlockSpec(a.shape, lambda i, _nd=nd: (0,) * _nd)

    in_specs = ([full_spec(a) for a in vmem_args]
                + [pl.BlockSpec(memory_space=pl.ANY) for _ in hbm_args]
                + [full_spec(a) for a in tail_args])

    # Whole pipeline fits VMEM (~3 MiB total), so a single fused grid step.
    # TODO(synk): on v7x (2 TensorCores) the batch could be split over a
    # grid=(2,) "parallel" axis (4 samples / 32 rows per core); at this size a
    # single M=64 block is best on v5e/v6e.
    probs = pl.pallas_call(
        duma_kernel,
        out_shape=jax.ShapeDtypeStruct((Bn, 1), jnp.float32),
        grid=(1,),
        in_specs=in_specs,
        out_specs=pl.BlockSpec((Bn, 1), lambda i: (0, 0)),
        scratch_shapes=[
            pltpu.VMEM((MODEL_DIM, DIM), jnp.bfloat16),       # wq2
            pltpu.VMEM((MODEL_DIM, 2 * DIM), jnp.bfloat16),   # wkv2
            pltpu.VMEM((DIM, MODEL_DIM), jnp.bfloat16),       # wo2
            pltpu.SemaphoreType.DMA((3,)),
        ],
        compiler_params=pltpu.CompilerParams(dimension_semantics=("arbitrary",)),
    )(*vmem_args, *hbm_args, *tail_args)
    return probs.reshape(-1, NUM_CHOICES)


# ---------------------------------------------------------------------------
# Deterministic parameter construction.
# ---------------------------------------------------------------------------
def make_coattention_params(key):
    ks = jax.random.split(key, 8)

    def rnd(k, shape):
        return jax.random.normal(k, shape, jnp.float32) * 0.02

    return {
        'wq': rnd(ks[0], (MODEL_DIM, DIM)), 'bq': rnd(ks[1], (DIM,)),
        'wk': rnd(ks[2], (MODEL_DIM, DIM)), 'bk': rnd(ks[3], (DIM,)),
        'wv': rnd(ks[4], (MODEL_DIM, DIM)), 'bv': rnd(ks[5], (DIM,)),
        'wo': rnd(ks[6], (DIM, MODEL_DIM)), 'bo': rnd(ks[7], (MODEL_DIM,)),
    }


if __name__ == "__main__":
    key = jax.random.PRNGKey(0)
    k_h, k_m1, k_m2, k_d = jax.random.split(key, 4)

    batch = 2
    Bn = batch * NUM_CHOICES            # 8  (= batch * num_choices, as in the module)
    seq = RIGHT + LEFT                  # 16

    last_hidden_state = jax.random.normal(k_h, (Bn, seq, MODEL_DIM), jnp.float32)
    attention_mask = jnp.ones((Bn, seq), jnp.float32)
    attention_mask = attention_mask.at[:, seq - 2:].set(0.0)   # pad last 2 qa tokens

    params = {
        'mha1': make_coattention_params(k_m1),
        'mha2': make_coattention_params(k_m2),
        'dense_w': jax.random.normal(k_d, (2 * MODEL_DIM, 1), jnp.float32) * 0.02,
        'dense_b': jnp.zeros((1, 1), jnp.float32),
    }

    fwd = jax.jit(duma_forward)
    out = jax.block_until_ready(fwd(last_hidden_state, attention_mask, params))
    assert out.shape == (batch, NUM_CHOICES)
    assert bool(jnp.all(jnp.isfinite(out)))
    print("KERNEL_OK")
</pallas_src>

<mosaic_0001>
module attributes {stable_mosaic.version = 11 : i64} {
  func.func @duma_kernel(%arg0: i32, %arg1: memref<64x768xbf16, #tpu.memory_space<vmem>>, %arg2: memref<64x768xbf16, #tpu.memory_space<vmem>>, %arg3: memref<1x64xf32, #tpu.memory_space<vmem>>, %arg4: memref<1x64xf32, #tpu.memory_space<vmem>>, %arg5: memref<768x128xbf16, #tpu.memory_space<vmem>>, %arg6: memref<1x128xf32, #tpu.memory_space<vmem>>, %arg7: memref<768x256xbf16, #tpu.memory_space<vmem>>, %arg8: memref<1x256xf32, #tpu.memory_space<vmem>>, %arg9: memref<128x768xbf16, #tpu.memory_space<vmem>>, %arg10: memref<1x768xf32, #tpu.memory_space<vmem>>, %arg11: memref<768x128xbf16, #tpu.memory_space<any>>, %arg12: memref<768x256xbf16, #tpu.memory_space<any>>, %arg13: memref<128x768xbf16, #tpu.memory_space<any>>, %arg14: memref<1x128xf32, #tpu.memory_space<vmem>>, %arg15: memref<1x256xf32, #tpu.memory_space<vmem>>, %arg16: memref<1x768xf32, #tpu.memory_space<vmem>>, %arg17: memref<1x768xf32, #tpu.memory_space<vmem>>, %arg18: memref<1x768xf32, #tpu.memory_space<vmem>>, %arg19: memref<1x1xf32, #tpu.memory_space<vmem>>, %arg20: memref<8x1xf32, #tpu.memory_space<vmem>>, %arg21: memref<768x128xbf16, #tpu.memory_space<vmem>>, %arg22: memref<768x256xbf16, #tpu.memory_space<vmem>>, %arg23: memref<128x768xbf16, #tpu.memory_space<vmem>>, %arg24: memref<3x!tpu.dma_semaphore, #tpu.memory_space<semaphore_mem>>) attributes {dimension_semantics = [#tpu.dimension_semantics<arbitrary>], iteration_bounds = array<i64: 1>, scalar_prefetch = 0 : i64, scratch_operands = 4 : i64, tpu.core_type = #tpu.core_type<tc>, window_params = [{pipeline_mode = #tpu.pipeline_mode<synchronous>, transform_indices = @transform_0, window_bounds = array<i64: 64, 768>}, {pipeline_mode = #tpu.pipeline_mode<synchronous>, transform_indices = @transform_1, window_bounds = array<i64: 64, 768>}, {pipeline_mode = #tpu.pipeline_mode<synchronous>, transform_indices = @transform_2, window_bounds = array<i64: 1, 64>}, {pipeline_mode = #tpu.pipeline_mode<synchronous>, transform_indices = @transform_3, window_bounds = array<i64: 1, 64>}, {pipeline_mode = #tpu.pipeline_mode<synchronous>, transform_indices = @transform_4, window_bounds = array<i64: 768, 128>}, {pipeline_mode = #tpu.pipeline_mode<synchronous>, transform_indices = @transform_5, window_bounds = array<i64: 1, 128>}, {pipeline_mode = #tpu.pipeline_mode<synchronous>, transform_indices = @transform_6, window_bounds = array<i64: 768, 256>}, {pipeline_mode = #tpu.pipeline_mode<synchronous>, transform_indices = @transform_7, window_bounds = array<i64: 1, 256>}, {pipeline_mode = #tpu.pipeline_mode<synchronous>, transform_indices = @transform_8, window_bounds = array<i64: 128, 768>}, {pipeline_mode = #tpu.pipeline_mode<synchronous>, transform_indices = @transform_9, window_bounds = array<i64: 1, 768>}, {}, {}, {}, {pipeline_mode = #tpu.pipeline_mode<synchronous>, transform_indices = @transform_13, window_bounds = array<i64: 1, 128>}, {pipeline_mode = #tpu.pipeline_mode<synchronous>, transform_indices = @transform_14, window_bounds = array<i64: 1, 256>}, {pipeline_mode = #tpu.pipeline_mode<synchronous>, transform_indices = @transform_15, window_bounds = array<i64: 1, 768>}, {pipeline_mode = #tpu.pipeline_mode<synchronous>, transform_indices = @transform_16, window_bounds = array<i64: 1, 768>}, {pipeline_mode = #tpu.pipeline_mode<synchronous>, transform_indices = @transform_17, window_bounds = array<i64: 1, 768>}, {pipeline_mode = #tpu.pipeline_mode<synchronous>, transform_indices = @transform_18, window_bounds = array<i64: 1, 1>}, {pipeline_mode = #tpu.pipeline_mode<synchronous>, transform_indices = @transform_19, window_bounds = array<i64: 8, 1>}]} {
    %c0_i32 = arith.constant 0 : i32
    %0 = tpu.memref_slice %arg24[%c0_i32] : memref<3x!tpu.dma_semaphore, #tpu.memory_space<semaphore_mem>> -> memref<1x!tpu.dma_semaphore, #tpu.memory_space<semaphore_mem>>
    %1 = tpu.memref_squeeze %0 : memref<1x!tpu.dma_semaphore, #tpu.memory_space<semaphore_mem>> -> memref<!tpu.dma_semaphore, #tpu.memory_space<semaphore_mem>>
    tpu.enqueue_dma source(%arg11 : memref<768x128xbf16, #tpu.memory_space<any>>) target(%arg21 : memref<768x128xbf16, #tpu.memory_space<vmem>>) target_semaphore(%1 : memref<!tpu.dma_semaphore, #tpu.memory_space<semaphore_mem>>)
    %c1_i32 = arith.constant 1 : i32
    %2 = tpu.memref_slice %arg24[%c1_i32] : memref<3x!tpu.dma_semaphore, #tpu.memory_space<semaphore_mem>> -> memref<1x!tpu.dma_semaphore, #tpu.memory_space<semaphore_mem>>
    %3 = tpu.memref_squeeze %2 : memref<1x!tpu.dma_semaphore, #tpu.memory_space<semaphore_mem>> -> memref<!tpu.dma_semaphore, #tpu.memory_space<semaphore_mem>>
    tpu.enqueue_dma source(%arg12 : memref<768x256xbf16, #tpu.memory_space<any>>) target(%arg22 : memref<768x256xbf16, #tpu.memory_space<vmem>>) target_semaphore(%3 : memref<!tpu.dma_semaphore, #tpu.memory_space<semaphore_mem>>)
    %c2_i32 = arith.constant 2 : i32
    %4 = tpu.memref_slice %arg24[%c2_i32] : memref<3x!tpu.dma_semaphore, #tpu.memory_space<semaphore_mem>> -> memref<1x!tpu.dma_semaphore, #tpu.memory_space<semaphore_mem>>
    %5 = tpu.memref_squeeze %4 : memref<1x!tpu.dma_semaphore, #tpu.memory_space<semaphore_mem>> -> memref<!tpu.dma_semaphore, #tpu.memory_space<semaphore_mem>>
    tpu.enqueue_dma source(%arg13 : memref<128x768xbf16, #tpu.memory_space<any>>) target(%arg23 : memref<128x768xbf16, #tpu.memory_space<vmem>>) target_semaphore(%5 : memref<!tpu.dma_semaphore, #tpu.memory_space<semaphore_mem>>)
    %6 = tpu.iota {dimensions = array<i32: 0>} : vector<64x64xi32>
    %c3_i32 = arith.constant 3 : i32
    %7 = vector.broadcast %c3_i32 : i32 to vector<64x64xi32>
    %8 = arith.shrsi %6, %7 : vector<64x64xi32>
    %9 = tpu.iota {dimensions = array<i32: 1>} : vector<64x64xi32>
    %c3_i32_0 = arith.constant 3 : i32
    %10 = vector.broadcast %c3_i32_0 : i32 to vector<64x64xi32>
    %11 = arith.shrsi %9, %10 : vector<64x64xi32>
    %12 = arith.cmpi ne, %8, %11 : vector<64x64xi32>
    %cst = arith.constant -1.000000e+30 : f32
    %cst_1 = arith.constant 0.000000e+00 : f32
    %13 = vector.broadcast %cst : f32 to vector<64x64xf32>
    %14 = vector.broadcast %cst_1 : f32 to vector<64x64xf32>
    %15 = arith.select %12, %13, %14 : vector<64x64xi1>, vector<64x64xf32>
    %c0 = arith.constant 0 : index
    %c0_2 = arith.constant 0 : index
    %16 = vector.load %arg4[%c0, %c0_2] : memref<1x64xf32, #tpu.memory_space<vmem>>, vector<1x64xf32>
    %cst_3 = arith.constant 0.000000e+00 : f32
    %17 = vector.broadcast %cst_3 : f32 to vector<1x64xf32>
    %18 = arith.cmpf oeq, %16, %17 : vector<1x64xf32>
    %c0_4 = arith.constant 0 : index
    %c0_5 = arith.constant 0 : index
    %19 = vector.load %arg3[%c0_4, %c0_5] : memref<1x64xf32, #tpu.memory_space<vmem>>, vector<1x64xf32>
    %cst_6 = arith.constant 0.000000e+00 : f32
    %20 = vector.broadcast %cst_6 : f32 to vector<1x64xf32>
    %21 = arith.cmpf oeq, %19, %20 : vector<1x64xf32>
    %c0_7 = arith.constant 0 : index
    %c0_8 = arith.constant 0 : index
    %22 = vector.load %arg1[%c0_7, %c0_8] : memref<64x768xbf16, #tpu.memory_space<vmem>>, vector<64x768xbf16>
    %c0_9 = arith.constant 0 : index
    %c0_10 = arith.constant 0 : index
    %23 = vector.load %arg2[%c0_9, %c0_10] : memref<64x768xbf16, #tpu.memory_space<vmem>>, vector<64x768xbf16>
    %24 = arith.extf %22 : vector<64x768xbf16> to vector<64x768xf32>
    %25 = arith.extf %23 : vector<64x768xbf16> to vector<64x768xf32>
    %c0_11 = arith.constant 0 : index
    %c0_12 = arith.constant 0 : index
    %26 = vector.load %arg5[%c0_11, %c0_12] : memref<768x128xbf16, #tpu.memory_space<vmem>>, vector<768x128xbf16>
    %cst_13 = arith.constant dense<0.000000e+00> : vector<64x128xf32>
    %27 = tpu.matmul %22, %26, %cst_13 {dimension_numbers = #tpu.dot_dimension_numbers<[1], [0], [0], [1], [0, 0, 1, 1], [], []>} : vector<64x768xbf16>, vector<768x128xbf16>, vector<64x128xf32> -> vector<64x128xf32>
    %c0_14 = arith.constant 0 : index
    %c0_15 = arith.constant 0 : index
    %28 = vector.load %arg6[%c0_14, %c0_15] : memref<1x128xf32, #tpu.memory_space<vmem>>, vector<1x128xf32>
    %29 = vector.broadcast %28 : vector<1x128xf32> to vector<64x128xf32>
    %30 = arith.addf %27, %29 : vector<64x128xf32>
    %c0_16 = arith.constant 0 : index
    %c0_17 = arith.constant 0 : index
    %31 = vector.load %arg7[%c0_16, %c0_17] : memref<768x256xbf16, #tpu.memory_space<vmem>>, vector<768x256xbf16>
    %cst_18 = arith.constant dense<0.000000e+00> : vector<64x256xf32>
    %32 = tpu.matmul %23, %31, %cst_18 {dimension_numbers = #tpu.dot_dimension_numbers<[1], [0], [0], [1], [0, 0, 1, 1], [], []>} : vector<64x768xbf16>, vector<768x256xbf16>, vector<64x256xf32> -> vector<64x256xf32>
    %c0_19 = arith.constant 0 : index
    %c0_20 = arith.constant 0 : index
    %33 = vector.load %arg8[%c0_19, %c0_20] : memref<1x256xf32, #tpu.memory_space<vmem>>, vector<1x256xf32>
    %34 = vector.broadcast %33 : vector<1x256xf32> to vector<64x256xf32>
    %35 = arith.addf %32, %34 : vector<64x256xf32>
    %36 = vector.extract_strided_slice %30 {offsets = [0, 0], sizes = [64, 64], strides = [1, 1]} : vector<64x128xf32> to vector<64x64xf32>
    %37 = arith.truncf %36 : vector<64x64xf32> to vector<64x64xbf16>
    %38 = vector.extract_strided_slice %35 {offsets = [0, 0], sizes = [64, 64], strides = [1, 1]} : vector<64x256xf32> to vector<64x64xf32>
    %39 = arith.truncf %38 : vector<64x64xf32> to vector<64x64xbf16>
    %40 = vector.extract_strided_slice %35 {offsets = [0, 128], sizes = [64, 64], strides = [1, 1]} : vector<64x256xf32> to vector<64x64xf32>
    %41 = arith.truncf %40 : vector<64x64xf32> to vector<64x64xbf16>
    %cst_21 = arith.constant dense<0.000000e+00> : vector<64x64xf32>
    %42 = tpu.matmul %37, %39, %cst_21 {dimension_numbers = #tpu.dot_dimension_numbers<[1], [1], [0], [0], [0, 0, 1, 0], [], []>} : vector<64x64xbf16>, vector<64x64xbf16>, vector<64x64xf32> -> vector<64x64xf32>
    %cst_22 = arith.constant 9.99999971E-10 : f32
    %43 = vector.shape_cast %18 : vector<1x64xi1> to vector<1x64xi1>
    %44 = vector.broadcast %43 : vector<1x64xi1> to vector<64x64xi1>
    %45 = vector.broadcast %cst_22 : f32 to vector<64x64xf32>
    %46 = arith.select %44, %45, %42 : vector<64x64xi1>, vector<64x64xf32>
    %47 = arith.addf %46, %15 : vector<64x64xf32>
    %cst_23 = arith.constant dense<0xFF800000> : vector<64xf32>
    %48 = vector.multi_reduction <maximumf>, %47, %cst_23 [1] : vector<64x64xf32> to vector<64xf32>
    %49 = vector.shape_cast %48 : vector<64xf32> to vector<64x1xf32>
    %50 = vector.broadcast %49 : vector<64x1xf32> to vector<64x64xf32>
    %51 = arith.subf %47, %50 : vector<64x64xf32>
    %52 = math.exp %51 : vector<64x64xf32>
    %cst_24 = arith.constant dense<0.000000e+00> : vector<64xf32>
    %53 = vector.multi_reduction <add>, %52, %cst_24 [1] : vector<64x64xf32> to vector<64xf32>
    %54 = vector.shape_cast %53 : vector<64xf32> to vector<64x1xf32>
    %55 = tpu.reciprocal %54 {approx = true} : vector<64x1xf32> -> vector<64x1xf32>
    %56 = vector.broadcast %55 : vector<64x1xf32> to vector<64x64xf32>
    %57 = arith.mulf %52, %56 : vector<64x64xf32>
    %58 = arith.truncf %57 : vector<64x64xf32> to vector<64x64xbf16>
    %cst_25 = arith.constant dense<0.000000e+00> : vector<64x64xf32>
    %59 = tpu.matmul %58, %41, %cst_25 {dimension_numbers = #tpu.dot_dimension_numbers<[1], [0], [0], [1], [0, 0, 1, 1], [], []>} : vector<64x64xbf16>, vector<64x64xbf16>, vector<64x64xf32> -> vector<64x64xf32>
    %60 = vector.extract_strided_slice %30 {offsets = [0, 64], sizes = [64, 64], strides = [1, 1]} : vector<64x128xf32> to vector<64x64xf32>
    %61 = arith.truncf %60 : vector<64x64xf32> to vector<64x64xbf16>
    %62 = vector.extract_strided_slice %35 {offsets = [0, 64], sizes = [64, 64], strides = [1, 1]} : vector<64x256xf32> to vector<64x64xf32>
    %63 = arith.truncf %62 : vector<64x64xf32> to vector<64x64xbf16>
    %64 = vector.extract_strided_slice %35 {offsets = [0, 192], sizes = [64, 64], strides = [1, 1]} : vector<64x256xf32> to vector<64x64xf32>
    %65 = arith.truncf %64 : vector<64x64xf32> to vector<64x64xbf16>
    %cst_26 = arith.constant dense<0.000000e+00> : vector<64x64xf32>
    %66 = tpu.matmul %61, %63, %cst_26 {dimension_numbers = #tpu.dot_dimension_numbers<[1], [1], [0], [0], [0, 0, 1, 0], [], []>} : vector<64x64xbf16>, vector<64x64xbf16>, vector<64x64xf32> -> vector<64x64xf32>
    %cst_27 = arith.constant 9.99999971E-10 : f32
    %67 = vector.shape_cast %18 : vector<1x64xi1> to vector<1x64xi1>
    %68 = vector.broadcast %67 : vector<1x64xi1> to vector<64x64xi1>
    %69 = vector.broadcast %cst_27 : f32 to vector<64x64xf32>
    %70 = arith.select %68, %69, %66 : vector<64x64xi1>, vector<64x64xf32>
    %71 = arith.addf %70, %15 : vector<64x64xf32>
    %cst_28 = arith.constant dense<0xFF800000> : vector<64xf32>
    %72 = vector.multi_reduction <maximumf>, %71, %cst_28 [1] : vector<64x64xf32> to vector<64xf32>
    %73 = vector.shape_cast %72 : vector<64xf32> to vector<64x1xf32>
    %74 = vector.broadcast %73 : vector<64x1xf32> to vector<64x64xf32>
    %75 = arith.subf %71, %74 : vector<64x64xf32>
    %76 = math.exp %75 : vector<64x64xf32>
    %cst_29 = arith.constant dense<0.000000e+00> : vector<64xf32>
    %77 = vector.multi_reduction <add>, %76, %cst_29 [1] : vector<64x64xf32> to vector<64xf32>
    %78 = vector.shape_cast %77 : vector<64xf32> to vector<64x1xf32>
    %79 = tpu.reciprocal %78 {approx = true} : vector<64x1xf32> -> vector<64x1xf32>
    %80 = vector.broadcast %79 : vector<64x1xf32> to vector<64x64xf32>
    %81 = arith.mulf %76, %80 : vector<64x64xf32>
    %82 = arith.truncf %81 : vector<64x64xf32> to vector<64x64xbf16>
    %cst_30 = arith.constant dense<0.000000e+00> : vector<64x64xf32>
    %83 = tpu.matmul %82, %65, %cst_30 {dimension_numbers = #tpu.dot_dimension_numbers<[1], [0], [0], [1], [0, 0, 1, 1], [], []>} : vector<64x64xbf16>, vector<64x64xbf16>, vector<64x64xf32> -> vector<64x64xf32>
    %84 = tpu.concatenate %59, %83 in 1 : vector<64x64xf32>, vector<64x64xf32> -> vector<64x128xf32>
    %85 = arith.truncf %84 : vector<64x128xf32> to vector<64x128xbf16>
    %c0_31 = arith.constant 0 : index
    %c0_32 = arith.constant 0 : index
    %86 = vector.load %arg9[%c0_31, %c0_32] : memref<128x768xbf16, #tpu.memory_space<vmem>>, vector<128x768xbf16>
    %cst_33 = arith.constant dense<0.000000e+00> : vector<64x768xf32>
    %87 = tpu.matmul %85, %86, %cst_33 {dimension_numbers = #tpu.dot_dimension_numbers<[1], [0], [0], [1], [0, 0, 1, 1], [], []>} : vector<64x128xbf16>, vector<128x768xbf16>, vector<64x768xf32> -> vector<64x768xf32>
    %c0_34 = arith.constant 0 : index
    %c0_35 = arith.constant 0 : index
    %88 = vector.load %arg10[%c0_34, %c0_35] : memref<1x768xf32, #tpu.memory_space<vmem>>, vector<1x768xf32>
    %89 = vector.broadcast %88 : vector<1x768xf32> to vector<64x768xf32>
    %90 = arith.addf %87, %89 : vector<64x768xf32>
    %91 = arith.addf %90, %24 : vector<64x768xf32>
    %cst_36 = arith.constant dense<0.000000e+00> : vector<64xf32>
    %92 = vector.multi_reduction <add>, %91, %cst_36 [1] : vector<64x768xf32> to vector<64xf32>
    %93 = vector.shape_cast %92 : vector<64xf32> to vector<64x1xf32>
    %cst_37 = arith.constant 7.680000e+02 : f32
    %94 = vector.broadcast %cst_37 : f32 to vector<64x1xf32>
    %95 = arith.divf %93, %94 : vector<64x1xf32>
    %96 = vector.broadcast %95 : vector<64x1xf32> to vector<64x768xf32>
    %97 = arith.subf %91, %96 : vector<64x768xf32>
    %98 = arith.mulf %97, %97 : vector<64x768xf32>
    %cst_38 = arith.constant dense<0.000000e+00> : vector<64xf32>
    %99 = vector.multi_reduction <add>, %98, %cst_38 [1] : vector<64x768xf32> to vector<64xf32>
    %100 = vector.shape_cast %99 : vector<64xf32> to vector<64x1xf32>
    %cst_39 = arith.constant 7.680000e+02 : f32
    %101 = vector.broadcast %cst_39 : f32 to vector<64x1xf32>
    %102 = arith.divf %100, %101 : vector<64x1xf32>
    %103 = vector.broadcast %95 : vector<64x1xf32> to vector<64x768xf32>
    %104 = arith.subf %91, %103 : vector<64x768xf32>
    %cst_40 = arith.constant 9.99999974E-6 : f32
    %105 = vector.broadcast %cst_40 : f32 to vector<64x1xf32>
    %106 = arith.addf %102, %105 : vector<64x1xf32>
    %107 = math.rsqrt %106 : vector<64x1xf32>
    %108 = vector.broadcast %107 : vector<64x1xf32> to vector<64x768xf32>
    %109 = arith.mulf %104, %108 : vector<64x768xf32>
    %c0_i32_41 = arith.constant 0 : i32
    %110 = tpu.memref_slice %arg24[%c0_i32_41] : memref<3x!tpu.dma_semaphore, #tpu.memory_space<semaphore_mem>> -> memref<1x!tpu.dma_semaphore, #tpu.memory_space<semaphore_mem>>
    %111 = tpu.memref_squeeze %110 : memref<1x!tpu.dma_semaphore, #tpu.memory_space<semaphore_mem>> -> memref<!tpu.dma_semaphore, #tpu.memory_space<semaphore_mem>>
    tpu.wait_dma2 semaphore(%111 : memref<!tpu.dma_semaphore, #tpu.memory_space<semaphore_mem>>) src(%arg11 : memref<768x128xbf16, #tpu.memory_space<any>>) dst(%arg21 : memref<768x128xbf16, #tpu.memory_space<vmem>>)
    %c1_i32_42 = arith.constant 1 : i32
    %112 = tpu.memref_slice %arg24[%c1_i32_42] : memref<3x!tpu.dma_semaphore, #tpu.memory_space<semaphore_mem>> -> memref<1x!tpu.dma_semaphore, #tpu.memory_space<semaphore_mem>>
    %113 = tpu.memref_squeeze %112 : memref<1x!tpu.dma_semaphore, #tpu.memory_space<semaphore_mem>> -> memref<!tpu.dma_semaphore, #tpu.memory_space<semaphore_mem>>
    tpu.wait_dma2 semaphore(%113 : memref<!tpu.dma_semaphore, #tpu.memory_space<semaphore_mem>>) src(%arg12 : memref<768x256xbf16, #tpu.memory_space<any>>) dst(%arg22 : memref<768x256xbf16, #tpu.memory_space<vmem>>)
    %c2_i32_43 = arith.constant 2 : i32
    %114 = tpu.memref_slice %arg24[%c2_i32_43] : memref<3x!tpu.dma_semaphore, #tpu.memory_space<semaphore_mem>> -> memref<1x!tpu.dma_semaphore, #tpu.memory_space<semaphore_mem>>
    %115 = tpu.memref_squeeze %114 : memref<1x!tpu.dma_semaphore, #tpu.memory_space<semaphore_mem>> -> memref<!tpu.dma_semaphore, #tpu.memory_space<semaphore_mem>>
    tpu.wait_dma2 semaphore(%115 : memref<!tpu.dma_semaphore, #tpu.memory_space<semaphore_mem>>) src(%arg13 : memref<128x768xbf16, #tpu.memory_space<any>>) dst(%arg23 : memref<128x768xbf16, #tpu.memory_space<vmem>>)
    %c0_44 = arith.constant 0 : index
    %c0_45 = arith.constant 0 : index
    %116 = vector.load %arg21[%c0_44, %c0_45] : memref<768x128xbf16, #tpu.memory_space<vmem>>, vector<768x128xbf16>
    %cst_46 = arith.constant dense<0.000000e+00> : vector<64x128xf32>
    %117 = tpu.matmul %23, %116, %cst_46 {dimension_numbers = #tpu.dot_dimension_numbers<[1], [0], [0], [1], [0, 0, 1, 1], [], []>} : vector<64x768xbf16>, vector<768x128xbf16>, vector<64x128xf32> -> vector<64x128xf32>
    %c0_47 = arith.constant 0 : index
    %c0_48 = arith.constant 0 : index
    %118 = vector.load %arg14[%c0_47, %c0_48] : memref<1x128xf32, #tpu.memory_space<vmem>>, vector<1x128xf32>
    %119 = vector.broadcast %118 : vector<1x128xf32> to vector<64x128xf32>
    %120 = arith.addf %117, %119 : vector<64x128xf32>
    %c0_49 = arith.constant 0 : index
    %c0_50 = arith.constant 0 : index
    %121 = vector.load %arg22[%c0_49, %c0_50] : memref<768x256xbf16, #tpu.memory_space<vmem>>, vector<768x256xbf16>
    %cst_51 = arith.constant dense<0.000000e+00> : vector<64x256xf32>
    %122 = tpu.matmul %22, %121, %cst_51 {dimension_numbers = #tpu.dot_dimension_numbers<[1], [0], [0], [1], [0, 0, 1, 1], [], []>} : vector<64x768xbf16>, vector<768x256xbf16>, vector<64x256xf32> -> vector<64x256xf32>
    %c0_52 = arith.constant 0 : index
    %c0_53 = arith.constant 0 : index
    %123 = vector.load %arg15[%c0_52, %c0_53] : memref<1x256xf32, #tpu.memory_space<vmem>>, vector<1x256xf32>
    %124 = vector.broadcast %123 : vector<1x256xf32> to vector<64x256xf32>
    %125 = arith.addf %122, %124 : vector<64x256xf32>
    %126 = vector.extract_strided_slice %120 {offsets = [0, 0], sizes = [64, 64], strides = [1, 1]} : vector<64x128xf32> to vector<64x64xf32>
    %127 = arith.truncf %126 : vector<64x64xf32> to vector<64x64xbf16>
    %128 = vector.extract_strided_slice %125 {offsets = [0, 0], sizes = [64, 64], strides = [1, 1]} : vector<64x256xf32> to vector<64x64xf32>
    %129 = arith.truncf %128 : vector<64x64xf32> to vector<64x64xbf16>
    %130 = vector.extract_strided_slice %125 {offsets = [0, 128], sizes = [64, 64], strides = [1, 1]} : vector<64x256xf32> to vector<64x64xf32>
    %131 = arith.truncf %130 : vector<64x64xf32> to vector<64x64xbf16>
    %cst_54 = arith.constant dense<0.000000e+00> : vector<64x64xf32>
    %132 = tpu.matmul %127, %129, %cst_54 {dimension_numbers = #tpu.dot_dimension_numbers<[1], [1], [0], [0], [0, 0, 1, 0], [], []>} : vector<64x64xbf16>, vector<64x64xbf16>, vector<64x64xf32> -> vector<64x64xf32>
    %cst_55 = arith.constant 9.99999971E-10 : f32
    %133 = vector.shape_cast %21 : vector<1x64xi1> to vector<1x64xi1>
    %134 = vector.broadcast %133 : vector<1x64xi1> to vector<64x64xi1>
    %135 = vector.broadcast %cst_55 : f32 to vector<64x64xf32>
    %136 = arith.select %134, %135, %132 : vector<64x64xi1>, vector<64x64xf32>
    %137 = arith.addf %136, %15 : vector<64x64xf32>
    %cst_56 = arith.constant dense<0xFF800000> : vector<64xf32>
    %138 = vector.multi_reduction <maximumf>, %137, %cst_56 [1] : vector<64x64xf32> to vector<64xf32>
    %139 = vector.shape_cast %138 : vector<64xf32> to vector<64x1xf32>
    %140 = vector.broadcast %139 : vector<64x1xf32> to vector<64x64xf32>
    %141 = arith.subf %137, %140 : vector<64x64xf32>
    %142 = math.exp %141 : vector<64x64xf32>
    %cst_57 = arith.constant dense<0.000000e+00> : vector<64xf32>
    %143 = vector.multi_reduction <add>, %142, %cst_57 [1] : vector<64x64xf32> to vector<64xf32>
    %144 = vector.shape_cast %143 : vector<64xf32> to vector<64x1xf32>
    %145 = tpu.reciprocal %144 {approx = true} : vector<64x1xf32> -> vector<64x1xf32>
    %146 = vector.broadcast %145 : vector<64x1xf32> to vector<64x64xf32>
    %147 = arith.mulf %142, %146 : vector<64x64xf32>
    %148 = arith.truncf %147 : vector<64x64xf32> to vector<64x64xbf16>
    %cst_58 = arith.constant dense<0.000000e+00> : vector<64x64xf32>
    %149 = tpu.matmul %148, %131, %cst_58 {dimension_numbers = #tpu.dot_dimension_numbers<[1], [0], [0], [1], [0, 0, 1, 1], [], []>} : vector<64x64xbf16>, vector<64x64xbf16>, vector<64x64xf32> -> vector<64x64xf32>
    %150 = vector.extract_strided_slice %120 {offsets = [0, 64], sizes = [64, 64], strides = [1, 1]} : vector<64x128xf32> to vector<64x64xf32>
    %151 = arith.truncf %150 : vector<64x64xf32> to vector<64x64xbf16>
    %152 = vector.extract_strided_slice %125 {offsets = [0, 64], sizes = [64, 64], strides = [1, 1]} : vector<64x256xf32> to vector<64x64xf32>
    %153 = arith.truncf %152 : vector<64x64xf32> to vector<64x64xbf16>
    %154 = vector.extract_strided_slice %125 {offsets = [0, 192], sizes = [64, 64], strides = [1, 1]} : vector<64x256xf32> to vector<64x64xf32>
    %155 = arith.truncf %154 : vector<64x64xf32> to vector<64x64xbf16>
    %cst_59 = arith.constant dense<0.000000e+00> : vector<64x64xf32>
    %156 = tpu.matmul %151, %153, %cst_59 {dimension_numbers = #tpu.dot_dimension_numbers<[1], [1], [0], [0], [0, 0, 1, 0], [], []>} : vector<64x64xbf16>, vector<64x64xbf16>, vector<64x64xf32> -> vector<64x64xf32>
    %cst_60 = arith.constant 9.99999971E-10 : f32
    %157 = vector.shape_cast %21 : vector<1x64xi1> to vector<1x64xi1>
    %158 = vector.broadcast %157 : vector<1x64xi1> to vector<64x64xi1>
    %159 = vector.broadcast %cst_60 : f32 to vector<64x64xf32>
    %160 = arith.select %158, %159, %156 : vector<64x64xi1>, vector<64x64xf32>
    %161 = arith.addf %160, %15 : vector<64x64xf32>
    %cst_61 = arith.constant dense<0xFF800000> : vector<64xf32>
    %162 = vector.multi_reduction <maximumf>, %161, %cst_61 [1] : vector<64x64xf32> to vector<64xf32>
    %163 = vector.shape_cast %162 : vector<64xf32> to vector<64x1xf32>
    %164 = vector.broadcast %163 : vector<64x1xf32> to vector<64x64xf32>
    %165 = arith.subf %161, %164 : vector<64x64xf32>
    %166 = math.exp %165 : vector<64x64xf32>
    %cst_62 = arith.constant dense<0.000000e+00> : vector<64xf32>
    %167 = vector.multi_reduction <add>, %166, %cst_62 [1] : vector<64x64xf32> to vector<64xf32>
    %168 = vector.shape_cast %167 : vector<64xf32> to vector<64x1xf32>
    %169 = tpu.reciprocal %168 {approx = true} : vector<64x1xf32> -> vector<64x1xf32>
    %170 = vector.broadcast %169 : vector<64x1xf32> to vector<64x64xf32>
    %171 = arith.mulf %166, %170 : vector<64x64xf32>
    %172 = arith.truncf %171 : vector<64x64xf32> to vector<64x64xbf16>
    %cst_63 = arith.constant dense<0.000000e+00> : vector<64x64xf32>
    %173 = tpu.matmul %172, %155, %cst_63 {dimension_numbers = #tpu.dot_dimension_numbers<[1], [0], [0], [1], [0, 0, 1, 1], [], []>} : vector<64x64xbf16>, vector<64x64xbf16>, vector<64x64xf32> -> vector<64x64xf32>
    %174 = tpu.concatenate %149, %173 in 1 : vector<64x64xf32>, vector<64x64xf32> -> vector<64x128xf32>
    %175 = arith.truncf %174 : vector<64x128xf32> to vector<64x128xbf16>
    %c0_64 = arith.constant 0 : index
    %c0_65 = arith.constant 0 : index
    %176 = vector.load %arg23[%c0_64, %c0_65] : memref<128x768xbf16, #tpu.memory_space<vmem>>, vector<128x768xbf16>
    %cst_66 = arith.constant dense<0.000000e+00> : vector<64x768xf32>
    %177 = tpu.matmul %175, %176, %cst_66 {dimension_numbers = #tpu.dot_dimension_numbers<[1], [0], [0], [1], [0, 0, 1, 1], [], []>} : vector<64x128xbf16>, vector<128x768xbf16>, vector<64x768xf32> -> vector<64x768xf32>
    %c0_67 = arith.constant 0 : index
    %c0_68 = arith.constant 0 : index
    %178 = vector.load %arg16[%c0_67, %c0_68] : memref<1x768xf32, #tpu.memory_space<vmem>>, vector<1x768xf32>
    %179 = vector.broadcast %178 : vector<1x768xf32> to vector<64x768xf32>
    %180 = arith.addf %177, %179 : vector<64x768xf32>
    %181 = arith.addf %180, %25 : vector<64x768xf32>
    %cst_69 = arith.constant dense<0.000000e+00> : vector<64xf32>
    %182 = vector.multi_reduction <add>, %181, %cst_69 [1] : vector<64x768xf32> to vector<64xf32>
    %183 = vector.shape_cast %182 : vector<64xf32> to vector<64x1xf32>
    %cst_70 = arith.constant 7.680000e+02 : f32
    %184 = vector.broadcast %cst_70 : f32 to vector<64x1xf32>
    %185 = arith.divf %183, %184 : vector<64x1xf32>
    %186 = vector.broadcast %185 : vector<64x1xf32> to vector<64x768xf32>
    %187 = arith.subf %181, %186 : vector<64x768xf32>
    %188 = arith.mulf %187, %187 : vector<64x768xf32>
    %cst_71 = arith.constant dense<0.000000e+00> : vector<64xf32>
    %189 = vector.multi_reduction <add>, %188, %cst_71 [1] : vector<64x768xf32> to vector<64xf32>
    %190 = vector.shape_cast %189 : vector<64xf32> to vector<64x1xf32>
    %cst_72 = arith.constant 7.680000e+02 : f32
    %191 = vector.broadcast %cst_72 : f32 to vector<64x1xf32>
    %192 = arith.divf %190, %191 : vector<64x1xf32>
    %193 = vector.broadcast %185 : vector<64x1xf32> to vector<64x768xf32>
    %194 = arith.subf %181, %193 : vector<64x768xf32>
    %cst_73 = arith.constant 9.99999974E-6 : f32
    %195 = vector.broadcast %cst_73 : f32 to vector<64x1xf32>
    %196 = arith.addf %192, %195 : vector<64x1xf32>
    %197 = math.rsqrt %196 : vector<64x1xf32>
    %198 = vector.broadcast %197 : vector<64x1xf32> to vector<64x768xf32>
    %199 = arith.mulf %194, %198 : vector<64x768xf32>
    %200 = arith.truncf %109 : vector<64x768xf32> to vector<64x768xbf16>
    %201 = arith.truncf %199 : vector<64x768xf32> to vector<64x768xbf16>
    %c0_74 = arith.constant 0 : index
    %c0_75 = arith.constant 0 : index
    %202 = vector.load %arg5[%c0_74, %c0_75] : memref<768x128xbf16, #tpu.memory_space<vmem>>, vector<768x128xbf16>
    %cst_76 = arith.constant dense<0.000000e+00> : vector<64x128xf32>
    %203 = tpu.matmul %200, %202, %cst_76 {dimension_numbers = #tpu.dot_dimension_numbers<[1], [0], [0], [1], [0, 0, 1, 1], [], []>} : vector<64x768xbf16>, vector<768x128xbf16>, vector<64x128xf32> -> vector<64x128xf32>
    %c0_77 = arith.constant 0 : index
    %c0_78 = arith.constant 0 : index
    %204 = vector.load %arg6[%c0_77, %c0_78] : memref<1x128xf32, #tpu.memory_space<vmem>>, vector<1x128xf32>
    %205 = vector.broadcast %204 : vector<1x128xf32> to vector<64x128xf32>
    %206 = arith.addf %203, %205 : vector<64x128xf32>
    %c0_79 = arith.constant 0 : index
    %c0_80 = arith.constant 0 : index
    %207 = vector.load %arg7[%c0_79, %c0_80] : memref<768x256xbf16, #tpu.memory_space<vmem>>, vector<768x256xbf16>
    %cst_81 = arith.constant dense<0.000000e+00> : vector<64x256xf32>
    %208 = tpu.matmul %201, %207, %cst_81 {dimension_numbers = #tpu.dot_dimension_numbers<[1], [0], [0], [1], [0, 0, 1, 1], [], []>} : vector<64x768xbf16>, vector<768x256xbf16>, vector<64x256xf32> -> vector<64x256xf32>
    %c0_82 = arith.constant 0 : index
    %c0_83 = arith.constant 0 : index
    %209 = vector.load %arg8[%c0_82, %c0_83] : memref<1x256xf32, #tpu.memory_space<vmem>>, vector<1x256xf32>
    %210 = vector.broadcast %209 : vector<1x256xf32> to vector<64x256xf32>
    %211 = arith.addf %208, %210 : vector<64x256xf32>
    %212 = vector.extract_strided_slice %206 {offsets = [0, 0], sizes = [64, 64], strides = [1, 1]} : vector<64x128xf32> to vector<64x64xf32>
    %213 = arith.truncf %212 : vector<64x64xf32> to vector<64x64xbf16>
    %214 = vector.extract_strided_slice %211 {offsets = [0, 0], sizes = [64, 64], strides = [1, 1]} : vector<64x256xf32> to vector<64x64xf32>
    %215 = arith.truncf %214 : vector<64x64xf32> to vector<64x64xbf16>
    %216 = vector.extract_strided_slice %211 {offsets = [0, 128], sizes = [64, 64], strides = [1, 1]} : vector<64x256xf32> to vector<64x64xf32>
    %217 = arith.truncf %216 : vector<64x64xf32> to vector<64x64xbf16>
    %cst_84 = arith.constant dense<0.000000e+00> : vector<64x64xf32>
    %218 = tpu.matmul %213, %215, %cst_84 {dimension_numbers = #tpu.dot_dimension_numbers<[1], [1], [0], [0], [0, 0, 1, 0], [], []>} : vector<64x64xbf16>, vector<64x64xbf16>, vector<64x64xf32> -> vector<64x64xf32>
    %cst_85 = arith.constant 9.99999971E-10 : f32
    %219 = vector.shape_cast %18 : vector<1x64xi1> to vector<1x64xi1>
    %220 = vector.broadcast %219 : vector<1x64xi1> to vector<64x64xi1>
    %221 = vector.broadcast %cst_85 : f32 to vector<64x64xf32>
    %222 = arith.select %220, %221, %218 : vector<64x64xi1>, vector<64x64xf32>
    %223 = arith.addf %222, %15 : vector<64x64xf32>
    %cst_86 = arith.constant dense<0xFF800000> : vector<64xf32>
    %224 = vector.multi_reduction <maximumf>, %223, %cst_86 [1] : vector<64x64xf32> to vector<64xf32>
    %225 = vector.shape_cast %224 : vector<64xf32> to vector<64x1xf32>
    %226 = vector.broadcast %225 : vector<64x1xf32> to vector<64x64xf32>
    %227 = arith.subf %223, %226 : vector<64x64xf32>
    %228 = math.exp %227 : vector<64x64xf32>
    %cst_87 = arith.constant dense<0.000000e+00> : vector<64xf32>
    %229 = vector.multi_reduction <add>, %228, %cst_87 [1] : vector<64x64xf32> to vector<64xf32>
    %230 = vector.shape_cast %229 : vector<64xf32> to vector<64x1xf32>
    %231 = tpu.reciprocal %230 {approx = true} : vector<64x1xf32> -> vector<64x1xf32>
    %232 = vector.broadcast %231 : vector<64x1xf32> to vector<64x64xf32>
    %233 = arith.mulf %228, %232 : vector<64x64xf32>
    %234 = arith.truncf %233 : vector<64x64xf32> to vector<64x64xbf16>
    %cst_88 = arith.constant dense<0.000000e+00> : vector<64x64xf32>
    %235 = tpu.matmul %234, %217, %cst_88 {dimension_numbers = #tpu.dot_dimension_numbers<[1], [0], [0], [1], [0, 0, 1, 1], [], []>} : vector<64x64xbf16>, vector<64x64xbf16>, vector<64x64xf32> -> vector<64x64xf32>
    %236 = vector.extract_strided_slice %206 {offsets = [0, 64], sizes = [64, 64], strides = [1, 1]} : vector<64x128xf32> to vector<64x64xf32>
    %237 = arith.truncf %236 : vector<64x64xf32> to vector<64x64xbf16>
    %238 = vector.extract_strided_slice %211 {offsets = [0, 64], sizes = [64, 64], strides = [1, 1]} : vector<64x256xf32> to vector<64x64xf32>
    %239 = arith.truncf %238 : vector<64x64xf32> to vector<64x64xbf16>
    %240 = vector.extract_strided_slice %211 {offsets = [0, 192], sizes = [64, 64], strides = [1, 1]} : vector<64x256xf32> to vector<64x64xf32>
    %241 = arith.truncf %240 : vector<64x64xf32> to vector<64x64xbf16>
    %cst_89 = arith.constant dense<0.000000e+00> : vector<64x64xf32>
    %242 = tpu.matmul %237, %239, %cst_89 {dimension_numbers = #tpu.dot_dimension_numbers<[1], [1], [0], [0], [0, 0, 1, 0], [], []>} : vector<64x64xbf16>, vector<64x64xbf16>, vector<64x64xf32> -> vector<64x64xf32>
    %cst_90 = arith.constant 9.99999971E-10 : f32
    %243 = vector.shape_cast %18 : vector<1x64xi1> to vector<1x64xi1>
    %244 = vector.broadcast %243 : vector<1x64xi1> to vector<64x64xi1>
    %245 = vector.broadcast %cst_90 : f32 to vector<64x64xf32>
    %246 = arith.select %244, %245, %242 : vector<64x64xi1>, vector<64x64xf32>
    %247 = arith.addf %246, %15 : vector<64x64xf32>
    %cst_91 = arith.constant dense<0xFF800000> : vector<64xf32>
    %248 = vector.multi_reduction <maximumf>, %247, %cst_91 [1] : vector<64x64xf32> to vector<64xf32>
    %249 = vector.shape_cast %248 : vector<64xf32> to vector<64x1xf32>
    %250 = vector.broadcast %249 : vector<64x1xf32> to vector<64x64xf32>
    %251 = arith.subf %247, %250 : vector<64x64xf32>
    %252 = math.exp %251 : vector<64x64xf32>
    %cst_92 = arith.constant dense<0.000000e+00> : vector<64xf32>
    %253 = vector.multi_reduction <add>, %252, %cst_92 [1] : vector<64x64xf32> to vector<64xf32>
    %254 = vector.shape_cast %253 : vector<64xf32> to vector<64x1xf32>
    %255 = tpu.reciprocal %254 {approx = true} : vector<64x1xf32> -> vector<64x1xf32>
    %256 = vector.broadcast %255 : vector<64x1xf32> to vector<64x64xf32>
    %257 = arith.mulf %252, %256 : vector<64x64xf32>
    %258 = arith.truncf %257 : vector<64x64xf32> to vector<64x64xbf16>
    %cst_93 = arith.constant dense<0.000000e+00> : vector<64x64xf32>
    %259 = tpu.matmul %258, %241, %cst_93 {dimension_numbers = #tpu.dot_dimension_numbers<[1], [0], [0], [1], [0, 0, 1, 1], [], []>} : vector<64x64xbf16>, vector<64x64xbf16>, vector<64x64xf32> -> vector<64x64xf32>
    %260 = tpu.concatenate %235, %259 in 1 : vector<64x64xf32>, vector<64x64xf32> -> vector<64x128xf32>
    %261 = arith.truncf %260 : vector<64x128xf32> to vector<64x128xbf16>
    %c0_94 = arith.constant 0 : index
    %c0_95 = arith.constant 0 : index
    %262 = vector.load %arg9[%c0_94, %c0_95] : memref<128x768xbf16, #tpu.memory_space<vmem>>, vector<128x768xbf16>
    %cst_96 = arith.constant dense<0.000000e+00> : vector<64x768xf32>
    %263 = tpu.matmul %261, %262, %cst_96 {dimension_numbers = #tpu.dot_dimension_numbers<[1], [0], [0], [1], [0, 0, 1, 1], [], []>} : vector<64x128xbf16>, vector<128x768xbf16>, vector<64x768xf32> -> vector<64x768xf32>
    %c0_97 = arith.constant 0 : index
    %c0_98 = arith.constant 0 : index
    %264 = vector.load %arg10[%c0_97, %c0_98] : memref<1x768xf32, #tpu.memory_space<vmem>>, vector<1x768xf32>
    %265 = vector.broadcast %264 : vector<1x768xf32> to vector<64x768xf32>
    %266 = arith.addf %263, %265 : vector<64x768xf32>
    %267 = arith.addf %266, %109 : vector<64x768xf32>
    %cst_99 = arith.constant dense<0.000000e+00> : vector<64xf32>
    %268 = vector.multi_reduction <add>, %267, %cst_99 [1] : vector<64x768xf32> to vector<64xf32>
    %269 = vector.shape_cast %268 : vector<64xf32> to vector<64x1xf32>
    %cst_100 = arith.constant 7.680000e+02 : f32
    %270 = vector.broadcast %cst_100 : f32 to vector<64x1xf32>
    %271 = arith.divf %269, %270 : vector<64x1xf32>
    %272 = vector.broadcast %271 : vector<64x1xf32> to vector<64x768xf32>
    %273 = arith.subf %267, %272 : vector<64x768xf32>
    %274 = arith.mulf %273, %273 : vector<64x768xf32>
    %cst_101 = arith.constant dense<0.000000e+00> : vector<64xf32>
    %275 = vector.multi_reduction <add>, %274, %cst_101 [1] : vector<64x768xf32> to vector<64xf32>
    %276 = vector.shape_cast %275 : vector<64xf32> to vector<64x1xf32>
    %cst_102 = arith.constant 7.680000e+02 : f32
    %277 = vector.broadcast %cst_102 : f32 to vector<64x1xf32>
    %278 = arith.divf %276, %277 : vector<64x1xf32>
    %279 = vector.broadcast %271 : vector<64x1xf32> to vector<64x768xf32>
    %280 = arith.subf %267, %279 : vector<64x768xf32>
    %cst_103 = arith.constant 9.99999974E-6 : f32
    %281 = vector.broadcast %cst_103 : f32 to vector<64x1xf32>
    %282 = arith.addf %278, %281 : vector<64x1xf32>
    %283 = math.rsqrt %282 : vector<64x1xf32>
    %284 = vector.broadcast %283 : vector<64x1xf32> to vector<64x768xf32>
    %285 = arith.mulf %280, %284 : vector<64x768xf32>
    %286 = arith.truncf %285 : vector<64x768xf32> to vector<64x768xbf16>
    %c0_104 = arith.constant 0 : index
    %c0_105 = arith.constant 0 : index
    %287 = vector.load %arg21[%c0_104, %c0_105] : memref<768x128xbf16, #tpu.memory_space<vmem>>, vector<768x128xbf16>
    %cst_106 = arith.constant dense<0.000000e+00> : vector<64x128xf32>
    %288 = tpu.matmul %201, %287, %cst_106 {dimension_numbers = #tpu.dot_dimension_numbers<[1], [0], [0], [1], [0, 0, 1, 1], [], []>} : vector<64x768xbf16>, vector<768x128xbf16>, vector<64x128xf32> -> vector<64x128xf32>
    %c0_107 = arith.constant 0 : index
    %c0_108 = arith.constant 0 : index
    %289 = vector.load %arg14[%c0_107, %c0_108] : memref<1x128xf32, #tpu.memory_space<vmem>>, vector<1x128xf32>
    %290 = vector.broadcast %289 : vector<1x128xf32> to vector<64x128xf32>
    %291 = arith.addf %288, %290 : vector<64x128xf32>
    %c0_109 = arith.constant 0 : index
    %c0_110 = arith.constant 0 : index
    %292 = vector.load %arg22[%c0_109, %c0_110] : memref<768x256xbf16, #tpu.memory_space<vmem>>, vector<768x256xbf16>
    %cst_111 = arith.constant dense<0.000000e+00> : vector<64x256xf32>
    %293 = tpu.matmul %286, %292, %cst_111 {dimension_numbers = #tpu.dot_dimension_numbers<[1], [0], [0], [1], [0, 0, 1, 1], [], []>} : vector<64x768xbf16>, vector<768x256xbf16>, vector<64x256xf32> -> vector<64x256xf32>
    %c0_112 = arith.constant 0 : index
    %c0_113 = arith.constant 0 : index
    %294 = vector.load %arg15[%c0_112, %c0_113] : memref<1x256xf32, #tpu.memory_space<vmem>>, vector<1x256xf32>
    %295 = vector.broadcast %294 : vector<1x256xf32> to vector<64x256xf32>
    %296 = arith.addf %293, %295 : vector<64x256xf32>
    %297 = vector.extract_strided_slice %291 {offsets = [0, 0], sizes = [64, 64], strides = [1, 1]} : vector<64x128xf32> to vector<64x64xf32>
    %298 = arith.truncf %297 : vector<64x64xf32> to vector<64x64xbf16>
    %299 = vector.extract_strided_slice %296 {offsets = [0, 0], sizes = [64, 64], strides = [1, 1]} : vector<64x256xf32> to vector<64x64xf32>
    %300 = arith.truncf %299 : vector<64x64xf32> to vector<64x64xbf16>
    %301 = vector.extract_strided_slice %296 {offsets = [0, 128], sizes = [64, 64], strides = [1, 1]} : vector<64x256xf32> to vector<64x64xf32>
    %302 = arith.truncf %301 : vector<64x64xf32> to vector<64x64xbf16>
    %cst_114 = arith.constant dense<0.000000e+00> : vector<64x64xf32>
    %303 = tpu.matmul %298, %300, %cst_114 {dimension_numbers = #tpu.dot_dimension_numbers<[1], [1], [0], [0], [0, 0, 1, 0], [], []>} : vector<64x64xbf16>, vector<64x64xbf16>, vector<64x64xf32> -> vector<64x64xf32>
    %cst_115 = arith.constant 9.99999971E-10 : f32
    %304 = vector.shape_cast %21 : vector<1x64xi1> to vector<1x64xi1>
    %305 = vector.broadcast %304 : vector<1x64xi1> to vector<64x64xi1>
    %306 = vector.broadcast %cst_115 : f32 to vector<64x64xf32>
    %307 = arith.select %305, %306, %303 : vector<64x64xi1>, vector<64x64xf32>
    %308 = arith.addf %307, %15 : vector<64x64xf32>
    %cst_116 = arith.constant dense<0xFF800000> : vector<64xf32>
    %309 = vector.multi_reduction <maximumf>, %308, %cst_116 [1] : vector<64x64xf32> to vector<64xf32>
    %310 = vector.shape_cast %309 : vector<64xf32> to vector<64x1xf32>
    %311 = vector.broadcast %310 : vector<64x1xf32> to vector<64x64xf32>
    %312 = arith.subf %308, %311 : vector<64x64xf32>
    %313 = math.exp %312 : vector<64x64xf32>
    %cst_117 = arith.constant dense<0.000000e+00> : vector<64xf32>
    %314 = vector.multi_reduction <add>, %313, %cst_117 [1] : vector<64x64xf32> to vector<64xf32>
    %315 = vector.shape_cast %314 : vector<64xf32> to vector<64x1xf32>
    %316 = tpu.reciprocal %315 {approx = true} : vector<64x1xf32> -> vector<64x1xf32>
    %317 = vector.broadcast %316 : vector<64x1xf32> to vector<64x64xf32>
    %318 = arith.mulf %313, %317 : vector<64x64xf32>
    %319 = arith.truncf %318 : vector<64x64xf32> to vector<64x64xbf16>
    %cst_118 = arith.constant dense<0.000000e+00> : vector<64x64xf32>
    %320 = tpu.matmul %319, %302, %cst_118 {dimension_numbers = #tpu.dot_dimension_numbers<[1], [0], [0], [1], [0, 0, 1, 1], [], []>} : vector<64x64xbf16>, vector<64x64xbf16>, vector<64x64xf32> -> vector<64x64xf32>
    %321 = vector.extract_strided_slice %291 {offsets = [0, 64], sizes = [64, 64], strides = [1, 1]} : vector<64x128xf32> to vector<64x64xf32>
    %322 = arith.truncf %321 : vector<64x64xf32> to vector<64x64xbf16>
    %323 = vector.extract_strided_slice %296 {offsets = [0, 64], sizes = [64, 64], strides = [1, 1]} : vector<64x256xf32> to vector<64x64xf32>
    %324 = arith.truncf %323 : vector<64x64xf32> to vector<64x64xbf16>
    %325 = vector.extract_strided_slice %296 {offsets = [0, 192], sizes = [64, 64], strides = [1, 1]} : vector<64x256xf32> to vector<64x64xf32>
    %326 = arith.truncf %325 : vector<64x64xf32> to vector<64x64xbf16>
    %cst_119 = arith.constant dense<0.000000e+00> : vector<64x64xf32>
    %327 = tpu.matmul %322, %324, %cst_119 {dimension_numbers = #tpu.dot_dimension_numbers<[1], [1], [0], [0], [0, 0, 1, 0], [], []>} : vector<64x64xbf16>, vector<64x64xbf16>, vector<64x64xf32> -> vector<64x64xf32>
    %cst_120 = arith.constant 9.99999971E-10 : f32
    %328 = vector.shape_cast %21 : vector<1x64xi1> to vector<1x64xi1>
    %329 = vector.broadcast %328 : vector<1x64xi1> to vector<64x64xi1>
    %330 = vector.broadcast %cst_120 : f32 to vector<64x64xf32>
    %331 = arith.select %329, %330, %327 : vector<64x64xi1>, vector<64x64xf32>
    %332 = arith.addf %331, %15 : vector<64x64xf32>
    %cst_121 = arith.constant dense<0xFF800000> : vector<64xf32>
    %333 = vector.multi_reduction <maximumf>, %332, %cst_121 [1] : vector<64x64xf32> to vector<64xf32>
    %334 = vector.shape_cast %333 : vector<64xf32> to vector<64x1xf32>
    %335 = vector.broadcast %334 : vector<64x1xf32> to vector<64x64xf32>
    %336 = arith.subf %332, %335 : vector<64x64xf32>
    %337 = math.exp %336 : vector<64x64xf32>
    %cst_122 = arith.constant dense<0.000000e+00> : vector<64xf32>
    %338 = vector.multi_reduction <add>, %337, %cst_122 [1] : vector<64x64xf32> to vector<64xf32>
    %339 = vector.shape_cast %338 : vector<64xf32> to vector<64x1xf32>
    %340 = tpu.reciprocal %339 {approx = true} : vector<64x1xf32> -> vector<64x1xf32>
    %341 = vector.broadcast %340 : vector<64x1xf32> to vector<64x64xf32>
    %342 = arith.mulf %337, %341 : vector<64x64xf32>
    %343 = arith.truncf %342 : vector<64x64xf32> to vector<64x64xbf16>
    %cst_123 = arith.constant dense<0.000000e+00> : vector<64x64xf32>
    %344 = tpu.matmul %343, %326, %cst_123 {dimension_numbers = #tpu.dot_dimension_numbers<[1], [0], [0], [1], [0, 0, 1, 1], [], []>} : vector<64x64xbf16>, vector<64x64xbf16>, vector<64x64xf32> -> vector<64x64xf32>
    %345 = tpu.concatenate %320, %344 in 1 : vector<64x64xf32>, vector<64x64xf32> -> vector<64x128xf32>
    %346 = arith.truncf %345 : vector<64x128xf32> to vector<64x128xbf16>
    %c0_124 = arith.constant 0 : index
    %c0_125 = arith.constant 0 : index
    %347 = vector.load %arg23[%c0_124, %c0_125] : memref<128x768xbf16, #tpu.memory_space<vmem>>, vector<128x768xbf16>
    %cst_126 = arith.constant dense<0.000000e+00> : vector<64x768xf32>
    %348 = tpu.matmul %346, %347, %cst_126 {dimension_numbers = #tpu.dot_dimension_numbers<[1], [0], [0], [1], [0, 0, 1, 1], [], []>} : vector<64x128xbf16>, vector<128x768xbf16>, vector<64x768xf32> -> vector<64x768xf32>
    %c0_127 = arith.constant 0 : index
    %c0_128 = arith.constant 0 : index
    %349 = vector.load %arg16[%c0_127, %c0_128] : memref<1x768xf32, #tpu.memory_space<vmem>>, vector<1x768xf32>
    %350 = vector.broadcast %349 : vector<1x768xf32> to vector<64x768xf32>
    %351 = arith.addf %348, %350 : vector<64x768xf32>
    %352 = arith.addf %351, %199 : vector<64x768xf32>
    %cst_129 = arith.constant dense<0.000000e+00> : vector<64xf32>
    %353 = vector.multi_reduction <add>, %352, %cst_129 [1] : vector<64x768xf32> to vector<64xf32>
    %354 = vector.shape_cast %353 : vector<64xf32> to vector<64x1xf32>
    %cst_130 = arith.constant 7.680000e+02 : f32
    %355 = vector.broadcast %cst_130 : f32 to vector<64x1xf32>
    %356 = arith.divf %354, %355 : vector<64x1xf32>
    %357 = vector.broadcast %356 : vector<64x1xf32> to vector<64x768xf32>
    %358 = arith.subf %352, %357 : vector<64x768xf32>
    %359 = arith.mulf %358, %358 : vector<64x768xf32>
    %cst_131 = arith.constant dense<0.000000e+00> : vector<64xf32>
    %360 = vector.multi_reduction <add>, %359, %cst_131 [1] : vector<64x768xf32> to vector<64xf32>
    %361 = vector.shape_cast %360 : vector<64xf32> to vector<64x1xf32>
    %cst_132 = arith.constant 7.680000e+02 : f32
    %362 = vector.broadcast %cst_132 : f32 to vector<64x1xf32>
    %363 = arith.divf %361, %362 : vector<64x1xf32>
    %364 = vector.broadcast %356 : vector<64x1xf32> to vector<64x768xf32>
    %365 = arith.subf %352, %364 : vector<64x768xf32>
    %cst_133 = arith.constant 9.99999974E-6 : f32
    %366 = vector.broadcast %cst_133 : f32 to vector<64x1xf32>
    %367 = arith.addf %363, %366 : vector<64x1xf32>
    %368 = math.rsqrt %367 : vector<64x1xf32>
    %369 = vector.broadcast %368 : vector<64x1xf32> to vector<64x768xf32>
    %370 = arith.mulf %365, %369 : vector<64x768xf32>
    %371 = tpu.iota {dimensions = array<i32: 0>} : vector<8x64xi32>
    %372 = tpu.iota {dimensions = array<i32: 1>} : vector<8x64xi32>
    %c3_i32_134 = arith.constant 3 : i32
    %373 = vector.broadcast %c3_i32_134 : i32 to vector<8x64xi32>
    %374 = arith.shrsi %372, %373 : vector<8x64xi32>
    %375 = arith.cmpi eq, %371, %374 : vector<8x64xi32>
    %cst_135 = arith.constant 1.250000e-01 : f32
    %cst_136 = arith.constant 0.000000e+00 : f32
    %376 = vector.broadcast %cst_135 : f32 to vector<8x64xf32>
    %377 = vector.broadcast %cst_136 : f32 to vector<8x64xf32>
    %378 = arith.select %375, %376, %377 : vector<8x64xi1>, vector<8x64xf32>
    %379 = arith.truncf %378 : vector<8x64xf32> to vector<8x64xbf16>
    %cst_137 = arith.constant dense<0.000000e+00> : vector<8x768xf32>
    %380 = tpu.matmul %379, %286, %cst_137 {dimension_numbers = #tpu.dot_dimension_numbers<[1], [0], [0], [1], [0, 0, 1, 1], [], []>} : vector<8x64xbf16>, vector<64x768xbf16>, vector<8x768xf32> -> vector<8x768xf32>
    %381 = arith.truncf %370 : vector<64x768xf32> to vector<64x768xbf16>
    %cst_138 = arith.constant dense<0.000000e+00> : vector<8x768xf32>
    %382 = tpu.matmul %379, %381, %cst_138 {dimension_numbers = #tpu.dot_dimension_numbers<[1], [0], [0], [1], [0, 0, 1, 1], [], []>} : vector<8x64xbf16>, vector<64x768xbf16>, vector<8x768xf32> -> vector<8x768xf32>
    %c0_139 = arith.constant 0 : index
    %c0_140 = arith.constant 0 : index
    %383 = vector.load %arg17[%c0_139, %c0_140] : memref<1x768xf32, #tpu.memory_space<vmem>>, vector<1x768xf32>
    %384 = vector.broadcast %383 : vector<1x768xf32> to vector<8x768xf32>
    %385 = arith.mulf %380, %384 : vector<8x768xf32>
    %cst_141 = arith.constant dense<0.000000e+00> : vector<8xf32>
    %386 = vector.multi_reduction <add>, %385, %cst_141 [1] : vector<8x768xf32> to vector<8xf32>
    %387 = vector.shape_cast %386 : vector<8xf32> to vector<8x1xf32>
    %c0_142 = arith.constant 0 : index
    %c0_143 = arith.constant 0 : index
    %388 = vector.load %arg18[%c0_142, %c0_143] : memref<1x768xf32, #tpu.memory_space<vmem>>, vector<1x768xf32>
    %389 = vector.broadcast %388 : vector<1x768xf32> to vector<8x768xf32>
    %390 = arith.mulf %382, %389 : vector<8x768xf32>
    %cst_144 = arith.constant dense<0.000000e+00> : vector<8xf32>
    %391 = vector.multi_reduction <add>, %390, %cst_144 [1] : vector<8x768xf32> to vector<8xf32>
    %392 = vector.shape_cast %391 : vector<8xf32> to vector<8x1xf32>
    %393 = arith.addf %387, %392 : vector<8x1xf32>
    %c0_145 = arith.constant 0 : index
    %c0_146 = arith.constant 0 : index
    %394 = vector.load %arg19[%c0_145, %c0_146] : memref<1x1xf32, #tpu.memory_space<vmem>>, vector<1x1xf32>
    %395 = vector.broadcast %394 : vector<1x1xf32> to vector<8x1xf32>
    %396 = arith.addf %393, %395 : vector<8x1xf32>
    %cst_147 = arith.constant dense<0xFF800000> : vector<1xf32>
    %397 = vector.multi_reduction <maximumf>, %396, %cst_147 [0] : vector<8x1xf32> to vector<1xf32>
    %398 = vector.shape_cast %397 : vector<1xf32> to vector<1x1xf32>
    %399 = vector.broadcast %398 : vector<1x1xf32> to vector<8x1xf32>
    %400 = arith.subf %396, %399 : vector<8x1xf32>
    %401 = math.exp %400 : vector<8x1xf32>
    %402 = tpu.iota {dimensions = array<i32: 0>} : vector<8x8xi32>
    %c2_i32_148 = arith.constant 2 : i32
    %403 = vector.broadcast %c2_i32_148 : i32 to vector<8x8xi32>
    %404 = arith.shrsi %402, %403 : vector<8x8xi32>
    %405 = tpu.iota {dimensions = array<i32: 1>} : vector<8x8xi32>
    %c2_i32_149 = arith.constant 2 : i32
    %406 = vector.broadcast %c2_i32_149 : i32 to vector<8x8xi32>
    %407 = arith.shrsi %405, %406 : vector<8x8xi32>
    %408 = arith.cmpi eq, %404, %407 : vector<8x8xi32>
    %cst_150 = arith.constant 1.000000e+00 : f32
    %cst_151 = arith.constant 0.000000e+00 : f32
    %409 = vector.broadcast %cst_150 : f32 to vector<8x8xf32>
    %410 = vector.broadcast %cst_151 : f32 to vector<8x8xf32>
    %411 = arith.select %408, %409, %410 : vector<8x8xi1>, vector<8x8xf32>
    %cst_152 = arith.constant dense<0.000000e+00> : vector<8x1xf32>
    %412 = tpu.matmul %411, %401, %cst_152 {dimension_numbers = #tpu.dot_dimension_numbers<[1], [0], [0], [1], [0, 0, 1, 1], [], []>} : vector<8x8xf32>, vector<8x1xf32>, vector<8x1xf32> -> vector<8x1xf32>
    %413 = arith.divf %401, %412 : vector<8x1xf32>
    %c0_153 = arith.constant 0 : index
    %c0_154 = arith.constant 0 : index
    %414 = vector.load %arg20[%c0_153, %c0_154] : memref<8x1xf32, #tpu.memory_space<vmem>>, vector<8x1xf32>
    tpu.vector_store %arg20[%c0_153, %c0_154], %413 {strides = array<i32>} : memref<8x1xf32, #tpu.memory_space<vmem>>, vector<8x1xf32>,
    return
  }
  func.func @transform_0(%arg0: i32) -> (i32, i32) {
    %c0_i32 = arith.constant 0 : i32
    %c0_i32_0 = arith.constant 0 : i32
    %c0_i32_1 = arith.constant 0 : i32
    return %c0_i32, %c0_i32_0 : i32, i32
  }
  func.func @transform_1(%arg0: i32) -> (i32, i32) {
    %c0_i32 = arith.constant 0 : i32
    %c0_i32_0 = arith.constant 0 : i32
    %c0_i32_1 = arith.constant 0 : i32
    return %c0_i32, %c0_i32_0 : i32, i32
  }
  func.func @transform_2(%arg0: i32) -> (i32, i32) {
    %c0_i32 = arith.constant 0 : i32
    %c0_i32_0 = arith.constant 0 : i32
    %c0_i32_1 = arith.constant 0 : i32
    return %c0_i32, %c0_i32_0 : i32, i32
  }
  func.func @transform_3(%arg0: i32) -> (i32, i32) {
    %c0_i32 = arith.constant 0 : i32
    %c0_i32_0 = arith.constant 0 : i32
    %c0_i32_1 = arith.constant 0 : i32
    return %c0_i32, %c0_i32_0 : i32, i32
  }
  func.func @transform_4(%arg0: i32) -> (i32, i32) {
    %c0_i32 = arith.constant 0 : i32
    %c0_i32_0 = arith.constant 0 : i32
    %c0_i32_1 = arith.constant 0 : i32
    return %c0_i32, %c0_i32_0 : i32, i32
  }
  func.func @transform_5(%arg0: i32) -> (i32, i32) {
    %c0_i32 = arith.constant 0 : i32
    %c0_i32_0 = arith.constant 0 : i32
    %c0_i32_1 = arith.constant 0 : i32
    return %c0_i32, %c0_i32_0 : i32, i32
  }
  func.func @transform_6(%arg0: i32) -> (i32, i32) {
    %c0_i32 = arith.constant 0 : i32
    %c0_i32_0 = arith.constant 0 : i32
    %c0_i32_1 = arith.constant 0 : i32
    return %c0_i32, %c0_i32_0 : i32, i32
  }
  func.func @transform_7(%arg0: i32) -> (i32, i32) {
    %c0_i32 = arith.constant 0 : i32
    %c0_i32_0 = arith.constant 0 : i32
    %c0_i32_1 = arith.constant 0 : i32
    return %c0_i32, %c0_i32_0 : i32, i32
  }
  func.func @transform_8(%arg0: i32) -> (i32, i32) {
    %c0_i32 = arith.constant 0 : i32
    %c0_i32_0 = arith.constant 0 : i32
    %c0_i32_1 = arith.constant 0 : i32
    return %c0_i32, %c0_i32_0 : i32, i32
  }
  func.func @transform_9(%arg0: i32) -> (i32, i32) {
    %c0_i32 = arith.constant 0 : i32
    %c0_i32_0 = arith.constant 0 : i32
    %c0_i32_1 = arith.constant 0 : i32
    return %c0_i32, %c0_i32_0 : i32, i32
  }
  func.func @transform_13(%arg0: i32) -> (i32, i32) {
    %c0_i32 = arith.constant 0 : i32
    %c0_i32_0 = arith.constant 0 : i32
    %c0_i32_1 = arith.constant 0 : i32
    return %c0_i32, %c0_i32_0 : i32, i32
  }
  func.func @transform_14(%arg0: i32) -> (i32, i32) {
    %c0_i32 = arith.constant 0 : i32
    %c0_i32_0 = arith.constant 0 : i32
    %c0_i32_1 = arith.constant 0 : i32
    return %c0_i32, %c0_i32_0 : i32, i32
  }
  func.func @transform_15(%arg0: i32) -> (i32, i32) {
    %c0_i32 = arith.constant 0 : i32
    %c0_i32_0 = arith.constant 0 : i32
    %c0_i32_1 = arith.constant 0 : i32
    return %c0_i32, %c0_i32_0 : i32, i32
  }
  func.func @transform_16(%arg0: i32) -> (i32, i32) {
    %c0_i32 = arith.constant 0 : i32
    %c0_i32_0 = arith.constant 0 : i32
    %c0_i32_1 = arith.constant 0 : i32
    return %c0_i32, %c0_i32_0 : i32, i32
  }
  func.func @transform_17(%arg0: i32) -> (i32, i32) {
    %c0_i32 = arith.constant 0 : i32
    %c0_i32_0 = arith.constant 0 : i32
    %c0_i32_1 = arith.constant 0 : i32
    return %c0_i32, %c0_i32_0 : i32, i32
  }
  func.func @transform_18(%arg0: i32) -> (i32, i32) {
    %c0_i32 = arith.constant 0 : i32
    %c0_i32_0 = arith.constant 0 : i32
    %c0_i32_1 = arith.constant 0 : i32
    return %c0_i32, %c0_i32_0 : i32, i32
  }
  func.func @transform_19(%arg0: i32) -> (i32, i32) {
    %c0_i32 = arith.constant 0 : i32
    %c0_i32_0 = arith.constant 0 : i32
    %c0_i32_1 = arith.constant 0 : i32
    return %c0_i32, %c0_i32_0 : i32, i32
  }
}

</mosaic_0001>

<llo_original>
// kernel: duma_forward.1
$region0: #{duma_forward.1}
  #allocation0 [shape = 'u32[]', space=smem, size = 0x4, offset = 0x4, fixed_abs, tag = 'smem constant byte address 0x4 - core index']
  #allocation1 [shape = 'u32[144,128]{1,0:T(1,128)}', space=vmem, size = 0x12000, scoped, tag = 'internal scratch']
  #allocation2 [shape = 'bf16[768,128]{1,0:T(16,128)(2,1)}', space=vmem, size = 0x30000, scoped, tag = 'scratch operand']
  #allocation3 [shape = 'bf16[768,256]{1,0:T(16,128)(2,1)}', space=vmem, size = 0x60000, scoped, tag = 'scratch operand']
  #allocation4 [shape = 'bf16[128,768]{1,0:T(16,128)(2,1)}', space=vmem, size = 0x30000, scoped, tag = 'scratch operand']
  #allocation5 [shape = 's32[3]{0}', space=sflag, size = 0xc, scoped, tag = 'scratch operand']
  #allocation6 [shape = 'f32[1,1]{1,0:T(1,128)S(1)}', space=vmem, size = 0x200, scoped, tag = 'scoped memory for duma_forward.1']
  #allocation7 [shape = 's32[]', space=sflag, size = 0x4, offset = 0, fixed_abs, tag = 'sflag constant byte address 0x0 - dummy sync flag']
  #allocation8 [shape = 's32[]', space=sflag, size = 0x4, offset = 0, fixed_abs, tag = 'sflag constant byte address 0x0 - dummy sync flag']
  #allocation9 [shape = 's32[]', space=sflag, size = 0x4, offset = 0, fixed_abs, tag = 'sflag constant byte address 0x0 - dummy sync flag']
  %s0 = inlined_call_operand.vmem [shape: bf16[64,768], index: 0, kind: input, shape index: {}]
  %s1 = inlined_call_operand.vmem [shape: bf16[64,768], index: 1, kind: input, shape index: {}]
  %s2 = inlined_call_operand.vmem [shape: f32[1,64], index: 2, kind: input, shape index: {}]
  %s3 = inlined_call_operand.vmem [shape: f32[1,64], index: 3, kind: input, shape index: {}]
  %s4 = inlined_call_operand.vmem [shape: bf16[768,128], index: 4, kind: input, shape index: {}]
  %s5 = inlined_call_operand.vmem [shape: f32[1,128], index: 5, kind: input, shape index: {}]
  %s6 = inlined_call_operand.vmem [shape: bf16[768,256], index: 6, kind: input, shape index: {}]
  %s7 = inlined_call_operand.vmem [shape: f32[1,256], index: 7, kind: input, shape index: {}]
  %s8 = inlined_call_operand.vmem [shape: bf16[128,768], index: 8, kind: input, shape index: {}]
  %s9 = inlined_call_operand.vmem [shape: f32[1,768], index: 9, kind: input, shape index: {}]
  %s10 = inlined_call_operand.vmem [shape: bf16[768,128], index: 10, kind: input, shape index: {}]
  %s11 = inlined_call_operand.vmem [shape: bf16[768,256], index: 11, kind: input, shape index: {}]
  %s12 = inlined_call_operand.vmem [shape: bf16[128,768], index: 12, kind: input, shape index: {}]
  %s13 = inlined_call_operand.vmem [shape: f32[1,128], index: 13, kind: input, shape index: {}]
  %s14 = inlined_call_operand.vmem [shape: f32[1,256], index: 14, kind: input, shape index: {}]
  %s15 = inlined_call_operand.vmem [shape: f32[1,768], index: 15, kind: input, shape index: {}]
  %s16 = inlined_call_operand.vmem [shape: f32[1,768], index: 16, kind: input, shape index: {}]
  %s17 = inlined_call_operand.vmem [shape: f32[1,768], index: 17, kind: input, shape index: {}]
  %s18 = inlined_call_operand.<no memory space> [shape: f32[1,1], index: 18, kind: input, shape index: {}]
  %s19 = inlined_call_operand.vmem [shape: f32[8,1], index: 19, kind: output, shape index: {}]
  %s20 = sld [smem:[#allocation0]]
  $region182: #{duma_forward.1} parent=0
    _
  %s22 = ssub.s32 1, %s20
  %s23 = scalar_select 0, %s22, %s20
  %v24 = vstv %s18
  %25 = vst [vmem:[#allocation6] sm:$0x1] %v24
  // Predicated region
  $region2: #{duma_forward.1} parent=0 // pred_check
    _
  $region3: #{duma_forward.1} parent=0 // pred_check_branch
    %27 = sbr.rel (0) target = $region5
  $region4: #{duma_forward.1} parent=0 // pred_region
    _
  $region5: #{duma_forward.1} parent=0 // pred_fallthru
    _
  // Predicated region
  $region6: #{duma_forward.1} parent=0 // pred_check
    _
  $region7: #{duma_forward.1} parent=0 // pred_check_branch
    %29 = sbr.rel (0) target = $region9
  $region8: #{duma_forward.1} parent=0 // pred_region
    _
  $region9: #{duma_forward.1} parent=0 // pred_fallthru
    _
  // Predicated region
  $region10: #{duma_forward.1} parent=0 // pred_check
    _
  $region11: #{duma_forward.1} parent=0 // pred_check_branch
    %31 = sbr.rel (0) target = $region13
  $region12: #{duma_forward.1} parent=0 // pred_region
    _
  $region13: #{duma_forward.1} parent=0 // pred_fallthru
    _
  // Predicated region
  $region14: #{duma_forward.1} parent=0 // pred_check
    _
  $region15: #{duma_forward.1} parent=0 // pred_check_branch
    %33 = sbr.rel (0) target = $region17
  $region16: #{duma_forward.1} parent=0 // pred_region
    _
  $region17: #{duma_forward.1} parent=0 // pred_fallthru
    _
  // Predicated region
  $region18: #{duma_forward.1} parent=0 // pred_check
    _
  $region19: #{duma_forward.1} parent=0 // pred_check_branch
    %35 = sbr.rel (0) target = $region21
  $region20: #{duma_forward.1} parent=0 // pred_region
    _
  $region21: #{duma_forward.1} parent=0 // pred_fallthru
    _
  // Predicated region
  $region22: #{duma_forward.1} parent=0 // pred_check
    _
  $region23: #{duma_forward.1} parent=0 // pred_check_branch
    %37 = sbr.rel (0) target = $region25
  $region24: #{duma_forward.1} parent=0 // pred_region
    _
  $region25: #{duma_forward.1} parent=0 // pred_fallthru
    _
  // Predicated region
  $region26: #{duma_forward.1} parent=0 // pred_check
    _
  $region27: #{duma_forward.1} parent=0 // pred_check_branch
    %39 = sbr.rel (0) target = $region29
  $region28: #{duma_forward.1} parent=0 // pred_region
    _
  $region29: #{duma_forward.1} parent=0 // pred_fallthru
    _
  // Predicated region
  $region30: #{duma_forward.1} parent=0 // pred_check
    _
  $region31: #{duma_forward.1} parent=0 // pred_check_branch
    %41 = sbr.rel (0) target = $region33
  $region32: #{duma_forward.1} parent=0 // pred_region
    _
  $region33: #{duma_forward.1} parent=0 // pred_fallthru
    _
  // Predicated region
  $region34: #{duma_forward.1} parent=0 // pred_check
    _
  $region35: #{duma_forward.1} parent=0 // pred_check_branch
    %43 = sbr.rel (0) target = $region37
  $region36: #{duma_forward.1} parent=0 // pred_region
    _
  $region37: #{duma_forward.1} parent=0 // pred_fallthru
    _
  // Predicated region
  $region38: #{duma_forward.1} parent=0 // pred_check
    _
  $region39: #{duma_forward.1} parent=0 // pred_check_branch
    %45 = sbr.rel (0) target = $region41
  $region40: #{duma_forward.1} parent=0 // pred_region
    _
  $region41: #{duma_forward.1} parent=0 // pred_fallthru
    _
  // Predicated region
  $region42: #{duma_forward.1} parent=0 // pred_check
    _
  $region43: #{duma_forward.1} parent=0 // pred_check_branch
    %47 = sbr.rel (0) target = $region45
  $region44: #{duma_forward.1} parent=0 // pred_region
    _
  $region45: #{duma_forward.1} parent=0 // pred_fallthru
    _
  // Predicated region
  $region46: #{duma_forward.1} parent=0 // pred_check
    _
  $region47: #{duma_forward.1} parent=0 // pred_check_branch
    %49 = sbr.rel (0) target = $region49
  $region48: #{duma_forward.1} parent=0 // pred_region
    _
  $region49: #{duma_forward.1} parent=0 // pred_fallthru
    _
  // Predicated region
  $region50: #{duma_forward.1} parent=0 // pred_check
    _
  $region51: #{duma_forward.1} parent=0 // pred_check_branch
    %51 = sbr.rel (0) target = $region53
  $region52: #{duma_forward.1} parent=0 // pred_region
    _
  $region53: #{duma_forward.1} parent=0 // pred_fallthru
    _
  // Predicated region
  $region54: #{duma_forward.1} parent=0 // pred_check
    _
  $region55: #{duma_forward.1} parent=0 // pred_check_branch
    %53 = sbr.rel (0) target = $region57
  $region56: #{duma_forward.1} parent=0 // pred_region
    _
  $region57: #{duma_forward.1} parent=0 // pred_fallthru
    _
  // Predicated region
  $region58: #{duma_forward.1} parent=0 // pred_check
    _
  $region59: #{duma_forward.1} parent=0 // pred_check_branch
    %55 = sbr.rel (0) target = $region61
  $region60: #{duma_forward.1} parent=0 // pred_region
    _
  $region61: #{duma_forward.1} parent=0 // pred_fallthru
    _
  // Predicated region
  $region62: #{duma_forward.1} parent=0 // pred_check
    _
  $region63: #{duma_forward.1} parent=0 // pred_check_branch
    %57 = sbr.rel (0) target = $region65
  $region64: #{duma_forward.1} parent=0 // pred_region
    _
  $region65: #{duma_forward.1} parent=0 // pred_fallthru
    _
  %p60 = scmp.lt.u32.totalorder 384, 8
  %p61 = pneg %p60
  // Predicated region
  $region66: #{duma_forward.1} parent=0 // pred_check
    _
  $region67: #{duma_forward.1} parent=0 // pred_check_branch
    %63 = sbr.rel (%p60) target = $region69
  $region68: #{duma_forward.1} parent=0 // pred_region
    %s78 = sand.u32 384, 7
    %p79 = scmp.eq.s32.totalorder %s78, 0
    // Predicated region
    $region81: #{duma_forward.1} parent=68 // pred_check
      %p80 = pneg %p79
    $region82: #{duma_forward.1} parent=68 // pred_check_branch
      %82 = sbr.rel (%p80) target = $region84
    $region83: #{duma_forward.1} parent=68 // pred_region
      loop: start=0, step=1, limit=1
      $region85: #{duma_forward.1} parent=83 // loop_pre_header
        _
      $region86: #{duma_forward.1} parent=83 // loop_header
        %s84 = sphi 0, %s88
        %p85 = scmp.ge.s32.totalorder %s84, 1
        %s89 = sphi %s10, %s10
        %s90 = sphi [#allocation2], [#allocation2]
      $region87: #{duma_forward.1} parent=83 // loop_header_branch
        %87 = sbr.rel (%p85) target = $region91
      $region88: #{duma_forward.1} parent=83 // loop_body
        %v91 = vld [vmem:[%s89] sm:$0xff]
        %92 = vst [vmem:[%s90] sm:$0xff] %v91
        %v93 = vld [vmem:[%s89 + $0x8] sm:$0xff]
        %94 = vst [vmem:[%s90 + $0x8] sm:$0xff] %v93
        %v95 = vld [vmem:[%s89 + $0x10] sm:$0xff]
        %96 = vst [vmem:[%s90 + $0x10] sm:$0xff] %v95
        %v97 = vld [vmem:[%s89 + $0x18] sm:$0xff]
        %98 = vst [vmem:[%s90 + $0x18] sm:$0xff] %v97
        %v99 = vld [vmem:[%s89 + $0x20] sm:$0xff]
        %100 = vst [vmem:[%s90 + $0x20] sm:$0xff] %v99
        %v101 = vld [vmem:[%s89 + $0x28] sm:$0xff]
        %102 = vst [vmem:[%s90 + $0x28] sm:$0xff] %v101
        %v103 = vld [vmem:[%s89 + $0x30] sm:$0xff]
        %104 = vst [vmem:[%s90 + $0x30] sm:$0xff] %v103
        %v105 = vld [vmem:[%s89 + $0x38] sm:$0xff]
        %106 = vst [vmem:[%s90 + $0x38] sm:$0xff] %v105
        %v107 = vld [vmem:[%s89 + $0x40] sm:$0xff]
        %108 = vst [vmem:[%s90 + $0x40] sm:$0xff] %v107
        %v109 = vld [vmem:[%s89 + $0x48] sm:$0xff]
        %110 = vst [vmem:[%s90 + $0x48] sm:$0xff] %v109
        %v111 = vld [vmem:[%s89 + $0x50] sm:$0xff]
        %112 = vst [vmem:[%s90 + $0x50] sm:$0xff] %v111
        %v113 = vld [vmem:[%s89 + $0x58] sm:$0xff]
        %114 = vst [vmem:[%s90 + $0x58] sm:$0xff] %v113
        %v115 = vld [vmem:[%s89 + $0x60] sm:$0xff]
        %116 = vst [vmem:[%s90 + $0x60] sm:$0xff] %v115
        %v117 = vld [vmem:[%s89 + $0x68] sm:$0xff]
        %118 = vst [vmem:[%s90 + $0x68] sm:$0xff] %v117
        %v119 = vld [vmem:[%s89 + $0x70] sm:$0xff]
        %120 = vst [vmem:[%s90 + $0x70] sm:$0xff] %v119
        %v121 = vld [vmem:[%s89 + $0x78] sm:$0xff]
        %122 = vst [vmem:[%s90 + $0x78] sm:$0xff] %v121
        %v123 = vld [vmem:[%s89 + $0x80] sm:$0xff]
        %124 = vst [vmem:[%s90 + $0x80] sm:$0xff] %v123
        %v125 = vld [vmem:[%s89 + $0x88] sm:$0xff]
        %126 = vst [vmem:[%s90 + $0x88] sm:$0xff] %v125
        %v127 = vld [vmem:[%s89 + $0x90] sm:$0xff]
        %128 = vst [vmem:[%s90 + $0x90] sm:$0xff] %v127
        %v129 = vld [vmem:[%s89 + $0x98] sm:$0xff]
        %130 = vst [vmem:[%s90 + $0x98] sm:$0xff] %v129
        %v131 = vld [vmem:[%s89 + $0xa0] sm:$0xff]
        %132 = vst [vmem:[%s90 + $0xa0] sm:$0xff] %v131
        %v133 = vld [vmem:[%s89 + $0xa8] sm:$0xff]
        %134 = vst [vmem:[%s90 + $0xa8] sm:$0xff] %v133
        %v135 = vld [vmem:[%s89 + $0xb0] sm:$0xff]
        %136 = vst [vmem:[%s90 + $0xb0] sm:$0xff] %v135
        %v137 = vld [vmem:[%s89 + $0xb8] sm:$0xff]
        %138 = vst [vmem:[%s90 + $0xb8] sm:$0xff] %v137
        %v139 = vld [vmem:[%s89 + $0xc0] sm:$0xff]
        %140 = vst [vmem:[%s90 + $0xc0] sm:$0xff] %v139
        %v141 = vld [vmem:[%s89 + $0xc8] sm:$0xff]
        %142 = vst [vmem:[%s90 + $0xc8] sm:$0xff] %v141
        %v143 = vld [vmem:[%s89 + $0xd0] sm:$0xff]
        %144 = vst [vmem:[%s90 + $0xd0] sm:$0xff] %v143
        %v145 = vld [vmem:[%s89 + $0xd8] sm:$0xff]
        %146 = vst [vmem:[%s90 + $0xd8] sm:$0xff] %v145
        %v147 = vld [vmem:[%s89 + $0xe0] sm:$0xff]
        %148 = vst [vmem:[%s90 + $0xe0] sm:$0xff] %v147
        %v149 = vld [vmem:[%s89 + $0xe8] sm:$0xff]
        %150 = vst [vmem:[%s90 + $0xe8] sm:$0xff] %v149
        %v151 = vld [vmem:[%s89 + $0xf0] sm:$0xff]
        %152 = vst [vmem:[%s90 + $0xf0] sm:$0xff] %v151
        %v153 = vld [vmem:[%s89 + $0xf8] sm:$0xff]
        %154 = vst [vmem:[%s90 + $0xf8] sm:$0xff] %v153
        %v155 = vld [vmem:[%s89 + $0x100] sm:$0xff]
        %156 = vst [vmem:[%s90 + $0x100] sm:$0xff] %v155
        %v157 = vld [vmem:[%s89 + $0x108] sm:$0xff]
        %158 = vst [vmem:[%s90 + $0x108] sm:$0xff] %v157
        %v159 = vld [vmem:[%s89 + $0x110] sm:$0xff]
        %160 = vst [vmem:[%s90 + $0x110] sm:$0xff] %v159
        %v161 = vld [vmem:[%s89 + $0x118] sm:$0xff]
        %162 = vst [vmem:[%s90 + $0x118] sm:$0xff] %v161
        %v163 = vld [vmem:[%s89 + $0x120] sm:$0xff]
        %164 = vst [vmem:[%s90 + $0x120] sm:$0xff] %v163
        %v165 = vld [vmem:[%s89 + $0x128] sm:$0xff]
        %166 = vst [vmem:[%s90 + $0x128] sm:$0xff] %v165
        %v167 = vld [vmem:[%s89 + $0x130] sm:$0xff]
        %168 = vst [vmem:[%s90 + $0x130] sm:$0xff] %v167
        %v169 = vld [vmem:[%s89 + $0x138] sm:$0xff]
        %170 = vst [vmem:[%s90 + $0x138] sm:$0xff] %v169
        %v171 = vld [vmem:[%s89 + $0x140] sm:$0xff]
        %172 = vst [vmem:[%s90 + $0x140] sm:$0xff] %v171
        %v173 = vld [vmem:[%s89 + $0x148] sm:$0xff]
        %174 = vst [vmem:[%s90 + $0x148] sm:$0xff] %v173
        %v175 = vld [vmem:[%s89 + $0x150] sm:$0xff]
        %176 = vst [vmem:[%s90 + $0x150] sm:$0xff] %v175
        %v177 = vld [vmem:[%s89 + $0x158] sm:$0xff]
        %178 = vst [vmem:[%s90 + $0x158] sm:$0xff] %v177
        %v179 = vld [vmem:[%s89 + $0x160] sm:$0xff]
        %180 = vst [vmem:[%s90 + $0x160] sm:$0xff] %v179
        %v181 = vld [vmem:[%s89 + $0x168] sm:$0xff]
        %182 = vst [vmem:[%s90 + $0x168] sm:$0xff] %v181
        %v183 = vld [vmem:[%s89 + $0x170] sm:$0xff]
        %184 = vst [vmem:[%s90 + $0x170] sm:$0xff] %v183
        %v185 = vld [vmem:[%s89 + $0x178] sm:$0xff]
        %186 = vst [vmem:[%s90 + $0x178] sm:$0xff] %v185
      $region89: #{duma_forward.1} parent=83 // loop_footer
        %s88 = sadd.s32 1, %s84
      $region90: #{duma_forward.1} parent=83 // loop_footer_branch
        %83 = sbr.rel target = $region86
      $region91: #{duma_forward.1} parent=83 // loop_exit
        _
    $region84: #{duma_forward.1} parent=68 // pred_fallthru
      _
    %p187 = pneg %p79
    // Predicated region
    $region92: #{duma_forward.1} parent=68 // pred_check
      _
    $region93: #{duma_forward.1} parent=68 // pred_check_branch
      %189 = sbr.rel (%p79) target = $region95
    $region94: #{duma_forward.1} parent=68 // pred_region
      %s190 = sand.u32 384, 7
    $region95: #{duma_forward.1} parent=68 // pred_fallthru
      _
  $region69: #{duma_forward.1} parent=0 // pred_fallthru
    _
  // Predicated region
  $region70: #{duma_forward.1} parent=0 // pred_check
    %p64 = pneg %p60
  $region71: #{duma_forward.1} parent=0 // pred_check_branch
    %66 = sbr.rel (%p64) target = $region73
  $region72: #{duma_forward.1} parent=0 // pred_region
    %s67 = sshllo.u32 0, 384
    loop: start=0, step=1, limit=1
    $region74: #{duma_forward.1} parent=72 // loop_pre_header
      _
    $region75: #{duma_forward.1} parent=72 // loop_header
      %s69 = sphi 0, %s73
      %p70 = scmp.ge.s32.totalorder %s69, 1
      %s74 = sphi %s10, %s10
      %s75 = sphi [#allocation2], [#allocation2]
    $region76: #{duma_forward.1} parent=72 // loop_header_branch
      %72 = sbr.rel (%p70) target = $region80
    $region77: #{duma_forward.1} parent=72 // loop_body
      %v76 = vld [vmem:[%s74] sm:%s67]
      %77 = vst [vmem:[%s75] sm:%s67] %v76
    $region78: #{duma_forward.1} parent=72 // loop_footer
      %s73 = sadd.s32 1, %s69
    $region79: #{duma_forward.1} parent=72 // loop_footer_branch
      %68 = sbr.rel target = $region75
    $region80: #{duma_forward.1} parent=72 // loop_exit
      _
  $region73: #{duma_forward.1} parent=0 // pred_fallthru
    _
  // Predicated region
  $region96: #{duma_forward.1} parent=0 // pred_check
    _
  $region97: #{duma_forward.1} parent=0 // pred_check_branch
    %193 = sbr.rel (0) target = $region99
  $region98: #{duma_forward.1} parent=0 // pred_region
    %194 = vsyncadd [#allocation5], 6144
  $region99: #{duma_forward.1} parent=0 // pred_fallthru
    _
  %s195 = scalar_lea.sflag [#allocation5], 1
  %p197 = scmp.lt.u32.totalorder 4, 8
  %p198 = pneg %p197
  // Predicated region
  $region100: #{duma_forward.1} parent=0 // pred_check
    _
  $region101: #{duma_forward.1} parent=0 // pred_check_branch
    %200 = sbr.rel (%p197) target = $region103
  $region102: #{duma_forward.1} parent=0 // pred_region
    %s597 = sand.u32 4, 7
    %p598 = scmp.eq.s32.totalorder %s597, 0
    %p599 = pneg %p598
    // Predicated region
    $region115: #{duma_forward.1} parent=102 // pred_check
      _
    $region116: #{duma_forward.1} parent=102 // pred_check_branch
      %601 = sbr.rel (%p598) target = $region118
    $region117: #{duma_forward.1} parent=102 // pred_region
      %s602 = sand.u32 4, 7
      %s603 = ssub.s32 4, %s602
      %s604 = scalar_lea.vmem %s11, %s603
      %s605 = ssub.s32 4, %s602
      %s606 = scalar_lea.vmem [#allocation3], %s605
      loop: start=0, step=1, limit=1
      $region119: #{duma_forward.1} parent=117 // loop_pre_header
        _
      $region120: #{duma_forward.1} parent=117 // loop_header
        %s608 = sphi 0, %s612
        %p609 = scmp.ge.s32.totalorder %s608, 1
        %s613 = sphi %s11, %s11
        %s614 = sphi [#allocation3], [#allocation3]
      $region121: #{duma_forward.1} parent=117 // loop_header_branch
        %611 = sbr.rel (%p609) target = $region125
      $region122: #{duma_forward.1} parent=117 // loop_body
        _
      $region123: #{duma_forward.1} parent=117 // loop_footer
        %s612 = sadd.s32 1, %s608
      $region124: #{duma_forward.1} parent=117 // loop_footer_branch
        %607 = sbr.rel target = $region120
      $region125: #{duma_forward.1} parent=117 // loop_exit
        _
      %s615 = sshllo.u32 0, %s602
      loop: start=0, step=1, limit=1
      $region126: #{duma_forward.1} parent=117 // loop_pre_header
        _
      $region127: #{duma_forward.1} parent=117 // loop_header
        %s617 = sphi 0, %s621
        %p618 = scmp.ge.s32.totalorder %s617, 1
        %s622 = sphi %s604, %s604
        %s623 = sphi %s606, %s606
      $region128: #{duma_forward.1} parent=117 // loop_header_branch
        %620 = sbr.rel (%p618) target = $region132
      $region129: #{duma_forward.1} parent=117 // loop_body
        %v624 = vld [vmem:[%s622] sm:%s615]
        %625 = vst [vmem:[%s623] sm:%s615] %v624
        %v626 = vld [vmem:[%s622 + $0x8] sm:%s615]
        %627 = vst [vmem:[%s623 + $0x4] sm:%s615] %v626
        %v628 = vld [vmem:[%s622 + $0x4] sm:%s615]
        %629 = vst [vmem:[%s623 + $0x8] sm:%s615] %v628
        %v630 = vld [vmem:[%s622 + $0xc] sm:%s615]
        %631 = vst [vmem:[%s623 + $0xc] sm:%s615] %v630
        %v632 = vld [vmem:[%s622 + $0x10] sm:%s615]
        %633 = vst [vmem:[%s623 + $0x10] sm:%s615] %v632
        %v634 = vld [vmem:[%s622 + $0x18] sm:%s615]
        %635 = vst [vmem:[%s623 + $0x14] sm:%s615] %v634
        %v636 = vld [vmem:[%s622 + $0x14] sm:%s615]
        %637 = vst [vmem:[%s623 + $0x18] sm:%s615] %v636
        %v638 = vld [vmem:[%s622 + $0x1c] sm:%s615]
        %639 = vst [vmem:[%s623 + $0x1c] sm:%s615] %v638
        %v640 = vld [vmem:[%s622 + $0x20] sm:%s615]
        %641 = vst [vmem:[%s623 + $0x20] sm:%s615] %v640
        %v642 = vld [vmem:[%s622 + $0x28] sm:%s615]
        %643 = vst [vmem:[%s623 + $0x24] sm:%s615] %v642
        %v644 = vld [vmem:[%s622 + $0x24] sm:%s615]
        %645 = vst [vmem:[%s623 + $0x28] sm:%s615] %v644
        %v646 = vld [vmem:[%s622 + $0x2c] sm:%s615]
        %647 = vst [vmem:[%s623 + $0x2c] sm:%s615] %v646
        %v648 = vld [vmem:[%s622 + $0x30] sm:%s615]
        %649 = vst [vmem:[%s623 + $0x30] sm:%s615] %v648
        %v650 = vld [vmem:[%s622 + $0x38] sm:%s615]
        %651 = vst [vmem:[%s623 + $0x34] sm:%s615] %v650
        %v652 = vld [vmem:[%s622 + $0x34] sm:%s615]
        %653 = vst [vmem:[%s623 + $0x38] sm:%s615] %v652
        %v654 = vld [vmem:[%s622 + $0x3c] sm:%s615]
        %655 = vst [vmem:[%s623 + $0x3c] sm:%s615] %v654
        %v656 = vld [vmem:[%s622 + $0x40] sm:%s615]
        %657 = vst [vmem:[%s623 + $0x40] sm:%s615] %v656
        %v658 = vld [vmem:[%s622 + $0x48] sm:%s615]
        %659 = vst [vmem:[%s623 + $0x44] sm:%s615] %v658
        %v660 = vld [vmem:[%s622 + $0x44] sm:%s615]
        %661 = vst [vmem:[%s623 + $0x48] sm:%s615] %v660
        %v662 = vld [vmem:[%s622 + $0x4c] sm:%s615]
        %663 = vst [vmem:[%s623 + $0x4c] sm:%s615] %v662
        %v664 = vld [vmem:[%s622 + $0x50] sm:%s615]
        %665 = vst [vmem:[%s623 + $0x50] sm:%s615] %v664
        %v666 = vld [vmem:[%s622 + $0x58] sm:%s615]
        %667 = vst [vmem:[%s623 + $0x54] sm:%s615] %v666
        %v668 = vld [vmem:[%s622 + $0x54] sm:%s615]
        %669 = vst [vmem:[%s623 + $0x58] sm:%s615] %v668
        %v670 = vld [vmem:[%s622 + $0x5c] sm:%s615]
        %671 = vst [vmem:[%s623 + $0x5c] sm:%s615] %v670
        %v672 = vld [vmem:[%s622 + $0x60] sm:%s615]
        %673 = vst [vmem:[%s623 + $0x60] sm:%s615] %v672
        %v674 = vld [vmem:[%s622 + $0x68] sm:%s615]
        %675 = vst [vmem:[%s623 + $0x64] sm:%s615] %v674
        %v676 = vld [vmem:[%s622 + $0x64] sm:%s615]
        %677 = vst [vmem:[%s623 + $0x68] sm:%s615] %v676
        %v678 = vld [vmem:[%s622 + $0x6c] sm:%s615]
        %679 = vst [vmem:[%s623 + $0x6c] sm:%s615] %v678
        %v680 = vld [vmem:[%s622 + $0x70] sm:%s615]
        %681 = vst [vmem:[%s623 + $0x70] sm:%s615] %v680
        %v682 = vld [vmem:[%s622 + $0x78] sm:%s615]
        %683 = vst [vmem:[%s623 + $0x74] sm:%s615] %v682
        %v684 = vld [vmem:[%s622 + $0x74] sm:%s615]
        %685 = vst [vmem:[%s623 + $0x78] sm:%s615] %v684
        %v686 = vld [vmem:[%s622 + $0x7c] sm:%s615]
        %687 = vst [vmem:[%s623 + $0x7c] sm:%s615] %v686
        %v688 = vld [vmem:[%s622 + $0x80] sm:%s615]
        %689 = vst [vmem:[%s623 + $0x80] sm:%s615] %v688
        %v690 = vld [vmem:[%s622 + $0x88] sm:%s615]
        %691 = vst [vmem:[%s623 + $0x84] sm:%s615] %v690
        %v692 = vld [vmem:[%s622 + $0x84] sm:%s615]
        %693 = vst [vmem:[%s623 + $0x88] sm:%s615] %v692
        %v694 = vld [vmem:[%s622 + $0x8c] sm:%s615]
        %695 = vst [vmem:[%s623 + $0x8c] sm:%s615] %v694
        %v696 = vld [vmem:[%s622 + $0x90] sm:%s615]
        %697 = vst [vmem:[%s623 + $0x90] sm:%s615] %v696
        %v698 = vld [vmem:[%s622 + $0x98] sm:%s615]
        %699 = vst [vmem:[%s623 + $0x94] sm:%s615] %v698
        %v700 = vld [vmem:[%s622 + $0x94] sm:%s615]
        %701 = vst [vmem:[%s623 + $0x98] sm:%s615] %v700
        %v702 = vld [vmem:[%s622 + $0x9c] sm:%s615]
        %703 = vst [vmem:[%s623 + $0x9c] sm:%s615] %v702
        %v704 = vld [vmem:[%s622 + $0xa0] sm:%s615]
        %705 = vst [vmem:[%s623 + $0xa0] sm:%s615] %v704
        %v706 = vld [vmem:[%s622 + $0xa8] sm:%s615]
        %707 = vst [vmem:[%s623 + $0xa4] sm:%s615] %v706
        %v708 = vld [vmem:[%s622 + $0xa4] sm:%s615]
        %709 = vst [vmem:[%s623 + $0xa8] sm:%s615] %v708
        %v710 = vld [vmem:[%s622 + $0xac] sm:%s615]
        %711 = vst [vmem:[%s623 + $0xac] sm:%s615] %v710
        %v712 = vld [vmem:[%s622 + $0xb0] sm:%s615]
        %713 = vst [vmem:[%s623 + $0xb0] sm:%s615] %v712
        %v714 = vld [vmem:[%s622 + $0xb8] sm:%s615]
        %715 = vst [vmem:[%s623 + $0xb4] sm:%s615] %v714
        %v716 = vld [vmem:[%s622 + $0xb4] sm:%s615]
        %717 = vst [vmem:[%s623 + $0xb8] sm:%s615] %v716
        %v718 = vld [vmem:[%s622 + $0xbc] sm:%s615]
        %719 = vst [vmem:[%s623 + $0xbc] sm:%s615] %v718
        %v720 = vld [vmem:[%s622 + $0xc0] sm:%s615]
        %721 = vst [vmem:[%s623 + $0xc0] sm:%s615] %v720
        %v722 = vld [vmem:[%s622 + $0xc8] sm:%s615]
        %723 = vst [vmem:[%s623 + $0xc4] sm:%s615] %v722
        %v724 = vld [vmem:[%s622 + $0xc4] sm:%s615]
        %725 = vst [vmem:[%s623 + $0xc8] sm:%s615] %v724
        %v726 = vld [vmem:[%s622 + $0xcc] sm:%s615]
        %727 = vst [vmem:[%s623 + $0xcc] sm:%s615] %v726
        %v728 = vld [vmem:[%s622 + $0xd0] sm:%s615]
        %729 = vst [vmem:[%s623 + $0xd0] sm:%s615] %v728
        %v730 = vld [vmem:[%s622 + $0xd8] sm:%s615]
        %731 = vst [vmem:[%s623 + $0xd4] sm:%s615] %v730
        %v732 = vld [vmem:[%s622 + $0xd4] sm:%s615]
        %733 = vst [vmem:[%s623 + $0xd8] sm:%s615] %v732
        %v734 = vld [vmem:[%s622 + $0xdc] sm:%s615]
        %735 = vst [vmem:[%s623 + $0xdc] sm:%s615] %v734
        %v736 = vld [vmem:[%s622 + $0xe0] sm:%s615]
        %737 = vst [vmem:[%s623 + $0xe0] sm:%s615] %v736
        %v738 = vld [vmem:[%s622 + $0xe8] sm:%s615]
        %739 = vst [vmem:[%s623 + $0xe4] sm:%s615] %v738
        %v740 = vld [vmem:[%s622 + $0xe4] sm:%s615]
        %741 = vst [vmem:[%s623 + $0xe8] sm:%s615] %v740
        %v742 = vld [vmem:[%s622 + $0xec] sm:%s615]
        %743 = vst [vmem:[%s623 + $0xec] sm:%s615] %v742
        %v744 = vld [vmem:[%s622 + $0xf0] sm:%s615]
        %745 = vst [vmem:[%s623 + $0xf0] sm:%s615] %v744
        %v746 = vld [vmem:[%s622 + $0xf8] sm:%s615]
        %747 = vst [vmem:[%s623 + $0xf4] sm:%s615] %v746
        %v748 = vld [vmem:[%s622 + $0xf4] sm:%s615]
        %749 = vst [vmem:[%s623 + $0xf8] sm:%s615] %v748
        %v750 = vld [vmem:[%s622 + $0xfc] sm:%s615]
        %751 = vst [vmem:[%s623 + $0xfc] sm:%s615] %v750
        %v752 = vld [vmem:[%s622 + $0x100] sm:%s615]
        %753 = vst [vmem:[%s623 + $0x100] sm:%s615] %v752
        %v754 = vld [vmem:[%s622 + $0x108] sm:%s615]
        %755 = vst [vmem:[%s623 + $0x104] sm:%s615] %v754
        %v756 = vld [vmem:[%s622 + $0x104] sm:%s615]
        %757 = vst [vmem:[%s623 + $0x108] sm:%s615] %v756
        %v758 = vld [vmem:[%s622 + $0x10c] sm:%s615]
        %759 = vst [vmem:[%s623 + $0x10c] sm:%s615] %v758
        %v760 = vld [vmem:[%s622 + $0x110] sm:%s615]
        %761 = vst [vmem:[%s623 + $0x110] sm:%s615] %v760
        %v762 = vld [vmem:[%s622 + $0x118] sm:%s615]
        %763 = vst [vmem:[%s623 + $0x114] sm:%s615] %v762
        %v764 = vld [vmem:[%s622 + $0x114] sm:%s615]
        %765 = vst [vmem:[%s623 + $0x118] sm:%s615] %v764
        %v766 = vld [vmem:[%s622 + $0x11c] sm:%s615]
        %767 = vst [vmem:[%s623 + $0x11c] sm:%s615] %v766
        %v768 = vld [vmem:[%s622 + $0x120] sm:%s615]
        %769 = vst [vmem:[%s623 + $0x120] sm:%s615] %v768
        %v770 = vld [vmem:[%s622 + $0x128] sm:%s615]
        %771 = vst [vmem:[%s623 + $0x124] sm:%s615] %v770
        %v772 = vld [vmem:[%s622 + $0x124] sm:%s615]
        %773 = vst [vmem:[%s623 + $0x128] sm:%s615] %v772
        %v774 = vld [vmem:[%s622 + $0x12c] sm:%s615]
        %775 = vst [vmem:[%s623 + $0x12c] sm:%s615] %v774
        %v776 = vld [vmem:[%s622 + $0x130] sm:%s615]
        %777 = vst [vmem:[%s623 + $0x130] sm:%s615] %v776
        %v778 = vld [vmem:[%s622 + $0x138] sm:%s615]
        %779 = vst [vmem:[%s623 + $0x134] sm:%s615] %v778
        %v780 = vld [vmem:[%s622 + $0x134] sm:%s615]
        %781 = vst [vmem:[%s623 + $0x138] sm:%s615] %v780
        %v782 = vld [vmem:[%s622 + $0x13c] sm:%s615]
        %783 = vst [vmem:[%s623 + $0x13c] sm:%s615] %v782
        %v784 = vld [vmem:[%s622 + $0x140] sm:%s615]
        %785 = vst [vmem:[%s623 + $0x140] sm:%s615] %v784
        %v786 = vld [vmem:[%s622 + $0x148] sm:%s615]
        %787 = vst [vmem:[%s623 + $0x144] sm:%s615] %v786
        %v788 = vld [vmem:[%s622 + $0x144] sm:%s615]
        %789 = vst [vmem:[%s623 + $0x148] sm:%s615] %v788
        %v790 = vld [vmem:[%s622 + $0x14c] sm:%s615]
        %791 = vst [vmem:[%s623 + $0x14c] sm:%s615] %v790
        %v792 = vld [vmem:[%s622 + $0x150] sm:%s615]
        %793 = vst [vmem:[%s623 + $0x150] sm:%s615] %v792
        %v794 = vld [vmem:[%s622 + $0x158] sm:%s615]
        %795 = vst [vmem:[%s623 + $0x154] sm:%s615] %v794
        %v796 = vld [vmem:[%s622 + $0x154] sm:%s615]
        %797 = vst [vmem:[%s623 + $0x158] sm:%s615] %v796
        %v798 = vld [vmem:[%s622 + $0x15c] sm:%s615]
        %799 = vst [vmem:[%s623 + $0x15c] sm:%s615] %v798
        %v800 = vld [vmem:[%s622 + $0x160] sm:%s615]
        %801 = vst [vmem:[%s623 + $0x160] sm:%s615] %v800
        %v802 = vld [vmem:[%s622 + $0x168] sm:%s615]
        %803 = vst [vmem:[%s623 + $0x164] sm:%s615] %v802
        %v804 = vld [vmem:[%s622 + $0x164] sm:%s615]
        %805 = vst [vmem:[%s623 + $0x168] sm:%s615] %v804
        %v806 = vld [vmem:[%s622 + $0x16c] sm:%s615]
        %807 = vst [vmem:[%s623 + $0x16c] sm:%s615] %v806
        %v808 = vld [vmem:[%s622 + $0x170] sm:%s615]
        %809 = vst [vmem:[%s623 + $0x170] sm:%s615] %v808
        %v810 = vld [vmem:[%s622 + $0x178] sm:%s615]
        %811 = vst [vmem:[%s623 + $0x174] sm:%s615] %v810
        %v812 = vld [vmem:[%s622 + $0x174] sm:%s615]
        %813 = vst [vmem:[%s623 + $0x178] sm:%s615] %v812
        %v814 = vld [vmem:[%s622 + $0x17c] sm:%s615]
        %815 = vst [vmem:[%s623 + $0x17c] sm:%s615] %v814
        %v816 = vld [vmem:[%s622 + $0x180] sm:%s615]
        %817 = vst [vmem:[%s623 + $0x180] sm:%s615] %v816
        %v818 = vld [vmem:[%s622 + $0x188] sm:%s615]
        %819 = vst [vmem:[%s623 + $0x184] sm:%s615] %v818
        %v820 = vld [vmem:[%s622 + $0x184] sm:%s615]
        %821 = vst [vmem:[%s623 + $0x188] sm:%s615] %v820
        %v822 = vld [vmem:[%s622 + $0x18c] sm:%s615]
        %823 = vst [vmem:[%s623 + $0x18c] sm:%s615] %v822
        %v824 = vld [vmem:[%s622 + $0x190] sm:%s615]
        %825 = vst [vmem:[%s623 + $0x190] sm:%s615] %v824
        %v826 = vld [vmem:[%s622 + $0x198] sm:%s615]
        %827 = vst [vmem:[%s623 + $0x194] sm:%s615] %v826
        %v828 = vld [vmem:[%s622 + $0x194] sm:%s615]
        %829 = vst [vmem:[%s623 + $0x198] sm:%s615] %v828
        %v830 = vld [vmem:[%s622 + $0x19c] sm:%s615]
        %831 = vst [vmem:[%s623 + $0x19c] sm:%s615] %v830
        %v832 = vld [vmem:[%s622 + $0x1a0] sm:%s615]
        %833 = vst [vmem:[%s623 + $0x1a0] sm:%s615] %v832
        %v834 = vld [vmem:[%s622 + $0x1a8] sm:%s615]
        %835 = vst [vmem:[%s623 + $0x1a4] sm:%s615] %v834
        %v836 = vld [vmem:[%s622 + $0x1a4] sm:%s615]
        %837 = vst [vmem:[%s623 + $0x1a8] sm:%s615] %v836
        %v838 = vld [vmem:[%s622 + $0x1ac] sm:%s615]
        %839 = vst [vmem:[%s623 + $0x1ac] sm:%s615] %v838
        %v840 = vld [vmem:[%s622 + $0x1b0] sm:%s615]
        %841 = vst [vmem:[%s623 + $0x1b0] sm:%s615] %v840
        %v842 = vld [vmem:[%s622 + $0x1b8] sm:%s615]
        %843 = vst [vmem:[%s623 + $0x1b4] sm:%s615] %v842
        %v844 = vld [vmem:[%s622 + $0x1b4] sm:%s615]
        %845 = vst [vmem:[%s623 + $0x1b8] sm:%s615] %v844
        %v846 = vld [vmem:[%s622 + $0x1bc] sm:%s615]
        %847 = vst [vmem:[%s623 + $0x1bc] sm:%s615] %v846
        %v848 = vld [vmem:[%s622 + $0x1c0] sm:%s615]
        %849 = vst [vmem:[%s623 + $0x1c0] sm:%s615] %v848
        %v850 = vld [vmem:[%s622 + $0x1c8] sm:%s615]
        %851 = vst [vmem:[%s623 + $0x1c4] sm:%s615] %v850
        %v852 = vld [vmem:[%s622 + $0x1c4] sm:%s615]
        %853 = vst [vmem:[%s623 + $0x1c8] sm:%s615] %v852
        %v854 = vld [vmem:[%s622 + $0x1cc] sm:%s615]
        %855 = vst [vmem:[%s623 + $0x1cc] sm:%s615] %v854
        %v856 = vld [vmem:[%s622 + $0x1d0] sm:%s615]
        %857 = vst [vmem:[%s623 + $0x1d0] sm:%s615] %v856
        %v858 = vld [vmem:[%s622 + $0x1d8] sm:%s615]
        %859 = vst [vmem:[%s623 + $0x1d4] sm:%s615] %v858
        %v860 = vld [vmem:[%s622 + $0x1d4] sm:%s615]
        %861 = vst [vmem:[%s623 + $0x1d8] sm:%s615] %v860
        %v862 = vld [vmem:[%s622 + $0x1dc] sm:%s615]
        %863 = vst [vmem:[%s623 + $0x1dc] sm:%s615] %v862
        %v864 = vld [vmem:[%s622 + $0x1e0] sm:%s615]
        %865 = vst [vmem:[%s623 + $0x1e0] sm:%s615] %v864
        %v866 = vld [vmem:[%s622 + $0x1e8] sm:%s615]
        %867 = vst [vmem:[%s623 + $0x1e4] sm:%s615] %v866
        %v868 = vld [vmem:[%s622 + $0x1e4] sm:%s615]
        %869 = vst [vmem:[%s623 + $0x1e8] sm:%s615] %v868
        %v870 = vld [vmem:[%s622 + $0x1ec] sm:%s615]
        %871 = vst [vmem:[%s623 + $0x1ec] sm:%s615] %v870
        %v872 = vld [vmem:[%s622 + $0x1f0] sm:%s615]
        %873 = vst [vmem:[%s623 + $0x1f0] sm:%s615] %v872
        %v874 = vld [vmem:[%s622 + $0x1f8] sm:%s615]
        %875 = vst [vmem:[%s623 + $0x1f4] sm:%s615] %v874
        %v876 = vld [vmem:[%s622 + $0x1f4] sm:%s615]
        %877 = vst [vmem:[%s623 + $0x1f8] sm:%s615] %v876
        %v878 = vld [vmem:[%s622 + $0x1fc] sm:%s615]
        %879 = vst [vmem:[%s623 + $0x1fc] sm:%s615] %v878
        %v880 = vld [vmem:[%s622 + $0x200] sm:%s615]
        %881 = vst [vmem:[%s623 + $0x200] sm:%s615] %v880
        %v882 = vld [vmem:[%s622 + $0x208] sm:%s615]
        %883 = vst [vmem:[%s623 + $0x204] sm:%s615] %v882
        %v884 = vld [vmem:[%s622 + $0x204] sm:%s615]
        %885 = vst [vmem:[%s623 + $0x208] sm:%s615] %v884
        %v886 = vld [vmem:[%s622 + $0x20c] sm:%s615]
        %887 = vst [vmem:[%s623 + $0x20c] sm:%s615] %v886
        %v888 = vld [vmem:[%s622 + $0x210] sm:%s615]
        %889 = vst [vmem:[%s623 + $0x210] sm:%s615] %v888
        %v890 = vld [vmem:[%s622 + $0x218] sm:%s615]
        %891 = vst [vmem:[%s623 + $0x214] sm:%s615] %v890
        %v892 = vld [vmem:[%s622 + $0x214] sm:%s615]
        %893 = vst [vmem:[%s623 + $0x218] sm:%s615] %v892
        %v894 = vld [vmem:[%s622 + $0x21c] sm:%s615]
        %895 = vst [vmem:[%s623 + $0x21c] sm:%s615] %v894
        %v896 = vld [vmem:[%s622 + $0x220] sm:%s615]
        %897 = vst [vmem:[%s623 + $0x220] sm:%s615] %v896
        %v898 = vld [vmem:[%s622 + $0x228] sm:%s615]
        %899 = vst [vmem:[%s623 + $0x224] sm:%s615] %v898
        %v900 = vld [vmem:[%s622 + $0x224] sm:%s615]
        %901 = vst [vmem:[%s623 + $0x228] sm:%s615] %v900
        %v902 = vld [vmem:[%s622 + $0x22c] sm:%s615]
        %903 = vst [vmem:[%s623 + $0x22c] sm:%s615] %v902
        %v904 = vld [vmem:[%s622 + $0x230] sm:%s615]
        %905 = vst [vmem:[%s623 + $0x230] sm:%s615] %v904
        %v906 = vld [vmem:[%s622 + $0x238] sm:%s615]
        %907 = vst [vmem:[%s623 + $0x234] sm:%s615] %v906
        %v908 = vld [vmem:[%s622 + $0x234] sm:%s615]
        %909 = vst [vmem:[%s623 + $0x238] sm:%s615] %v908
        %v910 = vld [vmem:[%s622 + $0x23c] sm:%s615]
        %911 = vst [vmem:[%s623 + $0x23c] sm:%s615] %v910
        %v912 = vld [vmem:[%s622 + $0x240] sm:%s615]
        %913 = vst [vmem:[%s623 + $0x240] sm:%s615] %v912
        %v914 = vld [vmem:[%s622 + $0x248] sm:%s615]
        %915 = vst [vmem:[%s623 + $0x244] sm:%s615] %v914
        %v916 = vld [vmem:[%s622 + $0x244] sm:%s615]
        %917 = vst [vmem:[%s623 + $0x248] sm:%s615] %v916
        %v918 = vld [vmem:[%s622 + $0x24c] sm:%s615]
        %919 = vst [vmem:[%s623 + $0x24c] sm:%s615] %v918
        %v920 = vld [vmem:[%s622 + $0x250] sm:%s615]
        %921 = vst [vmem:[%s623 + $0x250] sm:%s615] %v920
        %v922 = vld [vmem:[%s622 + $0x258] sm:%s615]
        %923 = vst [vmem:[%s623 + $0x254] sm:%s615] %v922
        %v924 = vld [vmem:[%s622 + $0x254] sm:%s615]
        %925 = vst [vmem:[%s623 + $0x258] sm:%s615] %v924
        %v926 = vld [vmem:[%s622 + $0x25c] sm:%s615]
        %927 = vst [vmem:[%s623 + $0x25c] sm:%s615] %v926
        %v928 = vld [vmem:[%s622 + $0x260] sm:%s615]
        %929 = vst [vmem:[%s623 + $0x260] sm:%s615] %v928
        %v930 = vld [vmem:[%s622 + $0x268] sm:%s615]
        %931 = vst [vmem:[%s623 + $0x264] sm:%s615] %v930
        %v932 = vld [vmem:[%s622 + $0x264] sm:%s615]
        %933 = vst [vmem:[%s623 + $0x268] sm:%s615] %v932
        %v934 = vld [vmem:[%s622 + $0x26c] sm:%s615]
        %935 = vst [vmem:[%s623 + $0x26c] sm:%s615] %v934
        %v936 = vld [vmem:[%s622 + $0x270] sm:%s615]
        %937 = vst [vmem:[%s623 + $0x270] sm:%s615] %v936
        %v938 = vld [vmem:[%s622 + $0x278] sm:%s615]
        %939 = vst [vmem:[%s623 + $0x274] sm:%s615] %v938
        %v940 = vld [vmem:[%s622 + $0x274] sm:%s615]
        %941 = vst [vmem:[%s623 + $0x278] sm:%s615] %v940
        %v942 = vld [vmem:[%s622 + $0x27c] sm:%s615]
        %943 = vst [vmem:[%s623 + $0x27c] sm:%s615] %v942
        %v944 = vld [vmem:[%s622 + $0x280] sm:%s615]
        %945 = vst [vmem:[%s623 + $0x280] sm:%s615] %v944
        %v946 = vld [vmem:[%s622 + $0x288] sm:%s615]
        %947 = vst [vmem:[%s623 + $0x284] sm:%s615] %v946
        %v948 = vld [vmem:[%s622 + $0x284] sm:%s615]
        %949 = vst [vmem:[%s623 + $0x288] sm:%s615] %v948
        %v950 = vld [vmem:[%s622 + $0x28c] sm:%s615]
        %951 = vst [vmem:[%s623 + $0x28c] sm:%s615] %v950
        %v952 = vld [vmem:[%s622 + $0x290] sm:%s615]
        %953 = vst [vmem:[%s623 + $0x290] sm:%s615] %v952
        %v954 = vld [vmem:[%s622 + $0x298] sm:%s615]
        %955 = vst [vmem:[%s623 + $0x294] sm:%s615] %v954
        %v956 = vld [vmem:[%s622 + $0x294] sm:%s615]
        %957 = vst [vmem:[%s623 + $0x298] sm:%s615] %v956
        %v958 = vld [vmem:[%s622 + $0x29c] sm:%s615]
        %959 = vst [vmem:[%s623 + $0x29c] sm:%s615] %v958
        %v960 = vld [vmem:[%s622 + $0x2a0] sm:%s615]
        %961 = vst [vmem:[%s623 + $0x2a0] sm:%s615] %v960
        %v962 = vld [vmem:[%s622 + $0x2a8] sm:%s615]
        %963 = vst [vmem:[%s623 + $0x2a4] sm:%s615] %v962
        %v964 = vld [vmem:[%s622 + $0x2a4] sm:%s615]
        %965 = vst [vmem:[%s623 + $0x2a8] sm:%s615] %v964
        %v966 = vld [vmem:[%s622 + $0x2ac] sm:%s615]
        %967 = vst [vmem:[%s623 + $0x2ac] sm:%s615] %v966
        %v968 = vld [vmem:[%s622 + $0x2b0] sm:%s615]
        %969 = vst [vmem:[%s623 + $0x2b0] sm:%s615] %v968
        %v970 = vld [vmem:[%s622 + $0x2b8] sm:%s615]
        %971 = vst [vmem:[%s623 + $0x2b4] sm:%s615] %v970
        %v972 = vld [vmem:[%s622 + $0x2b4] sm:%s615]
        %973 = vst [vmem:[%s623 + $0x2b8] sm:%s615] %v972
        %v974 = vld [vmem:[%s622 + $0x2bc] sm:%s615]
        %975 = vst [vmem:[%s623 + $0x2bc] sm:%s615] %v974
        %v976 = vld [vmem:[%s622 + $0x2c0] sm:%s615]
        %977 = vst [vmem:[%s623 + $0x2c0] sm:%s615] %v976
        %v978 = vld [vmem:[%s622 + $0x2c8] sm:%s615]
        %979 = vst [vmem:[%s623 + $0x2c4] sm:%s615] %v978
        %v980 = vld [vmem:[%s622 + $0x2c4] sm:%s615]
        %981 = vst [vmem:[%s623 + $0x2c8] sm:%s615] %v980
        %v982 = vld [vmem:[%s622 + $0x2cc] sm:%s615]
        %983 = vst [vmem:[%s623 + $0x2cc] sm:%s615] %v982
        %v984 = vld [vmem:[%s622 + $0x2d0] sm:%s615]
        %985 = vst [vmem:[%s623 + $0x2d0] sm:%s615] %v984
        %v986 = vld [vmem:[%s622 + $0x2d8] sm:%s615]
        %987 = vst [vmem:[%s623 + $0x2d4] sm:%s615] %v986
        %v988 = vld [vmem:[%s622 + $0x2d4] sm:%s615]
        %989 = vst [vmem:[%s623 + $0x2d8] sm:%s615] %v988
        %v990 = vld [vmem:[%s622 + $0x2dc] sm:%s615]
        %991 = vst [vmem:[%s623 + $0x2dc] sm:%s615] %v990
        %v992 = vld [vmem:[%s622 + $0x2e0] sm:%s615]
        %993 = vst [vmem:[%s623 + $0x2e0] sm:%s615] %v992
        %v994 = vld [vmem:[%s622 + $0x2e8] sm:%s615]
        %995 = vst [vmem:[%s623 + $0x2e4] sm:%s615] %v994
        %v996 = vld [vmem:[%s622 + $0x2e4] sm:%s615]
        %997 = vst [vmem:[%s623 + $0x2e8] sm:%s615] %v996
        %v998 = vld [vmem:[%s622 + $0x2ec] sm:%s615]
        %999 = vst [vmem:[%s623 + $0x2ec] sm:%s615] %v998
        %v1000 = vld [vmem:[%s622 + $0x2f0] sm:%s615]
        %1001 = vst [vmem:[%s623 + $0x2f0] sm:%s615] %v1000
        %v1002 = vld [vmem:[%s622 + $0x2f8] sm:%s615]
        %1003 = vst [vmem:[%s623 + $0x2f4] sm:%s615] %v1002
        %v1004 = vld [vmem:[%s622 + $0x2f4] sm:%s615]
        %1005 = vst [vmem:[%s623 + $0x2f8] sm:%s615] %v1004
        %v1006 = vld [vmem:[%s622 + $0x2fc] sm:%s615]
        %1007 = vst [vmem:[%s623 + $0x2fc] sm:%s615] %v1006
      $region130: #{duma_forward.1} parent=117 // loop_footer
        %s621 = sadd.s32 1, %s617
      $region131: #{duma_forward.1} parent=117 // loop_footer_branch
        %616 = sbr.rel target = $region127
      $region132: #{duma_forward.1} parent=117 // loop_exit
        _
    $region118: #{duma_forward.1} parent=102 // pred_fallthru
      _
  $region103: #{duma_forward.1} parent=0 // pred_fallthru
    _
  // Predicated region
  $region104: #{duma_forward.1} parent=0 // pred_check
    %p201 = pneg %p197
  $region105: #{duma_forward.1} parent=0 // pred_check_branch
    %203 = sbr.rel (%p201) target = $region107
  $region106: #{duma_forward.1} parent=0 // pred_region
    %s204 = sshllo.u32 0, 4
    loop: start=0, step=1, limit=1
    $region108: #{duma_forward.1} parent=106 // loop_pre_header
      _
    $region109: #{duma_forward.1} parent=106 // loop_header
      %s206 = sphi 0, %s210
      %p207 = scmp.ge.s32.totalorder %s206, 1
      %s211 = sphi %s11, %s11
      %s212 = sphi [#allocation3], [#allocation3]
    $region110: #{duma_forward.1} parent=106 // loop_header_branch
      %209 = sbr.rel (%p207) target = $region114
    $region111: #{duma_forward.1} parent=106 // loop_body
      %v213 = vld [vmem:[%s211] sm:%s204]
      %214 = vst [vmem:[%s212] sm:%s204] %v213
      %v215 = vld [vmem:[%s211 + $0x8] sm:%s204]
      %216 = vst [vmem:[%s212 + $0x4] sm:%s204] %v215
      %v217 = vld [vmem:[%s211 + $0x4] sm:%s204]
      %218 = vst [vmem:[%s212 + $0x8] sm:%s204] %v217
      %v219 = vld [vmem:[%s211 + $0xc] sm:%s204]
      %220 = vst [vmem:[%s212 + $0xc] sm:%s204] %v219
      %v221 = vld [vmem:[%s211 + $0x10] sm:%s204]
      %222 = vst [vmem:[%s212 + $0x10] sm:%s204] %v221
      %v223 = vld [vmem:[%s211 + $0x18] sm:%s204]
      %224 = vst [vmem:[%s212 + $0x14] sm:%s204] %v223
      %v225 = vld [vmem:[%s211 + $0x14] sm:%s204]
      %226 = vst [vmem:[%s212 + $0x18] sm:%s204] %v225
      %v227 = vld [vmem:[%s211 + $0x1c] sm:%s204]
      %228 = vst [vmem:[%s212 + $0x1c] sm:%s204] %v227
      %v229 = vld [vmem:[%s211 + $0x20] sm:%s204]
      %230 = vst [vmem:[%s212 + $0x20] sm:%s204] %v229
      %v231 = vld [vmem:[%s211 + $0x28] sm:%s204]
      %232 = vst [vmem:[%s212 + $0x24] sm:%s204] %v231
      %v233 = vld [vmem:[%s211 + $0x24] sm:%s204]
      %234 = vst [vmem:[%s212 + $0x28] sm:%s204] %v233
      %v235 = vld [vmem:[%s211 + $0x2c] sm:%s204]
      %236 = vst [vmem:[%s212 + $0x2c] sm:%s204] %v235
      %v237 = vld [vmem:[%s211 + $0x30] sm:%s204]
      %238 = vst [vmem:[%s212 + $0x30] sm:%s204] %v237
      %v239 = vld [vmem:[%s211 + $0x38] sm:%s204]
      %240 = vst [vmem:[%s212 + $0x34] sm:%s204] %v239
      %v241 = vld [vmem:[%s211 + $0x34] sm:%s204]
      %242 = vst [vmem:[%s212 + $0x38] sm:%s204] %v241
      %v243 = vld [vmem:[%s211 + $0x3c] sm:%s204]
      %244 = vst [vmem:[%s212 + $0x3c] sm:%s204] %v243
      %v245 = vld [vmem:[%s211 + $0x40] sm:%s204]
      %246 = vst [vmem:[%s212 + $0x40] sm:%s204] %v245
      %v247 = vld [vmem:[%s211 + $0x48] sm:%s204]
      %248 = vst [vmem:[%s212 + $0x44] sm:%s204] %v247
      %v249 = vld [vmem:[%s211 + $0x44] sm:%s204]
      %250 = vst [vmem:[%s212 + $0x48] sm:%s204] %v249
      %v251 = vld [vmem:[%s211 + $0x4c] sm:%s204]
      %252 = vst [vmem:[%s212 + $0x4c] sm:%s204] %v251
      %v253 = vld [vmem:[%s211 + $0x50] sm:%s204]
      %254 = vst [vmem:[%s212 + $0x50] sm:%s204] %v253
      %v255 = vld [vmem:[%s211 + $0x58] sm:%s204]
      %256 = vst [vmem:[%s212 + $0x54] sm:%s204] %v255
      %v257 = vld [vmem:[%s211 + $0x54] sm:%s204]
      %258 = vst [vmem:[%s212 + $0x58] sm:%s204] %v257
      %v259 = vld [vmem:[%s211 + $0x5c] sm:%s204]
      %260 = vst [vmem:[%s212 + $0x5c] sm:%s204] %v259
      %v261 = vld [vmem:[%s211 + $0x60] sm:%s204]
      %262 = vst [vmem:[%s212 + $0x60] sm:%s204] %v261
      %v263 = vld [vmem:[%s211 + $0x68] sm:%s204]
      %264 = vst [vmem:[%s212 + $0x64] sm:%s204] %v263
      %v265 = vld [vmem:[%s211 + $0x64] sm:%s204]
      %266 = vst [vmem:[%s212 + $0x68] sm:%s204] %v265
      %v267 = vld [vmem:[%s211 + $0x6c] sm:%s204]
      %268 = vst [vmem:[%s212 + $0x6c] sm:%s204] %v267
      %v269 = vld [vmem:[%s211 + $0x70] sm:%s204]
      %270 = vst [vmem:[%s212 + $0x70] sm:%s204] %v269
      %v271 = vld [vmem:[%s211 + $0x78] sm:%s204]
      %272 = vst [vmem:[%s212 + $0x74] sm:%s204] %v271
      %v273 = vld [vmem:[%s211 + $0x74] sm:%s204]
      %274 = vst [vmem:[%s212 + $0x78] sm:%s204] %v273
      %v275 = vld [vmem:[%s211 + $0x7c] sm:%s204]
      %276 = vst [vmem:[%s212 + $0x7c] sm:%s204] %v275
      %v277 = vld [vmem:[%s211 + $0x80] sm:%s204]
      %278 = vst [vmem:[%s212 + $0x80] sm:%s204] %v277
      %v279 = vld [vmem:[%s211 + $0x88] sm:%s204]
      %280 = vst [vmem:[%s212 + $0x84] sm:%s204] %v279
      %v281 = vld [vmem:[%s211 + $0x84] sm:%s204]
      %282 = vst [vmem:[%s212 + $0x88] sm:%s204] %v281
      %v283 = vld [vmem:[%s211 + $0x8c] sm:%s204]
      %284 = vst [vmem:[%s212 + $0x8c] sm:%s204] %v283
      %v285 = vld [vmem:[%s211 + $0x90] sm:%s204]
      %286 = vst [vmem:[%s212 + $0x90] sm:%s204] %v285
      %v287 = vld [vmem:[%s211 + $0x98] sm:%s204]
      %288 = vst [vmem:[%s212 + $0x94] sm:%s204] %v287
      %v289 = vld [vmem:[%s211 + $0x94] sm:%s204]
      %290 = vst [vmem:[%s212 + $0x98] sm:%s204] %v289
      %v291 = vld [vmem:[%s211 + $0x9c] sm:%s204]
      %292 = vst [vmem:[%s212 + $0x9c] sm:%s204] %v291
      %v293 = vld [vmem:[%s211 + $0xa0] sm:%s204]
      %294 = vst [vmem:[%s212 + $0xa0] sm:%s204] %v293
      %v295 = vld [vmem:[%s211 + $0xa8] sm:%s204]
      %296 = vst [vmem:[%s212 + $0xa4] sm:%s204] %v295
      %v297 = vld [vmem:[%s211 + $0xa4] sm:%s204]
      %298 = vst [vmem:[%s212 + $0xa8] sm:%s204] %v297
      %v299 = vld [vmem:[%s211 + $0xac] sm:%s204]
      %300 = vst [vmem:[%s212 + $0xac] sm:%s204] %v299
      %v301 = vld [vmem:[%s211 + $0xb0] sm:%s204]
      %302 = vst [vmem:[%s212 + $0xb0] sm:%s204] %v301
      %v303 = vld [vmem:[%s211 + $0xb8] sm:%s204]
      %304 = vst [vmem:[%s212 + $0xb4] sm:%s204] %v303
      %v305 = vld [vmem:[%s211 + $0xb4] sm:%s204]
      %306 = vst [vmem:[%s212 + $0xb8] sm:%s204] %v305
      %v307 = vld [vmem:[%s211 + $0xbc] sm:%s204]
      %308 = vst [vmem:[%s212 + $0xbc] sm:%s204] %v307
      %v309 = vld [vmem:[%s211 + $0xc0] sm:%s204]
      %310 = vst [vmem:[%s212 + $0xc0] sm:%s204] %v309
      %v311 = vld [vmem:[%s211 + $0xc8] sm:%s204]
      %312 = vst [vmem:[%s212 + $0xc4] sm:%s204] %v311
      %v313 = vld [vmem:[%s211 + $0xc4] sm:%s204]
      %314 = vst [vmem:[%s212 + $0xc8] sm:%s204] %v313
      %v315 = vld [vmem:[%s211 + $0xcc] sm:%s204]
      %316 = vst [vmem:[%s212 + $0xcc] sm:%s204] %v315
      %v317 = vld [vmem:[%s211 + $0xd0] sm:%s204]
      %318 = vst [vmem:[%s212 + $0xd0] sm:%s204] %v317
      %v319 = vld [vmem:[%s211 + $0xd8] sm:%s204]
      %320 = vst [vmem:[%s212 + $0xd4] sm:%s204] %v319
      %v321 = vld [vmem:[%s211 + $0xd4] sm:%s204]
      %322 = vst [vmem:[%s212 + $0xd8] sm:%s204] %v321
      %v323 = vld [vmem:[%s211 + $0xdc] sm:%s204]
      %324 = vst [vmem:[%s212 + $0xdc] sm:%s204] %v323
      %v325 = vld [vmem:[%s211 + $0xe0] sm:%s204]
      %326 = vst [vmem:[%s212 + $0xe0] sm:%s204] %v325
      %v327 = vld [vmem:[%s211 + $0xe8] sm:%s204]
      %328 = vst [vmem:[%s212 + $0xe4] sm:%s204] %v327
      %v329 = vld [vmem:[%s211 + $0xe4] sm:%s204]
      %330 = vst [vmem:[%s212 + $0xe8] sm:%s204] %v329
      %v331 = vld [vmem:[%s211 + $0xec] sm:%s204]
      %332 = vst [vmem:[%s212 + $0xec] sm:%s204] %v331
      %v333 = vld [vmem:[%s211 + $0xf0] sm:%s204]
      %334 = vst [vmem:[%s212 + $0xf0] sm:%s204] %v333
      %v335 = vld [vmem:[%s211 + $0xf8] sm:%s204]
      %336 = vst [vmem:[%s212 + $0xf4] sm:%s204] %v335
      %v337 = vld [vmem:[%s211 + $0xf4] sm:%s204]
      %338 = vst [vmem:[%s212 + $0xf8] sm:%s204] %v337
      %v339 = vld [vmem:[%s211 + $0xfc] sm:%s204]
      %340 = vst [vmem:[%s212 + $0xfc] sm:%s204] %v339
      %v341 = vld [vmem:[%s211 + $0x100] sm:%s204]
      %342 = vst [vmem:[%s212 + $0x100] sm:%s204] %v341
      %v343 = vld [vmem:[%s211 + $0x108] sm:%s204]
      %344 = vst [vmem:[%s212 + $0x104] sm:%s204] %v343
      %v345 = vld [vmem:[%s211 + $0x104] sm:%s204]
      %346 = vst [vmem:[%s212 + $0x108] sm:%s204] %v345
      %v347 = vld [vmem:[%s211 + $0x10c] sm:%s204]
      %348 = vst [vmem:[%s212 + $0x10c] sm:%s204] %v347
      %v349 = vld [vmem:[%s211 + $0x110] sm:%s204]
      %350 = vst [vmem:[%s212 + $0x110] sm:%s204] %v349
      %v351 = vld [vmem:[%s211 + $0x118] sm:%s204]
      %352 = vst [vmem:[%s212 + $0x114] sm:%s204] %v351
      %v353 = vld [vmem:[%s211 + $0x114] sm:%s204]
      %354 = vst [vmem:[%s212 + $0x118] sm:%s204] %v353
      %v355 = vld [vmem:[%s211 + $0x11c] sm:%s204]
      %356 = vst [vmem:[%s212 + $0x11c] sm:%s204] %v355
      %v357 = vld [vmem:[%s211 + $0x120] sm:%s204]
      %358 = vst [vmem:[%s212 + $0x120] sm:%s204] %v357
      %v359 = vld [vmem:[%s211 + $0x128] sm:%s204]
      %360 = vst [vmem:[%s212 + $0x124] sm:%s204] %v359
      %v361 = vld [vmem:[%s211 + $0x124] sm:%s204]
      %362 = vst [vmem:[%s212 + $0x128] sm:%s204] %v361
      %v363 = vld [vmem:[%s211 + $0x12c] sm:%s204]
      %364 = vst [vmem:[%s212 + $0x12c] sm:%s204] %v363
      %v365 = vld [vmem:[%s211 + $0x130] sm:%s204]
      %366 = vst [vmem:[%s212 + $0x130] sm:%s204] %v365
      %v367 = vld [vmem:[%s211 + $0x138] sm:%s204]
      %368 = vst [vmem:[%s212 + $0x134] sm:%s204] %v367
      %v369 = vld [vmem:[%s211 + $0x134] sm:%s204]
      %370 = vst [vmem:[%s212 + $0x138] sm:%s204] %v369
      %v371 = vld [vmem:[%s211 + $0x13c] sm:%s204]
      %372 = vst [vmem:[%s212 + $0x13c] sm:%s204] %v371
      %v373 = vld [vmem:[%s211 + $0x140] sm:%s204]
      %374 = vst [vmem:[%s212 + $0x140] sm:%s204] %v373
      %v375 = vld [vmem:[%s211 + $0x148] sm:%s204]
      %376 = vst [vmem:[%s212 + $0x144] sm:%s204] %v375
      %v377 = vld [vmem:[%s211 + $0x144] sm:%s204]
      %378 = vst [vmem:[%s212 + $0x148] sm:%s204] %v377
      %v379 = vld [vmem:[%s211 + $0x14c] sm:%s204]
      %380 = vst [vmem:[%s212 + $0x14c] sm:%s204] %v379
      %v381 = vld [vmem:[%s211 + $0x150] sm:%s204]
      %382 = vst [vmem:[%s212 + $0x150] sm:%s204] %v381
      %v383 = vld [vmem:[%s211 + $0x158] sm:%s204]
      %384 = vst [vmem:[%s212 + $0x154] sm:%s204] %v383
      %v385 = vld [vmem:[%s211 + $0x154] sm:%s204]
      %386 = vst [vmem:[%s212 + $0x158] sm:%s204] %v385
      %v387 = vld [vmem:[%s211 + $0x15c] sm:%s204]
      %388 = vst [vmem:[%s212 + $0x15c] sm:%s204] %v387
      %v389 = vld [vmem:[%s211 + $0x160] sm:%s204]
      %390 = vst [vmem:[%s212 + $0x160] sm:%s204] %v389
      %v391 = vld [vmem:[%s211 + $0x168] sm:%s204]
      %392 = vst [vmem:[%s212 + $0x164] sm:%s204] %v391
      %v393 = vld [vmem:[%s211 + $0x164] sm:%s204]
      %394 = vst [vmem:[%s212 + $0x168] sm:%s204] %v393
      %v395 = vld [vmem:[%s211 + $0x16c] sm:%s204]
      %396 = vst [vmem:[%s212 + $0x16c] sm:%s204] %v395
      %v397 = vld [vmem:[%s211 + $0x170] sm:%s204]
      %398 = vst [vmem:[%s212 + $0x170] sm:%s204] %v397
      %v399 = vld [vmem:[%s211 + $0x178] sm:%s204]
      %400 = vst [vmem:[%s212 + $0x174] sm:%s204] %v399
      %v401 = vld [vmem:[%s211 + $0x174] sm:%s204]
      %402 = vst [vmem:[%s212 + $0x178] sm:%s204] %v401
      %v403 = vld [vmem:[%s211 + $0x17c] sm:%s204]
      %404 = vst [vmem:[%s212 + $0x17c] sm:%s204] %v403
      %v405 = vld [vmem:[%s211 + $0x180] sm:%s204]
      %406 = vst [vmem:[%s212 + $0x180] sm:%s204] %v405
      %v407 = vld [vmem:[%s211 + $0x188] sm:%s204]
      %408 = vst [vmem:[%s212 + $0x184] sm:%s204] %v407
      %v409 = vld [vmem:[%s211 + $0x184] sm:%s204]
      %410 = vst [vmem:[%s212 + $0x188] sm:%s204] %v409
      %v411 = vld [vmem:[%s211 + $0x18c] sm:%s204]
      %412 = vst [vmem:[%s212 + $0x18c] sm:%s204] %v411
      %v413 = vld [vmem:[%s211 + $0x190] sm:%s204]
      %414 = vst [vmem:[%s212 + $0x190] sm:%s204] %v413
      %v415 = vld [vmem:[%s211 + $0x198] sm:%s204]
      %416 = vst [vmem:[%s212 + $0x194] sm:%s204] %v415
      %v417 = vld [vmem:[%s211 + $0x194] sm:%s204]
      %418 = vst [vmem:[%s212 + $0x198] sm:%s204] %v417
      %v419 = vld [vmem:[%s211 + $0x19c] sm:%s204]
      %420 = vst [vmem:[%s212 + $0x19c] sm:%s204] %v419
      %v421 = vld [vmem:[%s211 + $0x1a0] sm:%s204]
      %422 = vst [vmem:[%s212 + $0x1a0] sm:%s204] %v421
      %v423 = vld [vmem:[%s211 + $0x1a8] sm:%s204]
      %424 = vst [vmem:[%s212 + $0x1a4] sm:%s204] %v423
      %v425 = vld [vmem:[%s211 + $0x1a4] sm:%s204]
      %426 = vst [vmem:[%s212 + $0x1a8] sm:%s204] %v425
      %v427 = vld [vmem:[%s211 + $0x1ac] sm:%s204]
      %428 = vst [vmem:[%s212 + $0x1ac] sm:%s204] %v427
      %v429 = vld [vmem:[%s211 + $0x1b0] sm:%s204]
      %430 = vst [vmem:[%s212 + $0x1b0] sm:%s204] %v429
      %v431 = vld [vmem:[%s211 + $0x1b8] sm:%s204]
      %432 = vst [vmem:[%s212 + $0x1b4] sm:%s204] %v431
      %v433 = vld [vmem:[%s211 + $0x1b4] sm:%s204]
      %434 = vst [vmem:[%s212 + $0x1b8] sm:%s204] %v433
      %v435 = vld [vmem:[%s211 + $0x1bc] sm:%s204]
      %436 = vst [vmem:[%s212 + $0x1bc] sm:%s204] %v435
      %v437 = vld [vmem:[%s211 + $0x1c0] sm:%s204]
      %438 = vst [vmem:[%s212 + $0x1c0] sm:%s204] %v437
      %v439 = vld [vmem:[%s211 + $0x1c8] sm:%s204]
      %440 = vst [vmem:[%s212 + $0x1c4] sm:%s204] %v439
      %v441 = vld [vmem:[%s211 + $0x1c4] sm:%s204]
      %442 = vst [vmem:[%s212 + $0x1c8] sm:%s204] %v441
      %v443 = vld [vmem:[%s211 + $0x1cc] sm:%s204]
      %444 = vst [vmem:[%s212 + $0x1cc] sm:%s204] %v443
      %v445 = vld [vmem:[%s211 + $0x1d0] sm:%s204]
      %446 = vst [vmem:[%s212 + $0x1d0] sm:%s204] %v445
      %v447 = vld [vmem:[%s211 + $0x1d8] sm:%s204]
      %448 = vst [vmem:[%s212 + $0x1d4] sm:%s204] %v447
      %v449 = vld [vmem:[%s211 + $0x1d4] sm:%s204]
      %450 = vst [vmem:[%s212 + $0x1d8] sm:%s204] %v449
      %v451 = vld [vmem:[%s211 + $0x1dc] sm:%s204]
      %452 = vst [vmem:[%s212 + $0x1dc] sm:%s204] %v451
      %v453 = vld [vmem:[%s211 + $0x1e0] sm:%s204]
      %454 = vst [vmem:[%s212 + $0x1e0] sm:%s204] %v453
      %v455 = vld [vmem:[%s211 + $0x1e8] sm:%s204]
      %456 = vst [vmem:[%s212 + $0x1e4] sm:%s204] %v455
      %v457 = vld [vmem:[%s211 + $0x1e4] sm:%s204]
      %458 = vst [vmem:[%s212 + $0x1e8] sm:%s204] %v457
      %v459 = vld [vmem:[%s211 + $0x1ec] sm:%s204]
      %460 = vst [vmem:[%s212 + $0x1ec] sm:%s204] %v459
      %v461 = vld [vmem:[%s211 + $0x1f0] sm:%s204]
      %462 = vst [vmem:[%s212 + $0x1f0] sm:%s204] %v461
      %v463 = vld [vmem:[%s211 + $0x1f8] sm:%s204]
      %464 = vst [vmem:[%s212 + $0x1f4] sm:%s204] %v463
      %v465 = vld [vmem:[%s211 + $0x1f4] sm:%s204]
      %466 = vst [vmem:[%s212 + $0x1f8] sm:%s204] %v465
      %v467 = vld [vmem:[%s211 + $0x1fc] sm:%s204]
      %468 = vst [vmem:[%s212 + $0x1fc] sm:%s204] %v467
      %v469 = vld [vmem:[%s211 + $0x200] sm:%s204]
      %470 = vst [vmem:[%s212 + $0x200] sm:%s204] %v469
      %v471 = vld [vmem:[%s211 + $0x208] sm:%s204]
      %472 = vst [vmem:[%s212 + $0x204] sm:%s204] %v471
      %v473 = vld [vmem:[%s211 + $0x204] sm:%s204]
      %474 = vst [vmem:[%s212 + $0x208] sm:%s204] %v473
      %v475 = vld [vmem:[%s211 + $0x20c] sm:%s204]
      %476 = vst [vmem:[%s212 + $0x20c] sm:%s204] %v475
      %v477 = vld [vmem:[%s211 + $0x210] sm:%s204]
      %478 = vst [vmem:[%s212 + $0x210] sm:%s204] %v477
      %v479 = vld [vmem:[%s211 + $0x218] sm:%s204]
      %480 = vst [vmem:[%s212 + $0x214] sm:%s204] %v479
      %v481 = vld [vmem:[%s211 + $0x214] sm:%s204]
      %482 = vst [vmem:[%s212 + $0x218] sm:%s204] %v481
      %v483 = vld [vmem:[%s211 + $0x21c] sm:%s204]
      %484 = vst [vmem:[%s212 + $0x21c] sm:%s204] %v483
      %v485 = vld [vmem:[%s211 + $0x220] sm:%s204]
      %486 = vst [vmem:[%s212 + $0x220] sm:%s204] %v485
      %v487 = vld [vmem:[%s211 + $0x228] sm:%s204]
      %488 = vst [vmem:[%s212 + $0x224] sm:%s204] %v487
      %v489 = vld [vmem:[%s211 + $0x224] sm:%s204]
      %490 = vst [vmem:[%s212 + $0x228] sm:%s204] %v489
      %v491 = vld [vmem:[%s211 + $0x22c] sm:%s204]
      %492 = vst [vmem:[%s212 + $0x22c] sm:%s204] %v491
      %v493 = vld [vmem:[%s211 + $0x230] sm:%s204]
      %494 = vst [vmem:[%s212 + $0x230] sm:%s204] %v493
      %v495 = vld [vmem:[%s211 + $0x238] sm:%s204]
      %496 = vst [vmem:[%s212 + $0x234] sm:%s204] %v495
      %v497 = vld [vmem:[%s211 + $0x234] sm:%s204]
      %498 = vst [vmem:[%s212 + $0x238] sm:%s204] %v497
      %v499 = vld [vmem:[%s211 + $0x23c] sm:%s204]
      %500 = vst [vmem:[%s212 + $0x23c] sm:%s204] %v499
      %v501 = vld [vmem:[%s211 + $0x240] sm:%s204]
      %502 = vst [vmem:[%s212 + $0x240] sm:%s204] %v501
      %v503 = vld [vmem:[%s211 + $0x248] sm:%s204]
      %504 = vst [vmem:[%s212 + $0x244] sm:%s204] %v503
      %v505 = vld [vmem:[%s211 + $0x244] sm:%s204]
      %506 = vst [vmem:[%s212 + $0x248] sm:%s204] %v505
      %v507 = vld [vmem:[%s211 + $0x24c] sm:%s204]
      %508 = vst [vmem:[%s212 + $0x24c] sm:%s204] %v507
      %v509 = vld [vmem:[%s211 + $0x250] sm:%s204]
      %510 = vst [vmem:[%s212 + $0x250] sm:%s204] %v509
      %v511 = vld [vmem:[%s211 + $0x258] sm:%s204]
      %512 = vst [vmem:[%s212 + $0x254] sm:%s204] %v511
      %v513 = vld [vmem:[%s211 + $0x254] sm:%s204]
      %514 = vst [vmem:[%s212 + $0x258] sm:%s204] %v513
      %v515 = vld [vmem:[%s211 + $0x25c] sm:%s204]
      %516 = vst [vmem:[%s212 + $0x25c] sm:%s204] %v515
      %v517 = vld [vmem:[%s211 + $0x260] sm:%s204]
      %518 = vst [vmem:[%s212 + $0x260] sm:%s204] %v517
      %v519 = vld [vmem:[%s211 + $0x268] sm:%s204]
      %520 = vst [vmem:[%s212 + $0x264] sm:%s204] %v519
      %v521 = vld [vmem:[%s211 + $0x264] sm:%s204]
      %522 = vst [vmem:[%s212 + $0x268] sm:%s204] %v521
      %v523 = vld [vmem:[%s211 + $0x26c] sm:%s204]
      %524 = vst [vmem:[%s212 + $0x26c] sm:%s204] %v523
      %v525 = vld [vmem:[%s211 + $0x270] sm:%s204]
      %526 = vst [vmem:[%s212 + $0x270] sm:%s204] %v525
      %v527 = vld [vmem:[%s211 + $0x278] sm:%s204]
      %528 = vst [vmem:[%s212 + $0x274] sm:%s204] %v527
      %v529 = vld [vmem:[%s211 + $0x274] sm:%s204]
      %530 = vst [vmem:[%s212 + $0x278] sm:%s204] %v529
      %v531 = vld [vmem:[%s211 + $0x27c] sm:%s204]
      %532 = vst [vmem:[%s212 + $0x27c] sm:%s204] %v531
      %v533 = vld [vmem:[%s211 + $0x280] sm:%s204]
      %534 = vst [vmem:[%s212 + $0x280] sm:%s204] %v533
      %v535 = vld [vmem:[%s211 + $0x288] sm:%s204]
      %536 = vst [vmem:[%s212 + $0x284] sm:%s204] %v535
      %v537 = vld [vmem:[%s211 + $0x284] sm:%s204]
      %538 = vst [vmem:[%s212 + $0x288] sm:%s204] %v537
      %v539 = vld [vmem:[%s211 + $0x28c] sm:%s204]
      %540 = vst [vmem:[%s212 + $0x28c] sm:%s204] %v539
      %v541 = vld [vmem:[%s211 + $0x290] sm:%s204]
      %542 = vst [vmem:[%s212 + $0x290] sm:%s204] %v541
      %v543 = vld [vmem:[%s211 + $0x298] sm:%s204]
      %544 = vst [vmem:[%s212 + $0x294] sm:%s204] %v543
      %v545 = vld [vmem:[%s211 + $0x294] sm:%s204]
      %546 = vst [vmem:[%s212 + $0x298] sm:%s204] %v545
      %v547 = vld [vmem:[%s211 + $0x29c] sm:%s204]
      %548 = vst [vmem:[%s212 + $0x29c] sm:%s204] %v547
      %v549 = vld [vmem:[%s211 + $0x2a0] sm:%s204]
      %550 = vst [vmem:[%s212 + $0x2a0] sm:%s204] %v549
      %v551 = vld [vmem:[%s211 + $0x2a8] sm:%s204]
      %552 = vst [vmem:[%s212 + $0x2a4] sm:%s204] %v551
      %v553 = vld [vmem:[%s211 + $0x2a4] sm:%s204]
      %554 = vst [vmem:[%s212 + $0x2a8] sm:%s204] %v553
      %v555 = vld [vmem:[%s211 + $0x2ac] sm:%s204]
      %556 = vst [vmem:[%s212 + $0x2ac] sm:%s204] %v555
      %v557 = vld [vmem:[%s211 + $0x2b0] sm:%s204]
      %558 = vst [vmem:[%s212 + $0x2b0] sm:%s204] %v557
      %v559 = vld [vmem:[%s211 + $0x2b8] sm:%s204]
      %560 = vst [vmem:[%s212 + $0x2b4] sm:%s204] %v559
      %v561 = vld [vmem:[%s211 + $0x2b4] sm:%s204]
      %562 = vst [vmem:[%s212 + $0x2b8] sm:%s204] %v561
      %v563 = vld [vmem:[%s211 + $0x2bc] sm:%s204]
      %564 = vst [vmem:[%s212 + $0x2bc] sm:%s204] %v563
      %v565 = vld [vmem:[%s211 + $0x2c0] sm:%s204]
      %566 = vst [vmem:[%s212 + $0x2c0] sm:%s204] %v565
      %v567 = vld [vmem:[%s211 + $0x2c8] sm:%s204]
      %568 = vst [vmem:[%s212 + $0x2c4] sm:%s204] %v567
      %v569 = vld [vmem:[%s211 + $0x2c4] sm:%s204]
      %570 = vst [vmem:[%s212 + $0x2c8] sm:%s204] %v569
      %v571 = vld [vmem:[%s211 + $0x2cc] sm:%s204]
      %572 = vst [vmem:[%s212 + $0x2cc] sm:%s204] %v571
      %v573 = vld [vmem:[%s211 + $0x2d0] sm:%s204]
      %574 = vst [vmem:[%s212 + $0x2d0] sm:%s204] %v573
      %v575 = vld [vmem:[%s211 + $0x2d8] sm:%s204]
      %576 = vst [vmem:[%s212 + $0x2d4] sm:%s204] %v575
      %v577 = vld [vmem:[%s211 + $0x2d4] sm:%s204]
      %578 = vst [vmem:[%s212 + $0x2d8] sm:%s204] %v577
      %v579 = vld [vmem:[%s211 + $0x2dc] sm:%s204]
      %580 = vst [vmem:[%s212 + $0x2dc] sm:%s204] %v579
      %v581 = vld [vmem:[%s211 + $0x2e0] sm:%s204]
      %582 = vst [vmem:[%s212 + $0x2e0] sm:%s204] %v581
      %v583 = vld [vmem:[%s211 + $0x2e8] sm:%s204]
      %584 = vst [vmem:[%s212 + $0x2e4] sm:%s204] %v583
      %v585 = vld [vmem:[%s211 + $0x2e4] sm:%s204]
      %586 = vst [vmem:[%s212 + $0x2e8] sm:%s204] %v585
      %v587 = vld [vmem:[%s211 + $0x2ec] sm:%s204]
      %588 = vst [vmem:[%s212 + $0x2ec] sm:%s204] %v587
      %v589 = vld [vmem:[%s211 + $0x2f0] sm:%s204]
      %590 = vst [vmem:[%s212 + $0x2f0] sm:%s204] %v589
      %v591 = vld [vmem:[%s211 + $0x2f8] sm:%s204]
      %592 = vst [vmem:[%s212 + $0x2f4] sm:%s204] %v591
      %v593 = vld [vmem:[%s211 + $0x2f4] sm:%s204]
      %594 = vst [vmem:[%s212 + $0x2f8] sm:%s204] %v593
      %v595 = vld [vmem:[%s211 + $0x2fc] sm:%s204]
      %596 = vst [vmem:[%s212 + $0x2fc] sm:%s204] %v595
    $region112: #{duma_forward.1} parent=106 // loop_footer
      %s210 = sadd.s32 1, %s206
    $region113: #{duma_forward.1} parent=106 // loop_footer_branch
      %205 = sbr.rel target = $region109
    $region114: #{duma_forward.1} parent=106 // loop_exit
      _
  $region107: #{duma_forward.1} parent=0 // pred_fallthru
    _
  // Predicated region
  $region133: #{duma_forward.1} parent=0 // pred_check
    _
  $region134: #{duma_forward.1} parent=0 // pred_check_branch
    %1010 = sbr.rel (0) target = $region136
  $region135: #{duma_forward.1} parent=0 // pred_region
    %1011 = vsyncadd %s195, 12288
  $region136: #{duma_forward.1} parent=0 // pred_fallthru
    _
  %s1012 = scalar_lea.sflag [#allocation5], 2
  %p1014 = scmp.lt.u32.totalorder 4, 8
  %p1015 = pneg %p1014
  // Predicated region
  $region137: #{duma_forward.1} parent=0 // pred_check
    _
  $region138: #{duma_forward.1} parent=0 // pred_check_branch
    %1017 = sbr.rel (%p1014) target = $region140
  $region139: #{duma_forward.1} parent=0 // pred_region
    %s1222 = sand.u32 4, 7
    %p1223 = scmp.eq.s32.totalorder %s1222, 0
    %p1224 = pneg %p1223
    // Predicated region
    $region152: #{duma_forward.1} parent=139 // pred_check
      _
    $region153: #{duma_forward.1} parent=139 // pred_check_branch
      %1226 = sbr.rel (%p1223) target = $region155
    $region154: #{duma_forward.1} parent=139 // pred_region
      %s1227 = sand.u32 4, 7
      %s1228 = ssub.s32 4, %s1227
      %s1229 = scalar_lea.vmem %s12, %s1228
      %s1230 = ssub.s32 4, %s1227
      %s1231 = scalar_lea.vmem [#allocation4], %s1230
      loop: start=0, step=1, limit=1
      $region156: #{duma_forward.1} parent=154 // loop_pre_header
        _
      $region157: #{duma_forward.1} parent=154 // loop_header
        %s1233 = sphi 0, %s1237
        %p1234 = scmp.ge.s32.totalorder %s1233, 1
        %s1238 = sphi %s12, %s12
        %s1239 = sphi [#allocation4], [#allocation4]
      $region158: #{duma_forward.1} parent=154 // loop_header_branch
        %1236 = sbr.rel (%p1234) target = $region162
      $region159: #{duma_forward.1} parent=154 // loop_body
        _
      $region160: #{duma_forward.1} parent=154 // loop_footer
        %s1237 = sadd.s32 1, %s1233
      $region161: #{duma_forward.1} parent=154 // loop_footer_branch
        %1232 = sbr.rel target = $region157
      $region162: #{duma_forward.1} parent=154 // loop_exit
        _
      %s1240 = sshllo.u32 0, %s1227
      loop: start=0, step=1, limit=1
      $region163: #{duma_forward.1} parent=154 // loop_pre_header
        _
      $region164: #{duma_forward.1} parent=154 // loop_header
        %s1242 = sphi 0, %s1246
        %p1243 = scmp.ge.s32.totalorder %s1242, 1
        %s1247 = sphi %s1229, %s1229
        %s1248 = sphi %s1231, %s1231
      $region165: #{duma_forward.1} parent=154 // loop_header_branch
        %1245 = sbr.rel (%p1243) target = $region169
      $region166: #{duma_forward.1} parent=154 // loop_body
        %v1249 = vld [vmem:[%s1247] sm:%s1240]
        %1250 = vst [vmem:[%s1248] sm:%s1240] %v1249
        %v1251 = vld [vmem:[%s1247 + $0x18] sm:%s1240]
        %1252 = vst [vmem:[%s1248 + $0x4] sm:%s1240] %v1251
        %v1253 = vld [vmem:[%s1247 + $0x4] sm:%s1240]
        %1254 = vst [vmem:[%s1248 + $0x8] sm:%s1240] %v1253
        %v1255 = vld [vmem:[%s1247 + $0x1c] sm:%s1240]
        %1256 = vst [vmem:[%s1248 + $0xc] sm:%s1240] %v1255
        %v1257 = vld [vmem:[%s1247 + $0x8] sm:%s1240]
        %1258 = vst [vmem:[%s1248 + $0x10] sm:%s1240] %v1257
        %v1259 = vld [vmem:[%s1247 + $0x20] sm:%s1240]
        %1260 = vst [vmem:[%s1248 + $0x14] sm:%s1240] %v1259
        %v1261 = vld [vmem:[%s1247 + $0xc] sm:%s1240]
        %1262 = vst [vmem:[%s1248 + $0x18] sm:%s1240] %v1261
        %v1263 = vld [vmem:[%s1247 + $0x24] sm:%s1240]
        %1264 = vst [vmem:[%s1248 + $0x1c] sm:%s1240] %v1263
        %v1265 = vld [vmem:[%s1247 + $0x10] sm:%s1240]
        %1266 = vst [vmem:[%s1248 + $0x20] sm:%s1240] %v1265
        %v1267 = vld [vmem:[%s1247 + $0x28] sm:%s1240]
        %1268 = vst [vmem:[%s1248 + $0x24] sm:%s1240] %v1267
        %v1269 = vld [vmem:[%s1247 + $0x14] sm:%s1240]
        %1270 = vst [vmem:[%s1248 + $0x28] sm:%s1240] %v1269
        %v1271 = vld [vmem:[%s1247 + $0x2c] sm:%s1240]
        %1272 = vst [vmem:[%s1248 + $0x2c] sm:%s1240] %v1271
        %v1273 = vld [vmem:[%s1247 + $0x30] sm:%s1240]
        %1274 = vst [vmem:[%s1248 + $0x30] sm:%s1240] %v1273
        %v1275 = vld [vmem:[%s1247 + $0x48] sm:%s1240]
        %1276 = vst [vmem:[%s1248 + $0x34] sm:%s1240] %v1275
        %v1277 = vld [vmem:[%s1247 + $0x34] sm:%s1240]
        %1278 = vst [vmem:[%s1248 + $0x38] sm:%s1240] %v1277
        %v1279 = vld [vmem:[%s1247 + $0x4c] sm:%s1240]
        %1280 = vst [vmem:[%s1248 + $0x3c] sm:%s1240] %v1279
        %v1281 = vld [vmem:[%s1247 + $0x38] sm:%s1240]
        %1282 = vst [vmem:[%s1248 + $0x40] sm:%s1240] %v1281
        %v1283 = vld [vmem:[%s1247 + $0x50] sm:%s1240]
        %1284 = vst [vmem:[%s1248 + $0x44] sm:%s1240] %v1283
        %v1285 = vld [vmem:[%s1247 + $0x3c] sm:%s1240]
        %1286 = vst [vmem:[%s1248 + $0x48] sm:%s1240] %v1285
        %v1287 = vld [vmem:[%s1247 + $0x54] sm:%s1240]
        %1288 = vst [vmem:[%s1248 + $0x4c] sm:%s1240] %v1287
        %v1289 = vld [vmem:[%s1247 + $0x40] sm:%s1240]
        %1290 = vst [vmem:[%s1248 + $0x50] sm:%s1240] %v1289
        %v1291 = vld [vmem:[%s1247 + $0x58] sm:%s1240]
        %1292 = vst [vmem:[%s1248 + $0x54] sm:%s1240] %v1291
        %v1293 = vld [vmem:[%s1247 + $0x44] sm:%s1240]
        %1294 = vst [vmem:[%s1248 + $0x58] sm:%s1240] %v1293
        %v1295 = vld [vmem:[%s1247 + $0x5c] sm:%s1240]
        %1296 = vst [vmem:[%s1248 + $0x5c] sm:%s1240] %v1295
        %v1297 = vld [vmem:[%s1247 + $0x60] sm:%s1240]
        %1298 = vst [vmem:[%s1248 + $0x60] sm:%s1240] %v1297
        %v1299 = vld [vmem:[%s1247 + $0x78] sm:%s1240]
        %1300 = vst [vmem:[%s1248 + $0x64] sm:%s1240] %v1299
        %v1301 = vld [vmem:[%s1247 + $0x64] sm:%s1240]
        %1302 = vst [vmem:[%s1248 + $0x68] sm:%s1240] %v1301
        %v1303 = vld [vmem:[%s1247 + $0x7c] sm:%s1240]
        %1304 = vst [vmem:[%s1248 + $0x6c] sm:%s1240] %v1303
        %v1305 = vld [vmem:[%s1247 + $0x68] sm:%s1240]
        %1306 = vst [vmem:[%s1248 + $0x70] sm:%s1240] %v1305
        %v1307 = vld [vmem:[%s1247 + $0x80] sm:%s1240]
        %1308 = vst [vmem:[%s1248 + $0x74] sm:%s1240] %v1307
        %v1309 = vld [vmem:[%s1247 + $0x6c] sm:%s1240]
        %1310 = vst [vmem:[%s1248 + $0x78] sm:%s1240] %v1309
        %v1311 = vld [vmem:[%s1247 + $0x84] sm:%s1240]
        %1312 = vst [vmem:[%s1248 + $0x7c] sm:%s1240] %v1311
        %v1313 = vld [vmem:[%s1247 + $0x70] sm:%s1240]
        %1314 = vst [vmem:[%s1248 + $0x80] sm:%s1240] %v1313
        %v1315 = vld [vmem:[%s1247 + $0x88] sm:%s1240]
        %1316 = vst [vmem:[%s1248 + $0x84] sm:%s1240] %v1315
        %v1317 = vld [vmem:[%s1247 + $0x74] sm:%s1240]
        %1318 = vst [vmem:[%s1248 + $0x88] sm:%s1240] %v1317
        %v1319 = vld [vmem:[%s1247 + $0x8c] sm:%s1240]
        %1320 = vst [vmem:[%s1248 + $0x8c] sm:%s1240] %v1319
        %v1321 = vld [vmem:[%s1247 + $0x90] sm:%s1240]
        %1322 = vst [vmem:[%s1248 + $0x90] sm:%s1240] %v1321
        %v1323 = vld [vmem:[%s1247 + $0xa8] sm:%s1240]
        %1324 = vst [vmem:[%s1248 + $0x94] sm:%s1240] %v1323
        %v1325 = vld [vmem:[%s1247 + $0x94] sm:%s1240]
        %1326 = vst [vmem:[%s1248 + $0x98] sm:%s1240] %v1325
        %v1327 = vld [vmem:[%s1247 + $0xac] sm:%s1240]
        %1328 = vst [vmem:[%s1248 + $0x9c] sm:%s1240] %v1327
        %v1329 = vld [vmem:[%s1247 + $0x98] sm:%s1240]
        %1330 = vst [vmem:[%s1248 + $0xa0] sm:%s1240] %v1329
        %v1331 = vld [vmem:[%s1247 + $0xb0] sm:%s1240]
        %1332 = vst [vmem:[%s1248 + $0xa4] sm:%s1240] %v1331
        %v1333 = vld [vmem:[%s1247 + $0x9c] sm:%s1240]
        %1334 = vst [vmem:[%s1248 + $0xa8] sm:%s1240] %v1333
        %v1335 = vld [vmem:[%s1247 + $0xb4] sm:%s1240]
        %1336 = vst [vmem:[%s1248 + $0xac] sm:%s1240] %v1335
        %v1337 = vld [vmem:[%s1247 + $0xa0] sm:%s1240]
        %1338 = vst [vmem:[%s1248 + $0xb0] sm:%s1240] %v1337
        %v1339 = vld [vmem:[%s1247 + $0xb8] sm:%s1240]
        %1340 = vst [vmem:[%s1248 + $0xb4] sm:%s1240] %v1339
        %v1341 = vld [vmem:[%s1247 + $0xa4] sm:%s1240]
        %1342 = vst [vmem:[%s1248 + $0xb8] sm:%s1240] %v1341
        %v1343 = vld [vmem:[%s1247 + $0xbc] sm:%s1240]
        %1344 = vst [vmem:[%s1248 + $0xbc] sm:%s1240] %v1343
        %v1345 = vld [vmem:[%s1247 + $0xc0] sm:%s1240]
        %1346 = vst [vmem:[%s1248 + $0xc0] sm:%s1240] %v1345
        %v1347 = vld [vmem:[%s1247 + $0xd8] sm:%s1240]
        %1348 = vst [vmem:[%s1248 + $0xc4] sm:%s1240] %v1347
        %v1349 = vld [vmem:[%s1247 + $0xc4] sm:%s1240]
        %1350 = vst [vmem:[%s1248 + $0xc8] sm:%s1240] %v1349
        %v1351 = vld [vmem:[%s1247 + $0xdc] sm:%s1240]
        %1352 = vst [vmem:[%s1248 + $0xcc] sm:%s1240] %v1351
        %v1353 = vld [vmem:[%s1247 + $0xc8] sm:%s1240]
        %1354 = vst [vmem:[%s1248 + $0xd0] sm:%s1240] %v1353
        %v1355 = vld [vmem:[%s1247 + $0xe0] sm:%s1240]
        %1356 = vst [vmem:[%s1248 + $0xd4] sm:%s1240] %v1355
        %v1357 = vld [vmem:[%s1247 + $0xcc] sm:%s1240]
        %1358 = vst [vmem:[%s1248 + $0xd8] sm:%s1240] %v1357
        %v1359 = vld [vmem:[%s1247 + $0xe4] sm:%s1240]
        %1360 = vst [vmem:[%s1248 + $0xdc] sm:%s1240] %v1359
        %v1361 = vld [vmem:[%s1247 + $0xd0] sm:%s1240]
        %1362 = vst [vmem:[%s1248 + $0xe0] sm:%s1240] %v1361
        %v1363 = vld [vmem:[%s1247 + $0xe8] sm:%s1240]
        %1364 = vst [vmem:[%s1248 + $0xe4] sm:%s1240] %v1363
        %v1365 = vld [vmem:[%s1247 + $0xd4] sm:%s1240]
        %1366 = vst [vmem:[%s1248 + $0xe8] sm:%s1240] %v1365
        %v1367 = vld [vmem:[%s1247 + $0xec] sm:%s1240]
        %1368 = vst [vmem:[%s1248 + $0xec] sm:%s1240] %v1367
        %v1369 = vld [vmem:[%s1247 + $0xf0] sm:%s1240]
        %1370 = vst [vmem:[%s1248 + $0xf0] sm:%s1240] %v1369
        %v1371 = vld [vmem:[%s1247 + $0x108] sm:%s1240]
        %1372 = vst [vmem:[%s1248 + $0xf4] sm:%s1240] %v1371
        %v1373 = vld [vmem:[%s1247 + $0xf4] sm:%s1240]
        %1374 = vst [vmem:[%s1248 + $0xf8] sm:%s1240] %v1373
        %v1375 = vld [vmem:[%s1247 + $0x10c] sm:%s1240]
        %1376 = vst [vmem:[%s1248 + $0xfc] sm:%s1240] %v1375
        %v1377 = vld [vmem:[%s1247 + $0xf8] sm:%s1240]
        %1378 = vst [vmem:[%s1248 + $0x100] sm:%s1240] %v1377
        %v1379 = vld [vmem:[%s1247 + $0x110] sm:%s1240]
        %1380 = vst [vmem:[%s1248 + $0x104] sm:%s1240] %v1379
        %v1381 = vld [vmem:[%s1247 + $0xfc] sm:%s1240]
        %1382 = vst [vmem:[%s1248 + $0x108] sm:%s1240] %v1381
        %v1383 = vld [vmem:[%s1247 + $0x114] sm:%s1240]
        %1384 = vst [vmem:[%s1248 + $0x10c] sm:%s1240] %v1383
        %v1385 = vld [vmem:[%s1247 + $0x100] sm:%s1240]
        %1386 = vst [vmem:[%s1248 + $0x110] sm:%s1240] %v1385
        %v1387 = vld [vmem:[%s1247 + $0x118] sm:%s1240]
        %1388 = vst [vmem:[%s1248 + $0x114] sm:%s1240] %v1387
        %v1389 = vld [vmem:[%s1247 + $0x104] sm:%s1240]
        %1390 = vst [vmem:[%s1248 + $0x118] sm:%s1240] %v1389
        %v1391 = vld [vmem:[%s1247 + $0x11c] sm:%s1240]
        %1392 = vst [vmem:[%s1248 + $0x11c] sm:%s1240] %v1391
        %v1393 = vld [vmem:[%s1247 + $0x120] sm:%s1240]
        %1394 = vst [vmem:[%s1248 + $0x120] sm:%s1240] %v1393
        %v1395 = vld [vmem:[%s1247 + $0x138] sm:%s1240]
        %1396 = vst [vmem:[%s1248 + $0x124] sm:%s1240] %v1395
        %v1397 = vld [vmem:[%s1247 + $0x124] sm:%s1240]
        %1398 = vst [vmem:[%s1248 + $0x128] sm:%s1240] %v1397
        %v1399 = vld [vmem:[%s1247 + $0x13c] sm:%s1240]
        %1400 = vst [vmem:[%s1248 + $0x12c] sm:%s1240] %v1399
        %v1401 = vld [vmem:[%s1247 + $0x128] sm:%s1240]
        %1402 = vst [vmem:[%s1248 + $0x130] sm:%s1240] %v1401
        %v1403 = vld [vmem:[%s1247 + $0x140] sm:%s1240]
        %1404 = vst [vmem:[%s1248 + $0x134] sm:%s1240] %v1403
        %v1405 = vld [vmem:[%s1247 + $0x12c] sm:%s1240]
        %1406 = vst [vmem:[%s1248 + $0x138] sm:%s1240] %v1405
        %v1407 = vld [vmem:[%s1247 + $0x144] sm:%s1240]
        %1408 = vst [vmem:[%s1248 + $0x13c] sm:%s1240] %v1407
        %v1409 = vld [vmem:[%s1247 + $0x130] sm:%s1240]
        %1410 = vst [vmem:[%s1248 + $0x140] sm:%s1240] %v1409
        %v1411 = vld [vmem:[%s1247 + $0x148] sm:%s1240]
        %1412 = vst [vmem:[%s1248 + $0x144] sm:%s1240] %v1411
        %v1413 = vld [vmem:[%s1247 + $0x134] sm:%s1240]
        %1414 = vst [vmem:[%s1248 + $0x148] sm:%s1240] %v1413
        %v1415 = vld [vmem:[%s1247 + $0x14c] sm:%s1240]
        %1416 = vst [vmem:[%s1248 + $0x14c] sm:%s1240] %v1415
        %v1417 = vld [vmem:[%s1247 + $0x150] sm:%s1240]
        %1418 = vst [vmem:[%s1248 + $0x150] sm:%s1240] %v1417
        %v1419 = vld [vmem:[%s1247 + $0x168] sm:%s1240]
        %1420 = vst [vmem:[%s1248 + $0x154] sm:%s1240] %v1419
        %v1421 = vld [vmem:[%s1247 + $0x154] sm:%s1240]
        %1422 = vst [vmem:[%s1248 + $0x158] sm:%s1240] %v1421
        %v1423 = vld [vmem:[%s1247 + $0x16c] sm:%s1240]
        %1424 = vst [vmem:[%s1248 + $0x15c] sm:%s1240] %v1423
        %v1425 = vld [vmem:[%s1247 + $0x158] sm:%s1240]
        %1426 = vst [vmem:[%s1248 + $0x160] sm:%s1240] %v1425
        %v1427 = vld [vmem:[%s1247 + $0x170] sm:%s1240]
        %1428 = vst [vmem:[%s1248 + $0x164] sm:%s1240] %v1427
        %v1429 = vld [vmem:[%s1247 + $0x15c] sm:%s1240]
        %1430 = vst [vmem:[%s1248 + $0x168] sm:%s1240] %v1429
        %v1431 = vld [vmem:[%s1247 + $0x174] sm:%s1240]
        %1432 = vst [vmem:[%s1248 + $0x16c] sm:%s1240] %v1431
        %v1433 = vld [vmem:[%s1247 + $0x160] sm:%s1240]
        %1434 = vst [vmem:[%s1248 + $0x170] sm:%s1240] %v1433
        %v1435 = vld [vmem:[%s1247 + $0x178] sm:%s1240]
        %1436 = vst [vmem:[%s1248 + $0x174] sm:%s1240] %v1435
        %v1437 = vld [vmem:[%s1247 + $0x164] sm:%s1240]
        %1438 = vst [vmem:[%s1248 + $0x178] sm:%s1240] %v1437
        %v1439 = vld [vmem:[%s1247 + $0x17c] sm:%s1240]
        %1440 = vst [vmem:[%s1248 + $0x17c] sm:%s1240] %v1439
      $region167: #{duma_forward.1} parent=154 // loop_footer
        %s1246 = sadd.s32 1, %s1242
      $region168: #{duma_forward.1} parent=154 // loop_footer_branch
        %1241 = sbr.rel target = $region164
      $region169: #{duma_forward.1} parent=154 // loop_exit
        _
    $region155: #{duma_forward.1} parent=139 // pred_fallthru
      _
  $region140: #{duma_forward.1} parent=0 // pred_fallthru
    _
  // Predicated region
  $region141: #{duma_forward.1} parent=0 // pred_check
    %p1018 = pneg %p1014
  $region142: #{duma_forward.1} parent=0 // pred_check_branch
    %1020 = sbr.rel (%p1018) target = $region144
  $region143: #{duma_forward.1} parent=0 // pred_region
    %s1021 = sshllo.u32 0, 4
    loop: start=0, step=1, limit=1
    $region145: #{duma_forward.1} parent=143 // loop_pre_header
      _
    $region146: #{duma_forward.1} parent=143 // loop_header
      %s1023 = sphi 0, %s1027
      %p1024 = scmp.ge.s32.totalorder %s1023, 1
      %s1028 = sphi %s12, %s12
      %s1029 = sphi [#allocation4], [#allocation4]
    $region147: #{duma_forward.1} parent=143 // loop_header_branch
      %1026 = sbr.rel (%p1024) target = $region151
    $region148: #{duma_forward.1} parent=143 // loop_body
      %v1030 = vld [vmem:[%s1028] sm:%s1021]
      %1031 = vst [vmem:[%s1029] sm:%s1021] %v1030
      %v1032 = vld [vmem:[%s1028 + $0x18] sm:%s1021]
      %1033 = vst [vmem:[%s1029 + $0x4] sm:%s1021] %v1032
      %v1034 = vld [vmem:[%s1028 + $0x4] sm:%s1021]
      %1035 = vst [vmem:[%s1029 + $0x8] sm:%s1021] %v1034
      %v1036 = vld [vmem:[%s1028 + $0x1c] sm:%s1021]
      %1037 = vst [vmem:[%s1029 + $0xc] sm:%s1021] %v1036
      %v1038 = vld [vmem:[%s1028 + $0x8] sm:%s1021]
      %1039 = vst [vmem:[%s1029 + $0x10] sm:%s1021] %v1038
      %v1040 = vld [vmem:[%s1028 + $0x20] sm:%s1021]
      %1041 = vst [vmem:[%s1029 + $0x14] sm:%s1021] %v1040
      %v1042 = vld [vmem:[%s1028 + $0xc] sm:%s1021]
      %1043 = vst [vmem:[%s1029 + $0x18] sm:%s1021] %v1042
      %v1044 = vld [vmem:[%s1028 + $0x24] sm:%s1021]
      %1045 = vst [vmem:[%s1029 + $0x1c] sm:%s1021] %v1044
      %v1046 = vld [vmem:[%s1028 + $0x10] sm:%s1021]
      %1047 = vst [vmem:[%s1029 + $0x20] sm:%s1021] %v1046
      %v1048 = vld [vmem:[%s1028 + $0x28] sm:%s1021]
      %1049 = vst [vmem:[%s1029 + $0x24] sm:%s1021] %v1048
      %v1050 = vld [vmem:[%s1028 + $0x14] sm:%s1021]
      %1051 = vst [vmem:[%s1029 + $0x28] sm:%s1021] %v1050
      %v1052 = vld [vmem:[%s1028 + $0x2c] sm:%s1021]
      %1053 = vst [vmem:[%s1029 + $0x2c] sm:%s1021] %v1052
      %v1054 = vld [vmem:[%s1028 + $0x30] sm:%s1021]
      %1055 = vst [vmem:[%s1029 + $0x30] sm:%s1021] %v1054
      %v1056 = vld [vmem:[%s1028 + $0x48] sm:%s1021]
      %1057 = vst [vmem:[%s1029 + $0x34] sm:%s1021] %v1056
      %v1058 = vld [vmem:[%s1028 + $0x34] sm:%s1021]
      %1059 = vst [vmem:[%s1029 + $0x38] sm:%s1021] %v1058
      %v1060 = vld [vmem:[%s1028 + $0x4c] sm:%s1021]
      %1061 = vst [vmem:[%s1029 + $0x3c] sm:%s1021] %v1060
      %v1062 = vld [vmem:[%s1028 + $0x38] sm:%s1021]
      %1063 = vst [vmem:[%s1029 + $0x40] sm:%s1021] %v1062
      %v1064 = vld [vmem:[%s1028 + $0x50] sm:%s1021]
      %1065 = vst [vmem:[%s1029 + $0x44] sm:%s1021] %v1064
      %v1066 = vld [vmem:[%s1028 + $0x3c] sm:%s1021]
      %1067 = vst [vmem:[%s1029 + $0x48] sm:%s1021] %v1066
      %v1068 = vld [vmem:[%s1028 + $0x54] sm:%s1021]
      %1069 = vst [vmem:[%s1029 + $0x4c] sm:%s1021] %v1068
      %v1070 = vld [vmem:[%s1028 + $0x40] sm:%s1021]
      %1071 = vst [vmem:[%s1029 + $0x50] sm:%s1021] %v1070
      %v1072 = vld [vmem:[%s1028 + $0x58] sm:%s1021]
      %1073 = vst [vmem:[%s1029 + $0x54] sm:%s1021] %v1072
      %v1074 = vld [vmem:[%s1028 + $0x44] sm:%s1021]
      %1075 = vst [vmem:[%s1029 + $0x58] sm:%s1021] %v1074
      %v1076 = vld [vmem:[%s1028 + $0x5c] sm:%s1021]
      %1077 = vst [vmem:[%s1029 + $0x5c] sm:%s1021] %v1076
      %v1078 = vld [vmem:[%s1028 + $0x60] sm:%s1021]
      %1079 = vst [vmem:[%s1029 + $0x60] sm:%s1021] %v1078
      %v1080 = vld [vmem:[%s1028 + $0x78] sm:%s1021]
      %1081 = vst [vmem:[%s1029 + $0x64] sm:%s1021] %v1080
      %v1082 = vld [vmem:[%s1028 + $0x64] sm:%s1021]
      %1083 = vst [vmem:[%s1029 + $0x68] sm:%s1021] %v1082
      %v1084 = vld [vmem:[%s1028 + $0x7c] sm:%s1021]
      %1085 = vst [vmem:[%s1029 + $0x6c] sm:%s1021] %v1084
      %v1086 = vld [vmem:[%s1028 + $0x68] sm:%s1021]
      %1087 = vst [vmem:[%s1029 + $0x70] sm:%s1021] %v1086
      %v1088 = vld [vmem:[%s1028 + $0x80] sm:%s1021]
      %1089 = vst [vmem:[%s1029 + $0x74] sm:%s1021] %v1088
      %v1090 = vld [vmem:[%s1028 + $0x6c] sm:%s1021]
      %1091 = vst [vmem:[%s1029 + $0x78] sm:%s1021] %v1090
      %v1092 = vld [vmem:[%s1028 + $0x84] sm:%s1021]
      %1093 = vst [vmem:[%s1029 + $0x7c] sm:%s1021] %v1092
      %v1094 = vld [vmem:[%s1028 + $0x70] sm:%s1021]
      %1095 = vst [vmem:[%s1029 + $0x80] sm:%s1021] %v1094
      %v1096 = vld [vmem:[%s1028 + $0x88] sm:%s1021]
      %1097 = vst [vmem:[%s1029 + $0x84] sm:%s1021] %v1096
      %v1098 = vld [vmem:[%s1028 + $0x74] sm:%s1021]
      %1099 = vst [vmem:[%s1029 + $0x88] sm:%s1021] %v1098
      %v1100 = vld [vmem:[%s1028 + $0x8c] sm:%s1021]
      %1101 = vst [vmem:[%s1029 + $0x8c] sm:%s1021] %v1100
      %v1102 = vld [vmem:[%s1028 + $0x90] sm:%s1021]
      %1103 = vst [vmem:[%s1029 + $0x90] sm:%s1021] %v1102
      %v1104 = vld [vmem:[%s1028 + $0xa8] sm:%s1021]
      %1105 = vst [vmem:[%s1029 + $0x94] sm:%s1021] %v1104
      %v1106 = vld [vmem:[%s1028 + $0x94] sm:%s1021]
      %1107 = vst [vmem:[%s1029 + $0x98] sm:%s1021] %v1106
      %v1108 = vld [vmem:[%s1028 + $0xac] sm:%s1021]
      %1109 = vst [vmem:[%s1029 + $0x9c] sm:%s1021] %v1108
      %v1110 = vld [vmem:[%s1028 + $0x98] sm:%s1021]
      %1111 = vst [vmem:[%s1029 + $0xa0] sm:%s1021] %v1110
      %v1112 = vld [vmem:[%s1028 + $0xb0] sm:%s1021]
      %1113 = vst [vmem:[%s1029 + $0xa4] sm:%s1021] %v1112
      %v1114 = vld [vmem:[%s1028 + $0x9c] sm:%s1021]
      %1115 = vst [vmem:[%s1029 + $0xa8] sm:%s1021] %v1114
      %v1116 = vld [vmem:[%s1028 + $0xb4] sm:%s1021]
      %1117 = vst [vmem:[%s1029 + $0xac] sm:%s1021] %v1116
      %v1118 = vld [vmem:[%s1028 + $0xa0] sm:%s1021]
      %1119 = vst [vmem:[%s1029 + $0xb0] sm:%s1021] %v1118
      %v1120 = vld [vmem:[%s1028 + $0xb8] sm:%s1021]
      %1121 = vst [vmem:[%s1029 + $0xb4] sm:%s1021] %v1120
      %v1122 = vld [vmem:[%s1028 + $0xa4] sm:%s1021]
      %1123 = vst [vmem:[%s1029 + $0xb8] sm:%s1021] %v1122
      %v1124 = vld [vmem:[%s1028 + $0xbc] sm:%s1021]
      %1125 = vst [vmem:[%s1029 + $0xbc] sm:%s1021] %v1124
      %v1126 = vld [vmem:[%s1028 + $0xc0] sm:%s1021]
      %1127 = vst [vmem:[%s1029 + $0xc0] sm:%s1021] %v1126
      %v1128 = vld [vmem:[%s1028 + $0xd8] sm:%s1021]
      %1129 = vst [vmem:[%s1029 + $0xc4] sm:%s1021] %v1128
      %v1130 = vld [vmem:[%s1028 + $0xc4] sm:%s1021]
      %1131 = vst [vmem:[%s1029 + $0xc8] sm:%s1021] %v1130
      %v1132 = vld [vmem:[%s1028 + $0xdc] sm:%s1021]
      %1133 = vst [vmem:[%s1029 + $0xcc] sm:%s1021] %v1132
      %v1134 = vld [vmem:[%s1028 + $0xc8] sm:%s1021]
      %1135 = vst [vmem:[%s1029 + $0xd0] sm:%s1021] %v1134
      %v1136 = vld [vmem:[%s1028 + $0xe0] sm:%s1021]
      %1137 = vst [vmem:[%s1029 + $0xd4] sm:%s1021] %v1136
      %v1138 = vld [vmem:[%s1028 + $0xcc] sm:%s1021]
      %1139 = vst [vmem:[%s1029 + $0xd8] sm:%s1021] %v1138
      %v1140 = vld [vmem:[%s1028 + $0xe4] sm:%s1021]
      %1141 = vst [vmem:[%s1029 + $0xdc] sm:%s1021] %v1140
      %v1142 = vld [vmem:[%s1028 + $0xd0] sm:%s1021]
      %1143 = vst [vmem:[%s1029 + $0xe0] sm:%s1021] %v1142
      %v1144 = vld [vmem:[%s1028 + $0xe8] sm:%s1021]
      %1145 = vst [vmem:[%s1029 + $0xe4] sm:%s1021] %v1144
      %v1146 = vld [vmem:[%s1028 + $0xd4] sm:%s1021]
      %1147 = vst [vmem:[%s1029 + $0xe8] sm:%s1021] %v1146
      %v1148 = vld [vmem:[%s1028 + $0xec] sm:%s1021]
      %1149 = vst [vmem:[%s1029 + $0xec] sm:%s1021] %v1148
      %v1150 = vld [vmem:[%s1028 + $0xf0] sm:%s1021]
      %1151 = vst [vmem:[%s1029 + $0xf0] sm:%s1021] %v1150
      %v1152 = vld [vmem:[%s1028 + $0x108] sm:%s1021]
      %1153 = vst [vmem:[%s1029 + $0xf4] sm:%s1021] %v1152
      %v1154 = vld [vmem:[%s1028 + $0xf4] sm:%s1021]
      %1155 = vst [vmem:[%s1029 + $0xf8] sm:%s1021] %v1154
      %v1156 = vld [vmem:[%s1028 + $0x10c] sm:%s1021]
      %1157 = vst [vmem:[%s1029 + $0xfc] sm:%s1021] %v1156
      %v1158 = vld [vmem:[%s1028 + $0xf8] sm:%s1021]
      %1159 = vst [vmem:[%s1029 + $0x100] sm:%s1021] %v1158
      %v1160 = vld [vmem:[%s1028 + $0x110] sm:%s1021]
      %1161 = vst [vmem:[%s1029 + $0x104] sm:%s1021] %v1160
      %v1162 = vld [vmem:[%s1028 + $0xfc] sm:%s1021]
      %1163 = vst [vmem:[%s1029 + $0x108] sm:%s1021] %v1162
      %v1164 = vld [vmem:[%s1028 + $0x114] sm:%s1021]
      %1165 = vst [vmem:[%s1029 + $0x10c] sm:%s1021] %v1164
      %v1166 = vld [vmem:[%s1028 + $0x100] sm:%s1021]
      %1167 = vst [vmem:[%s1029 + $0x110] sm:%s1021] %v1166
      %v1168 = vld [vmem:[%s1028 + $0x118] sm:%s1021]
      %1169 = vst [vmem:[%s1029 + $0x114] sm:%s1021] %v1168
      %v1170 = vld [vmem:[%s1028 + $0x104] sm:%s1021]
      %1171 = vst [vmem:[%s1029 + $0x118] sm:%s1021] %v1170
      %v1172 = vld [vmem:[%s1028 + $0x11c] sm:%s1021]
      %1173 = vst [vmem:[%s1029 + $0x11c] sm:%s1021] %v1172
      %v1174 = vld [vmem:[%s1028 + $0x120] sm:%s1021]
      %1175 = vst [vmem:[%s1029 + $0x120] sm:%s1021] %v1174
      %v1176 = vld [vmem:[%s1028 + $0x138] sm:%s1021]
      %1177 = vst [vmem:[%s1029 + $0x124] sm:%s1021] %v1176
      %v1178 = vld [vmem:[%s1028 + $0x124] sm:%s1021]
      %1179 = vst [vmem:[%s1029 + $0x128] sm:%s1021] %v1178
      %v1180 = vld [vmem:[%s1028 + $0x13c] sm:%s1021]
      %1181 = vst [vmem:[%s1029 + $0x12c] sm:%s1021] %v1180
      %v1182 = vld [vmem:[%s1028 + $0x128] sm:%s1021]
      %1183 = vst [vmem:[%s1029 + $0x130] sm:%s1021] %v1182
      %v1184 = vld [vmem:[%s1028 + $0x140] sm:%s1021]
      %1185 = vst [vmem:[%s1029 + $0x134] sm:%s1021] %v1184
      %v1186 = vld [vmem:[%s1028 + $0x12c] sm:%s1021]
      %1187 = vst [vmem:[%s1029 + $0x138] sm:%s1021] %v1186
      %v1188 = vld [vmem:[%s1028 + $0x144] sm:%s1021]
      %1189 = vst [vmem:[%s1029 + $0x13c] sm:%s1021] %v1188
      %v1190 = vld [vmem:[%s1028 + $0x130] sm:%s1021]
      %1191 = vst [vmem:[%s1029 + $0x140] sm:%s1021] %v1190
      %v1192 = vld [vmem:[%s1028 + $0x148] sm:%s1021]
      %1193 = vst [vmem:[%s1029 + $0x144] sm:%s1021] %v1192
      %v1194 = vld [vmem:[%s1028 + $0x134] sm:%s1021]
      %1195 = vst [vmem:[%s1029 + $0x148] sm:%s1021] %v1194
      %v1196 = vld [vmem:[%s1028 + $0x14c] sm:%s1021]
      %1197 = vst [vmem:[%s1029 + $0x14c] sm:%s1021] %v1196
      %v1198 = vld [vmem:[%s1028 + $0x150] sm:%s1021]
      %1199 = vst [vmem:[%s1029 + $0x150] sm:%s1021] %v1198
      %v1200 = vld [vmem:[%s1028 + $0x168] sm:%s1021]
      %1201 = vst [vmem:[%s1029 + $0x154] sm:%s1021] %v1200
      %v1202 = vld [vmem:[%s1028 + $0x154] sm:%s1021]
      %1203 = vst [vmem:[%s1029 + $0x158] sm:%s1021] %v1202
      %v1204 = vld [vmem:[%s1028 + $0x16c] sm:%s1021]
      %1205 = vst [vmem:[%s1029 + $0x15c] sm:%s1021] %v1204
      %v1206 = vld [vmem:[%s1028 + $0x158] sm:%s1021]
      %1207 = vst [vmem:[%s1029 + $0x160] sm:%s1021] %v1206
      %v1208 = vld [vmem:[%s1028 + $0x170] sm:%s1021]
      %1209 = vst [vmem:[%s1029 + $0x164] sm:%s1021] %v1208
      %v1210 = vld [vmem:[%s1028 + $0x15c] sm:%s1021]
      %1211 = vst [vmem:[%s1029 + $0x168] sm:%s1021] %v1210
      %v1212 = vld [vmem:[%s1028 + $0x174] sm:%s1021]
      %1213 = vst [vmem:[%s1029 + $0x16c] sm:%s1021] %v1212
      %v1214 = vld [vmem:[%s1028 + $0x160] sm:%s1021]
      %1215 = vst [vmem:[%s1029 + $0x170] sm:%s1021] %v1214
      %v1216 = vld [vmem:[%s1028 + $0x178] sm:%s1021]
      %1217 = vst [vmem:[%s1029 + $0x174] sm:%s1021] %v1216
      %v1218 = vld [vmem:[%s1028 + $0x164] sm:%s1021]
      %1219 = vst [vmem:[%s1029 + $0x178] sm:%s1021] %v1218
      %v1220 = vld [vmem:[%s1028 + $0x17c] sm:%s1021]
      %1221 = vst [vmem:[%s1029 + $0x17c] sm:%s1021] %v1220
    $region149: #{duma_forward.1} parent=143 // loop_footer
      %s1027 = sadd.s32 1, %s1023
    $region150: #{duma_forward.1} parent=143 // loop_footer_branch
      %1022 = sbr.rel target = $region146
    $region151: #{duma_forward.1} parent=143 // loop_exit
      _
  $region144: #{duma_forward.1} parent=0 // pred_fallthru
    _
  // Predicated region
  $region170: #{duma_forward.1} parent=0 // pred_check
    _
  $region171: #{duma_forward.1} parent=0 // pred_check_branch
    %1443 = sbr.rel (0) target = $region173
  $region172: #{duma_forward.1} parent=0 // pred_region
    %1444 = vsyncadd %s1012, 6144
  $region173: #{duma_forward.1} parent=0 // pred_fallthru
    _
  %v1445 = vlaneseq
  %v1446 = vshrl.u32 %v1445, 7
  %v1447 = vadd.s32 %v1446, 8
  %v1448 = vadd.s32 %v1446, 16
  %v1449 = vadd.s32 %v1446, 24
  %v1450 = vadd.s32 %v1446, 32
  %v1451 = vadd.s32 %v1446, 40
  %v1452 = vadd.s32 %v1446, 48
  %v1453 = vadd.s32 %v1446, 56
  %v1454 = vshra.s32 %v1446, 3
  %v1455 = vshra.s32 %v1447, 3
  %v1456 = vshra.s32 %v1448, 3
  %v1457 = vshra.s32 %v1449, 3
  %v1458 = vshra.s32 %v1450, 3
  %v1459 = vshra.s32 %v1451, 3
  %v1460 = vshra.s32 %v1452, 3
  %v1461 = vshra.s32 %v1453, 3
  %v1462 = vlaneseq
  %v1463 = vand.u32 %v1462, 127
  %v1464 = vshra.s32 %v1463, 3
  %vm1465 = vcmp.ne.s32.totalorder %v1454, %v1464
  %vm1466 = vcmp.ne.s32.totalorder %v1455, %v1464
  %vm1467 = vcmp.ne.s32.totalorder %v1456, %v1464
  %vm1468 = vcmp.ne.s32.totalorder %v1457, %v1464
  %vm1469 = vcmp.ne.s32.totalorder %v1458, %v1464
  %vm1470 = vcmp.ne.s32.totalorder %v1459, %v1464
  %vm1471 = vcmp.ne.s32.totalorder %v1460, %v1464
  %vm1472 = vcmp.ne.s32.totalorder %v1461, %v1464
  %v1473 = vsel %vm1465, -1e+30, 0.0
  %v1474 = vsel %vm1466, -1e+30, 0.0
  %v1475 = vsel %vm1467, -1e+30, 0.0
  %v1476 = vsel %vm1468, -1e+30, 0.0
  %v1477 = vsel %vm1469, -1e+30, 0.0
  %v1478 = vsel %vm1470, -1e+30, 0.0
  %v1479 = vsel %vm1471, -1e+30, 0.0
  %v1480 = vsel %vm1472, -1e+30, 0.0
  %v1481 = vld [vmem:[%s3] sm:$0x1]
  %vm1482 = vcmp.eq.f32.partialorder %v1481, 0.0
  %v1483 = vld [vmem:[%s2] sm:$0x1]
  %vm1484 = vcmp.eq.f32.partialorder %v1483, 0.0
  %v1485 = vld [vmem:[%s0] sm:$0xff]
  %v1486 = vld [vmem:[%s0 + $0x8] sm:$0xff]
  %v1487 = vld [vmem:[%s0 + $0x10] sm:$0xff]
  %v1488 = vld [vmem:[%s0 + $0x18] sm:$0xff]
  %v1489 = vld [vmem:[%s0 + $0x20] sm:$0xff]
  %v1490 = vld [vmem:[%s0 + $0x28] sm:$0xff]
  %v1491 = vld [vmem:[%s0 + $0x30] sm:$0xff]
  %v1492 = vld [vmem:[%s0 + $0x38] sm:$0xff]
  %v1493 = vld [vmem:[%s0 + $0x40] sm:$0xff]
  %v1494 = vld [vmem:[%s0 + $0x48] sm:$0xff]
  %v1495 = vld [vmem:[%s0 + $0x50] sm:$0xff]
  %v1496 = vld [vmem:[%s0 + $0x58] sm:$0xff]
  %v1497 = vld [vmem:[%s0 + $0x60] sm:$0xff]
  %v1498 = vld [vmem:[%s0 + $0x68] sm:$0xff]
  %v1499 = vld [vmem:[%s0 + $0x70] sm:$0xff]
  %v1500 = vld [vmem:[%s0 + $0x78] sm:$0xff]
  %v1501 = vld [vmem:[%s0 + $0x80] sm:$0xff]
  %v1502 = vld [vmem:[%s0 + $0x88] sm:$0xff]
  %v1503 = vld [vmem:[%s0 + $0x90] sm:$0xff]
  %v1504 = vld [vmem:[%s0 + $0x98] sm:$0xff]
  %v1505 = vld [vmem:[%s0 + $0xa0] sm:$0xff]
  %v1506 = vld [vmem:[%s0 + $0xa8] sm:$0xff]
  %v1507 = vld [vmem:[%s0 + $0xb0] sm:$0xff]
  %v1508 = vld [vmem:[%s0 + $0xb8] sm:$0xff]
  %v1509 = vld [vmem:[%s1] sm:$0xff]
  %v1510 = vld [vmem:[%s1 + $0x8] sm:$0xff]
  %v1511 = vld [vmem:[%s1 + $0x10] sm:$0xff]
  %v1512 = vld [vmem:[%s1 + $0x18] sm:$0xff]
  %v1513 = vld [vmem:[%s1 + $0x20] sm:$0xff]
  %v1514 = vld [vmem:[%s1 + $0x28] sm:$0xff]
  %v1515 = vld [vmem:[%s1 + $0x30] sm:$0xff]
  %v1516 = vld [vmem:[%s1 + $0x38] sm:$0xff]
  %v1517 = vld [vmem:[%s1 + $0x40] sm:$0xff]
  %v1518 = vld [vmem:[%s1 + $0x48] sm:$0xff]
  %v1519 = vld [vmem:[%s1 + $0x50] sm:$0xff]
  %v1520 = vld [vmem:[%s1 + $0x58] sm:$0xff]
  %v1521 = vld [vmem:[%s1 + $0x60] sm:$0xff]
  %v1522 = vld [vmem:[%s1 + $0x68] sm:$0xff]
  %v1523 = vld [vmem:[%s1 + $0x70] sm:$0xff]
  %v1524 = vld [vmem:[%s1 + $0x78] sm:$0xff]
  %v1525 = vld [vmem:[%s1 + $0x80] sm:$0xff]
  %v1526 = vld [vmem:[%s1 + $0x88] sm:$0xff]
  %v1527 = vld [vmem:[%s1 + $0x90] sm:$0xff]
  %v1528 = vld [vmem:[%s1 + $0x98] sm:$0xff]
  %v1529 = vld [vmem:[%s1 + $0xa0] sm:$0xff]
  %v1530 = vld [vmem:[%s1 + $0xa8] sm:$0xff]
  %v1531 = vld [vmem:[%s1 + $0xb0] sm:$0xff]
  %v1532 = vld [vmem:[%s1 + $0xb8] sm:$0xff]
  %v1533 = vunpack.c.l.bf16 %v1485
  %v1534 = vunpack.c.h.bf16 %v1485
  %v1535 = vunpack.c.l.bf16 %v1486
  %v1536 = vunpack.c.h.bf16 %v1486
  %v1537 = vunpack.c.l.bf16 %v1487
  %v1538 = vunpack.c.h.bf16 %v1487
  %v1539 = vunpack.c.l.bf16 %v1488
  %v1540 = vunpack.c.h.bf16 %v1488
  %v1541 = vunpack.c.l.bf16 %v1489
  %v1542 = vunpack.c.h.bf16 %v1489
  %v1543 = vunpack.c.l.bf16 %v1490
  %v1544 = vunpack.c.h.bf16 %v1490
  %v1545 = vunpack.c.l.bf16 %v1491
  %v1546 = vunpack.c.h.bf16 %v1491
  %v1547 = vunpack.c.l.bf16 %v1492
  %v1548 = vunpack.c.h.bf16 %v1492
  %v1549 = vunpack.c.l.bf16 %v1493
  %v1550 = vunpack.c.h.bf16 %v1493
  %v1551 = vunpack.c.l.bf16 %v1494
  %v1552 = vunpack.c.h.bf16 %v1494
  %v1553 = vunpack.c.l.bf16 %v1495
  %v1554 = vunpack.c.h.bf16 %v1495
  %v1555 = vunpack.c.l.bf16 %v1496
  %v1556 = vunpack.c.h.bf16 %v1496
  %v1557 = vunpack.c.l.bf16 %v1497
  %v1558 = vunpack.c.h.bf16 %v1497
  %v1559 = vunpack.c.l.bf16 %v1498
  %v1560 = vunpack.c.h.bf16 %v1498
  %v1561 = vunpack.c.l.bf16 %v1499
  %v1562 = vunpack.c.h.bf16 %v1499
  %v1563 = vunpack.c.l.bf16 %v1500
  %v1564 = vunpack.c.h.bf16 %v1500
  %v1565 = vunpack.c.l.bf16 %v1501
  %v1566 = vunpack.c.h.bf16 %v1501
  %v1567 = vunpack.c.l.bf16 %v1502
  %v1568 = vunpack.c.h.bf16 %v1502
  %v1569 = vunpack.c.l.bf16 %v1503
  %v1570 = vunpack.c.h.bf16 %v1503
  %v1571 = vunpack.c.l.bf16 %v1504
  %v1572 = vunpack.c.h.bf16 %v1504
  %v1573 = vunpack.c.l.bf16 %v1505
  %v1574 = vunpack.c.h.bf16 %v1505
  %v1575 = vunpack.c.l.bf16 %v1506
  %v1576 = vunpack.c.h.bf16 %v1506
  %v1577 = vunpack.c.l.bf16 %v1507
  %v1578 = vunpack.c.h.bf16 %v1507
  %v1579 = vunpack.c.l.bf16 %v1508
  %v1580 = vunpack.c.h.bf16 %v1508
  %v1581 = vunpack.c.l.bf16 %v1509
  %v1582 = vunpack.c.h.bf16 %v1509
  %v1583 = vunpack.c.l.bf16 %v1510
  %v1584 = vunpack.c.h.bf16 %v1510
  %v1585 = vunpack.c.l.bf16 %v1511
  %v1586 = vunpack.c.h.bf16 %v1511
  %v1587 = vunpack.c.l.bf16 %v1512
  %v1588 = vunpack.c.h.bf16 %v1512
  %v1589 = vunpack.c.l.bf16 %v1513
  %v1590 = vunpack.c.h.bf16 %v1513
  %v1591 = vunpack.c.l.bf16 %v1514
  %v1592 = vunpack.c.h.bf16 %v1514
  %v1593 = vunpack.c.l.bf16 %v1515
  %v1594 = vunpack.c.h.bf16 %v1515
  %v1595 = vunpack.c.l.bf16 %v1516
  %v1596 = vunpack.c.h.bf16 %v1516
  %v1597 = vunpack.c.l.bf16 %v1517
  %v1598 = vunpack.c.h.bf16 %v1517
  %v1599 = vunpack.c.l.bf16 %v1518
  %v1600 = vunpack.c.h.bf16 %v1518
  %v1601 = vunpack.c.l.bf16 %v1519
  %v1602 = vunpack.c.h.bf16 %v1519
  %v1603 = vunpack.c.l.bf16 %v1520
  %v1604 = vunpack.c.h.bf16 %v1520
  %v1605 = vunpack.c.l.bf16 %v1521
  %v1606 = vunpack.c.h.bf16 %v1521
  %v1607 = vunpack.c.l.bf16 %v1522
  %v1608 = vunpack.c.h.bf16 %v1522
  %v1609 = vunpack.c.l.bf16 %v1523
  %v1610 = vunpack.c.h.bf16 %v1523
  %v1611 = vunpack.c.l.bf16 %v1524
  %v1612 = vunpack.c.h.bf16 %v1524
  %v1613 = vunpack.c.l.bf16 %v1525
  %v1614 = vunpack.c.h.bf16 %v1525
  %v1615 = vunpack.c.l.bf16 %v1526
  %v1616 = vunpack.c.h.bf16 %v1526
  %v1617 = vunpack.c.l.bf16 %v1527
  %v1618 = vunpack.c.h.bf16 %v1527
  %v1619 = vunpack.c.l.bf16 %v1528
  %v1620 = vunpack.c.h.bf16 %v1528
  %v1621 = vunpack.c.l.bf16 %v1529
  %v1622 = vunpack.c.h.bf16 %v1529
  %v1623 = vunpack.c.l.bf16 %v1530
  %v1624 = vunpack.c.h.bf16 %v1530
  %v1625 = vunpack.c.l.bf16 %v1531
  %v1626 = vunpack.c.h.bf16 %v1531
  %v1627 = vunpack.c.l.bf16 %v1532
  %v1628 = vunpack.c.h.bf16 %v1532
  %v1629 = vld [vmem:[%s4] sm:$0xf]
  %v1630 = vld [vmem:[%s4 + $0x4] sm:$0xf]
  %v1631 = vld [vmem:[%s4 + $0x8] sm:$0xf]
  %v1632 = vld [vmem:[%s4 + $0xc] sm:$0xf]
  %v1633 = vld [vmem:[%s4 + $0x10] sm:$0xf]
  %v1634 = vld [vmem:[%s4 + $0x14] sm:$0xf]
  %v1635 = vld [vmem:[%s4 + $0x18] sm:$0xf]
  %v1636 = vld [vmem:[%s4 + $0x1c] sm:$0xf]
  %v1637 = vld [vmem:[%s4 + $0x20] sm:$0xf]
  %v1638 = vld [vmem:[%s4 + $0x24] sm:$0xf]
  %v1639 = vld [vmem:[%s4 + $0x28] sm:$0xf]
  %v1640 = vld [vmem:[%s4 + $0x2c] sm:$0xf]
  %v1641 = vld [vmem:[%s4 + $0x30] sm:$0xf]
  %v1642 = vld [vmem:[%s4 + $0x34] sm:$0xf]
  %v1643 = vld [vmem:[%s4 + $0x38] sm:$0xf]
  %v1644 = vld [vmem:[%s4 + $0x3c] sm:$0xf]
  %v1645 = vld [vmem:[%s4 + $0x40] sm:$0xf]
  %v1646 = vld [vmem:[%s4 + $0x44] sm:$0xf]
  %v1647 = vld [vmem:[%s4 + $0x48] sm:$0xf]
  %v1648 = vld [vmem:[%s4 + $0x4c] sm:$0xf]
  %v1649 = vld [vmem:[%s4 + $0x50] sm:$0xf]
  %v1650 = vld [vmem:[%s4 + $0x54] sm:$0xf]
  %v1651 = vld [vmem:[%s4 + $0x58] sm:$0xf]
  %v1652 = vld [vmem:[%s4 + $0x5c] sm:$0xf]
  %v1653 = vld [vmem:[%s4 + $0x60] sm:$0xf]
  %v1654 = vld [vmem:[%s4 + $0x64] sm:$0xf]
  %v1655 = vld [vmem:[%s4 + $0x68] sm:$0xf]
  %v1656 = vld [vmem:[%s4 + $0x6c] sm:$0xf]
  %v1657 = vld [vmem:[%s4 + $0x70] sm:$0xf]
  %v1658 = vld [vmem:[%s4 + $0x74] sm:$0xf]
  %v1659 = vld [vmem:[%s4 + $0x78] sm:$0xf]
  %v1660 = vld [vmem:[%s4 + $0x7c] sm:$0xf]
  %v1661 = vld [vmem:[%s4 + $0x80] sm:$0xf]
  %v1662 = vld [vmem:[%s4 + $0x84] sm:$0xf]
  %v1663 = vld [vmem:[%s4 + $0x88] sm:$0xf]
  %v1664 = vld [vmem:[%s4 + $0x8c] sm:$0xf]
  %v1665 = vld [vmem:[%s4 + $0x90] sm:$0xf]
  %v1666 = vld [vmem:[%s4 + $0x94] sm:$0xf]
  %v1667 = vld [vmem:[%s4 + $0x98] sm:$0xf]
  %v1668 = vld [vmem:[%s4 + $0x9c] sm:$0xf]
  %v1669 = vld [vmem:[%s4 + $0xa0] sm:$0xf]
  %v1670 = vld [vmem:[%s4 + $0xa4] sm:$0xf]
  %v1671 = vld [vmem:[%s4 + $0xa8] sm:$0xf]
  %v1672 = vld [vmem:[%s4 + $0xac] sm:$0xf]
  %v1673 = vld [vmem:[%s4 + $0xb0] sm:$0xf]
  %v1674 = vld [vmem:[%s4 + $0xb4] sm:$0xf]
  %v1675 = vld [vmem:[%s4 + $0xb8] sm:$0xf]
  %v1676 = vld [vmem:[%s4 + $0xbc] sm:$0xf]
  %v1677 = vld [vmem:[%s4 + $0xc0] sm:$0xf]
  %v1678 = vld [vmem:[%s4 + $0xc4] sm:$0xf]
  %v1679 = vld [vmem:[%s4 + $0xc8] sm:$0xf]
  %v1680 = vld [vmem:[%s4 + $0xcc] sm:$0xf]
  %v1681 = vld [vmem:[%s4 + $0xd0] sm:$0xf]
  %v1682 = vld [vmem:[%s4 + $0xd4] sm:$0xf]
  %v1683 = vld [vmem:[%s4 + $0xd8] sm:$0xf]
  %v1684 = vld [vmem:[%s4 + $0xdc] sm:$0xf]
  %v1685 = vld [vmem:[%s4 + $0xe0] sm:$0xf]
  %v1686 = vld [vmem:[%s4 + $0xe4] sm:$0xf]
  %v1687 = vld [vmem:[%s4 + $0xe8] sm:$0xf]
  %v1688 = vld [vmem:[%s4 + $0xec] sm:$0xf]
  %v1689 = vld [vmem:[%s4 + $0xf0] sm:$0xf]
  %v1690 = vld [vmem:[%s4 + $0xf4] sm:$0xf]
  %v1691 = vld [vmem:[%s4 + $0xf8] sm:$0xf]
  %v1692 = vld [vmem:[%s4 + $0xfc] sm:$0xf]
  %v1693 = vld [vmem:[%s4 + $0x100] sm:$0xf]
  %v1694 = vld [vmem:[%s4 + $0x104] sm:$0xf]
  %v1695 = vld [vmem:[%s4 + $0x108] sm:$0xf]
  %v1696 = vld [vmem:[%s4 + $0x10c] sm:$0xf]
  %v1697 = vld [vmem:[%s4 + $0x110] sm:$0xf]
  %v1698 = vld [vmem:[%s4 + $0x114] sm:$0xf]
  %v1699 = vld [vmem:[%s4 + $0x118] sm:$0xf]
  %v1700 = vld [vmem:[%s4 + $0x11c] sm:$0xf]
  %v1701 = vld [vmem:[%s4 + $0x120] sm:$0xf]
  %v1702 = vld [vmem:[%s4 + $0x124] sm:$0xf]
  %v1703 = vld [vmem:[%s4 + $0x128] sm:$0xf]
  %v1704 = vld [vmem:[%s4 + $0x12c] sm:$0xf]
  %v1705 = vld [vmem:[%s4 + $0x130] sm:$0xf]
  %v1706 = vld [vmem:[%s4 + $0x134] sm:$0xf]
  %v1707 = vld [vmem:[%s4 + $0x138] sm:$0xf]
  %v1708 = vld [vmem:[%s4 + $0x13c] sm:$0xf]
  %v1709 = vld [vmem:[%s4 + $0x140] sm:$0xf]
  %v1710 = vld [vmem:[%s4 + $0x144] sm:$0xf]
  %v1711 = vld [vmem:[%s4 + $0x148] sm:$0xf]
  %v1712 = vld [vmem:[%s4 + $0x14c] sm:$0xf]
  %v1713 = vld [vmem:[%s4 + $0x150] sm:$0xf]
  %v1714 = vld [vmem:[%s4 + $0x154] sm:$0xf]
  %v1715 = vld [vmem:[%s4 + $0x158] sm:$0xf]
  %v1716 = vld [vmem:[%s4 + $0x15c] sm:$0xf]
  %v1717 = vld [vmem:[%s4 + $0x160] sm:$0xf]
  %v1718 = vld [vmem:[%s4 + $0x164] sm:$0xf]
  %v1719 = vld [vmem:[%s4 + $0x168] sm:$0xf]
  %v1720 = vld [vmem:[%s4 + $0x16c] sm:$0xf]
  %v1721 = vld [vmem:[%s4 + $0x170] sm:$0xf]
  %v1722 = vld [vmem:[%s4 + $0x174] sm:$0xf]
  %v1723 = vld [vmem:[%s4 + $0x178] sm:$0xf]
  %v1724 = vld [vmem:[%s4 + $0x17c] sm:$0xf]
  %v1725 = vld [vmem:[%s5] sm:$0x1]
  %v1727 = vlaneseq
  %v1728 = vshrl.u32 %v1727, 7
  %v1729 = vsub.s32 0, %v1728
  %v1730 = vrot.slane %v1725, %v1729
  %v1756 = vunpack.c.l.b16 %v1485
  %v1757 = vunpack.c.h.b16 %v1485
  %v1758 = vunpack.c.l.b16 %v1486
  %v1759 = vunpack.c.h.b16 %v1486
  %v1760 = vunpack.c.l.b16 %v1487
  %v1761 = vunpack.c.h.b16 %v1487
  %v1762 = vunpack.c.l.b16 %v1488
  %v1763 = vunpack.c.h.b16 %v1488
  %v1764 = vunpack.c.l.b16 %v1489
  %v1765 = vunpack.c.h.b16 %v1489
  %v1766 = vunpack.c.l.b16 %v1490
  %v1767 = vunpack.c.h.b16 %v1490
  %v1768 = vunpack.c.l.b16 %v1491
  %v1769 = vunpack.c.h.b16 %v1491
  %v1770 = vunpack.c.l.b16 %v1492
  %v1771 = vunpack.c.h.b16 %v1492
  %v1772 = vunpack.c.l.b16 %v1493
  %v1773 = vunpack.c.h.b16 %v1493
  %v1774 = vunpack.c.l.b16 %v1494
  %v1775 = vunpack.c.h.b16 %v1494
  %v1776 = vunpack.c.l.b16 %v1495
  %v1777 = vunpack.c.h.b16 %v1495
  %v1778 = vunpack.c.l.b16 %v1496
  %v1779 = vunpack.c.h.b16 %v1496
  %v1780 = vunpack.c.l.b16 %v1497
  %v1781 = vunpack.c.h.b16 %v1497
  %v1782 = vunpack.c.l.b16 %v1498
  %v1783 = vunpack.c.h.b16 %v1498
  %v1784 = vunpack.c.l.b16 %v1499
  %v1785 = vunpack.c.h.b16 %v1499
  %v1786 = vunpack.c.l.b16 %v1500
  %v1787 = vunpack.c.h.b16 %v1500
  %v1788 = vunpack.c.l.b16 %v1501
  %v1789 = vunpack.c.h.b16 %v1501
  %v1790 = vunpack.c.l.b16 %v1502
  %v1791 = vunpack.c.h.b16 %v1502
  %v1792 = vunpack.c.l.b16 %v1503
  %v1793 = vunpack.c.h.b16 %v1503
  %v1794 = vunpack.c.l.b16 %v1504
  %v1795 = vunpack.c.h.b16 %v1504
  %v1796 = vunpack.c.l.b16 %v1505
  %v1797 = vunpack.c.h.b16 %v1505
  %v1798 = vunpack.c.l.b16 %v1506
  %v1799 = vunpack.c.h.b16 %v1506
  %v1800 = vunpack.c.l.b16 %v1507
  %v1801 = vunpack.c.h.b16 %v1507
  %v1802 = vunpack.c.l.b16 %v1508
  %v1803 = vunpack.c.h.b16 %v1508
  %v1804 = vpack.c.b16 %v1762, %v1756
  %v1805 = vpack.c.b16 %v1763, %v1757
  %v1806 = vpack.c.b16 %v1764, %v1758
  %v1807 = vpack.c.b16 %v1765, %v1759
  %v1808 = vpack.c.b16 %v1766, %v1760
  %v1809 = vpack.c.b16 %v1767, %v1761
  %v1810 = vpack.c.b16 %v1774, %v1768
  %v1811 = vpack.c.b16 %v1775, %v1769
  %v1812 = vpack.c.b16 %v1776, %v1770
  %v1813 = vpack.c.b16 %v1777, %v1771
  %v1814 = vpack.c.b16 %v1778, %v1772
  %v1815 = vpack.c.b16 %v1779, %v1773
  %v1816 = vpack.c.b16 %v1786, %v1780
  %v1817 = vpack.c.b16 %v1787, %v1781
  %v1818 = vpack.c.b16 %v1788, %v1782
  %v1819 = vpack.c.b16 %v1789, %v1783
  %v1820 = vpack.c.b16 %v1790, %v1784
  %v1821 = vpack.c.b16 %v1791, %v1785
  %v1822 = vpack.c.b16 %v1798, %v1792
  %v1823 = vpack.c.b16 %v1799, %v1793
  %v1824 = vpack.c.b16 %v1800, %v1794
  %v1825 = vpack.c.b16 %v1801, %v1795
  %v1826 = vpack.c.b16 %v1802, %v1796
  %v1827 = vpack.c.b16 %v1803, %v1797
  %v1948 = vunpack.c.l.b16 %v1629
  %v1949 = vunpack.c.l.b16 %v1630
  %v1950 = vunpack.c.l.b16 %v1631
  %v1951 = vunpack.c.l.b16 %v1632
  %v1952 = vunpack.c.l.b16 %v1633
  %v1953 = vunpack.c.l.b16 %v1634
  %v1954 = vunpack.c.l.b16 %v1635
  %v1955 = vunpack.c.l.b16 %v1636
  %v1956 = vunpack.c.l.b16 %v1637
  %v1957 = vunpack.c.l.b16 %v1638
  %v1958 = vunpack.c.l.b16 %v1639
  %v1959 = vunpack.c.l.b16 %v1640
  %v1960 = vunpack.c.l.b16 %v1641
  %v1961 = vunpack.c.l.b16 %v1642
  %v1962 = vunpack.c.l.b16 %v1643
  %v1963 = vunpack.c.l.b16 %v1644
  %v1964 = vunpack.c.l.b16 %v1645
  %v1965 = vunpack.c.l.b16 %v1646
  %v1966 = vunpack.c.l.b16 %v1647
  %v1967 = vunpack.c.l.b16 %v1648
  %v1968 = vunpack.c.l.b16 %v1649
  %v1969 = vunpack.c.l.b16 %v1650
  %v1970 = vunpack.c.l.b16 %v1651
  %v1971 = vunpack.c.l.b16 %v1652
  %v1972 = vunpack.c.l.b16 %v1653
  %v1973 = vunpack.c.l.b16 %v1654
  %v1974 = vunpack.c.l.b16 %v1655
  %v1975 = vunpack.c.l.b16 %v1656
  %v1976 = vunpack.c.l.b16 %v1657
  %v1977 = vunpack.c.l.b16 %v1658
  %v1978 = vunpack.c.l.b16 %v1659
  %v1979 = vunpack.c.l.b16 %v1660
  %v1980 = vunpack.c.l.b16 %v1661
  %v1981 = vunpack.c.l.b16 %v1662
  %v1982 = vunpack.c.l.b16 %v1663
  %v1983 = vunpack.c.l.b16 %v1664
  %v1984 = vunpack.c.l.b16 %v1665
  %v1985 = vunpack.c.l.b16 %v1666
  %v1986 = vunpack.c.l.b16 %v1667
  %v1987 = vunpack.c.l.b16 %v1668
  %v1988 = vunpack.c.l.b16 %v1669
  %v1989 = vunpack.c.l.b16 %v1670
  %v1990 = vunpack.c.l.b16 %v1671
  %v1991 = vunpack.c.l.b16 %v1672
  %v1992 = vunpack.c.l.b16 %v1673
  %v1993 = vunpack.c.l.b16 %v1674
  %v1994 = vunpack.c.l.b16 %v1675
  %v1995 = vunpack.c.l.b16 %v1676
  %v1996 = vunpack.c.l.b16 %v1677
  %v1997 = vunpack.c.l.b16 %v1678
  %v1998 = vunpack.c.l.b16 %v1679
  %v1999 = vunpack.c.l.b16 %v1680
  %v2000 = vunpack.c.l.b16 %v1681
  %v2001 = vunpack.c.l.b16 %v1682
  %v2002 = vunpack.c.l.b16 %v1683
  %v2003 = vunpack.c.l.b16 %v1684
  %v2004 = vunpack.c.l.b16 %v1685
  %v2005 = vunpack.c.l.b16 %v1686
  %v2006 = vunpack.c.l.b16 %v1687
  %v2007 = vunpack.c.l.b16 %v1688
  %v2008 = vunpack.c.l.b16 %v1689
  %v2009 = vunpack.c.l.b16 %v1690
  %v2010 = vunpack.c.l.b16 %v1691
  %v2011 = vunpack.c.l.b16 %v1692
  %v2012 = vunpack.c.l.b16 %v1693
  %v2013 = vunpack.c.l.b16 %v1694
  %v2014 = vunpack.c.l.b16 %v1695
  %v2015 = vunpack.c.l.b16 %v1696
  %v2016 = vunpack.c.l.b16 %v1697
  %v2017 = vunpack.c.l.b16 %v1698
  %v2018 = vunpack.c.l.b16 %v1699
  %v2019 = vunpack.c.l.b16 %v1700
  %v2020 = vunpack.c.l.b16 %v1701
  %v2021 = vunpack.c.l.b16 %v1702
  %v2022 = vunpack.c.l.b16 %v1703
  %v2023 = vunpack.c.l.b16 %v1704
  %v2024 = vunpack.c.l.b16 %v1705
  %v2025 = vunpack.c.l.b16 %v1706
  %v2026 = vunpack.c.l.b16 %v1707
  %v2027 = vunpack.c.l.b16 %v1708
  %v2028 = vunpack.c.l.b16 %v1709
  %v2029 = vunpack.c.l.b16 %v1710
  %v2030 = vunpack.c.l.b16 %v1711
  %v2031 = vunpack.c.l.b16 %v1712
  %v2032 = vunpack.c.l.b16 %v1713
  %v2033 = vunpack.c.l.b16 %v1714
  %v2034 = vunpack.c.l.b16 %v1715
  %v2035 = vunpack.c.l.b16 %v1716
  %v2036 = vunpack.c.l.b16 %v1717
  %v2037 = vunpack.c.l.b16 %v1718
  %v2038 = vunpack.c.l.b16 %v1719
  %v2039 = vunpack.c.l.b16 %v1720
  %v2040 = vunpack.c.l.b16 %v1721
  %v2041 = vunpack.c.l.b16 %v1722
  %v2042 = vunpack.c.l.b16 %v1723
  %v2043 = vunpack.c.l.b16 %v1724
  %v2044 = vpack.c.b16 %v1949, %v1948
  %v2045 = vpack.c.b16 %v1951, %v1950
  %v2046 = vpack.c.b16 %v1953, %v1952
  %v2047 = vpack.c.b16 %v1955, %v1954
  %v2048 = vpack.c.b16 %v1957, %v1956
  %v2049 = vpack.c.b16 %v1959, %v1958
  %v2050 = vpack.c.b16 %v1961, %v1960
  %v2051 = vpack.c.b16 %v1963, %v1962
  %v2052 = vpack.c.b16 %v1965, %v1964
  %v2053 = vpack.c.b16 %v1967, %v1966
  %v2054 = vpack.c.b16 %v1969, %v1968
  %v2055 = vpack.c.b16 %v1971, %v1970
  %v2056 = vpack.c.b16 %v1973, %v1972
  %v2057 = vpack.c.b16 %v1975, %v1974
  %v2058 = vpack.c.b16 %v1977, %v1976
  %v2059 = vpack.c.b16 %v1979, %v1978
  %v2060 = vpack.c.b16 %v1981, %v1980
  %v2061 = vpack.c.b16 %v1983, %v1982
  %v2062 = vpack.c.b16 %v1985, %v1984
  %v2063 = vpack.c.b16 %v1987, %v1986
  %v2064 = vpack.c.b16 %v1989, %v1988
  %v2065 = vpack.c.b16 %v1991, %v1990
  %v2066 = vpack.c.b16 %v1993, %v1992
  %v2067 = vpack.c.b16 %v1995, %v1994
  %v2068 = vpack.c.b16 %v1997, %v1996
  %v2069 = vpack.c.b16 %v1999, %v1998
  %v2070 = vpack.c.b16 %v2001, %v2000
  %v2071 = vpack.c.b16 %v2003, %v2002
  %v2072 = vpack.c.b16 %v2005, %v2004
  %v2073 = vpack.c.b16 %v2007, %v2006
  %v2074 = vpack.c.b16 %v2009, %v2008
  %v2075 = vpack.c.b16 %v2011, %v2010
  %v2076 = vpack.c.b16 %v2013, %v2012
  %v2077 = vpack.c.b16 %v2015, %v2014
  %v2078 = vpack.c.b16 %v2017, %v2016
  %v2079 = vpack.c.b16 %v2019, %v2018
  %v2080 = vpack.c.b16 %v2021, %v2020
  %v2081 = vpack.c.b16 %v2023, %v2022
  %v2082 = vpack.c.b16 %v2025, %v2024
  %v2083 = vpack.c.b16 %v2027, %v2026
  %v2084 = vpack.c.b16 %v2029, %v2028
  %v2085 = vpack.c.b16 %v2031, %v2030
  %v2086 = vpack.c.b16 %v2033, %v2032
  %v2087 = vpack.c.b16 %v2035, %v2034
  %v2088 = vpack.c.b16 %v2037, %v2036
  %v2089 = vpack.c.b16 %v2039, %v2038
  %v2090 = vpack.c.b16 %v2041, %v2040
  %v2091 = vpack.c.b16 %v2043, %v2042
  %2140 = vmatprep.subr.bf16.mxu0 0
  %2141 = vmatpush1.bf16.msra.mxu0 %v2044
  %2142 = vmatprep.subr.bf16.mxu0 0
  %2143 = vmatpush1.bf16.msra.mxu0 %v2045
  %2144 = vmatprep.subr.bf16.mxu0 0
  %2145 = vmatpush1.bf16.msra.mxu0 %v2046
  %2146 = vmatprep.subr.bf16.mxu0 0
  %2147 = vmatpush1.bf16.msra.mxu0 %v2047
  %2148 = vmatprep.subr.bf16.mxu0 0
  %2149 = vmatpush1.bf16.msra.mxu0 %v2048
  %2150 = vmatprep.subr.bf16.mxu0 0
  %2151 = vmatpush1.bf16.msra.mxu0 %v2049
  %2152 = vmatprep.subr.bf16.mxu0 0
  %2153 = vmatpush1.bf16.msra.mxu0 %v2050
  %2154 = vmatprep.subr.bf16.mxu0 0
  %2155 = vmatpush1.bf16.msra.mxu0 %v2051
  %2156 = vmatprep.subr.bf16.mxu0 0
  %2157 = vmatpush1.bf16.msra.mxu0 %v2052
  %2158 = vmatprep.subr.bf16.mxu0 0
  %2159 = vmatpush1.bf16.msra.mxu0 %v2053
  %2160 = vmatprep.subr.bf16.mxu0 0
  %2161 = vmatpush1.bf16.msra.mxu0 %v2054
  %2162 = vmatprep.subr.bf16.mxu0 0
  %2163 = vmatpush1.bf16.msra.mxu0 %v2055
  %2164 = vmatprep.subr.bf16.mxu0 0
  %2165 = vmatpush1.bf16.msra.mxu0 %v2056
  %2166 = vmatprep.subr.bf16.mxu0 0
  %2167 = vmatpush1.bf16.msra.mxu0 %v2057
  %2168 = vmatprep.subr.bf16.mxu0 0
  %2169 = vmatpush1.bf16.msra.mxu0 %v2058
  %2170 = vmatprep.subr.bf16.mxu0 0
  %2171 = vmatpush1.bf16.msra.mxu0 %v2059
  %2172 = vmatprep.mubr.bf16.mxu0 %v1805
  %2173 = vmatmul.mubr.bf16.gmra.mrb[0].mxu0 %v1804
  %v2174 = vpop.f32.mrb[0].mxu0
  %v2175 = vadd.f32 %v1730, %v2174
  %v2176 = vpop.f32.mrb[0].mxu0
  %v2177 = vpop.f32.mrb[0].mxu0
  %v2178 = vadd.f32 %v1730, %v2177
  %v2179 = vpop.f32.mrb[0].mxu0
  %2180 = vmatprep.mubr.bf16.mxu0 %v1811
  %2181 = vmatmul.mubr.bf16.gmra.mrb[0].mxu0 %v1810
  %v2182 = vpop.f32.mrb[0].mxu0
  %v2183 = vadd.f32 %v1730, %v2182
  %v2184 = vpop.f32.mrb[0].mxu0
  %v2185 = vpop.f32.mrb[0].mxu0
  %v2186 = vadd.f32 %v1730, %v2185
  %v2187 = vpop.f32.mrb[0].mxu0
  %2188 = vmatprep.mubr.bf16.mxu0 %v1817
  %2189 = vmatmul.mubr.bf16.gmra.mrb[0].mxu0 %v1816
  %v2190 = vpop.f32.mrb[0].mxu0
  %v2191 = vadd.f32 %v1730, %v2190
  %v2192 = vpop.f32.mrb[0].mxu0
  %v2193 = vpop.f32.mrb[0].mxu0
  %v2194 = vadd.f32 %v1730, %v2193
  %v2195 = vpop.f32.mrb[0].mxu0
  %2196 = vmatprep.mubr.bf16.mxu0 %v1823
  %2197 = vmatmul.mubr.bf16.gmra.mrb[0].mxu0 %v1822
  %v2198 = vpop.f32.mrb[0].mxu0
  %v2199 = vadd.f32 %v1730, %v2198
  %v2200 = vpop.f32.mrb[0].mxu0
  %v2201 = vpop.f32.mrb[0].mxu0
  %v2202 = vadd.f32 %v1730, %v2201
  %v2203 = vpop.f32.mrb[0].mxu0
  %2204 = vdwg.mxu0
  %2205 = vmatprep.subr.bf16.mxu0 0
  %2206 = vmatpush1.bf16.msra.mxu0 %v2060
  %2207 = vmatprep.subr.bf16.mxu0 0
  %2208 = vmatpush1.bf16.msra.mxu0 %v2061
  %2209 = vmatprep.subr.bf16.mxu0 0
  %2210 = vmatpush1.bf16.msra.mxu0 %v2062
  %2211 = vmatprep.subr.bf16.mxu0 0
  %2212 = vmatpush1.bf16.msra.mxu0 %v2063
  %2213 = vmatprep.subr.bf16.mxu0 0
  %2214 = vmatpush1.bf16.msra.mxu0 %v2064
  %2215 = vmatprep.subr.bf16.mxu0 0
  %2216 = vmatpush1.bf16.msra.mxu0 %v2065
  %2217 = vmatprep.subr.bf16.mxu0 0
  %2218 = vmatpush1.bf16.msra.mxu0 %v2066
  %2219 = vmatprep.subr.bf16.mxu0 0
  %2220 = vmatpush1.bf16.msra.mxu0 %v2067
  %2221 = vmatprep.subr.bf16.mxu0 0
  %2222 = vmatpush1.bf16.msra.mxu0 %v2068
  %2223 = vmatprep.subr.bf16.mxu0 0
  %2224 = vmatpush1.bf16.msra.mxu0 %v2069
  %2225 = vmatprep.subr.bf16.mxu0 0
  %2226 = vmatpush1.bf16.msra.mxu0 %v2070
  %2227 = vmatprep.subr.bf16.mxu0 0
  %2228 = vmatpush1.bf16.msra.mxu0 %v2071
  %2229 = vmatprep.subr.bf16.mxu0 0
  %2230 = vmatpush1.bf16.msra.mxu0 %v2072
  %2231 = vmatprep.subr.bf16.mxu0 0
  %2232 = vmatpush1.bf16.msra.mxu0 %v2073
  %2233 = vmatprep.subr.bf16.mxu0 0
  %2234 = vmatpush1.bf16.msra.mxu0 %v2074
  %2235 = vmatprep.subr.bf16.mxu0 0
  %2236 = vmatpush1.bf16.msra.mxu0 %v2075
  %2237 = vmatprep.mubr.bf16.mxu0 %v1807
  %2238 = vmatmul.mubr.bf16.gmra.mrb[0].mxu0 %v1806
  %v2239 = vpop.f32.mrb[0].mxu0
  %v2240 = vadd.f32 %v2175, %v2239
  %v2241 = vpop.f32.mrb[0].mxu0
  %v2242 = vpop.f32.mrb[0].mxu0
  %v2243 = vadd.f32 %v2178, %v2242
  %v2244 = vpop.f32.mrb[0].mxu0
  %2245 = vmatprep.mubr.bf16.mxu0 %v1813
  %2246 = vmatmul.mubr.bf16.gmra.mrb[0].mxu0 %v1812
  %v2247 = vpop.f32.mrb[0].mxu0
  %v2248 = vadd.f32 %v2183, %v2247
  %v2249 = vpop.f32.mrb[0].mxu0
  %v2250 = vpop.f32.mrb[0].mxu0
  %v2251 = vadd.f32 %v2186, %v2250
  %v2252 = vpop.f32.mrb[0].mxu0
  %2253 = vmatprep.mubr.bf16.mxu0 %v1819
  %2254 = vmatmul.mubr.bf16.gmra.mrb[0].mxu0 %v1818
  %v2255 = vpop.f32.mrb[0].mxu0
  %v2256 = vadd.f32 %v2191, %v2255
  %v2257 = vpop.f32.mrb[0].mxu0
  %v2258 = vpop.f32.mrb[0].mxu0
  %v2259 = vadd.f32 %v2194, %v2258
  %v2260 = vpop.f32.mrb[0].mxu0
  %2261 = vmatprep.mubr.bf16.mxu0 %v1825
  %2262 = vmatmul.mubr.bf16.gmra.mrb[0].mxu0 %v1824
  %v2263 = vpop.f32.mrb[0].mxu0
  %v2264 = vadd.f32 %v2199, %v2263
  %v2265 = vpop.f32.mrb[0].mxu0
  %v2266 = vpop.f32.mrb[0].mxu0
  %v2267 = vadd.f32 %v2202, %v2266
  %v2268 = vpop.f32.mrb[0].mxu0
  %2269 = vdwg.mxu0
  %2270 = vmatprep.subr.bf16.mxu0 0
  %2271 = vmatpush1.bf16.msra.mxu0 %v2076
  %2272 = vmatprep.subr.bf16.mxu0 0
  %2273 = vmatpush1.bf16.msra.mxu0 %v2077
  %2274 = vmatprep.subr.bf16.mxu0 0
  %2275 = vmatpush1.bf16.msra.mxu0 %v2078
  %2276 = vmatprep.subr.bf16.mxu0 0
  %2277 = vmatpush1.bf16.msra.mxu0 %v2079
  %2278 = vmatprep.subr.bf16.mxu0 0
  %2279 = vmatpush1.bf16.msra.mxu0 %v2080
  %2280 = vmatprep.subr.bf16.mxu0 0
  %2281 = vmatpush1.bf16.msra.mxu0 %v2081
  %2282 = vmatprep.subr.bf16.mxu0 0
  %2283 = vmatpush1.bf16.msra.mxu0 %v2082
  %2284 = vmatprep.subr.bf16.mxu0 0
  %2285 = vmatpush1.bf16.msra.mxu0 %v2083
  %2286 = vmatprep.subr.bf16.mxu0 0
  %2287 = vmatpush1.bf16.msra.mxu0 %v2084
  %2288 = vmatprep.subr.bf16.mxu0 0
  %2289 = vmatpush1.bf16.msra.mxu0 %v2085
  %2290 = vmatprep.subr.bf16.mxu0 0
  %2291 = vmatpush1.bf16.msra.mxu0 %v2086
  %2292 = vmatprep.subr.bf16.mxu0 0
  %2293 = vmatpush1.bf16.msra.mxu0 %v2087
  %2294 = vmatprep.subr.bf16.mxu0 0
  %2295 = vmatpush1.bf16.msra.mxu0 %v2088
  %2296 = vmatprep.subr.bf16.mxu0 0
  %2297 = vmatpush1.bf16.msra.mxu0 %v2089
  %2298 = vmatprep.subr.bf16.mxu0 0
  %2299 = vmatpush1.bf16.msra.mxu0 %v2090
  %2300 = vmatprep.subr.bf16.mxu0 0
  %2301 = vmatpush1.bf16.msra.mxu0 %v2091
  %2302 = vmatprep.mubr.bf16.mxu0 %v1809
  %2303 = vmatmul.mubr.bf16.gmra.mrb[0].mxu0 %v1808
  %v2304 = vpop.f32.mrb[0].mxu0
  %v2305 = vadd.f32 %v2240, %v2304
  %v2306 = vpop.f32.mrb[0].mxu0
  %v2307 = vpop.f32.mrb[0].mxu0
  %v2308 = vadd.f32 %v2243, %v2307
  %v2309 = vpop.f32.mrb[0].mxu0
  %2310 = vmatprep.mubr.bf16.mxu0 %v1815
  %2311 = vmatmul.mubr.bf16.gmra.mrb[0].mxu0 %v1814
  %v2312 = vpop.f32.mrb[0].mxu0
  %v2313 = vadd.f32 %v2248, %v2312
  %v2314 = vpop.f32.mrb[0].mxu0
  %v2315 = vpop.f32.mrb[0].mxu0
  %v2316 = vadd.f32 %v2251, %v2315
  %v2317 = vpop.f32.mrb[0].mxu0
  %2318 = vmatprep.mubr.bf16.mxu0 %v1821
  %2319 = vmatmul.mubr.bf16.gmra.mrb[0].mxu0 %v1820
  %v2320 = vpop.f32.mrb[0].mxu0
  %v2321 = vadd.f32 %v2256, %v2320
  %v2322 = vpop.f32.mrb[0].mxu0
  %v2323 = vpop.f32.mrb[0].mxu0
  %v2324 = vadd.f32 %v2259, %v2323
  %v2325 = vpop.f32.mrb[0].mxu0
  %2326 = vmatprep.mubr.bf16.mxu0 %v1827
  %2327 = vmatmul.mubr.bf16.gmra.mrb[0].mxu0 %v1826
  %v2328 = vpop.f32.mrb[0].mxu0
  %v2329 = vadd.f32 %v2264, %v2328
  %v2330 = vpop.f32.mrb[0].mxu0
  %v2331 = vpop.f32.mrb[0].mxu0
  %v2332 = vadd.f32 %v2267, %v2331
  %v2333 = vpop.f32.mrb[0].mxu0
  %2334 = vdwg.mxu0
  %v2335 = vld [vmem:[%s6] sm:$0xff]
  %v2336 = vld [vmem:[%s6 + $0x8] sm:$0xff]
  %v2337 = vld [vmem:[%s6 + $0x10] sm:$0xff]
  %v2338 = vld [vmem:[%s6 + $0x18] sm:$0xff]
  %v2339 = vld [vmem:[%s6 + $0x20] sm:$0xff]
  %v2340 = vld [vmem:[%s6 + $0x28] sm:$0xff]
  %v2341 = vld [vmem:[%s6 + $0x30] sm:$0xff]
  %v2342 = vld [vmem:[%s6 + $0x38] sm:$0xff]
  %v2343 = vld [vmem:[%s6 + $0x40] sm:$0xff]
  %v2344 = vld [vmem:[%s6 + $0x48] sm:$0xff]
  %v2345 = vld [vmem:[%s6 + $0x50] sm:$0xff]
  %v2346 = vld [vmem:[%s6 + $0x58] sm:$0xff]
  %v2347 = vld [vmem:[%s6 + $0x60] sm:$0xff]
  %v2348 = vld [vmem:[%s6 + $0x68] sm:$0xff]
  %v2349 = vld [vmem:[%s6 + $0x70] sm:$0xff]
  %v2350 = vld [vmem:[%s6 + $0x78] sm:$0xff]
  %v2351 = vld [vmem:[%s6 + $0x80] sm:$0xff]
  %v2352 = vld [vmem:[%s6 + $0x88] sm:$0xff]
  %v2353 = vld [vmem:[%s6 + $0x90] sm:$0xff]
  %v2354 = vld [vmem:[%s6 + $0x98] sm:$0xff]
  %v2355 = vld [vmem:[%s6 + $0xa0] sm:$0xff]
  %v2356 = vld [vmem:[%s6 + $0xa8] sm:$0xff]
  %v2357 = vld [vmem:[%s6 + $0xb0] sm:$0xff]
  %v2358 = vld [vmem:[%s6 + $0xb8] sm:$0xff]
  %v2359 = vld [vmem:[%s6 + $0xc0] sm:$0xff]
  %v2360 = vld [vmem:[%s6 + $0xc8] sm:$0xff]
  %v2361 = vld [vmem:[%s6 + $0xd0] sm:$0xff]
  %v2362 = vld [vmem:[%s6 + $0xd8] sm:$0xff]
  %v2363 = vld [vmem:[%s6 + $0xe0] sm:$0xff]
  %v2364 = vld [vmem:[%s6 + $0xe8] sm:$0xff]
  %v2365 = vld [vmem:[%s6 + $0xf0] sm:$0xff]
  %v2366 = vld [vmem:[%s6 + $0xf8] sm:$0xff]
  %v2367 = vld [vmem:[%s6 + $0x100] sm:$0xff]
  %v2368 = vld [vmem:[%s6 + $0x108] sm:$0xff]
  %v2369 = vld [vmem:[%s6 + $0x110] sm:$0xff]
  %v2370 = vld [vmem:[%s6 + $0x118] sm:$0xff]
  %v2371 = vld [vmem:[%s6 + $0x120] sm:$0xff]
  %v2372 = vld [vmem:[%s6 + $0x128] sm:$0xff]
  %v2373 = vld [vmem:[%s6 + $0x130] sm:$0xff]
  %v2374 = vld [vmem:[%s6 + $0x138] sm:$0xff]
  %v2375 = vld [vmem:[%s6 + $0x140] sm:$0xff]
  %v2376 = vld [vmem:[%s6 + $0x148] sm:$0xff]
  %v2377 = vld [vmem:[%s6 + $0x150] sm:$0xff]
  %v2378 = vld [vmem:[%s6 + $0x158] sm:$0xff]
  %v2379 = vld [vmem:[%s6 + $0x160] sm:$0xff]
  %v2380 = vld [vmem:[%s6 + $0x168] sm:$0xff]
  %v2381 = vld [vmem:[%s6 + $0x170] sm:$0xff]
  %v2382 = vld [vmem:[%s6 + $0x178] sm:$0xff]
  %v2383 = vld [vmem:[%s6 + $0x180] sm:$0xff]
  %v2384 = vld [vmem:[%s6 + $0x188] sm:$0xff]
  %v2385 = vld [vmem:[%s6 + $0x190] sm:$0xff]
  %v2386 = vld [vmem:[%s6 + $0x198] sm:$0xff]
  %v2387 = vld [vmem:[%s6 + $0x1a0] sm:$0xff]
  %v2388 = vld [vmem:[%s6 + $0x1a8] sm:$0xff]
  %v2389 = vld [vmem:[%s6 + $0x1b0] sm:$0xff]
  %v2390 = vld [vmem:[%s6 + $0x1b8] sm:$0xff]
  %v2391 = vld [vmem:[%s6 + $0x1c0] sm:$0xff]
  %v2392 = vld [vmem:[%s6 + $0x1c8] sm:$0xff]
  %v2393 = vld [vmem:[%s6 + $0x1d0] sm:$0xff]
  %v2394 = vld [vmem:[%s6 + $0x1d8] sm:$0xff]
  %v2395 = vld [vmem:[%s6 + $0x1e0] sm:$0xff]
  %v2396 = vld [vmem:[%s6 + $0x1e8] sm:$0xff]
  %v2397 = vld [vmem:[%s6 + $0x1f0] sm:$0xff]
  %v2398 = vld [vmem:[%s6 + $0x1f8] sm:$0xff]
  %v2399 = vld [vmem:[%s6 + $0x200] sm:$0xff]
  %v2400 = vld [vmem:[%s6 + $0x208] sm:$0xff]
  %v2401 = vld [vmem:[%s6 + $0x210] sm:$0xff]
  %v2402 = vld [vmem:[%s6 + $0x218] sm:$0xff]
  %v2403 = vld [vmem:[%s6 + $0x220] sm:$0xff]
  %v2404 = vld [vmem:[%s6 + $0x228] sm:$0xff]
  %v2405 = vld [vmem:[%s6 + $0x230] sm:$0xff]
  %v2406 = vld [vmem:[%s6 + $0x238] sm:$0xff]
  %v2407 = vld [vmem:[%s6 + $0x240] sm:$0xff]
  %v2408 = vld [vmem:[%s6 + $0x248] sm:$0xff]
  %v2409 = vld [vmem:[%s6 + $0x250] sm:$0xff]
  %v2410 = vld [vmem:[%s6 + $0x258] sm:$0xff]
  %v2411 = vld [vmem:[%s6 + $0x260] sm:$0xff]
  %v2412 = vld [vmem:[%s6 + $0x268] sm:$0xff]
  %v2413 = vld [vmem:[%s6 + $0x270] sm:$0xff]
  %v2414 = vld [vmem:[%s6 + $0x278] sm:$0xff]
  %v2415 = vld [vmem:[%s6 + $0x280] sm:$0xff]
  %v2416 = vld [vmem:[%s6 + $0x288] sm:$0xff]
  %v2417 = vld [vmem:[%s6 + $0x290] sm:$0xff]
  %v2418 = vld [vmem:[%s6 + $0x298] sm:$0xff]
  %v2419 = vld [vmem:[%s6 + $0x2a0] sm:$0xff]
  %v2420 = vld [vmem:[%s6 + $0x2a8] sm:$0xff]
  %v2421 = vld [vmem:[%s6 + $0x2b0] sm:$0xff]
  %v2422 = vld [vmem:[%s6 + $0x2b8] sm:$0xff]
  %v2423 = vld [vmem:[%s6 + $0x2c0] sm:$0xff]
  %v2424 = vld [vmem:[%s6 + $0x2c8] sm:$0xff]
  %v2425 = vld [vmem:[%s6 + $0x2d0] sm:$0xff]
  %v2426 = vld [vmem:[%s6 + $0x2d8] sm:$0xff]
  %v2427 = vld [vmem:[%s6 + $0x2e0] sm:$0xff]
  %v2428 = vld [vmem:[%s6 + $0x2e8] sm:$0xff]
  %v2429 = vld [vmem:[%s6 + $0x2f0] sm:$0xff]
  %v2430 = vld [vmem:[%s6 + $0x2f8] sm:$0xff]
  %v2431 = vld [vmem:[%s7] sm:$0x3]
  %v2433 = vlaneseq
  %v2434 = vshrl.u32 %v2433, 7
  %v2435 = vsub.s32 0, %v2434
  %v2436 = vrot.slane %v2431, %v2435
  %v2437 = vlaneseq
  %v2438 = vshrl.u32 %v2437, 7
  %v2439 = vsub.s32 1, %v2438
  %v2440 = vrot.slane %v2431, %v2439
  %v2467 = vunpack.c.l.b16 %v1509
  %v2468 = vunpack.c.h.b16 %v1509
  %v2469 = vunpack.c.l.b16 %v1510
  %v2470 = vunpack.c.h.b16 %v1510
  %v2471 = vunpack.c.l.b16 %v1511
  %v2472 = vunpack.c.h.b16 %v1511
  %v2473 = vunpack.c.l.b16 %v1512
  %v2474 = vunpack.c.h.b16 %v1512
  %v2475 = vunpack.c.l.b16 %v1513
  %v2476 = vunpack.c.h.b16 %v1513
  %v2477 = vunpack.c.l.b16 %v1514
  %v2478 = vunpack.c.h.b16 %v1514
  %v2479 = vunpack.c.l.b16 %v1515
  %v2480 = vunpack.c.h.b16 %v1515
  %v2481 = vunpack.c.l.b16 %v1516
  %v2482 = vunpack.c.h.b16 %v1516
  %v2483 = vunpack.c.l.b16 %v1517
  %v2484 = vunpack.c.h.b16 %v1517
  %v2485 = vunpack.c.l.b16 %v1518
  %v2486 = vunpack.c.h.b16 %v1518
  %v2487 = vunpack.c.l.b16 %v1519
  %v2488 = vunpack.c.h.b16 %v1519
  %v2489 = vunpack.c.l.b16 %v1520
  %v2490 = vunpack.c.h.b16 %v1520
  %v2491 = vunpack.c.l.b16 %v1521
  %v2492 = vunpack.c.h.b16 %v1521
  %v2493 = vunpack.c.l.b16 %v1522
  %v2494 = vunpack.c.h.b16 %v1522
  %v2495 = vunpack.c.l.b16 %v1523
  %v2496 = vunpack.c.h.b16 %v1523
  %v2497 = vunpack.c.l.b16 %v1524
  %v2498 = vunpack.c.h.b16 %v1524
  %v2499 = vunpack.c.l.b16 %v1525
  %v2500 = vunpack.c.h.b16 %v1525
  %v2501 = vunpack.c.l.b16 %v1526
  %v2502 = vunpack.c.h.b16 %v1526
  %v2503 = vunpack.c.l.b16 %v1527
  %v2504 = vunpack.c.h.b16 %v1527
  %v2505 = vunpack.c.l.b16 %v1528
  %v2506 = vunpack.c.h.b16 %v1528
  %v2507 = vunpack.c.l.b16 %v1529
  %v2508 = vunpack.c.h.b16 %v1529
  %v2509 = vunpack.c.l.b16 %v1530
  %v2510 = vunpack.c.h.b16 %v1530
  %v2511 = vunpack.c.l.b16 %v1531
  %v2512 = vunpack.c.h.b16 %v1531
  %v2513 = vunpack.c.l.b16 %v1532
  %v2514 = vunpack.c.h.b16 %v1532
  %v2515 = vpack.c.b16 %v2473, %v2467
  %v2516 = vpack.c.b16 %v2474, %v2468
  %v2517 = vpack.c.b16 %v2475, %v2469
  %v2518 = vpack.c.b16 %v2476, %v2470
  %v2519 = vpack.c.b16 %v2477, %v2471
  %v2520 = vpack.c.b16 %v2478, %v2472
  %v2521 = vpack.c.b16 %v2485, %v2479
  %v2522 = vpack.c.b16 %v2486, %v2480
  %v2523 = vpack.c.b16 %v2487, %v2481
  %v2524 = vpack.c.b16 %v2488, %v2482
  %v2525 = vpack.c.b16 %v2489, %v2483
  %v2526 = vpack.c.b16 %v2490, %v2484
  %v2527 = vpack.c.b16 %v2497, %v2491
  %v2528 = vpack.c.b16 %v2498, %v2492
  %v2529 = vpack.c.b16 %v2499, %v2493
  %v2530 = vpack.c.b16 %v2500, %v2494
  %v2531 = vpack.c.b16 %v2501, %v2495
  %v2532 = vpack.c.b16 %v2502, %v2496
  %v2533 = vpack.c.b16 %v2509, %v2503
  %v2534 = vpack.c.b16 %v2510, %v2504
  %v2535 = vpack.c.b16 %v2511, %v2505
  %v2536 = vpack.c.b16 %v2512, %v2506
  %v2537 = vpack.c.b16 %v2513, %v2507
  %v2538 = vpack.c.b16 %v2514, %v2508
  %v2659 = vunpack.c.l.b16 %v2335
  %v2660 = vunpack.c.h.b16 %v2335
  %v2661 = vunpack.c.l.b16 %v2336
  %v2662 = vunpack.c.h.b16 %v2336
  %v2663 = vunpack.c.l.b16 %v2337
  %v2664 = vunpack.c.h.b16 %v2337
  %v2665 = vunpack.c.l.b16 %v2338
  %v2666 = vunpack.c.h.b16 %v2338
  %v2667 = vunpack.c.l.b16 %v2339
  %v2668 = vunpack.c.h.b16 %v2339
  %v2669 = vunpack.c.l.b16 %v2340
  %v2670 = vunpack.c.h.b16 %v2340
  %v2671 = vunpack.c.l.b16 %v2341
  %v2672 = vunpack.c.h.b16 %v2341
  %v2673 = vunpack.c.l.b16 %v2342
  %v2674 = vunpack.c.h.b16 %v2342
  %v2675 = vunpack.c.l.b16 %v2343
  %v2676 = vunpack.c.h.b16 %v2343
  %v2677 = vunpack.c.l.b16 %v2344
  %v2678 = vunpack.c.h.b16 %v2344
  %v2679 = vunpack.c.l.b16 %v2345
  %v2680 = vunpack.c.h.b16 %v2345
  %v2681 = vunpack.c.l.b16 %v2346
  %v2682 = vunpack.c.h.b16 %v2346
  %v2683 = vunpack.c.l.b16 %v2347
  %v2684 = vunpack.c.h.b16 %v2347
  %v2685 = vunpack.c.l.b16 %v2348
  %v2686 = vunpack.c.h.b16 %v2348
  %v2687 = vunpack.c.l.b16 %v2349
  %v2688 = vunpack.c.h.b16 %v2349
  %v2689 = vunpack.c.l.b16 %v2350
  %v2690 = vunpack.c.h.b16 %v2350
  %v2691 = vunpack.c.l.b16 %v2351
  %v2692 = vunpack.c.h.b16 %v2351
  %v2693 = vunpack.c.l.b16 %v2352
  %v2694 = vunpack.c.h.b16 %v2352
  %v2695 = vunpack.c.l.b16 %v2353
  %v2696 = vunpack.c.h.b16 %v2353
  %v2697 = vunpack.c.l.b16 %v2354
  %v2698 = vunpack.c.h.b16 %v2354
  %v2699 = vunpack.c.l.b16 %v2355
  %v2700 = vunpack.c.h.b16 %v2355
  %v2701 = vunpack.c.l.b16 %v2356
  %v2702 = vunpack.c.h.b16 %v2356
  %v2703 = vunpack.c.l.b16 %v2357
  %v2704 = vunpack.c.h.b16 %v2357
  %v2705 = vunpack.c.l.b16 %v2358
  %v2706 = vunpack.c.h.b16 %v2358
  %v2707 = vunpack.c.l.b16 %v2359
  %v2708 = vunpack.c.h.b16 %v2359
  %v2709 = vunpack.c.l.b16 %v2360
  %v2710 = vunpack.c.h.b16 %v2360
  %v2711 = vunpack.c.l.b16 %v2361
  %v2712 = vunpack.c.h.b16 %v2361
  %v2713 = vunpack.c.l.b16 %v2362
  %v2714 = vunpack.c.h.b16 %v2362
  %v2715 = vunpack.c.l.b16 %v2363
  %v2716 = vunpack.c.h.b16 %v2363
  %v2717 = vunpack.c.l.b16 %v2364
  %v2718 = vunpack.c.h.b16 %v2364
  %v2719 = vunpack.c.l.b16 %v2365
  %v2720 = vunpack.c.h.b16 %v2365
  %v2721 = vunpack.c.l.b16 %v2366
  %v2722 = vunpack.c.h.b16 %v2366
  %v2723 = vunpack.c.l.b16 %v2367
  %v2724 = vunpack.c.h.b16 %v2367
  %v2725 = vunpack.c.l.b16 %v2368
  %v2726 = vunpack.c.h.b16 %v2368
  %v2727 = vunpack.c.l.b16 %v2369
  %v2728 = vunpack.c.h.b16 %v2369
  %v2729 = vunpack.c.l.b16 %v2370
  %v2730 = vunpack.c.h.b16 %v2370
  %v2731 = vunpack.c.l.b16 %v2371
  %v2732 = vunpack.c.h.b16 %v2371
  %v2733 = vunpack.c.l.b16 %v2372
  %v2734 = vunpack.c.h.b16 %v2372
  %v2735 = vunpack.c.l.b16 %v2373
  %v2736 = vunpack.c.h.b16 %v2373
  %v2737 = vunpack.c.l.b16 %v2374
  %v2738 = vunpack.c.h.b16 %v2374
  %v2739 = vunpack.c.l.b16 %v2375
  %v2740 = vunpack.c.h.b16 %v2375
  %v2741 = vunpack.c.l.b16 %v2376
  %v2742 = vunpack.c.h.b16 %v2376
  %v2743 = vunpack.c.l.b16 %v2377
  %v2744 = vunpack.c.h.b16 %v2377
  %v2745 = vunpack.c.l.b16 %v2378
  %v2746 = vunpack.c.h.b16 %v2378
  %v2747 = vunpack.c.l.b16 %v2379
  %v2748 = vunpack.c.h.b16 %v2379
  %v2749 = vunpack.c.l.b16 %v2380
  %v2750 = vunpack.c.h.b16 %v2380
  %v2751 = vunpack.c.l.b16 %v2381
  %v2752 = vunpack.c.h.b16 %v2381
  %v2753 = vunpack.c.l.b16 %v2382
  %v2754 = vunpack.c.h.b16 %v2382
  %v2755 = vunpack.c.l.b16 %v2383
  %v2756 = vunpack.c.h.b16 %v2383
  %v2757 = vunpack.c.l.b16 %v2384
  %v2758 = vunpack.c.h.b16 %v2384
  %v2759 = vunpack.c.l.b16 %v2385
  %v2760 = vunpack.c.h.b16 %v2385
  %v2761 = vunpack.c.l.b16 %v2386
  %v2762 = vunpack.c.h.b16 %v2386
  %v2763 = vunpack.c.l.b16 %v2387
  %v2764 = vunpack.c.h.b16 %v2387
  %v2765 = vunpack.c.l.b16 %v2388
  %v2766 = vunpack.c.h.b16 %v2388
  %v2767 = vunpack.c.l.b16 %v2389
  %v2768 = vunpack.c.h.b16 %v2389
  %v2769 = vunpack.c.l.b16 %v2390
  %v2770 = vunpack.c.h.b16 %v2390
  %v2771 = vunpack.c.l.b16 %v2391
  %v2772 = vunpack.c.h.b16 %v2391
  %v2773 = vunpack.c.l.b16 %v2392
  %v2774 = vunpack.c.h.b16 %v2392
  %v2775 = vunpack.c.l.b16 %v2393
  %v2776 = vunpack.c.h.b16 %v2393
  %v2777 = vunpack.c.l.b16 %v2394
  %v2778 = vunpack.c.h.b16 %v2394
  %v2779 = vunpack.c.l.b16 %v2395
  %v2780 = vunpack.c.h.b16 %v2395
  %v2781 = vunpack.c.l.b16 %v2396
  %v2782 = vunpack.c.h.b16 %v2396
  %v2783 = vunpack.c.l.b16 %v2397
  %v2784 = vunpack.c.h.b16 %v2397
  %v2785 = vunpack.c.l.b16 %v2398
  %v2786 = vunpack.c.h.b16 %v2398
  %v2787 = vunpack.c.l.b16 %v2399
  %v2788 = vunpack.c.h.b16 %v2399
  %v2789 = vunpack.c.l.b16 %v2400
  %v2790 = vunpack.c.h.b16 %v2400
  %v2791 = vunpack.c.l.b16 %v2401
  %v2792 = vunpack.c.h.b16 %v2401
  %v2793 = vunpack.c.l.b16 %v2402
  %v2794 = vunpack.c.h.b16 %v2402
  %v2795 = vunpack.c.l.b16 %v2403
  %v2796 = vunpack.c.h.b16 %v2403
  %v2797 = vunpack.c.l.b16 %v2404
  %v2798 = vunpack.c.h.b16 %v2404
  %v2799 = vunpack.c.l.b16 %v2405
  %v2800 = vunpack.c.h.b16 %v2405
  %v2801 = vunpack.c.l.b16 %v2406
  %v2802 = vunpack.c.h.b16 %v2406
  %v2803 = vunpack.c.l.b16 %v2407
  %v2804 = vunpack.c.h.b16 %v2407
  %v2805 = vunpack.c.l.b16 %v2408
  %v2806 = vunpack.c.h.b16 %v2408
  %v2807 = vunpack.c.l.b16 %v2409
  %v2808 = vunpack.c.h.b16 %v2409
  %v2809 = vunpack.c.l.b16 %v2410
  %v2810 = vunpack.c.h.b16 %v2410
  %v2811 = vunpack.c.l.b16 %v2411
  %v2812 = vunpack.c.h.b16 %v2411
  %v2813 = vunpack.c.l.b16 %v2412
  %v2814 = vunpack.c.h.b16 %v2412
  %v2815 = vunpack.c.l.b16 %v2413
  %v2816 = vunpack.c.h.b16 %v2413
  %v2817 = vunpack.c.l.b16 %v2414
  %v2818 = vunpack.c.h.b16 %v2414
  %v2819 = vunpack.c.l.b16 %v2415
  %v2820 = vunpack.c.h.b16 %v2415
  %v2821 = vunpack.c.l.b16 %v2416
  %v2822 = vunpack.c.h.b16 %v2416
  %v2823 = vunpack.c.l.b16 %v2417
  %v2824 = vunpack.c.h.b16 %v2417
  %v2825 = vunpack.c.l.b16 %v2418
  %v2826 = vunpack.c.h.b16 %v2418
  %v2827 = vunpack.c.l.b16 %v2419
  %v2828 = vunpack.c.h.b16 %v2419
  %v2829 = vunpack.c.l.b16 %v2420
  %v2830 = vunpack.c.h.b16 %v2420
  %v2831 = vunpack.c.l.b16 %v2421
  %v2832 = vunpack.c.h.b16 %v2421
  %v2833 = vunpack.c.l.b16 %v2422
  %v2834 = vunpack.c.h.b16 %v2422
  %v2835 = vunpack.c.l.b16 %v2423
  %v2836 = vunpack.c.h.b16 %v2423
  %v2837 = vunpack.c.l.b16 %v2424
  %v2838 = vunpack.c.h.b16 %v2424
  %v2839 = vunpack.c.l.b16 %v2425
  %v2840 = vunpack.c.h.b16 %v2425
  %v2841 = vunpack.c.l.b16 %v2426
  %v2842 = vunpack.c.h.b16 %v2426
  %v2843 = vunpack.c.l.b16 %v2427
  %v2844 = vunpack.c.h.b16 %v2427
  %v2845 = vunpack.c.l.b16 %v2428
  %v2846 = vunpack.c.h.b16 %v2428
  %v2847 = vunpack.c.l.b16 %v2429
  %v2848 = vunpack.c.h.b16 %v2429
  %v2849 = vunpack.c.l.b16 %v2430
  %v2850 = vunpack.c.h.b16 %v2430
  %v2851 = vpack.c.b16 %v2661, %v2659
  %v2852 = vpack.c.b16 %v2662, %v2660
  %v2853 = vpack.c.b16 %v2665, %v2663
  %v2854 = vpack.c.b16 %v2666, %v2664
  %v2855 = vpack.c.b16 %v2669, %v2667
  %v2856 = vpack.c.b16 %v2670, %v2668
  %v2857 = vpack.c.b16 %v2673, %v2671
  %v2858 = vpack.c.b16 %v2674, %v2672
  %v2859 = vpack.c.b16 %v2677, %v2675
  %v2860 = vpack.c.b16 %v2678, %v2676
  %v2861 = vpack.c.b16 %v2681, %v2679
  %v2862 = vpack.c.b16 %v2682, %v2680
  %v2863 = vpack.c.b16 %v2685, %v2683
  %v2864 = vpack.c.b16 %v2686, %v2684
  %v2865 = vpack.c.b16 %v2689, %v2687
  %v2866 = vpack.c.b16 %v2690, %v2688
  %v2867 = vpack.c.b16 %v2693, %v2691
  %v2868 = vpack.c.b16 %v2694, %v2692
  %v2869 = vpack.c.b16 %v2697, %v2695
  %v2870 = vpack.c.b16 %v2698, %v2696
  %v2871 = vpack.c.b16 %v2701, %v2699
  %v2872 = vpack.c.b16 %v2702, %v2700
  %v2873 = vpack.c.b16 %v2705, %v2703
  %v2874 = vpack.c.b16 %v2706, %v2704
  %v2875 = vpack.c.b16 %v2709, %v2707
  %v2876 = vpack.c.b16 %v2710, %v2708
  %v2877 = vpack.c.b16 %v2713, %v2711
  %v2878 = vpack.c.b16 %v2714, %v2712
  %v2879 = vpack.c.b16 %v2717, %v2715
  %v2880 = vpack.c.b16 %v2718, %v2716
  %v2881 = vpack.c.b16 %v2721, %v2719
  %v2882 = vpack.c.b16 %v2722, %v2720
  %v2883 = vpack.c.b16 %v2725, %v2723
  %v2884 = vpack.c.b16 %v2726, %v2724
  %v2885 = vpack.c.b16 %v2729, %v2727
  %v2886 = vpack.c.b16 %v2730, %v2728
  %v2887 = vpack.c.b16 %v2733, %v2731
  %v2888 = vpack.c.b16 %v2734, %v2732
  %v2889 = vpack.c.b16 %v2737, %v2735
  %v2890 = vpack.c.b16 %v2738, %v2736
  %v2891 = vpack.c.b16 %v2741, %v2739
  %v2892 = vpack.c.b16 %v2742, %v2740
  %v2893 = vpack.c.b16 %v2745, %v2743
  %v2894 = vpack.c.b16 %v2746, %v2744
  %v2895 = vpack.c.b16 %v2749, %v2747
  %v2896 = vpack.c.b16 %v2750, %v2748
  %v2897 = vpack.c.b16 %v2753, %v2751
  %v2898 = vpack.c.b16 %v2754, %v2752
  %v2899 = vpack.c.b16 %v2757, %v2755
  %v2900 = vpack.c.b16 %v2758, %v2756
  %v2901 = vpack.c.b16 %v2761, %v2759
  %v2902 = vpack.c.b16 %v2762, %v2760
  %v2903 = vpack.c.b16 %v2765, %v2763
  %v2904 = vpack.c.b16 %v2766, %v2764
  %v2905 = vpack.c.b16 %v2769, %v2767
  %v2906 = vpack.c.b16 %v2770, %v2768
  %v2907 = vpack.c.b16 %v2773, %v2771
  %v2908 = vpack.c.b16 %v2774, %v2772
  %v2909 = vpack.c.b16 %v2777, %v2775
  %v2910 = vpack.c.b16 %v2778, %v2776
  %v2911 = vpack.c.b16 %v2781, %v2779
  %v2912 = vpack.c.b16 %v2782, %v2780
  %v2913 = vpack.c.b16 %v2785, %v2783
  %v2914 = vpack.c.b16 %v2786, %v2784
  %v2915 = vpack.c.b16 %v2789, %v2787
  %v2916 = vpack.c.b16 %v2790, %v2788
  %v2917 = vpack.c.b16 %v2793, %v2791
  %v2918 = vpack.c.b16 %v2794, %v2792
  %v2919 = vpack.c.b16 %v2797, %v2795
  %v2920 = vpack.c.b16 %v2798, %v2796
  %v2921 = vpack.c.b16 %v2801, %v2799
  %v2922 = vpack.c.b16 %v2802, %v2800
  %v2923 = vpack.c.b16 %v2805, %v2803
  %v2924 = vpack.c.b16 %v2806, %v2804
  %v2925 = vpack.c.b16 %v2809, %v2807
  %v2926 = vpack.c.b16 %v2810, %v2808
  %v2927 = vpack.c.b16 %v2813, %v2811
  %v2928 = vpack.c.b16 %v2814, %v2812
  %v2929 = vpack.c.b16 %v2817, %v2815
  %v2930 = vpack.c.b16 %v2818, %v2816
  %v2931 = vpack.c.b16 %v2821, %v2819
  %v2932 = vpack.c.b16 %v2822, %v2820
  %v2933 = vpack.c.b16 %v2825, %v2823
  %v2934 = vpack.c.b16 %v2826, %v2824
  %v2935 = vpack.c.b16 %v2829, %v2827
  %v2936 = vpack.c.b16 %v2830, %v2828
  %v2937 = vpack.c.b16 %v2833, %v2831
  %v2938 = vpack.c.b16 %v2834, %v2832
  %v2939 = vpack.c.b16 %v2837, %v2835
  %v2940 = vpack.c.b16 %v2838, %v2836
  %v2941 = vpack.c.b16 %v2841, %v2839
  %v2942 = vpack.c.b16 %v2842, %v2840
  %v2943 = vpack.c.b16 %v2845, %v2843
  %v2944 = vpack.c.b16 %v2846, %v2844
  %v2945 = vpack.c.b16 %v2849, %v2847
  %v2946 = vpack.c.b16 %v2850, %v2848
  %3043 = vmatprep.subr.bf16.mxu0 %v2852
  %3044 = vmatpush1.bf16.msra.mxu0 %v2851
  %3045 = vmatprep.subr.bf16.mxu0 %v2854
  %3046 = vmatpush1.bf16.msra.mxu0 %v2853
  %3047 = vmatprep.subr.bf16.mxu0 %v2856
  %3048 = vmatpush1.bf16.msra.mxu0 %v2855
  %3049 = vmatprep.subr.bf16.mxu0 %v2858
  %3050 = vmatpush1.bf16.msra.mxu0 %v2857
  %3051 = vmatprep.subr.bf16.mxu0 %v2860
  %3052 = vmatpush1.bf16.msra.mxu0 %v2859
  %3053 = vmatprep.subr.bf16.mxu0 %v2862
  %3054 = vmatpush1.bf16.msra.mxu0 %v2861
  %3055 = vmatprep.subr.bf16.mxu0 %v2864
  %3056 = vmatpush1.bf16.msra.mxu0 %v2863
  %3057 = vmatprep.subr.bf16.mxu0 %v2866
  %3058 = vmatpush1.bf16.msra.mxu0 %v2865
  %3059 = vmatprep.subr.bf16.mxu0 %v2868
  %3060 = vmatpush1.bf16.msra.mxu0 %v2867
  %3061 = vmatprep.subr.bf16.mxu0 %v2870
  %3062 = vmatpush1.bf16.msra.mxu0 %v2869
  %3063 = vmatprep.subr.bf16.mxu0 %v2872
  %3064 = vmatpush1.bf16.msra.mxu0 %v2871
  %3065 = vmatprep.subr.bf16.mxu0 %v2874
  %3066 = vmatpush1.bf16.msra.mxu0 %v2873
  %3067 = vmatprep.subr.bf16.mxu0 %v2876
  %3068 = vmatpush1.bf16.msra.mxu0 %v2875
  %3069 = vmatprep.subr.bf16.mxu0 %v2878
  %3070 = vmatpush1.bf16.msra.mxu0 %v2877
  %3071 = vmatprep.subr.bf16.mxu0 %v2880
  %3072 = vmatpush1.bf16.msra.mxu0 %v2879
  %3073 = vmatprep.subr.bf16.mxu0 %v2882
  %3074 = vmatpush1.bf16.msra.mxu0 %v2881
  %3075 = vmatprep.mubr.bf16.mxu0 %v2516
  %3076 = vmatmul.mubr.bf16.gmra.mrb[0].mxu0 %v2515
  %v3077 = vpop.f32.mrb[0].mxu0
  %v3078 = vadd.f32 %v2436, %v3077
  %v3079 = vpop.f32.mrb[0].mxu0
  %v3080 = vadd.f32 %v2440, %v3079
  %v3081 = vpop.f32.mrb[0].mxu0
  %v3082 = vadd.f32 %v2436, %v3081
  %v3083 = vpop.f32.mrb[0].mxu0
  %v3084 = vadd.f32 %v2440, %v3083
  %3085 = vmatprep.mubr.bf16.mxu0 %v2522
  %3086 = vmatmul.mubr.bf16.gmra.mrb[0].mxu0 %v2521
  %v3087 = vpop.f32.mrb[0].mxu0
  %v3088 = vadd.f32 %v2436, %v3087
  %v3089 = vpop.f32.mrb[0].mxu0
  %v3090 = vadd.f32 %v2440, %v3089
  %v3091 = vpop.f32.mrb[0].mxu0
  %v3092 = vadd.f32 %v2436, %v3091
  %v3093 = vpop.f32.mrb[0].mxu0
  %v3094 = vadd.f32 %v2440, %v3093
  %3095 = vmatprep.mubr.bf16.mxu0 %v2528
  %3096 = vmatmul.mubr.bf16.gmra.mrb[0].mxu0 %v2527
  %v3097 = vpop.f32.mrb[0].mxu0
  %v3098 = vadd.f32 %v2436, %v3097
  %v3099 = vpop.f32.mrb[0].mxu0
  %v3100 = vadd.f32 %v2440, %v3099
  %v3101 = vpop.f32.mrb[0].mxu0
  %v3102 = vadd.f32 %v2436, %v3101
  %v3103 = vpop.f32.mrb[0].mxu0
  %v3104 = vadd.f32 %v2440, %v3103
  %3105 = vmatprep.mubr.bf16.mxu0 %v2534
  %3106 = vmatmul.mubr.bf16.gmra.mrb[0].mxu0 %v2533
  %v3107 = vpop.f32.mrb[0].mxu0
  %v3108 = vadd.f32 %v2436, %v3107
  %v3109 = vpop.f32.mrb[0].mxu0
  %v3110 = vadd.f32 %v2440, %v3109
  %v3111 = vpop.f32.mrb[0].mxu0
  %v3112 = vadd.f32 %v2436, %v3111
  %v3113 = vpop.f32.mrb[0].mxu0
  %v3114 = vadd.f32 %v2440, %v3113
  %3115 = vdwg.mxu0
  %3116 = vmatprep.subr.bf16.mxu0 %v2884
  %3117 = vmatpush1.bf16.msra.mxu0 %v2883
  %3118 = vmatprep.subr.bf16.mxu0 %v2886
  %3119 = vmatpush1.bf16.msra.mxu0 %v2885
  %3120 = vmatprep.subr.bf16.mxu0 %v2888
  %3121 = vmatpush1.bf16.msra.mxu0 %v2887
  %3122 = vmatprep.subr.bf16.mxu0 %v2890
  %3123 = vmatpush1.bf16.msra.mxu0 %v2889
  %3124 = vmatprep.subr.bf16.mxu0 %v2892
  %3125 = vmatpush1.bf16.msra.mxu0 %v2891
  %3126 = vmatprep.subr.bf16.mxu0 %v2894
  %3127 = vmatpush1.bf16.msra.mxu0 %v2893
  %3128 = vmatprep.subr.bf16.mxu0 %v2896
  %3129 = vmatpush1.bf16.msra.mxu0 %v2895
  %3130 = vmatprep.subr.bf16.mxu0 %v2898
  %3131 = vmatpush1.bf16.msra.mxu0 %v2897
  %3132 = vmatprep.subr.bf16.mxu0 %v2900
  %3133 = vmatpush1.bf16.msra.mxu0 %v2899
  %3134 = vmatprep.subr.bf16.mxu0 %v2902
  %3135 = vmatpush1.bf16.msra.mxu0 %v2901
  %3136 = vmatprep.subr.bf16.mxu0 %v2904
  %3137 = vmatpush1.bf16.msra.mxu0 %v2903
  %3138 = vmatprep.subr.bf16.mxu0 %v2906
  %3139 = vmatpush1.bf16.msra.mxu0 %v2905
  %3140 = vmatprep.subr.bf16.mxu0 %v2908
  %3141 = vmatpush1.bf16.msra.mxu0 %v2907
  %3142 = vmatprep.subr.bf16.mxu0 %v2910
  %3143 = vmatpush1.bf16.msra.mxu0 %v2909
  %3144 = vmatprep.subr.bf16.mxu0 %v2912
  %3145 = vmatpush1.bf16.msra.mxu0 %v2911
  %3146 = vmatprep.subr.bf16.mxu0 %v2914
  %3147 = vmatpush1.bf16.msra.mxu0 %v2913
  %3148 = vmatprep.mubr.bf16.mxu0 %v2518
  %3149 = vmatmul.mubr.bf16.gmra.mrb[0].mxu0 %v2517
  %v3150 = vpop.f32.mrb[0].mxu0
  %v3151 = vadd.f32 %v3078, %v3150
  %v3152 = vpop.f32.mrb[0].mxu0
  %v3153 = vadd.f32 %v3080, %v3152
  %v3154 = vpop.f32.mrb[0].mxu0
  %v3155 = vadd.f32 %v3082, %v3154
  %v3156 = vpop.f32.mrb[0].mxu0
  %v3157 = vadd.f32 %v3084, %v3156
  %3158 = vmatprep.mubr.bf16.mxu0 %v2524
  %3159 = vmatmul.mubr.bf16.gmra.mrb[0].mxu0 %v2523
  %v3160 = vpop.f32.mrb[0].mxu0
  %v3161 = vadd.f32 %v3088, %v3160
  %v3162 = vpop.f32.mrb[0].mxu0
  %v3163 = vadd.f32 %v3090, %v3162
  %v3164 = vpop.f32.mrb[0].mxu0
  %v3165 = vadd.f32 %v3092, %v3164
  %v3166 = vpop.f32.mrb[0].mxu0
  %v3167 = vadd.f32 %v3094, %v3166
  %3168 = vmatprep.mubr.bf16.mxu0 %v2530
  %3169 = vmatmul.mubr.bf16.gmra.mrb[0].mxu0 %v2529
  %v3170 = vpop.f32.mrb[0].mxu0
  %v3171 = vadd.f32 %v3098, %v3170
  %v3172 = vpop.f32.mrb[0].mxu0
  %v3173 = vadd.f32 %v3100, %v3172
  %v3174 = vpop.f32.mrb[0].mxu0
  %v3175 = vadd.f32 %v3102, %v3174
  %v3176 = vpop.f32.mrb[0].mxu0
  %v3177 = vadd.f32 %v3104, %v3176
  %3178 = vmatprep.mubr.bf16.mxu0 %v2536
  %3179 = vmatmul.mubr.bf16.gmra.mrb[0].mxu0 %v2535
  %v3180 = vpop.f32.mrb[0].mxu0
  %v3181 = vadd.f32 %v3108, %v3180
  %v3182 = vpop.f32.mrb[0].mxu0
  %v3183 = vadd.f32 %v3110, %v3182
  %v3184 = vpop.f32.mrb[0].mxu0
  %v3185 = vadd.f32 %v3112, %v3184
  %v3186 = vpop.f32.mrb[0].mxu0
  %v3187 = vadd.f32 %v3114, %v3186
  %3188 = vdwg.mxu0
  %3189 = vmatprep.subr.bf16.mxu0 %v2916
  %3190 = vmatpush1.bf16.msra.mxu0 %v2915
  %3191 = vmatprep.subr.bf16.mxu0 %v2918
  %3192 = vmatpush1.bf16.msra.mxu0 %v2917
  %3193 = vmatprep.subr.bf16.mxu0 %v2920
  %3194 = vmatpush1.bf16.msra.mxu0 %v2919
  %3195 = vmatprep.subr.bf16.mxu0 %v2922
  %3196 = vmatpush1.bf16.msra.mxu0 %v2921
  %3197 = vmatprep.subr.bf16.mxu0 %v2924
  %3198 = vmatpush1.bf16.msra.mxu0 %v2923
  %3199 = vmatprep.subr.bf16.mxu0 %v2926
  %3200 = vmatpush1.bf16.msra.mxu0 %v2925
  %3201 = vmatprep.subr.bf16.mxu0 %v2928
  %3202 = vmatpush1.bf16.msra.mxu0 %v2927
  %3203 = vmatprep.subr.bf16.mxu0 %v2930
  %3204 = vmatpush1.bf16.msra.mxu0 %v2929
  %3205 = vmatprep.subr.bf16.mxu0 %v2932
  %3206 = vmatpush1.bf16.msra.mxu0 %v2931
  %3207 = vmatprep.subr.bf16.mxu0 %v2934
  %3208 = vmatpush1.bf16.msra.mxu0 %v2933
  %3209 = vmatprep.subr.bf16.mxu0 %v2936
  %3210 = vmatpush1.bf16.msra.mxu0 %v2935
  %3211 = vmatprep.subr.bf16.mxu0 %v2938
  %3212 = vmatpush1.bf16.msra.mxu0 %v2937
  %3213 = vmatprep.subr.bf16.mxu0 %v2940
  %3214 = vmatpush1.bf16.msra.mxu0 %v2939
  %3215 = vmatprep.subr.bf16.mxu0 %v2942
  %3216 = vmatpush1.bf16.msra.mxu0 %v2941
  %3217 = vmatprep.subr.bf16.mxu0 %v2944
  %3218 = vmatpush1.bf16.msra.mxu0 %v2943
  %3219 = vmatprep.subr.bf16.mxu0 %v2946
  %3220 = vmatpush1.bf16.msra.mxu0 %v2945
  %3221 = vmatprep.mubr.bf16.mxu0 %v2520
  %3222 = vmatmul.mubr.bf16.gmra.mrb[0].mxu0 %v2519
  %v3223 = vpop.f32.mrb[0].mxu0
  %v3224 = vadd.f32 %v3151, %v3223
  %v3225 = vpop.f32.mrb[0].mxu0
  %v3226 = vadd.f32 %v3153, %v3225
  %v3227 = vpop.f32.mrb[0].mxu0
  %v3228 = vadd.f32 %v3155, %v3227
  %v3229 = vpop.f32.mrb[0].mxu0
  %v3230 = vadd.f32 %v3157, %v3229
  %3231 = vmatprep.mubr.bf16.mxu0 %v2526
  %3232 = vmatmul.mubr.bf16.gmra.mrb[0].mxu0 %v2525
  %v3233 = vpop.f32.mrb[0].mxu0
  %v3234 = vadd.f32 %v3161, %v3233
  %v3235 = vpop.f32.mrb[0].mxu0
  %v3236 = vadd.f32 %v3163, %v3235
  %v3237 = vpop.f32.mrb[0].mxu0
  %v3238 = vadd.f32 %v3165, %v3237
  %v3239 = vpop.f32.mrb[0].mxu0
  %v3240 = vadd.f32 %v3167, %v3239
  %3241 = vmatprep.mubr.bf16.mxu0 %v2532
  %3242 = vmatmul.mubr.bf16.gmra.mrb[0].mxu0 %v2531
  %v3243 = vpop.f32.mrb[0].mxu0
  %v3244 = vadd.f32 %v3171, %v3243
  %v3245 = vpop.f32.mrb[0].mxu0
  %v3246 = vadd.f32 %v3173, %v3245
  %v3247 = vpop.f32.mrb[0].mxu0
  %v3248 = vadd.f32 %v3175, %v3247
  %v3249 = vpop.f32.mrb[0].mxu0
  %v3250 = vadd.f32 %v3177, %v3249
  %3251 = vmatprep.mubr.bf16.mxu0 %v2538
  %3252 = vmatmul.mubr.bf16.gmra.mrb[0].mxu0 %v2537
  %v3253 = vpop.f32.mrb[0].mxu0
  %v3254 = vadd.f32 %v3181, %v3253
  %v3255 = vpop.f32.mrb[0].mxu0
  %v3256 = vadd.f32 %v3183, %v3255
  %v3257 = vpop.f32.mrb[0].mxu0
  %v3258 = vadd.f32 %v3185, %v3257
  %v3259 = vpop.f32.mrb[0].mxu0
  %v3260 = vadd.f32 %v3187, %v3259
  %3261 = vdwg.mxu0
  %v3262 = vpack.c.bf16 %v2308, %v2305
  %v3263 = vpack.c.bf16 %v2316, %v2313
  %v3264 = vpack.c.bf16 %v2324, %v2321
  %v3265 = vpack.c.bf16 %v2332, %v2329
  %v3266 = vpack.c.bf16 %v3228, %v3224
  %v3267 = vpack.c.bf16 %v3238, %v3234
  %v3268 = vpack.c.bf16 %v3248, %v3244
  %v3269 = vpack.c.bf16 %v3258, %v3254
  %v3270 = vpack.c.bf16 %v3230, %v3226
  %v3271 = vpack.c.bf16 %v3240, %v3236
  %v3272 = vpack.c.bf16 %v3250, %v3246
  %v3273 = vpack.c.bf16 %v3260, %v3256
  %vm3274 = vcmask 523264
  %v3276 = vsel %vm3274, %v3262, 0
  %v3279 = vsel %vm3274, %v3263, 0
  %v3282 = vsel %vm3274, %v3264, 0
  %v3285 = vsel %vm3274, %v3265, 0
  %v3288 = vsel %vm3274, %v3266, 0
  %v3291 = vsel %vm3274, %v3267, 0
  %v3294 = vsel %vm3274, %v3268, 0
  %v3297 = vsel %vm3274, %v3269, 0
  %3299 = vmatprep.subr.bf16.mxu0 0
  %3300 = vmatpush1.bf16.xpose.msra.mxu0 %v3288
  %3301 = vmatprep.subr.bf16.mxu0 0
  %3302 = vmatpush1.bf16.xpose.msra.mxu0 %v3291
  %3303 = vmatprep.subr.bf16.mxu0 0
  %3304 = vmatpush1.bf16.xpose.msra.mxu0 %v3294
  %3305 = vmatprep.subr.bf16.mxu0 0
  %3306 = vmatpush1.bf16.xpose.msra.mxu0 %v3297
  %3307 = vmatprep.subr.bf16.mxu0 0
  %3308 = vmatpush1.bf16.xpose.msra.mxu0 0
  %3309 = vmatprep.subr.bf16.mxu0 0
  %3310 = vmatpush1.bf16.xpose.msra.mxu0 0
  %3311 = vmatprep.subr.bf16.mxu0 0
  %3312 = vmatpush1.bf16.xpose.msra.mxu0 0
  %3313 = vmatprep.subr.bf16.mxu0 0
  %3314 = vmatpush1.bf16.xpose.msra.mxu0 0
  %3315 = vmatprep.subr.bf16.mxu0 0
  %3316 = vmatpush1.bf16.xpose.msra.mxu0 0
  %3317 = vmatprep.subr.bf16.mxu0 0
  %3318 = vmatpush1.bf16.xpose.msra.mxu0 0
  %3319 = vmatprep.subr.bf16.mxu0 0
  %3320 = vmatpush1.bf16.xpose.msra.mxu0 0
  %3321 = vmatprep.subr.bf16.mxu0 0
  %3322 = vmatpush1.bf16.xpose.msra.mxu0 0
  %3323 = vmatprep.subr.bf16.mxu0 0
  %3324 = vmatpush1.bf16.xpose.msra.mxu0 0
  %3325 = vmatprep.subr.bf16.mxu0 0
  %3326 = vmatpush1.bf16.xpose.msra.mxu0 0
  %3327 = vmatprep.subr.bf16.mxu0 0
  %3328 = vmatpush1.bf16.xpose.msra.mxu0 0
  %3329 = vmatprep.subr.bf16.mxu0 0
  %3330 = vmatpush1.bf16.xpose.msra.mxu0 0
  %3331 = vmatprep.mubr.bf16.mxu0 0
  %3332 = vmatmul.mubr.bf16.gmra.mrb[0].mxu0 %v3276
  %v3333 = vpop.f32.mrb[0].mxu0
  %v3334 = vadd.f32 0.0, %v3333
  %v3335 = vpop.f32.mrb[0].mxu0
  %v3336 = vpop.f32.mrb[0].mxu0
  %v3337 = vadd.f32 0.0, %v3336
  %v3338 = vpop.f32.mrb[0].mxu0
  %3339 = vmatprep.mubr.bf16.mxu0 0
  %3340 = vmatmul.mubr.bf16.gmra.mrb[0].mxu0 %v3279
  %v3341 = vpop.f32.mrb[0].mxu0
  %v3342 = vadd.f32 0.0, %v3341
  %v3343 = vpop.f32.mrb[0].mxu0
  %v3344 = vpop.f32.mrb[0].mxu0
  %v3345 = vadd.f32 0.0, %v3344
  %v3346 = vpop.f32.mrb[0].mxu0
  %3347 = vmatprep.mubr.bf16.mxu0 0
  %3348 = vmatmul.mubr.bf16.gmra.mrb[0].mxu0 %v3282
  %v3349 = vpop.f32.mrb[0].mxu0
  %v3350 = vadd.f32 0.0, %v3349
  %v3351 = vpop.f32.mrb[0].mxu0
  %v3352 = vpop.f32.mrb[0].mxu0
  %v3353 = vadd.f32 0.0, %v3352
  %v3354 = vpop.f32.mrb[0].mxu0
  %3355 = vmatprep.mubr.bf16.mxu0 0
  %3356 = vmatmul.mubr.bf16.gmra.mrb[0].mxu0 %v3285
  %v3357 = vpop.f32.mrb[0].mxu0
  %v3358 = vadd.f32 0.0, %v3357
  %v3359 = vpop.f32.mrb[0].mxu0
  %v3360 = vpop.f32.mrb[0].mxu0
  %v3361 = vadd.f32 0.0, %v3360
  %v3362 = vpop.f32.mrb[0].mxu0
  %3363 = vdwg.mxu0
  %v3364 = vsel %vm1482, 1, 0
  %v3365 = vlaneseq
  %v3366 = vshrl.u32 %v3365, 7
  %v3367 = vsub.s32 0, %v3366
  %v3368 = vrot.slane %v3364, %v3367
  %vm3369 = vcmp.eq.s32.totalorder %v3368, 1
  %v3370 = vsel %vm3369, 1e-09, %v3334
  %v3371 = vsel %vm3369, 1e-09, %v3337
  %v3372 = vsel %vm3369, 1e-09, %v3342
  %v3373 = vsel %vm3369, 1e-09, %v3345
  %v3374 = vsel %vm3369, 1e-09, %v3350
  %v3375 = vsel %vm3369, 1e-09, %v3353
  %v3376 = vsel %vm3369, 1e-09, %v3358
  %v3377 = vsel %vm3369, 1e-09, %v3361
  %v3378 = vadd.f32 %v3370, %v1473
  %v3379 = vadd.f32 %v3371, %v1474
  %v3380 = vadd.f32 %v3372, %v1475
  %v3381 = vadd.f32 %v3373, %v1476
  %v3382 = vadd.f32 %v3374, %v1477
  %v3383 = vadd.f32 %v3375, %v1478
  %v3384 = vadd.f32 %v3376, %v1479
  %v3385 = vadd.f32 %v3377, %v1480
  %v3386 = vsel %vm3274, %v3378, -inf
  %3387 = vmax.xlane.f32.xlu0 %v3386
  %v3388 = vpop.xlane.xlu0 %3387
  %v3389 = vsel %vm3274, %v3379, -inf
  %3390 = vmax.xlane.f32.xlu0 %v3389
  %v3391 = vpop.xlane.xlu0 %3390
  %v3392 = vsel %vm3274, %v3380, -inf
  %3393 = vmax.xlane.f32.xlu0 %v3392
  %v3394 = vpop.xlane.xlu0 %3393
  %v3395 = vsel %vm3274, %v3381, -inf
  %3396 = vmax.xlane.f32.xlu0 %v3395
  %v3397 = vpop.xlane.xlu0 %3396
  %v3398 = vsel %vm3274, %v3382, -inf
  %3399 = vmax.xlane.f32.xlu0 %v3398
  %v3400 = vpop.xlane.xlu0 %3399
  %v3401 = vsel %vm3274, %v3383, -inf
  %3402 = vmax.xlane.f32.xlu0 %v3401
  %v3403 = vpop.xlane.xlu0 %3402
  %v3404 = vsel %vm3274, %v3384, -inf
  %3405 = vmax.xlane.f32.xlu0 %v3404
  %v3406 = vpop.xlane.xlu0 %3405
  %v3407 = vsel %vm3274, %v3385, -inf
  %3408 = vmax.xlane.f32.xlu0 %v3407
  %v3409 = vpop.xlane.xlu0 %3408
  %v3410 = vsub.f32 %v3378, %v3388
  %v3411 = vsub.f32 %v3379, %v3391
  %v3412 = vsub.f32 %v3380, %v3394
  %v3413 = vsub.f32 %v3381, %v3397
  %v3414 = vsub.f32 %v3382, %v3400
  %v3415 = vsub.f32 %v3383, %v3403
  %v3416 = vsub.f32 %v3384, %v3406
  %v3417 = vsub.f32 %v3385, %v3409
  %v3418 = vmul.f32 %v3410, 1.442695
  %v3419 = vpow.pop %v3418
  %v3420 = vmul.f32 %v3411, 1.442695
  %v3421 = vpow.pop %v3420
  %v3422 = vmul.f32 %v3412, 1.442695
  %v3423 = vpow.pop %v3422
  %v3424 = vmul.f32 %v3413, 1.442695
  %v3425 = vpow.pop %v3424
  %v3426 = vmul.f32 %v3414, 1.442695
  %v3427 = vpow.pop %v3426
  %v3428 = vmul.f32 %v3415, 1.442695
  %v3429 = vpow.pop %v3428
  %v3430 = vmul.f32 %v3416, 1.442695
  %v3431 = vpow.pop %v3430
  %v3432 = vmul.f32 %v3417, 1.442695
  %v3433 = vpow.pop %v3432
  %v3434 = vsel %vm3274, %v3419, 0.0
  %3435 = vadd.xlane.f32.xlu0 %v3434
  %v3436 = vpop.xlane.xlu0 %3435
  %v3437 = vsel %vm3274, %v3421, 0.0
  %3438 = vadd.xlane.f32.xlu0 %v3437
  %v3439 = vpop.xlane.xlu0 %3438
  %v3440 = vsel %vm3274, %v3423, 0.0
  %3441 = vadd.xlane.f32.xlu0 %v3440
  %v3442 = vpop.xlane.xlu0 %3441
  %v3443 = vsel %vm3274, %v3425, 0.0
  %3444 = vadd.xlane.f32.xlu0 %v3443
  %v3445 = vpop.xlane.xlu0 %3444
  %v3446 = vsel %vm3274, %v3427, 0.0
  %3447 = vadd.xlane.f32.xlu0 %v3446
  %v3448 = vpop.xlane.xlu0 %3447
  %v3449 = vsel %vm3274, %v3429, 0.0
  %3450 = vadd.xlane.f32.xlu0 %v3449
  %v3451 = vpop.xlane.xlu0 %3450
  %v3452 = vsel %vm3274, %v3431, 0.0
  %3453 = vadd.xlane.f32.xlu0 %v3452
  %v3454 = vpop.xlane.xlu0 %3453
  %v3455 = vsel %vm3274, %v3433, 0.0
  %3456 = vadd.xlane.f32.xlu0 %v3455
  %v3457 = vpop.xlane.xlu0 %3456
  %v3458 = vrcp.pop %v3436
  %v3459 = vrcp.pop %v3439
  %v3460 = vrcp.pop %v3442
  %v3461 = vrcp.pop %v3445
  %v3462 = vrcp.pop %v3448
  %v3463 = vrcp.pop %v3451
  %v3464 = vrcp.pop %v3454
  %v3465 = vrcp.pop %v3457
  %v3466 = vmul.f32 %v3419, %v3458
  %v3467 = vmul.f32 %v3421, %v3459
  %v3468 = vmul.f32 %v3423, %v3460
  %v3469 = vmul.f32 %v3425, %v3461
  %v3470 = vmul.f32 %v3427, %v3462
  %v3471 = vmul.f32 %v3429, %v3463
  %v3472 = vmul.f32 %v3431, %v3464
  %v3473 = vmul.f32 %v3433, %v3465
  %v3474 = vpack.c.bf16 %v3467, %v3466
  %v3475 = vpack.c.bf16 %v3469, %v3468
  %v3476 = vpack.c.bf16 %v3471, %v3470
  %v3477 = vpack.c.bf16 %v3473, %v3472
  %v3479 = vsel %vm3274, %v3474, 0
  %v3482 = vsel %vm3274, %v3475, 0
  %v3485 = vsel %vm3274, %v3476, 0
  %v3488 = vsel %vm3274, %v3477, 0
  %3490 = vmatprep.subr.bf16.mxu0 0
  %3491 = vmatpush1.bf16.msra.mxu0 %v3270
  %3492 = vmatprep.subr.bf16.mxu0 0
  %3493 = vmatpush1.bf16.msra.mxu0 %v3271
  %3494 = vmatprep.subr.bf16.mxu0 0
  %3495 = vmatpush1.bf16.msra.mxu0 %v3272
  %3496 = vmatprep.subr.bf16.mxu0 0
  %3497 = vmatpush1.bf16.msra.mxu0 %v3273
  %3498 = vmatprep.subr.bf16.mxu0 0
  %3499 = vmatpush1.bf16.msra.mxu0 0
  %3500 = vmatprep.subr.bf16.mxu0 0
  %3501 = vmatpush1.bf16.msra.mxu0 0
  %3502 = vmatprep.subr.bf16.mxu0 0
  %3503 = vmatpush1.bf16.msra.mxu0 0
  %3504 = vmatprep.subr.bf16.mxu0 0
  %3505 = vmatpush1.bf16.msra.mxu0 0
  %3506 = vmatprep.subr.bf16.mxu0 0
  %3507 = vmatpush1.bf16.msra.mxu0 0
  %3508 = vmatprep.subr.bf16.mxu0 0
  %3509 = vmatpush1.bf16.msra.mxu0 0
  %3510 = vmatprep.subr.bf16.mxu0 0
  %3511 = vmatpush1.bf16.msra.mxu0 0
  %3512 = vmatprep.subr.bf16.mxu0 0
  %3513 = vmatpush1.bf16.msra.mxu0 0
  %3514 = vmatprep.subr.bf16.mxu0 0
  %3515 = vmatpush1.bf16.msra.mxu0 0
  %3516 = vmatprep.subr.bf16.mxu0 0
  %3517 = vmatpush1.bf16.msra.mxu0 0
  %3518 = vmatprep.subr.bf16.mxu0 0
  %3519 = vmatpush1.bf16.msra.mxu0 0
  %3520 = vmatprep.subr.bf16.mxu0 0
  %3521 = vmatpush1.bf16.msra.mxu0 0
  %3522 = vmatprep.mubr.bf16.mxu0 0
  %3523 = vmatmul.mubr.bf16.gmra.mrb[0].mxu0 %v3479
  %v3524 = vpop.f32.mrb[0].mxu0
  %v3525 = vadd.f32 0.0, %v3524
  %v3526 = vpop.f32.mrb[0].mxu0
  %v3527 = vpop.f32.mrb[0].mxu0
  %v3528 = vadd.f32 0.0, %v3527
  %v3529 = vpop.f32.mrb[0].mxu0
  %3530 = vmatprep.mubr.bf16.mxu0 0
  %3531 = vmatmul.mubr.bf16.gmra.mrb[0].mxu0 %v3482
  %v3532 = vpop.f32.mrb[0].mxu0
  %v3533 = vadd.f32 0.0, %v3532
  %v3534 = vpop.f32.mrb[0].mxu0
  %v3535 = vpop.f32.mrb[0].mxu0
  %v3536 = vadd.f32 0.0, %v3535
  %v3537 = vpop.f32.mrb[0].mxu0
  %3538 = vmatprep.mubr.bf16.mxu0 0
  %3539 = vmatmul.mubr.bf16.gmra.mrb[0].mxu0 %v3485
  %v3540 = vpop.f32.mrb[0].mxu0
  %v3541 = vadd.f32 0.0, %v3540
  %v3542 = vpop.f32.mrb[0].mxu0
  %v3543 = vpop.f32.mrb[0].mxu0
  %v3544 = vadd.f32 0.0, %v3543
  %v3545 = vpop.f32.mrb[0].mxu0
  %3546 = vmatprep.mubr.bf16.mxu0 0
  %3547 = vmatmul.mubr.bf16.gmra.mrb[0].mxu0 %v3488
  %v3548 = vpop.f32.mrb[0].mxu0
  %v3549 = vadd.f32 0.0, %v3548
  %v3550 = vpop.f32.mrb[0].mxu0
  %v3551 = vpop.f32.mrb[0].mxu0
  %v3552 = vadd.f32 0.0, %v3551
  %v3553 = vpop.f32.mrb[0].mxu0
  %3554 = vdwg.mxu0
  %3559 = vrot.lane.b32.xlu0 %v3262, 64
  %v3560 = vpop.permute.xlu0 %3559
  %3561 = vrot.lane.b32.xlu0 %v3263, 64
  %v3562 = vpop.permute.xlu0 %3561
  %3563 = vrot.lane.b32.xlu0 %v3264, 64
  %v3564 = vpop.permute.xlu0 %3563
  %3565 = vrot.lane.b32.xlu0 %v3265, 64
  %v3566 = vpop.permute.xlu0 %3565
  %3571 = vrot.lane.b32.xlu0 %v3266, 64
  %v3572 = vpop.permute.xlu0 %3571
  %3573 = vrot.lane.b32.xlu0 %v3267, 64
  %v3574 = vpop.permute.xlu0 %3573
  %3575 = vrot.lane.b32.xlu0 %v3268, 64
  %v3576 = vpop.permute.xlu0 %3575
  %3577 = vrot.lane.b32.xlu0 %v3269, 64
  %v3578 = vpop.permute.xlu0 %3577
  %v3580 = vsel %vm3274, %v3560, 0
  %v3583 = vsel %vm3274, %v3562, 0
  %v3586 = vsel %vm3274, %v3564, 0
  %v3589 = vsel %vm3274, %v3566, 0
  %v3592 = vsel %vm3274, %v3572, 0
  %v3595 = vsel %vm3274, %v3574, 0
  %v3598 = vsel %vm3274, %v3576, 0
  %v3601 = vsel %vm3274, %v3578, 0
  %3603 = vmatprep.subr.bf16.mxu0 0
  %3604 = vmatpush1.bf16.xpose.msra.mxu0 %v3592
  %3605 = vmatprep.subr.bf16.mxu0 0
  %3606 = vmatpush1.bf16.xpose.msra.mxu0 %v3595
  %3607 = vmatprep.subr.bf16.mxu0 0
  %3608 = vmatpush1.bf16.xpose.msra.mxu0 %v3598
  %3609 = vmatprep.subr.bf16.mxu0 0
  %3610 = vmatpush1.bf16.xpose.msra.mxu0 %v3601
  %3611 = vmatprep.subr.bf16.mxu0 0
  %3612 = vmatpush1.bf16.xpose.msra.mxu0 0
  %3613 = vmatprep.subr.bf16.mxu0 0
  %3614 = vmatpush1.bf16.xpose.msra.mxu0 0
  %3615 = vmatprep.subr.bf16.mxu0 0
  %3616 = vmatpush1.bf16.xpose.msra.mxu0 0
  %3617 = vmatprep.subr.bf16.mxu0 0
  %3618 = vmatpush1.bf16.xpose.msra.mxu0 0
  %3619 = vmatprep.subr.bf16.mxu0 0
  %3620 = vmatpush1.bf16.xpose.msra.mxu0 0
  %3621 = vmatprep.subr.bf16.mxu0 0
  %3622 = vmatpush1.bf16.xpose.msra.mxu0 0
  %3623 = vmatprep.subr.bf16.mxu0 0
  %3624 = vmatpush1.bf16.xpose.msra.mxu0 0
  %3625 = vmatprep.subr.bf16.mxu0 0
  %3626 = vmatpush1.bf16.xpose.msra.mxu0 0
  %3627 = vmatprep.subr.bf16.mxu0 0
  %3628 = vmatpush1.bf16.xpose.msra.mxu0 0
  %3629 = vmatprep.subr.bf16.mxu0 0
  %3630 = vmatpush1.bf16.xpose.msra.mxu0 0
  %3631 = vmatprep.subr.bf16.mxu0 0
  %3632 = vmatpush1.bf16.xpose.msra.mxu0 0
  %3633 = vmatprep.subr.bf16.mxu0 0
  %3634 = vmatpush1.bf16.xpose.msra.mxu0 0
  %3635 = vmatprep.mubr.bf16.mxu0 0
  %3636 = vmatmul.mubr.bf16.gmra.mrb[0].mxu0 %v3580
  %v3637 = vpop.f32.mrb[0].mxu0
  %v3638 = vadd.f32 0.0, %v3637
  %v3639 = vpop.f32.mrb[0].mxu0
  %v3640 = vpop.f32.mrb[0].mxu0
  %v3641 = vadd.f32 0.0, %v3640
  %v3642 = vpop.f32.mrb[0].mxu0
  %3643 = vmatprep.mubr.bf16.mxu0 0
  %3644 = vmatmul.mubr.bf16.gmra.mrb[0].mxu0 %v3583
  %v3645 = vpop.f32.mrb[0].mxu0
  %v3646 = vadd.f32 0.0, %v3645
  %v3647 = vpop.f32.mrb[0].mxu0
  %v3648 = vpop.f32.mrb[0].mxu0
  %v3649 = vadd.f32 0.0, %v3648
  %v3650 = vpop.f32.mrb[0].mxu0
  %3651 = vmatprep.mubr.bf16.mxu0 0
  %3652 = vmatmul.mubr.bf16.gmra.mrb[0].mxu0 %v3586
  %v3653 = vpop.f32.mrb[0].mxu0
  %v3654 = vadd.f32 0.0, %v3653
  %v3655 = vpop.f32.mrb[0].mxu0
  %v3656 = vpop.f32.mrb[0].mxu0
  %v3657 = vadd.f32 0.0, %v3656
  %v3658 = vpop.f32.mrb[0].mxu0
  %3659 = vmatprep.mubr.bf16.mxu0 0
  %3660 = vmatmul.mubr.bf16.gmra.mrb[0].mxu0 %v3589
  %v3661 = vpop.f32.mrb[0].mxu0
  %v3662 = vadd.f32 0.0, %v3661
  %v3663 = vpop.f32.mrb[0].mxu0
  %v3664 = vpop.f32.mrb[0].mxu0
  %v3665 = vadd.f32 0.0, %v3664
  %v3666 = vpop.f32.mrb[0].mxu0
  %3667 = vdwg.mxu0
  %v3668 = vsel %vm3369, 1e-09, %v3638
  %v3669 = vsel %vm3369, 1e-09, %v3641
  %v3670 = vsel %vm3369, 1e-09, %v3646
  %v3671 = vsel %vm3369, 1e-09, %v3649
  %v3672 = vsel %vm3369, 1e-09, %v3654
  %v3673 = vsel %vm3369, 1e-09, %v3657
  %v3674 = vsel %vm3369, 1e-09, %v3662
  %v3675 = vsel %vm3369, 1e-09, %v3665
  %v3676 = vadd.f32 %v3668, %v1473
  %v3677 = vadd.f32 %v3669, %v1474
  %v3678 = vadd.f32 %v3670, %v1475
  %v3679 = vadd.f32 %v3671, %v1476
  %v3680 = vadd.f32 %v3672, %v1477
  %v3681 = vadd.f32 %v3673, %v1478
  %v3682 = vadd.f32 %v3674, %v1479
  %v3683 = vadd.f32 %v3675, %v1480
  %v3684 = vsel %vm3274, %v3676, -inf
  %3685 = vmax.xlane.f32.xlu0 %v3684
  %v3686 = vpop.xlane.xlu0 %3685
  %v3687 = vsel %vm3274, %v3677, -inf
  %3688 = vmax.xlane.f32.xlu0 %v3687
  %v3689 = vpop.xlane.xlu0 %3688
  %v3690 = vsel %vm3274, %v3678, -inf
  %3691 = vmax.xlane.f32.xlu0 %v3690
  %v3692 = vpop.xlane.xlu0 %3691
  %v3693 = vsel %vm3274, %v3679, -inf
  %3694 = vmax.xlane.f32.xlu0 %v3693
  %v3695 = vpop.xlane.xlu0 %3694
  %v3696 = vsel %vm3274, %v3680, -inf
  %3697 = vmax.xlane.f32.xlu0 %v3696
  %v3698 = vpop.xlane.xlu0 %3697
  %v3699 = vsel %vm3274, %v3681, -inf
  %3700 = vmax.xlane.f32.xlu0 %v3699
  %v3701 = vpop.xlane.xlu0 %3700
  %v3702 = vsel %vm3274, %v3682, -inf
  %3703 = vmax.xlane.f32.xlu0 %v3702
  %v3704 = vpop.xlane.xlu0 %3703
  %v3705 = vsel %vm3274, %v3683, -inf
  %3706 = vmax.xlane.f32.xlu0 %v3705
  %v3707 = vpop.xlane.xlu0 %3706
  %v3708 = vsub.f32 %v3676, %v3686
  %v3709 = vsub.f32 %v3677, %v3689
  %v3710 = vsub.f32 %v3678, %v3692
  %v3711 = vsub.f32 %v3679, %v3695
  %v3712 = vsub.f32 %v3680, %v3698
  %v3713 = vsub.f32 %v3681, %v3701
  %v3714 = vsub.f32 %v3682, %v3704
  %v3715 = vsub.f32 %v3683, %v3707
  %v3716 = vmul.f32 %v3708, 1.442695
  %v3717 = vpow.pop %v3716
  %v3718 = vmul.f32 %v3709, 1.442695
  %v3719 = vpow.pop %v3718
  %v3720 = vmul.f32 %v3710, 1.442695
  %v3721 = vpow.pop %v3720
  %v3722 = vmul.f32 %v3711, 1.442695
  %v3723 = vpow.pop %v3722
  %v3724 = vmul.f32 %v3712, 1.442695
  %v3725 = vpow.pop %v3724
  %v3726 = vmul.f32 %v3713, 1.442695
  %v3727 = vpow.pop %v3726
  %v3728 = vmul.f32 %v3714, 1.442695
  %v3729 = vpow.pop %v3728
  %v3730 = vmul.f32 %v3715, 1.442695
  %v3731 = vpow.pop %v3730
  %v3732 = vsel %vm3274, %v3717, 0.0
  %3733 = vadd.xlane.f32.xlu0 %v3732
  %v3734 = vpop.xlane.xlu0 %3733
  %v3735 = vsel %vm3274, %v3719, 0.0
  %3736 = vadd.xlane.f32.xlu0 %v3735
  %v3737 = vpop.xlane.xlu0 %3736
  %v3738 = vsel %vm3274, %v3721, 0.0
  %3739 = vadd.xlane.f32.xlu0 %v3738
  %v3740 = vpop.xlane.xlu0 %3739
  %v3741 = vsel %vm3274, %v3723, 0.0
  %3742 = vadd.xlane.f32.xlu0 %v3741
  %v3743 = vpop.xlane.xlu0 %3742
  %v3744 = vsel %vm3274, %v3725, 0.0
  %3745 = vadd.xlane.f32.xlu0 %v3744
  %v3746 = vpop.xlane.xlu0 %3745
  %v3747 = vsel %vm3274, %v3727, 0.0
  %3748 = vadd.xlane.f32.xlu0 %v3747
  %v3749 = vpop.xlane.xlu0 %3748
  %v3750 = vsel %vm3274, %v3729, 0.0
  %3751 = vadd.xlane.f32.xlu0 %v3750
  %v3752 = vpop.xlane.xlu0 %3751
  %v3753 = vsel %vm3274, %v3731, 0.0
  %3754 = vadd.xlane.f32.xlu0 %v3753
  %v3755 = vpop.xlane.xlu0 %3754
  %v3756 = vrcp.pop %v3734
  %v3757 = vrcp.pop %v3737
  %v3758 = vrcp.pop %v3740
  %v3759 = vrcp.pop %v3743
  %v3760 = vrcp.pop %v3746
  %v3761 = vrcp.pop %v3749
  %v3762 = vrcp.pop %v3752
  %v3763 = vrcp.pop %v3755
  %v3764 = vmul.f32 %v3717, %v3756
  %v3765 = vmul.f32 %v3719, %v3757
  %v3766 = vmul.f32 %v3721, %v3758
  %v3767 = vmul.f32 %v3723, %v3759
  %v3768 = vmul.f32 %v3725, %v3760
  %v3769 = vmul.f32 %v3727, %v3761
  %v3770 = vmul.f32 %v3729, %v3762
  %v3771 = vmul.f32 %v3731, %v3763
  %v3772 = vpack.c.bf16 %v3765, %v3764
  %v3773 = vpack.c.bf16 %v3767, %v3766
  %v3774 = vpack.c.bf16 %v3769, %v3768
  %v3775 = vpack.c.bf16 %v3771, %v3770
  %3780 = vrot.lane.b32.xlu0 %v3270, 64
  %v3781 = vpop.permute.xlu0 %3780
  %3782 = vrot.lane.b32.xlu0 %v3271, 64
  %v3783 = vpop.permute.xlu0 %3782
  %3784 = vrot.lane.b32.xlu0 %v3272, 64
  %v3785 = vpop.permute.xlu0 %3784
  %3786 = vrot.lane.b32.xlu0 %v3273, 64
  %v3787 = vpop.permute.xlu0 %3786
  %v3793 = vsel %vm3274, %v3772, 0
  %v3796 = vsel %vm3274, %v3773, 0
  %v3799 = vsel %vm3274, %v3774, 0
  %v3802 = vsel %vm3274, %v3775, 0
  %3804 = vmatprep.subr.bf16.mxu0 0
  %3805 = vmatpush1.bf16.msra.mxu0 %v3781
  %3806 = vmatprep.subr.bf16.mxu0 0
  %3807 = vmatpush1.bf16.msra.mxu0 %v3783
  %3808 = vmatprep.subr.bf16.mxu0 0
  %3809 = vmatpush1.bf16.msra.mxu0 %v3785
  %3810 = vmatprep.subr.bf16.mxu0 0
  %3811 = vmatpush1.bf16.msra.mxu0 %v3787
  %3812 = vmatprep.subr.bf16.mxu0 0
  %3813 = vmatpush1.bf16.msra.mxu0 0
  %3814 = vmatprep.subr.bf16.mxu0 0
  %3815 = vmatpush1.bf16.msra.mxu0 0
  %3816 = vmatprep.subr.bf16.mxu0 0
  %3817 = vmatpush1.bf16.msra.mxu0 0
  %3818 = vmatprep.subr.bf16.mxu0 0
  %3819 = vmatpush1.bf16.msra.mxu0 0
  %3820 = vmatprep.subr.bf16.mxu0 0
  %3821 = vmatpush1.bf16.msra.mxu0 0
  %3822 = vmatprep.subr.bf16.mxu0 0
  %3823 = vmatpush1.bf16.msra.mxu0 0
  %3824 = vmatprep.subr.bf16.mxu0 0
  %3825 = vmatpush1.bf16.msra.mxu0 0
  %3826 = vmatprep.subr.bf16.mxu0 0
  %3827 = vmatpush1.bf16.msra.mxu0 0
  %3828 = vmatprep.subr.bf16.mxu0 0
  %3829 = vmatpush1.bf16.msra.mxu0 0
  %3830 = vmatprep.subr.bf16.mxu0 0
  %3831 = vmatpush1.bf16.msra.mxu0 0
  %3832 = vmatprep.subr.bf16.mxu0 0
  %3833 = vmatpush1.bf16.msra.mxu0 0
  %3834 = vmatprep.subr.bf16.mxu0 0
  %3835 = vmatpush1.bf16.msra.mxu0 0
  %3836 = vmatprep.mubr.bf16.mxu0 0
  %3837 = vmatmul.mubr.bf16.gmra.mrb[0].mxu0 %v3793
  %v3838 = vpop.f32.mrb[0].mxu0
  %v3839 = vadd.f32 0.0, %v3838
  %v3840 = vpop.f32.mrb[0].mxu0
  %v3841 = vpop.f32.mrb[0].mxu0
  %v3842 = vadd.f32 0.0, %v3841
  %v3843 = vpop.f32.mrb[0].mxu0
  %3844 = vmatprep.mubr.bf16.mxu0 0
  %3845 = vmatmul.mubr.bf16.gmra.mrb[0].mxu0 %v3796
  %v3846 = vpop.f32.mrb[0].mxu0
  %v3847 = vadd.f32 0.0, %v3846
  %v3848 = vpop.f32.mrb[0].mxu0
  %v3849 = vpop.f32.mrb[0].mxu0
  %v3850 = vadd.f32 0.0, %v3849
  %v3851 = vpop.f32.mrb[0].mxu0
  %3852 = vmatprep.mubr.bf16.mxu0 0
  %3853 = vmatmul.mubr.bf16.gmra.mrb[0].mxu0 %v3799
  %v3854 = vpop.f32.mrb[0].mxu0
  %v3855 = vadd.f32 0.0, %v3854
  %v3856 = vpop.f32.mrb[0].mxu0
  %v3857 = vpop.f32.mrb[0].mxu0
  %v3858 = vadd.f32 0.0, %v3857
  %v3859 = vpop.f32.mrb[0].mxu0
  %3860 = vmatprep.mubr.bf16.mxu0 0
  %3861 = vmatmul.mubr.bf16.gmra.mrb[0].mxu0 %v3802
  %v3862 = vpop.f32.mrb[0].mxu0
  %v3863 = vadd.f32 0.0, %v3862
  %v3864 = vpop.f32.mrb[0].mxu0
  %v3865 = vpop.f32.mrb[0].mxu0
  %v3866 = vadd.f32 0.0, %v3865
  %v3867 = vpop.f32.mrb[0].mxu0
  %3868 = vdwg.mxu0
  %3877 = vrot.lane.b32.xlu0 %v3839, 64
  %v3878 = vpop.permute.xlu0 %3877
  %3879 = vrot.lane.b32.xlu0 %v3842, 64
  %v3880 = vpop.permute.xlu0 %3879
  %3881 = vrot.lane.b32.xlu0 %v3847, 64
  %v3882 = vpop.permute.xlu0 %3881
  %3883 = vrot.lane.b32.xlu0 %v3850, 64
  %v3884 = vpop.permute.xlu0 %3883
  %3885 = vrot.lane.b32.xlu0 %v3855, 64
  %v3886 = vpop.permute.xlu0 %3885
  %3887 = vrot.lane.b32.xlu0 %v3858, 64
  %v3888 = vpop.permute.xlu0 %3887
  %3889 = vrot.lane.b32.xlu0 %v3863, 64
  %v3890 = vpop.permute.xlu0 %3889
  %3891 = vrot.lane.b32.xlu0 %v3866, 64
  %v3892 = vpop.permute.xlu0 %3891
  %v3901 = vsel %vm3274, %v3525, %v3878
  %v3902 = vsel %vm3274, %v3528, %v3880
  %v3903 = vsel %vm3274, %v3533, %v3882
  %v3904 = vsel %vm3274, %v3536, %v3884
  %v3905 = vsel %vm3274, %v3541, %v3886
  %v3906 = vsel %vm3274, %v3544, %v3888
  %v3907 = vsel %vm3274, %v3549, %v3890
  %v3908 = vsel %vm3274, %v3552, %v3892
  %v3909 = vpack.c.bf16 %v3902, %v3901
  %v3910 = vpack.c.bf16 %v3904, %v3903
  %v3911 = vpack.c.bf16 %v3906, %v3905
  %v3912 = vpack.c.bf16 %v3908, %v3907
  %v3913 = vld [vmem:[%s8] sm:$0xff]
  %v3914 = vld [vmem:[%s8 + $0x8] sm:$0xff]
  %v3915 = vld [vmem:[%s8 + $0x10] sm:$0xff]
  %v3916 = vld [vmem:[%s8 + $0x18] sm:$0xff]
  %v3917 = vld [vmem:[%s8 + $0x20] sm:$0xff]
  %v3918 = vld [vmem:[%s8 + $0x28] sm:$0xff]
  %v3919 = vld [vmem:[%s8 + $0x30] sm:$0xff]
  %v3920 = vld [vmem:[%s8 + $0x38] sm:$0xff]
  %v3921 = vld [vmem:[%s8 + $0x40] sm:$0xff]
  %v3922 = vld [vmem:[%s8 + $0x48] sm:$0xff]
  %v3923 = vld [vmem:[%s8 + $0x50] sm:$0xff]
  %v3924 = vld [vmem:[%s8 + $0x58] sm:$0xff]
  %v3925 = vld [vmem:[%s8 + $0x60] sm:$0xff]
  %v3926 = vld [vmem:[%s8 + $0x68] sm:$0xff]
  %v3927 = vld [vmem:[%s8 + $0x70] sm:$0xff]
  %v3928 = vld [vmem:[%s8 + $0x78] sm:$0xff]
  %v3929 = vld [vmem:[%s8 + $0x80] sm:$0xff]
  %v3930 = vld [vmem:[%s8 + $0x88] sm:$0xff]
  %v3931 = vld [vmem:[%s8 + $0x90] sm:$0xff]
  %v3932 = vld [vmem:[%s8 + $0x98] sm:$0xff]
  %v3933 = vld [vmem:[%s8 + $0xa0] sm:$0xff]
  %v3934 = vld [vmem:[%s8 + $0xa8] sm:$0xff]
  %v3935 = vld [vmem:[%s8 + $0xb0] sm:$0xff]
  %v3936 = vld [vmem:[%s8 + $0xb8] sm:$0xff]
  %v3937 = vld [vmem:[%s8 + $0xc0] sm:$0xff]
  %v3938 = vld [vmem:[%s8 + $0xc8] sm:$0xff]
  %v3939 = vld [vmem:[%s8 + $0xd0] sm:$0xff]
  %v3940 = vld [vmem:[%s8 + $0xd8] sm:$0xff]
  %v3941 = vld [vmem:[%s8 + $0xe0] sm:$0xff]
  %v3942 = vld [vmem:[%s8 + $0xe8] sm:$0xff]
  %v3943 = vld [vmem:[%s8 + $0xf0] sm:$0xff]
  %v3944 = vld [vmem:[%s8 + $0xf8] sm:$0xff]
  %v3945 = vld [vmem:[%s8 + $0x100] sm:$0xff]
  %v3946 = vld [vmem:[%s8 + $0x108] sm:$0xff]
  %v3947 = vld [vmem:[%s8 + $0x110] sm:$0xff]
  %v3948 = vld [vmem:[%s8 + $0x118] sm:$0xff]
  %v3949 = vld [vmem:[%s8 + $0x120] sm:$0xff]
  %v3950 = vld [vmem:[%s8 + $0x128] sm:$0xff]
  %v3951 = vld [vmem:[%s8 + $0x130] sm:$0xff]
  %v3952 = vld [vmem:[%s8 + $0x138] sm:$0xff]
  %v3953 = vld [vmem:[%s8 + $0x140] sm:$0xff]
  %v3954 = vld [vmem:[%s8 + $0x148] sm:$0xff]
  %v3955 = vld [vmem:[%s8 + $0x150] sm:$0xff]
  %v3956 = vld [vmem:[%s8 + $0x158] sm:$0xff]
  %v3957 = vld [vmem:[%s8 + $0x160] sm:$0xff]
  %v3958 = vld [vmem:[%s8 + $0x168] sm:$0xff]
  %v3959 = vld [vmem:[%s8 + $0x170] sm:$0xff]
  %v3960 = vld [vmem:[%s8 + $0x178] sm:$0xff]
  %v3961 = vld [vmem:[%s9] sm:$0x3f]
  %v3963 = vlaneseq
  %v3964 = vshrl.u32 %v3963, 7
  %v3965 = vsub.s32 0, %v3964
  %v3966 = vrot.slane %v3961, %v3965
  %v3967 = vlaneseq
  %v3968 = vshrl.u32 %v3967, 7
  %v3969 = vsub.s32 1, %v3968
  %v3970 = vrot.slane %v3961, %v3969
  %v3971 = vlaneseq
  %v3972 = vshrl.u32 %v3971, 7
  %v3973 = vsub.s32 2, %v3972
  %v3974 = vrot.slane %v3961, %v3973
  %v3975 = vlaneseq
  %v3976 = vshrl.u32 %v3975, 7
  %v3977 = vsub.s32 3, %v3976
  %v3978 = vrot.slane %v3961, %v3977
  %v3979 = vlaneseq
  %v3980 = vshrl.u32 %v3979, 7
  %v3981 = vsub.s32 4, %v3980
  %v3982 = vrot.slane %v3961, %v3981
  %v3983 = vlaneseq
  %v3984 = vshrl.u32 %v3983, 7
  %v3985 = vsub.s32 5, %v3984
  %v3986 = vrot.slane %v3961, %v3985
  %v4041 = vunpack.c.l.b16 %v3913
  %v4042 = vunpack.c.h.b16 %v3913
  %v4043 = vunpack.c.l.b16 %v3914
  %v4044 = vunpack.c.h.b16 %v3914
  %v4045 = vunpack.c.l.b16 %v3915
  %v4046 = vunpack.c.h.b16 %v3915
  %v4047 = vunpack.c.l.b16 %v3916
  %v4048 = vunpack.c.h.b16 %v3916
  %v4049 = vunpack.c.l.b16 %v3917
  %v4050 = vunpack.c.h.b16 %v3917
  %v4051 = vunpack.c.l.b16 %v3918
  %v4052 = vunpack.c.h.b16 %v3918
  %v4053 = vunpack.c.l.b16 %v3919
  %v4054 = vunpack.c.h.b16 %v3919
  %v4055 = vunpack.c.l.b16 %v3920
  %v4056 = vunpack.c.h.b16 %v3920
  %v4057 = vunpack.c.l.b16 %v3921
  %v4058 = vunpack.c.h.b16 %v3921
  %v4059 = vunpack.c.l.b16 %v3922
  %v4060 = vunpack.c.h.b16 %v3922
  %v4061 = vunpack.c.l.b16 %v3923
  %v4062 = vunpack.c.h.b16 %v3923
  %v4063 = vunpack.c.l.b16 %v3924
  %v4064 = vunpack.c.h.b16 %v3924
  %v4065 = vunpack.c.l.b16 %v3925
  %v4066 = vunpack.c.h.b16 %v3925
  %v4067 = vunpack.c.l.b16 %v3926
  %v4068 = vunpack.c.h.b16 %v3926
  %v4069 = vunpack.c.l.b16 %v3927
  %v4070 = vunpack.c.h.b16 %v3927
  %v4071 = vunpack.c.l.b16 %v3928
  %v4072 = vunpack.c.h.b16 %v3928
  %v4073 = vunpack.c.l.b16 %v3929
  %v4074 = vunpack.c.h.b16 %v3929
  %v4075 = vunpack.c.l.b16 %v3930
  %v4076 = vunpack.c.h.b16 %v3930
  %v4077 = vunpack.c.l.b16 %v3931
  %v4078 = vunpack.c.h.b16 %v3931
  %v4079 = vunpack.c.l.b16 %v3932
  %v4080 = vunpack.c.h.b16 %v3932
  %v4081 = vunpack.c.l.b16 %v3933
  %v4082 = vunpack.c.h.b16 %v3933
  %v4083 = vunpack.c.l.b16 %v3934
  %v4084 = vunpack.c.h.b16 %v3934
  %v4085 = vunpack.c.l.b16 %v3935
  %v4086 = vunpack.c.h.b16 %v3935
  %v4087 = vunpack.c.l.b16 %v3936
  %v4088 = vunpack.c.h.b16 %v3936
  %v4089 = vunpack.c.l.b16 %v3937
  %v4090 = vunpack.c.h.b16 %v3937
  %v4091 = vunpack.c.l.b16 %v3938
  %v4092 = vunpack.c.h.b16 %v3938
  %v4093 = vunpack.c.l.b16 %v3939
  %v4094 = vunpack.c.h.b16 %v3939
  %v4095 = vunpack.c.l.b16 %v3940
  %v4096 = vunpack.c.h.b16 %v3940
  %v4097 = vunpack.c.l.b16 %v3941
  %v4098 = vunpack.c.h.b16 %v3941
  %v4099 = vunpack.c.l.b16 %v3942
  %v4100 = vunpack.c.h.b16 %v3942
  %v4101 = vunpack.c.l.b16 %v3943
  %v4102 = vunpack.c.h.b16 %v3943
  %v4103 = vunpack.c.l.b16 %v3944
  %v4104 = vunpack.c.h.b16 %v3944
  %v4105 = vunpack.c.l.b16 %v3945
  %v4106 = vunpack.c.h.b16 %v3945
  %v4107 = vunpack.c.l.b16 %v3946
  %v4108 = vunpack.c.h.b16 %v3946
  %v4109 = vunpack.c.l.b16 %v3947
  %v4110 = vunpack.c.h.b16 %v3947
  %v4111 = vunpack.c.l.b16 %v3948
  %v4112 = vunpack.c.h.b16 %v3948
  %v4113 = vunpack.c.l.b16 %v3949
  %v4114 = vunpack.c.h.b16 %v3949
  %v4115 = vunpack.c.l.b16 %v3950
  %v4116 = vunpack.c.h.b16 %v3950
  %v4117 = vunpack.c.l.b16 %v3951
  %v4118 = vunpack.c.h.b16 %v3951
  %v4119 = vunpack.c.l.b16 %v3952
  %v4120 = vunpack.c.h.b16 %v3952
  %v4121 = vunpack.c.l.b16 %v3953
  %v4122 = vunpack.c.h.b16 %v3953
  %v4123 = vunpack.c.l.b16 %v3954
  %v4124 = vunpack.c.h.b16 %v3954
  %v4125 = vunpack.c.l.b16 %v3955
  %v4126 = vunpack.c.h.b16 %v3955
  %v4127 = vunpack.c.l.b16 %v3956
  %v4128 = vunpack.c.h.b16 %v3956
  %v4129 = vunpack.c.l.b16 %v3957
  %v4130 = vunpack.c.h.b16 %v3957
  %v4131 = vunpack.c.l.b16 %v3958
  %v4132 = vunpack.c.h.b16 %v3958
  %v4133 = vunpack.c.l.b16 %v3959
  %v4134 = vunpack.c.h.b16 %v3959
  %v4135 = vunpack.c.l.b16 %v3960
  %v4136 = vunpack.c.h.b16 %v3960
  %v4137 = vpack.c.b16 %v4047, %v4041
  %v4138 = vpack.c.b16 %v4048, %v4042
  %v4139 = vpack.c.b16 %v4049, %v4043
  %v4140 = vpack.c.b16 %v4050, %v4044
  %v4141 = vpack.c.b16 %v4051, %v4045
  %v4142 = vpack.c.b16 %v4052, %v4046
  %v4143 = vpack.c.b16 %v4059, %v4053
  %v4144 = vpack.c.b16 %v4060, %v4054
  %v4145 = vpack.c.b16 %v4061, %v4055
  %v4146 = vpack.c.b16 %v4062, %v4056
  %v4147 = vpack.c.b16 %v4063, %v4057
  %v4148 = vpack.c.b16 %v4064, %v4058
  %v4149 = vpack.c.b16 %v4071, %v4065
  %v4150 = vpack.c.b16 %v4072, %v4066
  %v4151 = vpack.c.b16 %v4073, %v4067
  %v4152 = vpack.c.b16 %v4074, %v4068
  %v4153 = vpack.c.b16 %v4075, %v4069
  %v4154 = vpack.c.b16 %v4076, %v4070
  %v4155 = vpack.c.b16 %v4083, %v4077
  %v4156 = vpack.c.b16 %v4084, %v4078
  %v4157 = vpack.c.b16 %v4085, %v4079
  %v4158 = vpack.c.b16 %v4086, %v4080
  %v4159 = vpack.c.b16 %v4087, %v4081
  %v4160 = vpack.c.b16 %v4088, %v4082
  %v4161 = vpack.c.b16 %v4095, %v4089
  %v4162 = vpack.c.b16 %v4096, %v4090
  %v4163 = vpack.c.b16 %v4097, %v4091
  %v4164 = vpack.c.b16 %v4098, %v4092
  %v4165 = vpack.c.b16 %v4099, %v4093
  %v4166 = vpack.c.b16 %v4100, %v4094
  %v4167 = vpack.c.b16 %v4107, %v4101
  %v4168 = vpack.c.b16 %v4108, %v4102
  %v4169 = vpack.c.b16 %v4109, %v4103
  %v4170 = vpack.c.b16 %v4110, %v4104
  %v4171 = vpack.c.b16 %v4111, %v4105
  %v4172 = vpack.c.b16 %v4112, %v4106
  %v4173 = vpack.c.b16 %v4119, %v4113
  %v4174 = vpack.c.b16 %v4120, %v4114
  %v4175 = vpack.c.b16 %v4121, %v4115
  %v4176 = vpack.c.b16 %v4122, %v4116
  %v4177 = vpack.c.b16 %v4123, %v4117
  %v4178 = vpack.c.b16 %v4124, %v4118
  %v4179 = vpack.c.b16 %v4131, %v4125
  %v4180 = vpack.c.b16 %v4132, %v4126
  %v4181 = vpack.c.b16 %v4133, %v4127
  %v4182 = vpack.c.b16 %v4134, %v4128
  %v4183 = vpack.c.b16 %v4135, %v4129
  %v4184 = vpack.c.b16 %v4136, %v4130
  %4233 = vmatprep.subr.bf16.mxu0 %v4138
  %4234 = vmatpush1.bf16.msra.mxu0 %v4137
  %4235 = vmatprep.subr.bf16.mxu0 %v4144
  %4236 = vmatpush1.bf16.msra.mxu0 %v4143
  %4237 = vmatprep.subr.bf16.mxu0 %v4150
  %4238 = vmatpush1.bf16.msra.mxu0 %v4149
  %4239 = vmatprep.subr.bf16.mxu0 %v4156
  %4240 = vmatpush1.bf16.msra.mxu0 %v4155
  %4241 = vmatprep.subr.bf16.mxu0 %v4162
  %4242 = vmatpush1.bf16.msra.mxu0 %v4161
  %4243 = vmatprep.subr.bf16.mxu0 %v4168
  %4244 = vmatpush1.bf16.msra.mxu0 %v4167
  %4245 = vmatprep.subr.bf16.mxu0 %v4174
  %4246 = vmatpush1.bf16.msra.mxu0 %v4173
  %4247 = vmatprep.subr.bf16.mxu0 %v4180
  %4248 = vmatpush1.bf16.msra.mxu0 %v4179
  %4249 = vmatprep.subr.bf16.mxu0 0
  %4250 = vmatpush1.bf16.msra.mxu0 0
  %4251 = vmatprep.subr.bf16.mxu0 0
  %4252 = vmatpush1.bf16.msra.mxu0 0
  %4253 = vmatprep.subr.bf16.mxu0 0
  %4254 = vmatpush1.bf16.msra.mxu0 0
  %4255 = vmatprep.subr.bf16.mxu0 0
  %4256 = vmatpush1.bf16.msra.mxu0 0
  %4257 = vmatprep.subr.bf16.mxu0 0
  %4258 = vmatpush1.bf16.msra.mxu0 0
  %4259 = vmatprep.subr.bf16.mxu0 0
  %4260 = vmatpush1.bf16.msra.mxu0 0
  %4261 = vmatprep.subr.bf16.mxu0 0
  %4262 = vmatpush1.bf16.msra.mxu0 0
  %4263 = vmatprep.subr.bf16.mxu0 0
  %4264 = vmatpush1.bf16.msra.mxu0 0
  %4265 = vmatprep.mubr.bf16.mxu0 0
  %4266 = vmatmul.mubr.bf16.gmra.mrb[0].mxu0 %v3909
  %v4267 = vpop.f32.mrb[0].mxu0
  %v4268 = vadd.f32 %v3966, %v4267
  %v4269 = vpop.f32.mrb[0].mxu0
  %v4270 = vadd.f32 %v3970, %v4269
  %v4271 = vpop.f32.mrb[0].mxu0
  %v4272 = vadd.f32 %v3966, %v4271
  %v4273 = vpop.f32.mrb[0].mxu0
  %v4274 = vadd.f32 %v3970, %v4273
  %4275 = vmatprep.mubr.bf16.mxu0 0
  %4276 = vmatmul.mubr.bf16.gmra.mrb[0].mxu0 %v3910
  %v4277 = vpop.f32.mrb[0].mxu0
  %v4278 = vadd.f32 %v3966, %v4277
  %v4279 = vpop.f32.mrb[0].mxu0
  %v4280 = vadd.f32 %v3970, %v4279
  %v4281 = vpop.f32.mrb[0].mxu0
  %v4282 = vadd.f32 %v3966, %v4281
  %v4283 = vpop.f32.mrb[0].mxu0
  %v4284 = vadd.f32 %v3970, %v4283
  %4285 = vmatprep.mubr.bf16.mxu0 0
  %4286 = vmatmul.mubr.bf16.gmra.mrb[0].mxu0 %v3911
  %v4287 = vpop.f32.mrb[0].mxu0
  %v4288 = vadd.f32 %v3966, %v4287
  %v4289 = vpop.f32.mrb[0].mxu0
  %v4290 = vadd.f32 %v3970, %v4289
  %v4291 = vpop.f32.mrb[0].mxu0
  %v4292 = vadd.f32 %v3966, %v4291
  %v4293 = vpop.f32.mrb[0].mxu0
  %v4294 = vadd.f32 %v3970, %v4293
  %4295 = vmatprep.mubr.bf16.mxu0 0
  %4296 = vmatmul.mubr.bf16.gmra.mrb[0].mxu0 %v3912
  %v4297 = vpop.f32.mrb[0].mxu0
  %v4298 = vadd.f32 %v3966, %v4297
  %v4299 = vpop.f32.mrb[0].mxu0
  %v4300 = vadd.f32 %v3970, %v4299
  %v4301 = vpop.f32.mrb[0].mxu0
  %v4302 = vadd.f32 %v3966, %v4301
  %v4303 = vpop.f32.mrb[0].mxu0
  %v4304 = vadd.f32 %v3970, %v4303
  %4305 = vdwg.mxu0
  %4306 = vmatprep.subr.bf16.mxu0 %v4140
  %4307 = vmatpush1.bf16.msra.mxu0 %v4139
  %4308 = vmatprep.subr.bf16.mxu0 %v4146
  %4309 = vmatpush1.bf16.msra.mxu0 %v4145
  %4310 = vmatprep.subr.bf16.mxu0 %v4152
  %4311 = vmatpush1.bf16.msra.mxu0 %v4151
  %4312 = vmatprep.subr.bf16.mxu0 %v4158
  %4313 = vmatpush1.bf16.msra.mxu0 %v4157
  %4314 = vmatprep.subr.bf16.mxu0 %v4164
  %4315 = vmatpush1.bf16.msra.mxu0 %v4163
  %4316 = vmatprep.subr.bf16.mxu0 %v4170
  %4317 = vmatpush1.bf16.msra.mxu0 %v4169
  %4318 = vmatprep.subr.bf16.mxu0 %v4176
  %4319 = vmatpush1.bf16.msra.mxu0 %v4175
  %4320 = vmatprep.subr.bf16.mxu0 %v4182
  %4321 = vmatpush1.bf16.msra.mxu0 %v4181
  %4322 = vmatprep.subr.bf16.mxu0 0
  %4323 = vmatpush1.bf16.msra.mxu0 0
  %4324 = vmatprep.subr.bf16.mxu0 0
  %4325 = vmatpush1.bf16.msra.mxu0 0
  %4326 = vmatprep.subr.bf16.mxu0 0
  %4327 = vmatpush1.bf16.msra.mxu0 0
  %4328 = vmatprep.subr.bf16.mxu0 0
  %4329 = vmatpush1.bf16.msra.mxu0 0
  %4330 = vmatprep.subr.bf16.mxu0 0
  %4331 = vmatpush1.bf16.msra.mxu0 0
  %4332 = vmatprep.subr.bf16.mxu0 0
  %4333 = vmatpush1.bf16.msra.mxu0 0
  %4334 = vmatprep.subr.bf16.mxu0 0
  %4335 = vmatpush1.bf16.msra.mxu0 0
  %4336 = vmatprep.subr.bf16.mxu0 0
  %4337 = vmatpush1.bf16.msra.mxu0 0
  %4338 = vmatprep.mubr.bf16.mxu0 0
  %4339 = vmatmul.mubr.bf16.gmra.mrb[0].mxu0 %v3909
  %v4340 = vpop.f32.mrb[0].mxu0
  %v4341 = vadd.f32 %v3974, %v4340
  %v4342 = vpop.f32.mrb[0].mxu0
  %v4343 = vadd.f32 %v3978, %v4342
  %v4344 = vpop.f32.mrb[0].mxu0
  %v4345 = vadd.f32 %v3974, %v4344
  %v4346 = vpop.f32.mrb[0].mxu0
  %v4347 = vadd.f32 %v3978, %v4346
  %4348 = vmatprep.mubr.bf16.mxu0 0
  %4349 = vmatmul.mubr.bf16.gmra.mrb[0].mxu0 %v3910
  %v4350 = vpop.f32.mrb[0].mxu0
  %v4351 = vadd.f32 %v3974, %v4350
  %v4352 = vpop.f32.mrb[0].mxu0
  %v4353 = vadd.f32 %v3978, %v4352
  %v4354 = vpop.f32.mrb[0].mxu0
  %v4355 = vadd.f32 %v3974, %v4354
  %v4356 = vpop.f32.mrb[0].mxu0
  %v4357 = vadd.f32 %v3978, %v4356
  %4358 = vmatprep.mubr.bf16.mxu0 0
  %4359 = vmatmul.mubr.bf16.gmra.mrb[0].mxu0 %v3911
  %v4360 = vpop.f32.mrb[0].mxu0
  %v4361 = vadd.f32 %v3974, %v4360
  %v4362 = vpop.f32.mrb[0].mxu0
  %v4363 = vadd.f32 %v3978, %v4362
  %v4364 = vpop.f32.mrb[0].mxu0
  %v4365 = vadd.f32 %v3974, %v4364
  %v4366 = vpop.f32.mrb[0].mxu0
  %v4367 = vadd.f32 %v3978, %v4366
  %4368 = vmatprep.mubr.bf16.mxu0 0
  %4369 = vmatmul.mubr.bf16.gmra.mrb[0].mxu0 %v3912
  %v4370 = vpop.f32.mrb[0].mxu0
  %v4371 = vadd.f32 %v3974, %v4370
  %v4372 = vpop.f32.mrb[0].mxu0
  %v4373 = vadd.f32 %v3978, %v4372
  %v4374 = vpop.f32.mrb[0].mxu0
  %v4375 = vadd.f32 %v3974, %v4374
  %v4376 = vpop.f32.mrb[0].mxu0
  %v4377 = vadd.f32 %v3978, %v4376
  %4378 = vdwg.mxu0
  %4379 = vmatprep.subr.bf16.mxu0 %v4142
  %4380 = vmatpush1.bf16.msra.mxu0 %v4141
  %4381 = vmatprep.subr.bf16.mxu0 %v4148
  %4382 = vmatpush1.bf16.msra.mxu0 %v4147
  %4383 = vmatprep.subr.bf16.mxu0 %v4154
  %4384 = vmatpush1.bf16.msra.mxu0 %v4153
  %4385 = vmatprep.subr.bf16.mxu0 %v4160
  %4386 = vmatpush1.bf16.msra.mxu0 %v4159
  %4387 = vmatprep.subr.bf16.mxu0 %v4166
  %4388 = vmatpush1.bf16.msra.mxu0 %v4165
  %4389 = vmatprep.subr.bf16.mxu0 %v4172
  %4390 = vmatpush1.bf16.msra.mxu0 %v4171
  %4391 = vmatprep.subr.bf16.mxu0 %v4178
  %4392 = vmatpush1.bf16.msra.mxu0 %v4177
  %4393 = vmatprep.subr.bf16.mxu0 %v4184
  %4394 = vmatpush1.bf16.msra.mxu0 %v4183
  %4395 = vmatprep.subr.bf16.mxu0 0
  %4396 = vmatpush1.bf16.msra.mxu0 0
  %4397 = vmatprep.subr.bf16.mxu0 0
  %4398 = vmatpush1.bf16.msra.mxu0 0
  %4399 = vmatprep.subr.bf16.mxu0 0
  %4400 = vmatpush1.bf16.msra.mxu0 0
  %4401 = vmatprep.subr.bf16.mxu0 0
  %4402 = vmatpush1.bf16.msra.mxu0 0
  %4403 = vmatprep.subr.bf16.mxu0 0
  %4404 = vmatpush1.bf16.msra.mxu0 0
  %4405 = vmatprep.subr.bf16.mxu0 0
  %4406 = vmatpush1.bf16.msra.mxu0 0
  %4407 = vmatprep.subr.bf16.mxu0 0
  %4408 = vmatpush1.bf16.msra.mxu0 0
  %4409 = vmatprep.subr.bf16.mxu0 0
  %4410 = vmatpush1.bf16.msra.mxu0 0
  %4411 = vmatprep.mubr.bf16.mxu0 0
  %4412 = vmatmul.mubr.bf16.gmra.mrb[0].mxu0 %v3909
  %v4413 = vpop.f32.mrb[0].mxu0
  %v4414 = vadd.f32 %v3982, %v4413
  %v4415 = vpop.f32.mrb[0].mxu0
  %v4416 = vadd.f32 %v3986, %v4415
  %v4417 = vpop.f32.mrb[0].mxu0
  %v4418 = vadd.f32 %v3982, %v4417
  %v4419 = vpop.f32.mrb[0].mxu0
  %v4420 = vadd.f32 %v3986, %v4419
  %4421 = vmatprep.mubr.bf16.mxu0 0
  %4422 = vmatmul.mubr.bf16.gmra.mrb[0].mxu0 %v3910
  %v4423 = vpop.f32.mrb[0].mxu0
  %v4424 = vadd.f32 %v3982, %v4423
  %v4425 = vpop.f32.mrb[0].mxu0
  %v4426 = vadd.f32 %v3986, %v4425
  %v4427 = vpop.f32.mrb[0].mxu0
  %v4428 = vadd.f32 %v3982, %v4427
  %v4429 = vpop.f32.mrb[0].mxu0
  %v4430 = vadd.f32 %v3986, %v4429
  %4431 = vmatprep.mubr.bf16.mxu0 0
  %4432 = vmatmul.mubr.bf16.gmra.mrb[0].mxu0 %v3911
  %v4433 = vpop.f32.mrb[0].mxu0
  %v4434 = vadd.f32 %v3982, %v4433
  %v4435 = vpop.f32.mrb[0].mxu0
  %v4436 = vadd.f32 %v3986, %v4435
  %v4437 = vpop.f32.mrb[0].mxu0
  %v4438 = vadd.f32 %v3982, %v4437
  %v4439 = vpop.f32.mrb[0].mxu0
  %v4440 = vadd.f32 %v3986, %v4439
  %4441 = vmatprep.mubr.bf16.mxu0 0
  %4442 = vmatmul.mubr.bf16.gmra.mrb[0].mxu0 %v3912
  %v4443 = vpop.f32.mrb[0].mxu0
  %v4444 = vadd.f32 %v3982, %v4443
  %v4445 = vpop.f32.mrb[0].mxu0
  %v4446 = vadd.f32 %v3986, %v4445
  %v4447 = vpop.f32.mrb[0].mxu0
  %v4448 = vadd.f32 %v3982, %v4447
  %v4449 = vpop.f32.mrb[0].mxu0
  %v4450 = vadd.f32 %v3986, %v4449
  %4451 = vdwg.mxu0
  %v4452 = vadd.f32 %v4268, %v1533
  %v4453 = vadd.f32 %v4270, %v1534
  %v4454 = vadd.f32 %v4341, %v1535
  %v4455 = vadd.f32 %v4343, %v1536
  %v4456 = vadd.f32 %v4414, %v1537
  %v4457 = vadd.f32 %v4416, %v1538
  %v4458 = vadd.f32 %v4272, %v1539
  %v4459 = vadd.f32 %v4274, %v1540
  %v4460 = vadd.f32 %v4345, %v1541
  %v4461 = vadd.f32 %v4347, %v1542
  %v4462 = vadd.f32 %v4418, %v1543
  %v4463 = vadd.f32 %v4420, %v1544
  %v4464 = vadd.f32 %v4278, %v1545
  %v4465 = vadd.f32 %v4280, %v1546
  %v4466 = vadd.f32 %v4351, %v1547
  %v4467 = vadd.f32 %v4353, %v1548
  %v4468 = vadd.f32 %v4424, %v1549
  %v4469 = vadd.f32 %v4426, %v1550
  %v4470 = vadd.f32 %v4282, %v1551
  %v4471 = vadd.f32 %v4284, %v1552
  %v4472 = vadd.f32 %v4355, %v1553
  %v4473 = vadd.f32 %v4357, %v1554
  %v4474 = vadd.f32 %v4428, %v1555
  %v4475 = vadd.f32 %v4430, %v1556
  %v4476 = vadd.f32 %v4288, %v1557
  %v4477 = vadd.f32 %v4290, %v1558
  %v4478 = vadd.f32 %v4361, %v1559
  %v4479 = vadd.f32 %v4363, %v1560
  %v4480 = vadd.f32 %v4434, %v1561
  %v4481 = vadd.f32 %v4436, %v1562
  %v4482 = vadd.f32 %v4292, %v1563
  %v4483 = vadd.f32 %v4294, %v1564
  %v4484 = vadd.f32 %v4365, %v1565
  %v4485 = vadd.f32 %v4367, %v1566
  %v4486 = vadd.f32 %v4438, %v1567
  %v4487 = vadd.f32 %v4440, %v1568
  %v4488 = vadd.f32 %v4298, %v1569
  %v4489 = vadd.f32 %v4300, %v1570
  %v4490 = vadd.f32 %v4371, %v1571
  %v4491 = vadd.f32 %v4373, %v1572
  %v4492 = vadd.f32 %v4444, %v1573
  %v4493 = vadd.f32 %v4446, %v1574
  %v4494 = vadd.f32 %v4302, %v1575
  %v4495 = vadd.f32 %v4304, %v1576
  %v4496 = vadd.f32 %v4375, %v1577
  %v4497 = vadd.f32 %v4377, %v1578
  %v4498 = vadd.f32 %v4448, %v1579
  %v4499 = vadd.f32 %v4450, %v1580
  %v4500 = vadd.f32 %v4452, %v4453
  %v4501 = vadd.f32 %v4500, %v4454
  %v4502 = vadd.f32 %v4501, %v4455
  %v4503 = vadd.f32 %v4502, %v4456
  %v4504 = vadd.f32 %v4503, %v4457
  %4505 = vadd.xlane.f32.xlu0 %v4504
  %v4506 = vpop.xlane.xlu0 %4505
  %v4507 = vadd.f32 %v4458, %v4459
  %v4508 = vadd.f32 %v4507, %v4460
  %v4509 = vadd.f32 %v4508, %v4461
  %v4510 = vadd.f32 %v4509, %v4462
  %v4511 = vadd.f32 %v4510, %v4463
  %4512 = vadd.xlane.f32.xlu0 %v4511
  %v4513 = vpop.xlane.xlu0 %4512
  %v4514 = vadd.f32 %v4464, %v4465
  %v4515 = vadd.f32 %v4514, %v4466
  %v4516 = vadd.f32 %v4515, %v4467
  %v4517 = vadd.f32 %v4516, %v4468
  %v4518 = vadd.f32 %v4517, %v4469
  %4519 = vadd.xlane.f32.xlu0 %v4518
  %v4520 = vpop.xlane.xlu0 %4519
  %v4521 = vadd.f32 %v4470, %v4471
  %v4522 = vadd.f32 %v4521, %v4472
  %v4523 = vadd.f32 %v4522, %v4473
  %v4524 = vadd.f32 %v4523, %v4474
  %v4525 = vadd.f32 %v4524, %v4475
  %4526 = vadd.xlane.f32.xlu0 %v4525
  %v4527 = vpop.xlane.xlu0 %4526
  %v4528 = vadd.f32 %v4476, %v4477
  %v4529 = vadd.f32 %v4528, %v4478
  %v4530 = vadd.f32 %v4529, %v4479
  %v4531 = vadd.f32 %v4530, %v4480
  %v4532 = vadd.f32 %v4531, %v4481
  %4533 = vadd.xlane.f32.xlu0 %v4532
  %v4534 = vpop.xlane.xlu0 %4533
  %v4535 = vadd.f32 %v4482, %v4483
  %v4536 = vadd.f32 %v4535, %v4484
  %v4537 = vadd.f32 %v4536, %v4485
  %v4538 = vadd.f32 %v4537, %v4486
  %v4539 = vadd.f32 %v4538, %v4487
  %4540 = vadd.xlane.f32.xlu0 %v4539
  %v4541 = vpop.xlane.xlu0 %4540
  %v4542 = vadd.f32 %v4488, %v4489
  %v4543 = vadd.f32 %v4542, %v4490
  %v4544 = vadd.f32 %v4543, %v4491
  %v4545 = vadd.f32 %v4544, %v4492
  %v4546 = vadd.f32 %v4545, %v4493
  %4547 = vadd.xlane.f32.xlu0 %v4546
  %v4548 = vpop.xlane.xlu0 %4547
  %v4549 = vadd.f32 %v4494, %v4495
  %v4550 = vadd.f32 %v4549, %v4496
  %v4551 = vadd.f32 %v4550, %v4497
  %v4552 = vadd.f32 %v4551, %v4498
  %v4553 = vadd.f32 %v4552, %v4499
  %4554 = vadd.xlane.f32.xlu0 %v4553
  %v4555 = vpop.xlane.xlu0 %4554
  %v4556 = vrcp.pop 768.0
  %v4557 = vmul.f32 %v4506, %v4556
  %v4558 = vmul.f32 %v4513, %v4556
  %v4559 = vmul.f32 %v4520, %v4556
  %v4560 = vmul.f32 %v4527, %v4556
  %v4561 = vmul.f32 %v4534, %v4556
  %v4562 = vmul.f32 %v4541, %v4556
  %v4563 = vmul.f32 %v4548, %v4556
  %v4564 = vmul.f32 %v4555, %v4556
  %v4565 = vsub.f32 %v4452, %v4557
  %v4566 = vsub.f32 %v4453, %v4557
  %v4567 = vsub.f32 %v4454, %v4557
  %v4568 = vsub.f32 %v4455, %v4557
  %v4569 = vsub.f32 %v4456, %v4557
  %v4570 = vsub.f32 %v4457, %v4557
  %v4571 = vsub.f32 %v4458, %v4558
  %v4572 = vsub.f32 %v4459, %v4558
  %v4573 = vsub.f32 %v4460, %v4558
  %v4574 = vsub.f32 %v4461, %v4558
  %v4575 = vsub.f32 %v4462, %v4558
  %v4576 = vsub.f32 %v4463, %v4558
  %v4577 = vsub.f32 %v4464, %v4559
  %v4578 = vsub.f32 %v4465, %v4559
  %v4579 = vsub.f32 %v4466, %v4559
  %v4580 = vsub.f32 %v4467, %v4559
  %v4581 = vsub.f32 %v4468, %v4559
  %v4582 = vsub.f32 %v4469, %v4559
  %v4583 = vsub.f32 %v4470, %v4560
  %v4584 = vsub.f32 %v4471, %v4560
  %v4585 = vsub.f32 %v4472, %v4560
  %v4586 = vsub.f32 %v4473, %v4560
  %v4587 = vsub.f32 %v4474, %v4560
  %v4588 = vsub.f32 %v4475, %v4560
  %v4589 = vsub.f32 %v4476, %v4561
  %v4590 = vsub.f32 %v4477, %v4561
  %v4591 = vsub.f32 %v4478, %v4561
  %v4592 = vsub.f32 %v4479, %v4561
  %v4593 = vsub.f32 %v4480, %v4561
  %v4594 = vsub.f32 %v4481, %v4561
  %v4595 = vsub.f32 %v4482, %v4562
  %v4596 = vsub.f32 %v4483, %v4562
  %v4597 = vsub.f32 %v4484, %v4562
  %v4598 = vsub.f32 %v4485, %v4562
  %v4599 = vsub.f32 %v4486, %v4562
  %v4600 = vsub.f32 %v4487, %v4562
  %v4601 = vsub.f32 %v4488, %v4563
  %v4602 = vsub.f32 %v4489, %v4563
  %v4603 = vsub.f32 %v4490, %v4563
  %v4604 = vsub.f32 %v4491, %v4563
  %v4605 = vsub.f32 %v4492, %v4563
  %v4606 = vsub.f32 %v4493, %v4563
  %v4607 = vsub.f32 %v4494, %v4564
  %v4608 = vsub.f32 %v4495, %v4564
  %v4609 = vsub.f32 %v4496, %v4564
  %v4610 = vsub.f32 %v4497, %v4564
  %v4611 = vsub.f32 %v4498, %v4564
  %v4612 = vsub.f32 %v4499, %v4564
  %v4613 = vmul.f32 %v4565, %v4565
  %v4614 = vmul.f32 %v4566, %v4566
  %v4615 = vmul.f32 %v4567, %v4567
  %v4616 = vmul.f32 %v4568, %v4568
  %v4617 = vmul.f32 %v4569, %v4569
  %v4618 = vmul.f32 %v4570, %v4570
  %v4619 = vmul.f32 %v4571, %v4571
  %v4620 = vmul.f32 %v4572, %v4572
  %v4621 = vmul.f32 %v4573, %v4573
  %v4622 = vmul.f32 %v4574, %v4574
  %v4623 = vmul.f32 %v4575, %v4575
  %v4624 = vmul.f32 %v4576, %v4576
  %v4625 = vmul.f32 %v4577, %v4577
  %v4626 = vmul.f32 %v4578, %v4578
  %v4627 = vmul.f32 %v4579, %v4579
  %v4628 = vmul.f32 %v4580, %v4580
  %v4629 = vmul.f32 %v4581, %v4581
  %v4630 = vmul.f32 %v4582, %v4582
  %v4631 = vmul.f32 %v4583, %v4583
  %v4632 = vmul.f32 %v4584, %v4584
  %v4633 = vmul.f32 %v4585, %v4585
  %v4634 = vmul.f32 %v4586, %v4586
  %v4635 = vmul.f32 %v4587, %v4587
  %v4636 = vmul.f32 %v4588, %v4588
  %v4637 = vmul.f32 %v4589, %v4589
  %v4638 = vmul.f32 %v4590, %v4590
  %v4639 = vmul.f32 %v4591, %v4591
  %v4640 = vmul.f32 %v4592, %v4592
  %v4641 = vmul.f32 %v4593, %v4593
  %v4642 = vmul.f32 %v4594, %v4594
  %v4643 = vmul.f32 %v4595, %v4595
  %v4644 = vmul.f32 %v4596, %v4596
  %v4645 = vmul.f32 %v4597, %v4597
  %v4646 = vmul.f32 %v4598, %v4598
  %v4647 = vmul.f32 %v4599, %v4599
  %v4648 = vmul.f32 %v4600, %v4600
  %v4649 = vmul.f32 %v4601, %v4601
  %v4650 = vmul.f32 %v4602, %v4602
  %v4651 = vmul.f32 %v4603, %v4603
  %v4652 = vmul.f32 %v4604, %v4604
  %v4653 = vmul.f32 %v4605, %v4605
  %v4654 = vmul.f32 %v4606, %v4606
  %v4655 = vmul.f32 %v4607, %v4607
  %v4656 = vmul.f32 %v4608, %v4608
  %v4657 = vmul.f32 %v4609, %v4609
  %v4658 = vmul.f32 %v4610, %v4610
  %v4659 = vmul.f32 %v4611, %v4611
  %v4660 = vmul.f32 %v4612, %v4612
  %v4661 = vadd.f32 %v4613, %v4614
  %v4662 = vadd.f32 %v4661, %v4615
  %v4663 = vadd.f32 %v4662, %v4616
  %v4664 = vadd.f32 %v4663, %v4617
  %v4665 = vadd.f32 %v4664, %v4618
  %4666 = vadd.xlane.f32.xlu0 %v4665
  %v4667 = vpop.xlane.xlu0 %4666
  %v4668 = vadd.f32 %v4619, %v4620
  %v4669 = vadd.f32 %v4668, %v4621
  %v4670 = vadd.f32 %v4669, %v4622
  %v4671 = vadd.f32 %v4670, %v4623
  %v4672 = vadd.f32 %v4671, %v4624
  %4673 = vadd.xlane.f32.xlu0 %v4672
  %v4674 = vpop.xlane.xlu0 %4673
  %v4675 = vadd.f32 %v4625, %v4626
  %v4676 = vadd.f32 %v4675, %v4627
  %v4677 = vadd.f32 %v4676, %v4628
  %v4678 = vadd.f32 %v4677, %v4629
  %v4679 = vadd.f32 %v4678, %v4630
  %4680 = vadd.xlane.f32.xlu0 %v4679
  %v4681 = vpop.xlane.xlu0 %4680
  %v4682 = vadd.f32 %v4631, %v4632
  %v4683 = vadd.f32 %v4682, %v4633
  %v4684 = vadd.f32 %v4683, %v4634
  %v4685 = vadd.f32 %v4684, %v4635
  %v4686 = vadd.f32 %v4685, %v4636
  %4687 = vadd.xlane.f32.xlu0 %v4686
  %v4688 = vpop.xlane.xlu0 %4687
  %v4689 = vadd.f32 %v4637, %v4638
  %v4690 = vadd.f32 %v4689, %v4639
  %v4691 = vadd.f32 %v4690, %v4640
  %v4692 = vadd.f32 %v4691, %v4641
  %v4693 = vadd.f32 %v4692, %v4642
  %4694 = vadd.xlane.f32.xlu0 %v4693
  %v4695 = vpop.xlane.xlu0 %4694
  %v4696 = vadd.f32 %v4643, %v4644
  %v4697 = vadd.f32 %v4696, %v4645
  %v4698 = vadd.f32 %v4697, %v4646
  %v4699 = vadd.f32 %v4698, %v4647
  %v4700 = vadd.f32 %v4699, %v4648
  %4701 = vadd.xlane.f32.xlu0 %v4700
  %v4702 = vpop.xlane.xlu0 %4701
  %v4703 = vadd.f32 %v4649, %v4650
  %v4704 = vadd.f32 %v4703, %v4651
  %v4705 = vadd.f32 %v4704, %v4652
  %v4706 = vadd.f32 %v4705, %v4653
  %v4707 = vadd.f32 %v4706, %v4654
  %4708 = vadd.xlane.f32.xlu0 %v4707
  %v4709 = vpop.xlane.xlu0 %4708
  %v4710 = vadd.f32 %v4655, %v4656
  %v4711 = vadd.f32 %v4710, %v4657
  %v4712 = vadd.f32 %v4711, %v4658
  %v4713 = vadd.f32 %v4712, %v4659
  %v4714 = vadd.f32 %v4713, %v4660
  %4715 = vadd.xlane.f32.xlu0 %v4714
  %v4716 = vpop.xlane.xlu0 %4715
  %v4717 = vmul.f32 %v4667, %v4556
  %v4718 = vmul.f32 %v4674, %v4556
  %v4719 = vmul.f32 %v4681, %v4556
  %v4720 = vmul.f32 %v4688, %v4556
  %v4721 = vmul.f32 %v4695, %v4556
  %v4722 = vmul.f32 %v4702, %v4556
  %v4723 = vmul.f32 %v4709, %v4556
  %v4724 = vmul.f32 %v4716, %v4556
  %v4725 = vadd.f32 %v4717, 1e-05
  %v4726 = vadd.f32 %v4718, 1e-05
  %v4727 = vadd.f32 %v4719, 1e-05
  %v4728 = vadd.f32 %v4720, 1e-05
  %v4729 = vadd.f32 %v4721, 1e-05
  %v4730 = vadd.f32 %v4722, 1e-05
  %v4731 = vadd.f32 %v4723, 1e-05
  %v4732 = vadd.f32 %v4724, 1e-05
  %v4733 = vrsqrt.pop %v4725
  %v4734 = vrsqrt.pop %v4726
  %v4735 = vrsqrt.pop %v4727
  %v4736 = vrsqrt.pop %v4728
  %v4737 = vrsqrt.pop %v4729
  %v4738 = vrsqrt.pop %v4730
  %v4739 = vrsqrt.pop %v4731
  %v4740 = vrsqrt.pop %v4732
  %v4741 = vmul.f32 %v4565, %v4733
  %v4742 = vmul.f32 %v4566, %v4733
  %v4743 = vmul.f32 %v4567, %v4733
  %v4744 = vmul.f32 %v4568, %v4733
  %v4745 = vmul.f32 %v4569, %v4733
  %v4746 = vmul.f32 %v4570, %v4733
  %v4747 = vmul.f32 %v4571, %v4734
  %v4748 = vmul.f32 %v4572, %v4734
  %v4749 = vmul.f32 %v4573, %v4734
  %v4750 = vmul.f32 %v4574, %v4734
  %v4751 = vmul.f32 %v4575, %v4734
  %v4752 = vmul.f32 %v4576, %v4734
  %v4753 = vmul.f32 %v4577, %v4735
  %v4754 = vmul.f32 %v4578, %v4735
  %v4755 = vmul.f32 %v4579, %v4735
  %v4756 = vmul.f32 %v4580, %v4735
  %v4757 = vmul.f32 %v4581, %v4735
  %v4758 = vmul.f32 %v4582, %v4735
  %v4759 = vmul.f32 %v4583, %v4736
  %v4760 = vmul.f32 %v4584, %v4736
  %v4761 = vmul.f32 %v4585, %v4736
  %v4762 = vmul.f32 %v4586, %v4736
  %v4763 = vmul.f32 %v4587, %v4736
  %v4764 = vmul.f32 %v4588, %v4736
  %v4765 = vmul.f32 %v4589, %v4737
  %v4766 = vmul.f32 %v4590, %v4737
  %v4767 = vmul.f32 %v4591, %v4737
  %v4768 = vmul.f32 %v4592, %v4737
  %v4769 = vmul.f32 %v4593, %v4737
  %v4770 = vmul.f32 %v4594, %v4737
  %v4771 = vmul.f32 %v4595, %v4738
  %v4772 = vmul.f32 %v4596, %v4738
  %v4773 = vmul.f32 %v4597, %v4738
  %v4774 = vmul.f32 %v4598, %v4738
  %v4775 = vmul.f32 %v4599, %v4738
  %v4776 = vmul.f32 %v4600, %v4738
  %v4777 = vmul.f32 %v4601, %v4739
  %v4778 = vmul.f32 %v4602, %v4739
  %v4779 = vmul.f32 %v4603, %v4739
  %v4780 = vmul.f32 %v4604, %v4739
  %v4781 = vmul.f32 %v4605, %v4739
  %v4782 = vmul.f32 %v4606, %v4739
  %v4783 = vmul.f32 %v4607, %v4740
  %v4784 = vmul.f32 %v4608, %v4740
  %v4785 = vmul.f32 %v4609, %v4740
  %v4786 = vmul.f32 %v4610, %v4740
  %v4787 = vmul.f32 %v4611, %v4740
  %v4788 = vmul.f32 %v4612, %v4740
  %s4789 = smul.u32 4, 96
  %s4790 = smul.u32 %s4789, 1
  %s4791 = sshll.u32 %s4790, 4
  %4792 = dma.done [#allocation5], %s4791
  %s4793 = smul.u32 %s4789, 2
  %s4794 = sshll.u32 %s4793, 4
  %4795 = dma.done %s195, %s4794
  %s4796 = smul.u32 4, 16
  %s4797 = smul.u32 %s4796, 6
  %s4798 = sshll.u32 %s4797, 4
  %4799 = dma.done %s1012, %s4798
  %v4800 = vld [vmem:[#allocation2] sm:$0xff]
  %v4801 = vld [vmem:[#allocation2 + $0x8] sm:$0xff]
  %v4802 = vld [vmem:[#allocation2 + $0x10] sm:$0xff]
  %v4803 = vld [vmem:[#allocation2 + $0x18] sm:$0xff]
  %v4804 = vld [vmem:[#allocation2 + $0x20] sm:$0xff]
  %v4805 = vld [vmem:[#allocation2 + $0x28] sm:$0xff]
  %v4806 = vld [vmem:[#allocation2 + $0x30] sm:$0xff]
  %v4807 = vld [vmem:[#allocation2 + $0x38] sm:$0xff]
  %v4808 = vld [vmem:[#allocation2 + $0x40] sm:$0xff]
  %v4809 = vld [vmem:[#allocation2 + $0x48] sm:$0xff]
  %v4810 = vld [vmem:[#allocation2 + $0x50] sm:$0xff]
  %v4811 = vld [vmem:[#allocation2 + $0x58] sm:$0xff]
  %v4812 = vld [vmem:[#allocation2 + $0x60] sm:$0xff]
  %v4813 = vld [vmem:[#allocation2 + $0x68] sm:$0xff]
  %v4814 = vld [vmem:[#allocation2 + $0x70] sm:$0xff]
  %v4815 = vld [vmem:[#allocation2 + $0x78] sm:$0xff]
  %v4816 = vld [vmem:[#allocation2 + $0x80] sm:$0xff]
  %v4817 = vld [vmem:[#allocation2 + $0x88] sm:$0xff]
  %v4818 = vld [vmem:[#allocation2 + $0x90] sm:$0xff]
  %v4819 = vld [vmem:[#allocation2 + $0x98] sm:$0xff]
  %v4820 = vld [vmem:[#allocation2 + $0xa0] sm:$0xff]
  %v4821 = vld [vmem:[#allocation2 + $0xa8] sm:$0xff]
  %v4822 = vld [vmem:[#allocation2 + $0xb0] sm:$0xff]
  %v4823 = vld [vmem:[#allocation2 + $0xb8] sm:$0xff]
  %v4824 = vld [vmem:[#allocation2 + $0xc0] sm:$0xff]
  %v4825 = vld [vmem:[#allocation2 + $0xc8] sm:$0xff]
  %v4826 = vld [vmem:[#allocation2 + $0xd0] sm:$0xff]
  %v4827 = vld [vmem:[#allocation2 + $0xd8] sm:$0xff]
  %v4828 = vld [vmem:[#allocation2 + $0xe0] sm:$0xff]
  %v4829 = vld [vmem:[#allocation2 + $0xe8] sm:$0xff]
  %v4830 = vld [vmem:[#allocation2 + $0xf0] sm:$0xff]
  %v4831 = vld [vmem:[#allocation2 + $0xf8] sm:$0xff]
  %v4832 = vld [vmem:[#allocation2 + $0x100] sm:$0xff]
  %v4833 = vld [vmem:[#allocation2 + $0x108] sm:$0xff]
  %v4834 = vld [vmem:[#allocation2 + $0x110] sm:$0xff]
  %v4835 = vld [vmem:[#allocation2 + $0x118] sm:$0xff]
  %v4836 = vld [vmem:[#allocation2 + $0x120] sm:$0xff]
  %v4837 = vld [vmem:[#allocation2 + $0x128] sm:$0xff]
  %v4838 = vld [vmem:[#allocation2 + $0x130] sm:$0xff]
  %v4839 = vld [vmem:[#allocation2 + $0x138] sm:$0xff]
  %v4840 = vld [vmem:[#allocation2 + $0x140] sm:$0xff]
  %v4841 = vld [vmem:[#allocation2 + $0x148] sm:$0xff]
  %v4842 = vld [vmem:[#allocation2 + $0x150] sm:$0xff]
  %v4843 = vld [vmem:[#allocation2 + $0x158] sm:$0xff]
  %v4844 = vld [vmem:[#allocation2 + $0x160] sm:$0xff]
  %v4845 = vld [vmem:[#allocation2 + $0x168] sm:$0xff]
  %v4846 = vld [vmem:[#allocation2 + $0x170] sm:$0xff]
  %v4847 = vld [vmem:[#allocation2 + $0x178] sm:$0xff]
  %v4848 = vld [vmem:[%s13] sm:$0x1]
  %v4850 = vlaneseq
  %v4851 = vshrl.u32 %v4850, 7
  %v4852 = vsub.s32 0, %v4851
  %v4853 = vrot.slane %v4848, %v4852
  %4855 = vmatprep.subr.bf16.mxu0 0
  %4856 = vmatpush1.bf16.msra.mxu0 %v4800
  %4857 = vmatprep.subr.bf16.mxu0 0
  %4858 = vmatpush1.bf16.msra.mxu0 %v4801
  %4859 = vmatprep.subr.bf16.mxu0 0
  %4860 = vmatpush1.bf16.msra.mxu0 %v4802
  %4861 = vmatprep.subr.bf16.mxu0 0
  %4862 = vmatpush1.bf16.msra.mxu0 %v4803
  %4863 = vmatprep.subr.bf16.mxu0 0
  %4864 = vmatpush1.bf16.msra.mxu0 %v4804
  %4865 = vmatprep.subr.bf16.mxu0 0
  %4866 = vmatpush1.bf16.msra.mxu0 %v4805
  %4867 = vmatprep.subr.bf16.mxu0 0
  %4868 = vmatpush1.bf16.msra.mxu0 %v4806
  %4869 = vmatprep.subr.bf16.mxu0 0
  %4870 = vmatpush1.bf16.msra.mxu0 %v4807
  %4871 = vmatprep.subr.bf16.mxu0 0
  %4872 = vmatpush1.bf16.msra.mxu0 %v4808
  %4873 = vmatprep.subr.bf16.mxu0 0
  %4874 = vmatpush1.bf16.msra.mxu0 %v4809
  %4875 = vmatprep.subr.bf16.mxu0 0
  %4876 = vmatpush1.bf16.msra.mxu0 %v4810
  %4877 = vmatprep.subr.bf16.mxu0 0
  %4878 = vmatpush1.bf16.msra.mxu0 %v4811
  %4879 = vmatprep.subr.bf16.mxu0 0
  %4880 = vmatpush1.bf16.msra.mxu0 %v4812
  %4881 = vmatprep.subr.bf16.mxu0 0
  %4882 = vmatpush1.bf16.msra.mxu0 %v4813
  %4883 = vmatprep.subr.bf16.mxu0 0
  %4884 = vmatpush1.bf16.msra.mxu0 %v4814
  %4885 = vmatprep.subr.bf16.mxu0 0
  %4886 = vmatpush1.bf16.msra.mxu0 %v4815
  %4887 = vmatprep.mubr.bf16.mxu0 %v2516
  %4888 = vmatmul.mubr.bf16.gmra.mrb[0].mxu0 %v2515
  %v4889 = vpop.f32.mrb[0].mxu0
  %v4890 = vadd.f32 %v4853, %v4889
  %v4891 = vpop.f32.mrb[0].mxu0
  %v4892 = vpop.f32.mrb[0].mxu0
  %v4893 = vadd.f32 %v4853, %v4892
  %v4894 = vpop.f32.mrb[0].mxu0
  %4895 = vmatprep.mubr.bf16.mxu0 %v2522
  %4896 = vmatmul.mubr.bf16.gmra.mrb[0].mxu0 %v2521
  %v4897 = vpop.f32.mrb[0].mxu0
  %v4898 = vadd.f32 %v4853, %v4897
  %v4899 = vpop.f32.mrb[0].mxu0
  %v4900 = vpop.f32.mrb[0].mxu0
  %v4901 = vadd.f32 %v4853, %v4900
  %v4902 = vpop.f32.mrb[0].mxu0
  %4903 = vmatprep.mubr.bf16.mxu0 %v2528
  %4904 = vmatmul.mubr.bf16.gmra.mrb[0].mxu0 %v2527
  %v4905 = vpop.f32.mrb[0].mxu0
  %v4906 = vadd.f32 %v4853, %v4905
  %v4907 = vpop.f32.mrb[0].mxu0
  %v4908 = vpop.f32.mrb[0].mxu0
  %v4909 = vadd.f32 %v4853, %v4908
  %v4910 = vpop.f32.mrb[0].mxu0
  %4911 = vmatprep.mubr.bf16.mxu0 %v2534
  %4912 = vmatmul.mubr.bf16.gmra.mrb[0].mxu0 %v2533
  %v4913 = vpop.f32.mrb[0].mxu0
  %v4914 = vadd.f32 %v4853, %v4913
  %v4915 = vpop.f32.mrb[0].mxu0
  %v4916 = vpop.f32.mrb[0].mxu0
  %v4917 = vadd.f32 %v4853, %v4916
  %v4918 = vpop.f32.mrb[0].mxu0
  %4919 = vdwg.mxu0
  %4920 = vmatprep.subr.bf16.mxu0 0
  %4921 = vmatpush1.bf16.msra.mxu0 %v4816
  %4922 = vmatprep.subr.bf16.mxu0 0
  %4923 = vmatpush1.bf16.msra.mxu0 %v4817
  %4924 = vmatprep.subr.bf16.mxu0 0
  %4925 = vmatpush1.bf16.msra.mxu0 %v4818
  %4926 = vmatprep.subr.bf16.mxu0 0
  %4927 = vmatpush1.bf16.msra.mxu0 %v4819
  %4928 = vmatprep.subr.bf16.mxu0 0
  %4929 = vmatpush1.bf16.msra.mxu0 %v4820
  %4930 = vmatprep.subr.bf16.mxu0 0
  %4931 = vmatpush1.bf16.msra.mxu0 %v4821
  %4932 = vmatprep.subr.bf16.mxu0 0
  %4933 = vmatpush1.bf16.msra.mxu0 %v4822
  %4934 = vmatprep.subr.bf16.mxu0 0
  %4935 = vmatpush1.bf16.msra.mxu0 %v4823
  %4936 = vmatprep.subr.bf16.mxu0 0
  %4937 = vmatpush1.bf16.msra.mxu0 %v4824
  %4938 = vmatprep.subr.bf16.mxu0 0
  %4939 = vmatpush1.bf16.msra.mxu0 %v4825
  %4940 = vmatprep.subr.bf16.mxu0 0
  %4941 = vmatpush1.bf16.msra.mxu0 %v4826
  %4942 = vmatprep.subr.bf16.mxu0 0
  %4943 = vmatpush1.bf16.msra.mxu0 %v4827
  %4944 = vmatprep.subr.bf16.mxu0 0
  %4945 = vmatpush1.bf16.msra.mxu0 %v4828
  %4946 = vmatprep.subr.bf16.mxu0 0
  %4947 = vmatpush1.bf16.msra.mxu0 %v4829
  %4948 = vmatprep.subr.bf16.mxu0 0
  %4949 = vmatpush1.bf16.msra.mxu0 %v4830
  %4950 = vmatprep.subr.bf16.mxu0 0
  %4951 = vmatpush1.bf16.msra.mxu0 %v4831
  %4952 = vmatprep.mubr.bf16.mxu0 %v2518
  %4953 = vmatmul.mubr.bf16.gmra.mrb[0].mxu0 %v2517
  %v4954 = vpop.f32.mrb[0].mxu0
  %v4955 = vadd.f32 %v4890, %v4954
  %v4956 = vpop.f32.mrb[0].mxu0
  %v4957 = vpop.f32.mrb[0].mxu0
  %v4958 = vadd.f32 %v4893, %v4957
  %v4959 = vpop.f32.mrb[0].mxu0
  %4960 = vmatprep.mubr.bf16.mxu0 %v2524
  %4961 = vmatmul.mubr.bf16.gmra.mrb[0].mxu0 %v2523
  %v4962 = vpop.f32.mrb[0].mxu0
  %v4963 = vadd.f32 %v4898, %v4962
  %v4964 = vpop.f32.mrb[0].mxu0
  %v4965 = vpop.f32.mrb[0].mxu0
  %v4966 = vadd.f32 %v4901, %v4965
  %v4967 = vpop.f32.mrb[0].mxu0
  %4968 = vmatprep.mubr.bf16.mxu0 %v2530
  %4969 = vmatmul.mubr.bf16.gmra.mrb[0].mxu0 %v2529
  %v4970 = vpop.f32.mrb[0].mxu0
  %v4971 = vadd.f32 %v4906, %v4970
  %v4972 = vpop.f32.mrb[0].mxu0
  %v4973 = vpop.f32.mrb[0].mxu0
  %v4974 = vadd.f32 %v4909, %v4973
  %v4975 = vpop.f32.mrb[0].mxu0
  %4976 = vmatprep.mubr.bf16.mxu0 %v2536
  %4977 = vmatmul.mubr.bf16.gmra.mrb[0].mxu0 %v2535
  %v4978 = vpop.f32.mrb[0].mxu0
  %v4979 = vadd.f32 %v4914, %v4978
  %v4980 = vpop.f32.mrb[0].mxu0
  %v4981 = vpop.f32.mrb[0].mxu0
  %v4982 = vadd.f32 %v4917, %v4981
  %v4983 = vpop.f32.mrb[0].mxu0
  %4984 = vdwg.mxu0
  %4985 = vmatprep.subr.bf16.mxu0 0
  %4986 = vmatpush1.bf16.msra.mxu0 %v4832
  %4987 = vmatprep.subr.bf16.mxu0 0
  %4988 = vmatpush1.bf16.msra.mxu0 %v4833
  %4989 = vmatprep.subr.bf16.mxu0 0
  %4990 = vmatpush1.bf16.msra.mxu0 %v4834
  %4991 = vmatprep.subr.bf16.mxu0 0
  %4992 = vmatpush1.bf16.msra.mxu0 %v4835
  %4993 = vmatprep.subr.bf16.mxu0 0
  %4994 = vmatpush1.bf16.msra.mxu0 %v4836
  %4995 = vmatprep.subr.bf16.mxu0 0
  %4996 = vmatpush1.bf16.msra.mxu0 %v4837
  %4997 = vmatprep.subr.bf16.mxu0 0
  %4998 = vmatpush1.bf16.msra.mxu0 %v4838
  %4999 = vmatprep.subr.bf16.mxu0 0
  %5000 = vmatpush1.bf16.msra.mxu0 %v4839
  %5001 = vmatprep.subr.bf16.mxu0 0
  %5002 = vmatpush1.bf16.msra.mxu0 %v4840
  %5003 = vmatprep.subr.bf16.mxu0 0
  %5004 = vmatpush1.bf16.msra.mxu0 %v4841
  %5005 = vmatprep.subr.bf16.mxu0 0
  %5006 = vmatpush1.bf16.msra.mxu0 %v4842
  %5007 = vmatprep.subr.bf16.mxu0 0
  %5008 = vmatpush1.bf16.msra.mxu0 %v4843
  %5009 = vmatprep.subr.bf16.mxu0 0
  %5010 = vmatpush1.bf16.msra.mxu0 %v4844
  %5011 = vmatprep.subr.bf16.mxu0 0
  %5012 = vmatpush1.bf16.msra.mxu0 %v4845
  %5013 = vmatprep.subr.bf16.mxu0 0
  %5014 = vmatpush1.bf16.msra.mxu0 %v4846
  %5015 = vmatprep.subr.bf16.mxu0 0
  %5016 = vmatpush1.bf16.msra.mxu0 %v4847
  %5017 = vmatprep.mubr.bf16.mxu0 %v2520
  %5018 = vmatmul.mubr.bf16.gmra.mrb[0].mxu0 %v2519
  %v5019 = vpop.f32.mrb[0].mxu0
  %v5020 = vadd.f32 %v4955, %v5019
  %v5021 = vpop.f32.mrb[0].mxu0
  %v5022 = vpop.f32.mrb[0].mxu0
  %v5023 = vadd.f32 %v4958, %v5022
  %v5024 = vpop.f32.mrb[0].mxu0
  %5025 = vmatprep.mubr.bf16.mxu0 %v2526
  %5026 = vmatmul.mubr.bf16.gmra.mrb[0].mxu0 %v2525
  %v5027 = vpop.f32.mrb[0].mxu0
  %v5028 = vadd.f32 %v4963, %v5027
  %v5029 = vpop.f32.mrb[0].mxu0
  %v5030 = vpop.f32.mrb[0].mxu0
  %v5031 = vadd.f32 %v4966, %v5030
  %v5032 = vpop.f32.mrb[0].mxu0
  %5033 = vmatprep.mubr.bf16.mxu0 %v2532
  %5034 = vmatmul.mubr.bf16.gmra.mrb[0].mxu0 %v2531
  %v5035 = vpop.f32.mrb[0].mxu0
  %v5036 = vadd.f32 %v4971, %v5035
  %v5037 = vpop.f32.mrb[0].mxu0
  %v5038 = vpop.f32.mrb[0].mxu0
  %v5039 = vadd.f32 %v4974, %v5038
  %v5040 = vpop.f32.mrb[0].mxu0
  %5041 = vmatprep.mubr.bf16.mxu0 %v2538
  %5042 = vmatmul.mubr.bf16.gmra.mrb[0].mxu0 %v2537
  %v5043 = vpop.f32.mrb[0].mxu0
  %v5044 = vadd.f32 %v4979, %v5043
  %v5045 = vpop.f32.mrb[0].mxu0
  %v5046 = vpop.f32.mrb[0].mxu0
  %v5047 = vadd.f32 %v4982, %v5046
  %v5048 = vpop.f32.mrb[0].mxu0
  %5049 = vdwg.mxu0
  %v5050 = vld [vmem:[#allocation3] sm:$0xff]
  %v5051 = vld [vmem:[#allocation3 + $0x8] sm:$0xff]
  %v5052 = vld [vmem:[#allocation3 + $0x10] sm:$0xff]
  %v5053 = vld [vmem:[#allocation3 + $0x18] sm:$0xff]
  %v5054 = vld [vmem:[#allocation3 + $0x20] sm:$0xff]
  %v5055 = vld [vmem:[#allocation3 + $0x28] sm:$0xff]
  %v5056 = vld [vmem:[#allocation3 + $0x30] sm:$0xff]
  %v5057 = vld [vmem:[#allocation3 + $0x38] sm:$0xff]
  %v5058 = vld [vmem:[#allocation3 + $0x40] sm:$0xff]
  %v5059 = vld [vmem:[#allocation3 + $0x48] sm:$0xff]
  %v5060 = vld [vmem:[#allocation3 + $0x50] sm:$0xff]
  %v5061 = vld [vmem:[#allocation3 + $0x58] sm:$0xff]
  %v5062 = vld [vmem:[#allocation3 + $0x60] sm:$0xff]
  %v5063 = vld [vmem:[#allocation3 + $0x68] sm:$0xff]
  %v5064 = vld [vmem:[#allocation3 + $0x70] sm:$0xff]
  %v5065 = vld [vmem:[#allocation3 + $0x78] sm:$0xff]
  %v5066 = vld [vmem:[#allocation3 + $0x80] sm:$0xff]
  %v5067 = vld [vmem:[#allocation3 + $0x88] sm:$0xff]
  %v5068 = vld [vmem:[#allocation3 + $0x90] sm:$0xff]
  %v5069 = vld [vmem:[#allocation3 + $0x98] sm:$0xff]
  %v5070 = vld [vmem:[#allocation3 + $0xa0] sm:$0xff]
  %v5071 = vld [vmem:[#allocation3 + $0xa8] sm:$0xff]
  %v5072 = vld [vmem:[#allocation3 + $0xb0] sm:$0xff]
  %v5073 = vld [vmem:[#allocation3 + $0xb8] sm:$0xff]
  %v5074 = vld [vmem:[#allocation3 + $0xc0] sm:$0xff]
  %v5075 = vld [vmem:[#allocation3 + $0xc8] sm:$0xff]
  %v5076 = vld [vmem:[#allocation3 + $0xd0] sm:$0xff]
  %v5077 = vld [vmem:[#allocation3 + $0xd8] sm:$0xff]
  %v5078 = vld [vmem:[#allocation3 + $0xe0] sm:$0xff]
  %v5079 = vld [vmem:[#allocation3 + $0xe8] sm:$0xff]
  %v5080 = vld [vmem:[#allocation3 + $0xf0] sm:$0xff]
  %v5081 = vld [vmem:[#allocation3 + $0xf8] sm:$0xff]
  %v5082 = vld [vmem:[#allocation3 + $0x100] sm:$0xff]
  %v5083 = vld [vmem:[#allocation3 + $0x108] sm:$0xff]
  %v5084 = vld [vmem:[#allocation3 + $0x110] sm:$0xff]
  %v5085 = vld [vmem:[#allocation3 + $0x118] sm:$0xff]
  %v5086 = vld [vmem:[#allocation3 + $0x120] sm:$0xff]
  %v5087 = vld [vmem:[#allocation3 + $0x128] sm:$0xff]
  %v5088 = vld [vmem:[#allocation3 + $0x130] sm:$0xff]
  %v5089 = vld [vmem:[#allocation3 + $0x138] sm:$0xff]
  %v5090 = vld [vmem:[#allocation3 + $0x140] sm:$0xff]
  %v5091 = vld [vmem:[#allocation3 + $0x148] sm:$0xff]
  %v5092 = vld [vmem:[#allocation3 + $0x150] sm:$0xff]
  %v5093 = vld [vmem:[#allocation3 + $0x158] sm:$0xff]
  %v5094 = vld [vmem:[#allocation3 + $0x160] sm:$0xff]
  %v5095 = vld [vmem:[#allocation3 + $0x168] sm:$0xff]
  %v5096 = vld [vmem:[#allocation3 + $0x170] sm:$0xff]
  %v5097 = vld [vmem:[#allocation3 + $0x178] sm:$0xff]
  %v5098 = vld [vmem:[#allocation3 + $0x180] sm:$0xff]
  %v5099 = vld [vmem:[#allocation3 + $0x188] sm:$0xff]
  %v5100 = vld [vmem:[#allocation3 + $0x190] sm:$0xff]
  %v5101 = vld [vmem:[#allocation3 + $0x198] sm:$0xff]
  %v5102 = vld [vmem:[#allocation3 + $0x1a0] sm:$0xff]
  %v5103 = vld [vmem:[#allocation3 + $0x1a8] sm:$0xff]
  %v5104 = vld [vmem:[#allocation3 + $0x1b0] sm:$0xff]
  %v5105 = vld [vmem:[#allocation3 + $0x1b8] sm:$0xff]
  %v5106 = vld [vmem:[#allocation3 + $0x1c0] sm:$0xff]
  %v5107 = vld [vmem:[#allocation3 + $0x1c8] sm:$0xff]
  %v5108 = vld [vmem:[#allocation3 + $0x1d0] sm:$0xff]
  %v5109 = vld [vmem:[#allocation3 + $0x1d8] sm:$0xff]
  %v5110 = vld [vmem:[#allocation3 + $0x1e0] sm:$0xff]
  %v5111 = vld [vmem:[#allocation3 + $0x1e8] sm:$0xff]
  %v5112 = vld [vmem:[#allocation3 + $0x1f0] sm:$0xff]
  %v5113 = vld [vmem:[#allocation3 + $0x1f8] sm:$0xff]
  %v5114 = vld [vmem:[#allocation3 + $0x200] sm:$0xff]
  %v5115 = vld [vmem:[#allocation3 + $0x208] sm:$0xff]
  %v5116 = vld [vmem:[#allocation3 + $0x210] sm:$0xff]
  %v5117 = vld [vmem:[#allocation3 + $0x218] sm:$0xff]
  %v5118 = vld [vmem:[#allocation3 + $0x220] sm:$0xff]
  %v5119 = vld [vmem:[#allocation3 + $0x228] sm:$0xff]
  %v5120 = vld [vmem:[#allocation3 + $0x230] sm:$0xff]
  %v5121 = vld [vmem:[#allocation3 + $0x238] sm:$0xff]
  %v5122 = vld [vmem:[#allocation3 + $0x240] sm:$0xff]
  %v5123 = vld [vmem:[#allocation3 + $0x248] sm:$0xff]
  %v5124 = vld [vmem:[#allocation3 + $0x250] sm:$0xff]
  %v5125 = vld [vmem:[#allocation3 + $0x258] sm:$0xff]
  %v5126 = vld [vmem:[#allocation3 + $0x260] sm:$0xff]
  %v5127 = vld [vmem:[#allocation3 + $0x268] sm:$0xff]
  %v5128 = vld [vmem:[#allocation3 + $0x270] sm:$0xff]
  %v5129 = vld [vmem:[#allocation3 + $0x278] sm:$0xff]
  %v5130 = vld [vmem:[#allocation3 + $0x280] sm:$0xff]
  %v5131 = vld [vmem:[#allocation3 + $0x288] sm:$0xff]
  %v5132 = vld [vmem:[#allocation3 + $0x290] sm:$0xff]
  %v5133 = vld [vmem:[#allocation3 + $0x298] sm:$0xff]
  %v5134 = vld [vmem:[#allocation3 + $0x2a0] sm:$0xff]
  %v5135 = vld [vmem:[#allocation3 + $0x2a8] sm:$0xff]
  %v5136 = vld [vmem:[#allocation3 + $0x2b0] sm:$0xff]
  %v5137 = vld [vmem:[#allocation3 + $0x2b8] sm:$0xff]
  %v5138 = vld [vmem:[#allocation3 + $0x2c0] sm:$0xff]
  %v5139 = vld [vmem:[#allocation3 + $0x2c8] sm:$0xff]
  %v5140 = vld [vmem:[#allocation3 + $0x2d0] sm:$0xff]
  %v5141 = vld [vmem:[#allocation3 + $0x2d8] sm:$0xff]
  %v5142 = vld [vmem:[#allocation3 + $0x2e0] sm:$0xff]
  %v5143 = vld [vmem:[#allocation3 + $0x2e8] sm:$0xff]
  %v5144 = vld [vmem:[#allocation3 + $0x2f0] sm:$0xff]
  %v5145 = vld [vmem:[#allocation3 + $0x2f8] sm:$0xff]
  %v5146 = vld [vmem:[%s14] sm:$0x3]
  %v5148 = vlaneseq
  %v5149 = vshrl.u32 %v5148, 7
  %v5150 = vsub.s32 0, %v5149
  %v5151 = vrot.slane %v5146, %v5150
  %v5152 = vlaneseq
  %v5153 = vshrl.u32 %v5152, 7
  %v5154 = vsub.s32 1, %v5153
  %v5155 = vrot.slane %v5146, %v5154
  %5158 = vmatprep.subr.bf16.mxu0 %v5051
  %5159 = vmatpush1.bf16.msra.mxu0 %v5050
  %5160 = vmatprep.subr.bf16.mxu0 %v5053
  %5161 = vmatpush1.bf16.msra.mxu0 %v5052
  %5162 = vmatprep.subr.bf16.mxu0 %v5055
  %5163 = vmatpush1.bf16.msra.mxu0 %v5054
  %5164 = vmatprep.subr.bf16.mxu0 %v5057
  %5165 = vmatpush1.bf16.msra.mxu0 %v5056
  %5166 = vmatprep.subr.bf16.mxu0 %v5059
  %5167 = vmatpush1.bf16.msra.mxu0 %v5058
  %5168 = vmatprep.subr.bf16.mxu0 %v5061
  %5169 = vmatpush1.bf16.msra.mxu0 %v5060
  %5170 = vmatprep.subr.bf16.mxu0 %v5063
  %5171 = vmatpush1.bf16.msra.mxu0 %v5062
  %5172 = vmatprep.subr.bf16.mxu0 %v5065
  %5173 = vmatpush1.bf16.msra.mxu0 %v5064
  %5174 = vmatprep.subr.bf16.mxu0 %v5067
  %5175 = vmatpush1.bf16.msra.mxu0 %v5066
  %5176 = vmatprep.subr.bf16.mxu0 %v5069
  %5177 = vmatpush1.bf16.msra.mxu0 %v5068
  %5178 = vmatprep.subr.bf16.mxu0 %v5071
  %5179 = vmatpush1.bf16.msra.mxu0 %v5070
  %5180 = vmatprep.subr.bf16.mxu0 %v5073
  %5181 = vmatpush1.bf16.msra.mxu0 %v5072
  %5182 = vmatprep.subr.bf16.mxu0 %v5075
  %5183 = vmatpush1.bf16.msra.mxu0 %v5074
  %5184 = vmatprep.subr.bf16.mxu0 %v5077
  %5185 = vmatpush1.bf16.msra.mxu0 %v5076
  %5186 = vmatprep.subr.bf16.mxu0 %v5079
  %5187 = vmatpush1.bf16.msra.mxu0 %v5078
  %5188 = vmatprep.subr.bf16.mxu0 %v5081
  %5189 = vmatpush1.bf16.msra.mxu0 %v5080
  %5190 = vmatprep.mubr.bf16.mxu0 %v1805
  %5191 = vmatmul.mubr.bf16.gmra.mrb[0].mxu0 %v1804
  %v5192 = vpop.f32.mrb[0].mxu0
  %v5193 = vadd.f32 %v5151, %v5192
  %v5194 = vpop.f32.mrb[0].mxu0
  %v5195 = vadd.f32 %v5155, %v5194
  %v5196 = vpop.f32.mrb[0].mxu0
  %v5197 = vadd.f32 %v5151, %v5196
  %v5198 = vpop.f32.mrb[0].mxu0
  %v5199 = vadd.f32 %v5155, %v5198
  %5200 = vmatprep.mubr.bf16.mxu0 %v1811
  %5201 = vmatmul.mubr.bf16.gmra.mrb[0].mxu0 %v1810
  %v5202 = vpop.f32.mrb[0].mxu0
  %v5203 = vadd.f32 %v5151, %v5202
  %v5204 = vpop.f32.mrb[0].mxu0
  %v5205 = vadd.f32 %v5155, %v5204
  %v5206 = vpop.f32.mrb[0].mxu0
  %v5207 = vadd.f32 %v5151, %v5206
  %v5208 = vpop.f32.mrb[0].mxu0
  %v5209 = vadd.f32 %v5155, %v5208
  %5210 = vmatprep.mubr.bf16.mxu0 %v1817
  %5211 = vmatmul.mubr.bf16.gmra.mrb[0].mxu0 %v1816
  %v5212 = vpop.f32.mrb[0].mxu0
  %v5213 = vadd.f32 %v5151, %v5212
  %v5214 = vpop.f32.mrb[0].mxu0
  %v5215 = vadd.f32 %v5155, %v5214
  %v5216 = vpop.f32.mrb[0].mxu0
  %v5217 = vadd.f32 %v5151, %v5216
  %v5218 = vpop.f32.mrb[0].mxu0
  %v5219 = vadd.f32 %v5155, %v5218
  %5220 = vmatprep.mubr.bf16.mxu0 %v1823
  %5221 = vmatmul.mubr.bf16.gmra.mrb[0].mxu0 %v1822
  %v5222 = vpop.f32.mrb[0].mxu0
  %v5223 = vadd.f32 %v5151, %v5222
  %v5224 = vpop.f32.mrb[0].mxu0
  %v5225 = vadd.f32 %v5155, %v5224
  %v5226 = vpop.f32.mrb[0].mxu0
  %v5227 = vadd.f32 %v5151, %v5226
  %v5228 = vpop.f32.mrb[0].mxu0
  %v5229 = vadd.f32 %v5155, %v5228
  %5230 = vdwg.mxu0
  %5231 = vmatprep.subr.bf16.mxu0 %v5083
  %5232 = vmatpush1.bf16.msra.mxu0 %v5082
  %5233 = vmatprep.subr.bf16.mxu0 %v5085
  %5234 = vmatpush1.bf16.msra.mxu0 %v5084
  %5235 = vmatprep.subr.bf16.mxu0 %v5087
  %5236 = vmatpush1.bf16.msra.mxu0 %v5086
  %5237 = vmatprep.subr.bf16.mxu0 %v5089
  %5238 = vmatpush1.bf16.msra.mxu0 %v5088
  %5239 = vmatprep.subr.bf16.mxu0 %v5091
  %5240 = vmatpush1.bf16.msra.mxu0 %v5090
  %5241 = vmatprep.subr.bf16.mxu0 %v5093
  %5242 = vmatpush1.bf16.msra.mxu0 %v5092
  %5243 = vmatprep.subr.bf16.mxu0 %v5095
  %5244 = vmatpush1.bf16.msra.mxu0 %v5094
  %5245 = vmatprep.subr.bf16.mxu0 %v5097
  %5246 = vmatpush1.bf16.msra.mxu0 %v5096
  %5247 = vmatprep.subr.bf16.mxu0 %v5099
  %5248 = vmatpush1.bf16.msra.mxu0 %v5098
  %5249 = vmatprep.subr.bf16.mxu0 %v5101
  %5250 = vmatpush1.bf16.msra.mxu0 %v5100
  %5251 = vmatprep.subr.bf16.mxu0 %v5103
  %5252 = vmatpush1.bf16.msra.mxu0 %v5102
  %5253 = vmatprep.subr.bf16.mxu0 %v5105
  %5254 = vmatpush1.bf16.msra.mxu0 %v5104
  %5255 = vmatprep.subr.bf16.mxu0 %v5107
  %5256 = vmatpush1.bf16.msra.mxu0 %v5106
  %5257 = vmatprep.subr.bf16.mxu0 %v5109
  %5258 = vmatpush1.bf16.msra.mxu0 %v5108
  %5259 = vmatprep.subr.bf16.mxu0 %v5111
  %5260 = vmatpush1.bf16.msra.mxu0 %v5110
  %5261 = vmatprep.subr.bf16.mxu0 %v5113
  %5262 = vmatpush1.bf16.msra.mxu0 %v5112
  %5263 = vmatprep.mubr.bf16.mxu0 %v1807
  %5264 = vmatmul.mubr.bf16.gmra.mrb[0].mxu0 %v1806
  %v5265 = vpop.f32.mrb[0].mxu0
  %v5266 = vadd.f32 %v5193, %v5265
  %v5267 = vpop.f32.mrb[0].mxu0
  %v5268 = vadd.f32 %v5195, %v5267
  %v5269 = vpop.f32.mrb[0].mxu0
  %v5270 = vadd.f32 %v5197, %v5269
  %v5271 = vpop.f32.mrb[0].mxu0
  %v5272 = vadd.f32 %v5199, %v5271
  %5273 = vmatprep.mubr.bf16.mxu0 %v1813
  %5274 = vmatmul.mubr.bf16.gmra.mrb[0].mxu0 %v1812
  %v5275 = vpop.f32.mrb[0].mxu0
  %v5276 = vadd.f32 %v5203, %v5275
  %v5277 = vpop.f32.mrb[0].mxu0
  %v5278 = vadd.f32 %v5205, %v5277
  %v5279 = vpop.f32.mrb[0].mxu0
  %v5280 = vadd.f32 %v5207, %v5279
  %v5281 = vpop.f32.mrb[0].mxu0
  %v5282 = vadd.f32 %v5209, %v5281
  %5283 = vmatprep.mubr.bf16.mxu0 %v1819
  %5284 = vmatmul.mubr.bf16.gmra.mrb[0].mxu0 %v1818
  %v5285 = vpop.f32.mrb[0].mxu0
  %v5286 = vadd.f32 %v5213, %v5285
  %v5287 = vpop.f32.mrb[0].mxu0
  %v5288 = vadd.f32 %v5215, %v5287
  %v5289 = vpop.f32.mrb[0].mxu0
  %v5290 = vadd.f32 %v5217, %v5289
  %v5291 = vpop.f32.mrb[0].mxu0
  %v5292 = vadd.f32 %v5219, %v5291
  %5293 = vmatprep.mubr.bf16.mxu0 %v1825
  %5294 = vmatmul.mubr.bf16.gmra.mrb[0].mxu0 %v1824
  %v5295 = vpop.f32.mrb[0].mxu0
  %v5296 = vadd.f32 %v5223, %v5295
  %v5297 = vpop.f32.mrb[0].mxu0
  %v5298 = vadd.f32 %v5225, %v5297
  %v5299 = vpop.f32.mrb[0].mxu0
  %v5300 = vadd.f32 %v5227, %v5299
  %v5301 = vpop.f32.mrb[0].mxu0
  %v5302 = vadd.f32 %v5229, %v5301
  %5303 = vdwg.mxu0
  %5304 = vmatprep.subr.bf16.mxu0 %v5115
  %5305 = vmatpush1.bf16.msra.mxu0 %v5114
  %5306 = vmatprep.subr.bf16.mxu0 %v5117
  %5307 = vmatpush1.bf16.msra.mxu0 %v5116
  %5308 = vmatprep.subr.bf16.mxu0 %v5119
  %5309 = vmatpush1.bf16.msra.mxu0 %v5118
  %5310 = vmatprep.subr.bf16.mxu0 %v5121
  %5311 = vmatpush1.bf16.msra.mxu0 %v5120
  %5312 = vmatprep.subr.bf16.mxu0 %v5123
  %5313 = vmatpush1.bf16.msra.mxu0 %v5122
  %5314 = vmatprep.subr.bf16.mxu0 %v5125
  %5315 = vmatpush1.bf16.msra.mxu0 %v5124
  %5316 = vmatprep.subr.bf16.mxu0 %v5127
  %5317 = vmatpush1.bf16.msra.mxu0 %v5126
  %5318 = vmatprep.subr.bf16.mxu0 %v5129
  %5319 = vmatpush1.bf16.msra.mxu0 %v5128
  %5320 = vmatprep.subr.bf16.mxu0 %v5131
  %5321 = vmatpush1.bf16.msra.mxu0 %v5130
  %5322 = vmatprep.subr.bf16.mxu0 %v5133
  %5323 = vmatpush1.bf16.msra.mxu0 %v5132
  %5324 = vmatprep.subr.bf16.mxu0 %v5135
  %5325 = vmatpush1.bf16.msra.mxu0 %v5134
  %5326 = vmatprep.subr.bf16.mxu0 %v5137
  %5327 = vmatpush1.bf16.msra.mxu0 %v5136
  %5328 = vmatprep.subr.bf16.mxu0 %v5139
  %5329 = vmatpush1.bf16.msra.mxu0 %v5138
  %5330 = vmatprep.subr.bf16.mxu0 %v5141
  %5331 = vmatpush1.bf16.msra.mxu0 %v5140
  %5332 = vmatprep.subr.bf16.mxu0 %v5143
  %5333 = vmatpush1.bf16.msra.mxu0 %v5142
  %5334 = vmatprep.subr.bf16.mxu0 %v5145
  %5335 = vmatpush1.bf16.msra.mxu0 %v5144
  %5336 = vmatprep.mubr.bf16.mxu0 %v1809
  %5337 = vmatmul.mubr.bf16.gmra.mrb[0].mxu0 %v1808
  %v5338 = vpop.f32.mrb[0].mxu0
  %v5339 = vadd.f32 %v5266, %v5338
  %v5340 = vpop.f32.mrb[0].mxu0
  %v5341 = vadd.f32 %v5268, %v5340
  %v5342 = vpop.f32.mrb[0].mxu0
  %v5343 = vadd.f32 %v5270, %v5342
  %v5344 = vpop.f32.mrb[0].mxu0
  %v5345 = vadd.f32 %v5272, %v5344
  %5346 = vmatprep.mubr.bf16.mxu0 %v1815
  %5347 = vmatmul.mubr.bf16.gmra.mrb[0].mxu0 %v1814
  %v5348 = vpop.f32.mrb[0].mxu0
  %v5349 = vadd.f32 %v5276, %v5348
  %v5350 = vpop.f32.mrb[0].mxu0
  %v5351 = vadd.f32 %v5278, %v5350
  %v5352 = vpop.f32.mrb[0].mxu0
  %v5353 = vadd.f32 %v5280, %v5352
  %v5354 = vpop.f32.mrb[0].mxu0
  %v5355 = vadd.f32 %v5282, %v5354
  %5356 = vmatprep.mubr.bf16.mxu0 %v1821
  %5357 = vmatmul.mubr.bf16.gmra.mrb[0].mxu0 %v1820
  %v5358 = vpop.f32.mrb[0].mxu0
  %v5359 = vadd.f32 %v5286, %v5358
  %v5360 = vpop.f32.mrb[0].mxu0
  %v5361 = vadd.f32 %v5288, %v5360
  %v5362 = vpop.f32.mrb[0].mxu0
  %v5363 = vadd.f32 %v5290, %v5362
  %v5364 = vpop.f32.mrb[0].mxu0
  %v5365 = vadd.f32 %v5292, %v5364
  %5366 = vmatprep.mubr.bf16.mxu0 %v1827
  %5367 = vmatmul.mubr.bf16.gmra.mrb[0].mxu0 %v1826
  %v5368 = vpop.f32.mrb[0].mxu0
  %v5369 = vadd.f32 %v5296, %v5368
  %v5370 = vpop.f32.mrb[0].mxu0
  %v5371 = vadd.f32 %v5298, %v5370
  %v5372 = vpop.f32.mrb[0].mxu0
  %v5373 = vadd.f32 %v5300, %v5372
  %v5374 = vpop.f32.mrb[0].mxu0
  %v5375 = vadd.f32 %v5302, %v5374
  %5376 = vdwg.mxu0
  %v5377 = vpack.c.bf16 %v5023, %v5020
  %v5378 = vpack.c.bf16 %v5031, %v5028
  %v5379 = vpack.c.bf16 %v5039, %v5036
  %v5380 = vpack.c.bf16 %v5047, %v5044
  %v5381 = vpack.c.bf16 %v5343, %v5339
  %v5382 = vpack.c.bf16 %v5353, %v5349
  %v5383 = vpack.c.bf16 %v5363, %v5359
  %v5384 = vpack.c.bf16 %v5373, %v5369
  %v5385 = vpack.c.bf16 %v5345, %v5341
  %v5386 = vpack.c.bf16 %v5355, %v5351
  %v5387 = vpack.c.bf16 %v5365, %v5361
  %v5388 = vpack.c.bf16 %v5375, %v5371
  %v5390 = vsel %vm3274, %v5377, 0
  %v5393 = vsel %vm3274, %v5378, 0
  %v5396 = vsel %vm3274, %v5379, 0
  %v5399 = vsel %vm3274, %v5380, 0
  %v5402 = vsel %vm3274, %v5381, 0
  %v5405 = vsel %vm3274, %v5382, 0
  %v5408 = vsel %vm3274, %v5383, 0
  %v5411 = vsel %vm3274, %v5384, 0
  %5413 = vmatprep.subr.bf16.mxu0 0
  %5414 = vmatpush1.bf16.xpose.msra.mxu0 %v5402
  %5415 = vmatprep.subr.bf16.mxu0 0
  %5416 = vmatpush1.bf16.xpose.msra.mxu0 %v5405
  %5417 = vmatprep.subr.bf16.mxu0 0
  %5418 = vmatpush1.bf16.xpose.msra.mxu0 %v5408
  %5419 = vmatprep.subr.bf16.mxu0 0
  %5420 = vmatpush1.bf16.xpose.msra.mxu0 %v5411
  %5421 = vmatprep.subr.bf16.mxu0 0
  %5422 = vmatpush1.bf16.xpose.msra.mxu0 0
  %5423 = vmatprep.subr.bf16.mxu0 0
  %5424 = vmatpush1.bf16.xpose.msra.mxu0 0
  %5425 = vmatprep.subr.bf16.mxu0 0
  %5426 = vmatpush1.bf16.xpose.msra.mxu0 0
  %5427 = vmatprep.subr.bf16.mxu0 0
  %5428 = vmatpush1.bf16.xpose.msra.mxu0 0
  %5429 = vmatprep.subr.bf16.mxu0 0
  %5430 = vmatpush1.bf16.xpose.msra.mxu0 0
  %5431 = vmatprep.subr.bf16.mxu0 0
  %5432 = vmatpush1.bf16.xpose.msra.mxu0 0
  %5433 = vmatprep.subr.bf16.mxu0 0
  %5434 = vmatpush1.bf16.xpose.msra.mxu0 0
  %5435 = vmatprep.subr.bf16.mxu0 0
  %5436 = vmatpush1.bf16.xpose.msra.mxu0 0
  %5437 = vmatprep.subr.bf16.mxu0 0
  %5438 = vmatpush1.bf16.xpose.msra.mxu0 0
  %5439 = vmatprep.subr.bf16.mxu0 0
  %5440 = vmatpush1.bf16.xpose.msra.mxu0 0
  %5441 = vmatprep.subr.bf16.mxu0 0
  %5442 = vmatpush1.bf16.xpose.msra.mxu0 0
  %5443 = vmatprep.subr.bf16.mxu0 0
  %5444 = vmatpush1.bf16.xpose.msra.mxu0 0
  %5445 = vmatprep.mubr.bf16.mxu0 0
  %5446 = vmatmul.mubr.bf16.gmra.mrb[0].mxu0 %v5390
  %v5447 = vpop.f32.mrb[0].mxu0
  %v5448 = vadd.f32 0.0, %v5447
  %v5449 = vpop.f32.mrb[0].mxu0
  %v5450 = vpop.f32.mrb[0].mxu0
  %v5451 = vadd.f32 0.0, %v5450
  %v5452 = vpop.f32.mrb[0].mxu0
  %5453 = vmatprep.mubr.bf16.mxu0 0
  %5454 = vmatmul.mubr.bf16.gmra.mrb[0].mxu0 %v5393
  %v5455 = vpop.f32.mrb[0].mxu0
  %v5456 = vadd.f32 0.0, %v5455
  %v5457 = vpop.f32.mrb[0].mxu0
  %v5458 = vpop.f32.mrb[0].mxu0
  %v5459 = vadd.f32 0.0, %v5458
  %v5460 = vpop.f32.mrb[0].mxu0
  %5461 = vmatprep.mubr.bf16.mxu0 0
  %5462 = vmatmul.mubr.bf16.gmra.mrb[0].mxu0 %v5396
  %v5463 = vpop.f32.mrb[0].mxu0
  %v5464 = vadd.f32 0.0, %v5463
  %v5465 = vpop.f32.mrb[0].mxu0
  %v5466 = vpop.f32.mrb[0].mxu0
  %v5467 = vadd.f32 0.0, %v5466
  %v5468 = vpop.f32.mrb[0].mxu0
  %5469 = vmatprep.mubr.bf16.mxu0 0
  %5470 = vmatmul.mubr.bf16.gmra.mrb[0].mxu0 %v5399
  %v5471 = vpop.f32.mrb[0].mxu0
  %v5472 = vadd.f32 0.0, %v5471
  %v5473 = vpop.f32.mrb[0].mxu0
  %v5474 = vpop.f32.mrb[0].mxu0
  %v5475 = vadd.f32 0.0, %v5474
  %v5476 = vpop.f32.mrb[0].mxu0
  %5477 = vdwg.mxu0
  %v5478 = vsel %vm1484, 1, 0
  %v5479 = vlaneseq
  %v5480 = vshrl.u32 %v5479, 7
  %v5481 = vsub.s32 0, %v5480
  %v5482 = vrot.slane %v5478, %v5481
  %vm5483 = vcmp.eq.s32.totalorder %v5482, 1
  %v5484 = vsel %vm5483, 1e-09, %v5448
  %v5485 = vsel %vm5483, 1e-09, %v5451
  %v5486 = vsel %vm5483, 1e-09, %v5456
  %v5487 = vsel %vm5483, 1e-09, %v5459
  %v5488 = vsel %vm5483, 1e-09, %v5464
  %v5489 = vsel %vm5483, 1e-09, %v5467
  %v5490 = vsel %vm5483, 1e-09, %v5472
  %v5491 = vsel %vm5483, 1e-09, %v5475
  %v5492 = vadd.f32 %v5484, %v1473
  %v5493 = vadd.f32 %v5485, %v1474
  %v5494 = vadd.f32 %v5486, %v1475
  %v5495 = vadd.f32 %v5487, %v1476
  %v5496 = vadd.f32 %v5488, %v1477
  %v5497 = vadd.f32 %v5489, %v1478
  %v5498 = vadd.f32 %v5490, %v1479
  %v5499 = vadd.f32 %v5491, %v1480
  %v5500 = vsel %vm3274, %v5492, -inf
  %5501 = vmax.xlane.f32.xlu0 %v5500
  %v5502 = vpop.xlane.xlu0 %5501
  %v5503 = vsel %vm3274, %v5493, -inf
  %5504 = vmax.xlane.f32.xlu0 %v5503
  %v5505 = vpop.xlane.xlu0 %5504
  %v5506 = vsel %vm3274, %v5494, -inf
  %5507 = vmax.xlane.f32.xlu0 %v5506
  %v5508 = vpop.xlane.xlu0 %5507
  %v5509 = vsel %vm3274, %v5495, -inf
  %5510 = vmax.xlane.f32.xlu0 %v5509
  %v5511 = vpop.xlane.xlu0 %5510
  %v5512 = vsel %vm3274, %v5496, -inf
  %5513 = vmax.xlane.f32.xlu0 %v5512
  %v5514 = vpop.xlane.xlu0 %5513
  %v5515 = vsel %vm3274, %v5497, -inf
  %5516 = vmax.xlane.f32.xlu0 %v5515
  %v5517 = vpop.xlane.xlu0 %5516
  %v5518 = vsel %vm3274, %v5498, -inf
  %5519 = vmax.xlane.f32.xlu0 %v5518
  %v5520 = vpop.xlane.xlu0 %5519
  %v5521 = vsel %vm3274, %v5499, -inf
  %5522 = vmax.xlane.f32.xlu0 %v5521
  %v5523 = vpop.xlane.xlu0 %5522
  %v5524 = vsub.f32 %v5492, %v5502
  %v5525 = vsub.f32 %v5493, %v5505
  %v5526 = vsub.f32 %v5494, %v5508
  %v5527 = vsub.f32 %v5495, %v5511
  %v5528 = vsub.f32 %v5496, %v5514
  %v5529 = vsub.f32 %v5497, %v5517
  %v5530 = vsub.f32 %v5498, %v5520
  %v5531 = vsub.f32 %v5499, %v5523
  %v5532 = vmul.f32 %v5524, 1.442695
  %v5533 = vpow.pop %v5532
  %v5534 = vmul.f32 %v5525, 1.442695
  %v5535 = vpow.pop %v5534
  %v5536 = vmul.f32 %v5526, 1.442695
  %v5537 = vpow.pop %v5536
  %v5538 = vmul.f32 %v5527, 1.442695
  %v5539 = vpow.pop %v5538
  %v5540 = vmul.f32 %v5528, 1.442695
  %v5541 = vpow.pop %v5540
  %v5542 = vmul.f32 %v5529, 1.442695
  %v5543 = vpow.pop %v5542
  %v5544 = vmul.f32 %v5530, 1.442695
  %v5545 = vpow.pop %v5544
  %v5546 = vmul.f32 %v5531, 1.442695
  %v5547 = vpow.pop %v5546
  %v5548 = vsel %vm3274, %v5533, 0.0
  %5549 = vadd.xlane.f32.xlu0 %v5548
  %v5550 = vpop.xlane.xlu0 %5549
  %v5551 = vsel %vm3274, %v5535, 0.0
  %5552 = vadd.xlane.f32.xlu0 %v5551
  %v5553 = vpop.xlane.xlu0 %5552
  %v5554 = vsel %vm3274, %v5537, 0.0
  %5555 = vadd.xlane.f32.xlu0 %v5554
  %v5556 = vpop.xlane.xlu0 %5555
  %v5557 = vsel %vm3274, %v5539, 0.0
  %5558 = vadd.xlane.f32.xlu0 %v5557
  %v5559 = vpop.xlane.xlu0 %5558
  %v5560 = vsel %vm3274, %v5541, 0.0
  %5561 = vadd.xlane.f32.xlu0 %v5560
  %v5562 = vpop.xlane.xlu0 %5561
  %v5563 = vsel %vm3274, %v5543, 0.0
  %5564 = vadd.xlane.f32.xlu0 %v5563
  %v5565 = vpop.xlane.xlu0 %5564
  %v5566 = vsel %vm3274, %v5545, 0.0
  %5567 = vadd.xlane.f32.xlu0 %v5566
  %v5568 = vpop.xlane.xlu0 %5567
  %v5569 = vsel %vm3274, %v5547, 0.0
  %5570 = vadd.xlane.f32.xlu0 %v5569
  %v5571 = vpop.xlane.xlu0 %5570
  %v5572 = vrcp.pop %v5550
  %v5573 = vrcp.pop %v5553
  %v5574 = vrcp.pop %v5556
  %v5575 = vrcp.pop %v5559
  %v5576 = vrcp.pop %v5562
  %v5577 = vrcp.pop %v5565
  %v5578 = vrcp.pop %v5568
  %v5579 = vrcp.pop %v5571
  %v5580 = vmul.f32 %v5533, %v5572
  %v5581 = vmul.f32 %v5535, %v5573
  %v5582 = vmul.f32 %v5537, %v5574
  %v5583 = vmul.f32 %v5539, %v5575
  %v5584 = vmul.f32 %v5541, %v5576
  %v5585 = vmul.f32 %v5543, %v5577
  %v5586 = vmul.f32 %v5545, %v5578
  %v5587 = vmul.f32 %v5547, %v5579
  %v5588 = vpack.c.bf16 %v5581, %v5580
  %v5589 = vpack.c.bf16 %v5583, %v5582
  %v5590 = vpack.c.bf16 %v5585, %v5584
  %v5591 = vpack.c.bf16 %v5587, %v5586
  %v5593 = vsel %vm3274, %v5588, 0
  %v5596 = vsel %vm3274, %v5589, 0
  %v5599 = vsel %vm3274, %v5590, 0
  %v5602 = vsel %vm3274, %v5591, 0
  %5604 = vmatprep.subr.bf16.mxu0 0
  %5605 = vmatpush1.bf16.msra.mxu0 %v5385
  %5606 = vmatprep.subr.bf16.mxu0 0
  %5607 = vmatpush1.bf16.msra.mxu0 %v5386
  %5608 = vmatprep.subr.bf16.mxu0 0
  %5609 = vmatpush1.bf16.msra.mxu0 %v5387
  %5610 = vmatprep.subr.bf16.mxu0 0
  %5611 = vmatpush1.bf16.msra.mxu0 %v5388
  %5612 = vmatprep.subr.bf16.mxu0 0
  %5613 = vmatpush1.bf16.msra.mxu0 0
  %5614 = vmatprep.subr.bf16.mxu0 0
  %5615 = vmatpush1.bf16.msra.mxu0 0
  %5616 = vmatprep.subr.bf16.mxu0 0
  %5617 = vmatpush1.bf16.msra.mxu0 0
  %5618 = vmatprep.subr.bf16.mxu0 0
  %5619 = vmatpush1.bf16.msra.mxu0 0
  %5620 = vmatprep.subr.bf16.mxu0 0
  %5621 = vmatpush1.bf16.msra.mxu0 0
  %5622 = vmatprep.subr.bf16.mxu0 0
  %5623 = vmatpush1.bf16.msra.mxu0 0
  %5624 = vmatprep.subr.bf16.mxu0 0
  %5625 = vmatpush1.bf16.msra.mxu0 0
  %5626 = vmatprep.subr.bf16.mxu0 0
  %5627 = vmatpush1.bf16.msra.mxu0 0
  %5628 = vmatprep.subr.bf16.mxu0 0
  %5629 = vmatpush1.bf16.msra.mxu0 0
  %5630 = vmatprep.subr.bf16.mxu0 0
  %5631 = vmatpush1.bf16.msra.mxu0 0
  %5632 = vmatprep.subr.bf16.mxu0 0
  %5633 = vmatpush1.bf16.msra.mxu0 0
  %5634 = vmatprep.subr.bf16.mxu0 0
  %5635 = vmatpush1.bf16.msra.mxu0 0
  %5636 = vmatprep.mubr.bf16.mxu0 0
  %5637 = vmatmul.mubr.bf16.gmra.mrb[0].mxu0 %v5593
  %v5638 = vpop.f32.mrb[0].mxu0
  %v5639 = vadd.f32 0.0, %v5638
  %v5640 = vpop.f32.mrb[0].mxu0
  %v5641 = vpop.f32.mrb[0].mxu0
  %v5642 = vadd.f32 0.0, %v5641
  %v5643 = vpop.f32.mrb[0].mxu0
  %5644 = vmatprep.mubr.bf16.mxu0 0
  %5645 = vmatmul.mubr.bf16.gmra.mrb[0].mxu0 %v5596
  %v5646 = vpop.f32.mrb[0].mxu0
  %v5647 = vadd.f32 0.0, %v5646
  %v5648 = vpop.f32.mrb[0].mxu0
  %v5649 = vpop.f32.mrb[0].mxu0
  %v5650 = vadd.f32 0.0, %v5649
  %v5651 = vpop.f32.mrb[0].mxu0
  %5652 = vmatprep.mubr.bf16.mxu0 0
  %5653 = vmatmul.mubr.bf16.gmra.mrb[0].mxu0 %v5599
  %v5654 = vpop.f32.mrb[0].mxu0
  %v5655 = vadd.f32 0.0, %v5654
  %v5656 = vpop.f32.mrb[0].mxu0
  %v5657 = vpop.f32.mrb[0].mxu0
  %v5658 = vadd.f32 0.0, %v5657
  %v5659 = vpop.f32.mrb[0].mxu0
  %5660 = vmatprep.mubr.bf16.mxu0 0
  %5661 = vmatmul.mubr.bf16.gmra.mrb[0].mxu0 %v5602
  %v5662 = vpop.f32.mrb[0].mxu0
  %v5663 = vadd.f32 0.0, %v5662
  %v5664 = vpop.f32.mrb[0].mxu0
  %v5665 = vpop.f32.mrb[0].mxu0
  %v5666 = vadd.f32 0.0, %v5665
  %v5667 = vpop.f32.mrb[0].mxu0
  %5668 = vdwg.mxu0
  %5673 = vrot.lane.b32.xlu0 %v5377, 64
  %v5674 = vpop.permute.xlu0 %5673
  %5675 = vrot.lane.b32.xlu0 %v5378, 64
  %v5676 = vpop.permute.xlu0 %5675
  %5677 = vrot.lane.b32.xlu0 %v5379, 64
  %v5678 = vpop.permute.xlu0 %5677
  %5679 = vrot.lane.b32.xlu0 %v5380, 64
  %v5680 = vpop.permute.xlu0 %5679
  %5685 = vrot.lane.b32.xlu0 %v5381, 64
  %v5686 = vpop.permute.xlu0 %5685
  %5687 = vrot.lane.b32.xlu0 %v5382, 64
  %v5688 = vpop.permute.xlu0 %5687
  %5689 = vrot.lane.b32.xlu0 %v5383, 64
  %v5690 = vpop.permute.xlu0 %5689
  %5691 = vrot.lane.b32.xlu0 %v5384, 64
  %v5692 = vpop.permute.xlu0 %5691
  %v5694 = vsel %vm3274, %v5674, 0
  %v5697 = vsel %vm3274, %v5676, 0
  %v5700 = vsel %vm3274, %v5678, 0
  %v5703 = vsel %vm3274, %v5680, 0
  %v5706 = vsel %vm3274, %v5686, 0
  %v5709 = vsel %vm3274, %v5688, 0
  %v5712 = vsel %vm3274, %v5690, 0
  %v5715 = vsel %vm3274, %v5692, 0
  %5717 = vmatprep.subr.bf16.mxu0 0
  %5718 = vmatpush1.bf16.xpose.msra.mxu0 %v5706
  %5719 = vmatprep.subr.bf16.mxu0 0
  %5720 = vmatpush1.bf16.xpose.msra.mxu0 %v5709
  %5721 = vmatprep.subr.bf16.mxu0 0
  %5722 = vmatpush1.bf16.xpose.msra.mxu0 %v5712
  %5723 = vmatprep.subr.bf16.mxu0 0
  %5724 = vmatpush1.bf16.xpose.msra.mxu0 %v5715
  %5725 = vmatprep.subr.bf16.mxu0 0
  %5726 = vmatpush1.bf16.xpose.msra.mxu0 0
  %5727 = vmatprep.subr.bf16.mxu0 0
  %5728 = vmatpush1.bf16.xpose.msra.mxu0 0
  %5729 = vmatprep.subr.bf16.mxu0 0
  %5730 = vmatpush1.bf16.xpose.msra.mxu0 0
  %5731 = vmatprep.subr.bf16.mxu0 0
  %5732 = vmatpush1.bf16.xpose.msra.mxu0 0
  %5733 = vmatprep.subr.bf16.mxu0 0
  %5734 = vmatpush1.bf16.xpose.msra.mxu0 0
  %5735 = vmatprep.subr.bf16.mxu0 0
  %5736 = vmatpush1.bf16.xpose.msra.mxu0 0
  %5737 = vmatprep.subr.bf16.mxu0 0
  %5738 = vmatpush1.bf16.xpose.msra.mxu0 0
  %5739 = vmatprep.subr.bf16.mxu0 0
  %5740 = vmatpush1.bf16.xpose.msra.mxu0 0
  %5741 = vmatprep.subr.bf16.mxu0 0
  %5742 = vmatpush1.bf16.xpose.msra.mxu0 0
  %5743 = vmatprep.subr.bf16.mxu0 0
  %5744 = vmatpush1.bf16.xpose.msra.mxu0 0
  %5745 = vmatprep.subr.bf16.mxu0 0
  %5746 = vmatpush1.bf16.xpose.msra.mxu0 0
  %5747 = vmatprep.subr.bf16.mxu0 0
  %5748 = vmatpush1.bf16.xpose.msra.mxu0 0
  %5749 = vmatprep.mubr.bf16.mxu0 0
  %5750 = vmatmul.mubr.bf16.gmra.mrb[0].mxu0 %v5694
  %v5751 = vpop.f32.mrb[0].mxu0
  %v5752 = vadd.f32 0.0, %v5751
  %v5753 = vpop.f32.mrb[0].mxu0
  %v5754 = vpop.f32.mrb[0].mxu0
  %v5755 = vadd.f32 0.0, %v5754
  %v5756 = vpop.f32.mrb[0].mxu0
  %5757 = vmatprep.mubr.bf16.mxu0 0
  %5758 = vmatmul.mubr.bf16.gmra.mrb[0].mxu0 %v5697
  %v5759 = vpop.f32.mrb[0].mxu0
  %v5760 = vadd.f32 0.0, %v5759
  %v5761 = vpop.f32.mrb[0].mxu0
  %v5762 = vpop.f32.mrb[0].mxu0
  %v5763 = vadd.f32 0.0, %v5762
  %v5764 = vpop.f32.mrb[0].mxu0
  %5765 = vmatprep.mubr.bf16.mxu0 0
  %5766 = vmatmul.mubr.bf16.gmra.mrb[0].mxu0 %v5700
  %v5767 = vpop.f32.mrb[0].mxu0
  %v5768 = vadd.f32 0.0, %v5767
  %v5769 = vpop.f32.mrb[0].mxu0
  %v5770 = vpop.f32.mrb[0].mxu0
  %v5771 = vadd.f32 0.0, %v5770
  %v5772 = vpop.f32.mrb[0].mxu0
  %5773 = vmatprep.mubr.bf16.mxu0 0
  %5774 = vmatmul.mubr.bf16.gmra.mrb[0].mxu0 %v5703
  %v5775 = vpop.f32.mrb[0].mxu0
  %v5776 = vadd.f32 0.0, %v5775
  %v5777 = vpop.f32.mrb[0].mxu0
  %v5778 = vpop.f32.mrb[0].mxu0
  %v5779 = vadd.f32 0.0, %v5778
  %v5780 = vpop.f32.mrb[0].mxu0
  %5781 = vdwg.mxu0
  %v5782 = vsel %vm5483, 1e-09, %v5752
  %v5783 = vsel %vm5483, 1e-09, %v5755
  %v5784 = vsel %vm5483, 1e-09, %v5760
  %v5785 = vsel %vm5483, 1e-09, %v5763
  %v5786 = vsel %vm5483, 1e-09, %v5768
  %v5787 = vsel %vm5483, 1e-09, %v5771
  %v5788 = vsel %vm5483, 1e-09, %v5776
  %v5789 = vsel %vm5483, 1e-09, %v5779
  %v5790 = vadd.f32 %v5782, %v1473
  %v5791 = vadd.f32 %v5783, %v1474
  %v5792 = vadd.f32 %v5784, %v1475
  %v5793 = vadd.f32 %v5785, %v1476
  %v5794 = vadd.f32 %v5786, %v1477
  %v5795 = vadd.f32 %v5787, %v1478
  %v5796 = vadd.f32 %v5788, %v1479
  %v5797 = vadd.f32 %v5789, %v1480
  %v5798 = vsel %vm3274, %v5790, -inf
  %5799 = vmax.xlane.f32.xlu0 %v5798
  %v5800 = vpop.xlane.xlu0 %5799
  %v5801 = vsel %vm3274, %v5791, -inf
  %5802 = vmax.xlane.f32.xlu0 %v5801
  %v5803 = vpop.xlane.xlu0 %5802
  %v5804 = vsel %vm3274, %v5792, -inf
  %5805 = vmax.xlane.f32.xlu0 %v5804
  %v5806 = vpop.xlane.xlu0 %5805
  %v5807 = vsel %vm3274, %v5793, -inf
  %5808 = vmax.xlane.f32.xlu0 %v5807
  %v5809 = vpop.xlane.xlu0 %5808
  %v5810 = vsel %vm3274, %v5794, -inf
  %5811 = vmax.xlane.f32.xlu0 %v5810
  %v5812 = vpop.xlane.xlu0 %5811
  %v5813 = vsel %vm3274, %v5795, -inf
  %5814 = vmax.xlane.f32.xlu0 %v5813
  %v5815 = vpop.xlane.xlu0 %5814
  %v5816 = vsel %vm3274, %v5796, -inf
  %5817 = vmax.xlane.f32.xlu0 %v5816
  %v5818 = vpop.xlane.xlu0 %5817
  %v5819 = vsel %vm3274, %v5797, -inf
  %5820 = vmax.xlane.f32.xlu0 %v5819
  %v5821 = vpop.xlane.xlu0 %5820
  %v5822 = vsub.f32 %v5790, %v5800
  %v5823 = vsub.f32 %v5791, %v5803
  %v5824 = vsub.f32 %v5792, %v5806
  %v5825 = vsub.f32 %v5793, %v5809
  %v5826 = vsub.f32 %v5794, %v5812
  %v5827 = vsub.f32 %v5795, %v5815
  %v5828 = vsub.f32 %v5796, %v5818
  %v5829 = vsub.f32 %v5797, %v5821
  %v5830 = vmul.f32 %v5822, 1.442695
  %v5831 = vpow.pop %v5830
  %v5832 = vmul.f32 %v5823, 1.442695
  %v5833 = vpow.pop %v5832
  %v5834 = vmul.f32 %v5824, 1.442695
  %v5835 = vpow.pop %v5834
  %v5836 = vmul.f32 %v5825, 1.442695
  %v5837 = vpow.pop %v5836
  %v5838 = vmul.f32 %v5826, 1.442695
  %v5839 = vpow.pop %v5838
  %v5840 = vmul.f32 %v5827, 1.442695
  %v5841 = vpow.pop %v5840
  %v5842 = vmul.f32 %v5828, 1.442695
  %v5843 = vpow.pop %v5842
  %v5844 = vmul.f32 %v5829, 1.442695
  %v5845 = vpow.pop %v5844
  %v5846 = vsel %vm3274, %v5831, 0.0
  %5847 = vadd.xlane.f32.xlu0 %v5846
  %v5848 = vpop.xlane.xlu0 %5847
  %v5849 = vsel %vm3274, %v5833, 0.0
  %5850 = vadd.xlane.f32.xlu0 %v5849
  %v5851 = vpop.xlane.xlu0 %5850
  %v5852 = vsel %vm3274, %v5835, 0.0
  %5853 = vadd.xlane.f32.xlu0 %v5852
  %v5854 = vpop.xlane.xlu0 %5853
  %v5855 = vsel %vm3274, %v5837, 0.0
  %5856 = vadd.xlane.f32.xlu0 %v5855
  %v5857 = vpop.xlane.xlu0 %5856
  %v5858 = vsel %vm3274, %v5839, 0.0
  %5859 = vadd.xlane.f32.xlu0 %v5858
  %v5860 = vpop.xlane.xlu0 %5859
  %v5861 = vsel %vm3274, %v5841, 0.0
  %5862 = vadd.xlane.f32.xlu0 %v5861
  %v5863 = vpop.xlane.xlu0 %5862
  %v5864 = vsel %vm3274, %v5843, 0.0
  %5865 = vadd.xlane.f32.xlu0 %v5864
  %v5866 = vpop.xlane.xlu0 %5865
  %v5867 = vsel %vm3274, %v5845, 0.0
  %5868 = vadd.xlane.f32.xlu0 %v5867
  %v5869 = vpop.xlane.xlu0 %5868
  %v5870 = vrcp.pop %v5848
  %v5871 = vrcp.pop %v5851
  %v5872 = vrcp.pop %v5854
  %v5873 = vrcp.pop %v5857
  %v5874 = vrcp.pop %v5860
  %v5875 = vrcp.pop %v5863
  %v5876 = vrcp.pop %v5866
  %v5877 = vrcp.pop %v5869
  %v5878 = vmul.f32 %v5831, %v5870
  %v5879 = vmul.f32 %v5833, %v5871
  %v5880 = vmul.f32 %v5835, %v5872
  %v5881 = vmul.f32 %v5837, %v5873
  %v5882 = vmul.f32 %v5839, %v5874
  %v5883 = vmul.f32 %v5841, %v5875
  %v5884 = vmul.f32 %v5843, %v5876
  %v5885 = vmul.f32 %v5845, %v5877
  %v5886 = vpack.c.bf16 %v5879, %v5878
  %v5887 = vpack.c.bf16 %v5881, %v5880
  %v5888 = vpack.c.bf16 %v5883, %v5882
  %v5889 = vpack.c.bf16 %v5885, %v5884
  %5894 = vrot.lane.b32.xlu0 %v5385, 64
  %v5895 = vpop.permute.xlu0 %5894
  %5896 = vrot.lane.b32.xlu0 %v5386, 64
  %v5897 = vpop.permute.xlu0 %5896
  %5898 = vrot.lane.b32.xlu0 %v5387, 64
  %v5899 = vpop.permute.xlu0 %5898
  %5900 = vrot.lane.b32.xlu0 %v5388, 64
  %v5901 = vpop.permute.xlu0 %5900
  %v5907 = vsel %vm3274, %v5886, 0
  %v5910 = vsel %vm3274, %v5887, 0
  %v5913 = vsel %vm3274, %v5888, 0
  %v5916 = vsel %vm3274, %v5889, 0
  %5918 = vmatprep.subr.bf16.mxu0 0
  %5919 = vmatpush1.bf16.msra.mxu0 %v5895
  %5920 = vmatprep.subr.bf16.mxu0 0
  %5921 = vmatpush1.bf16.msra.mxu0 %v5897
  %5922 = vmatprep.subr.bf16.mxu0 0
  %5923 = vmatpush1.bf16.msra.mxu0 %v5899
  %5924 = vmatprep.subr.bf16.mxu0 0
  %5925 = vmatpush1.bf16.msra.mxu0 %v5901
  %5926 = vmatprep.subr.bf16.mxu0 0
  %5927 = vmatpush1.bf16.msra.mxu0 0
  %5928 = vmatprep.subr.bf16.mxu0 0
  %5929 = vmatpush1.bf16.msra.mxu0 0
  %5930 = vmatprep.subr.bf16.mxu0 0
  %5931 = vmatpush1.bf16.msra.mxu0 0
  %5932 = vmatprep.subr.bf16.mxu0 0
  %5933 = vmatpush1.bf16.msra.mxu0 0
  %5934 = vmatprep.subr.bf16.mxu0 0
  %5935 = vmatpush1.bf16.msra.mxu0 0
  %5936 = vmatprep.subr.bf16.mxu0 0
  %5937 = vmatpush1.bf16.msra.mxu0 0
  %5938 = vmatprep.subr.bf16.mxu0 0
  %5939 = vmatpush1.bf16.msra.mxu0 0
  %5940 = vmatprep.subr.bf16.mxu0 0
  %5941 = vmatpush1.bf16.msra.mxu0 0
  %5942 = vmatprep.subr.bf16.mxu0 0
  %5943 = vmatpush1.bf16.msra.mxu0 0
  %5944 = vmatprep.subr.bf16.mxu0 0
  %5945 = vmatpush1.bf16.msra.mxu0 0
  %5946 = vmatprep.subr.bf16.mxu0 0
  %5947 = vmatpush1.bf16.msra.mxu0 0
  %5948 = vmatprep.subr.bf16.mxu0 0
  %5949 = vmatpush1.bf16.msra.mxu0 0
  %5950 = vmatprep.mubr.bf16.mxu0 0
  %5951 = vmatmul.mubr.bf16.gmra.mrb[0].mxu0 %v5907
  %v5952 = vpop.f32.mrb[0].mxu0
  %v5953 = vadd.f32 0.0, %v5952
  %v5954 = vpop.f32.mrb[0].mxu0
  %v5955 = vpop.f32.mrb[0].mxu0
  %v5956 = vadd.f32 0.0, %v5955
  %v5957 = vpop.f32.mrb[0].mxu0
  %5958 = vmatprep.mubr.bf16.mxu0 0
  %5959 = vmatmul.mubr.bf16.gmra.mrb[0].mxu0 %v5910
  %v5960 = vpop.f32.mrb[0].mxu0
  %v5961 = vadd.f32 0.0, %v5960
  %v5962 = vpop.f32.mrb[0].mxu0
  %v5963 = vpop.f32.mrb[0].mxu0
  %v5964 = vadd.f32 0.0, %v5963
  %v5965 = vpop.f32.mrb[0].mxu0
  %5966 = vmatprep.mubr.bf16.mxu0 0
  %5967 = vmatmul.mubr.bf16.gmra.mrb[0].mxu0 %v5913
  %v5968 = vpop.f32.mrb[0].mxu0
  %v5969 = vadd.f32 0.0, %v5968
  %v5970 = vpop.f32.mrb[0].mxu0
  %v5971 = vpop.f32.mrb[0].mxu0
  %v5972 = vadd.f32 0.0, %v5971
  %v5973 = vpop.f32.mrb[0].mxu0
  %5974 = vmatprep.mubr.bf16.mxu0 0
  %5975 = vmatmul.mubr.bf16.gmra.mrb[0].mxu0 %v5916
  %v5976 = vpop.f32.mrb[0].mxu0
  %v5977 = vadd.f32 0.0, %v5976
  %v5978 = vpop.f32.mrb[0].mxu0
  %v5979 = vpop.f32.mrb[0].mxu0
  %v5980 = vadd.f32 0.0, %v5979
  %v5981 = vpop.f32.mrb[0].mxu0
  %5982 = vdwg.mxu0
  %5991 = vrot.lane.b32.xlu0 %v5953, 64
  %v5992 = vpop.permute.xlu0 %5991
  %5993 = vrot.lane.b32.xlu0 %v5956, 64
  %v5994 = vpop.permute.xlu0 %5993
  %5995 = vrot.lane.b32.xlu0 %v5961, 64
  %v5996 = vpop.permute.xlu0 %5995
  %5997 = vrot.lane.b32.xlu0 %v5964, 64
  %v5998 = vpop.permute.xlu0 %5997
  %5999 = vrot.lane.b32.xlu0 %v5969, 64
  %v6000 = vpop.permute.xlu0 %5999
  %6001 = vrot.lane.b32.xlu0 %v5972, 64
  %v6002 = vpop.permute.xlu0 %6001
  %6003 = vrot.lane.b32.xlu0 %v5977, 64
  %v6004 = vpop.permute.xlu0 %6003
  %6005 = vrot.lane.b32.xlu0 %v5980, 64
  %v6006 = vpop.permute.xlu0 %6005
  %v6015 = vsel %vm3274, %v5639, %v5992
  %v6016 = vsel %vm3274, %v5642, %v5994
  %v6017 = vsel %vm3274, %v5647, %v5996
  %v6018 = vsel %vm3274, %v5650, %v5998
  %v6019 = vsel %vm3274, %v5655, %v6000
  %v6020 = vsel %vm3274, %v5658, %v6002
  %v6021 = vsel %vm3274, %v5663, %v6004
  %v6022 = vsel %vm3274, %v5666, %v6006
  %v6023 = vpack.c.bf16 %v6016, %v6015
  %v6024 = vpack.c.bf16 %v6018, %v6017
  %v6025 = vpack.c.bf16 %v6020, %v6019
  %v6026 = vpack.c.bf16 %v6022, %v6021
  %v6027 = vld [vmem:[#allocation4] sm:$0xff]
  %v6028 = vld [vmem:[#allocation4 + $0x8] sm:$0xff]
  %v6029 = vld [vmem:[#allocation4 + $0x10] sm:$0xff]
  %v6030 = vld [vmem:[#allocation4 + $0x18] sm:$0xff]
  %v6031 = vld [vmem:[#allocation4 + $0x20] sm:$0xff]
  %v6032 = vld [vmem:[#allocation4 + $0x28] sm:$0xff]
  %v6033 = vld [vmem:[#allocation4 + $0x30] sm:$0xff]
  %v6034 = vld [vmem:[#allocation4 + $0x38] sm:$0xff]
  %v6035 = vld [vmem:[#allocation4 + $0x40] sm:$0xff]
  %v6036 = vld [vmem:[#allocation4 + $0x48] sm:$0xff]
  %v6037 = vld [vmem:[#allocation4 + $0x50] sm:$0xff]
  %v6038 = vld [vmem:[#allocation4 + $0x58] sm:$0xff]
  %v6039 = vld [vmem:[#allocation4 + $0x60] sm:$0xff]
  %v6040 = vld [vmem:[#allocation4 + $0x68] sm:$0xff]
  %v6041 = vld [vmem:[#allocation4 + $0x70] sm:$0xff]
  %v6042 = vld [vmem:[#allocation4 + $0x78] sm:$0xff]
  %v6043 = vld [vmem:[#allocation4 + $0x80] sm:$0xff]
  %v6044 = vld [vmem:[#allocation4 + $0x88] sm:$0xff]
  %v6045 = vld [vmem:[#allocation4 + $0x90] sm:$0xff]
  %v6046 = vld [vmem:[#allocation4 + $0x98] sm:$0xff]
  %v6047 = vld [vmem:[#allocation4 + $0xa0] sm:$0xff]
  %v6048 = vld [vmem:[#allocation4 + $0xa8] sm:$0xff]
  %v6049 = vld [vmem:[#allocation4 + $0xb0] sm:$0xff]
  %v6050 = vld [vmem:[#allocation4 + $0xb8] sm:$0xff]
  %v6051 = vld [vmem:[#allocation4 + $0xc0] sm:$0xff]
  %v6052 = vld [vmem:[#allocation4 + $0xc8] sm:$0xff]
  %v6053 = vld [vmem:[#allocation4 + $0xd0] sm:$0xff]
  %v6054 = vld [vmem:[#allocation4 + $0xd8] sm:$0xff]
  %v6055 = vld [vmem:[#allocation4 + $0xe0] sm:$0xff]
  %v6056 = vld [vmem:[#allocation4 + $0xe8] sm:$0xff]
  %v6057 = vld [vmem:[#allocation4 + $0xf0] sm:$0xff]
  %v6058 = vld [vmem:[#allocation4 + $0xf8] sm:$0xff]
  %v6059 = vld [vmem:[#allocation4 + $0x100] sm:$0xff]
  %v6060 = vld [vmem:[#allocation4 + $0x108] sm:$0xff]
  %v6061 = vld [vmem:[#allocation4 + $0x110] sm:$0xff]
  %v6062 = vld [vmem:[#allocation4 + $0x118] sm:$0xff]
  %v6063 = vld [vmem:[#allocation4 + $0x120] sm:$0xff]
  %v6064 = vld [vmem:[#allocation4 + $0x128] sm:$0xff]
  %v6065 = vld [vmem:[#allocation4 + $0x130] sm:$0xff]
  %v6066 = vld [vmem:[#allocation4 + $0x138] sm:$0xff]
  %v6067 = vld [vmem:[#allocation4 + $0x140] sm:$0xff]
  %v6068 = vld [vmem:[#allocation4 + $0x148] sm:$0xff]
  %v6069 = vld [vmem:[#allocation4 + $0x150] sm:$0xff]
  %v6070 = vld [vmem:[#allocation4 + $0x158] sm:$0xff]
  %v6071 = vld [vmem:[#allocation4 + $0x160] sm:$0xff]
  %v6072 = vld [vmem:[#allocation4 + $0x168] sm:$0xff]
  %v6073 = vld [vmem:[#allocation4 + $0x170] sm:$0xff]
  %v6074 = vld [vmem:[#allocation4 + $0x178] sm:$0xff]
  %v6075 = vld [vmem:[%s15] sm:$0x3f]
  %v6077 = vlaneseq
  %v6078 = vshrl.u32 %v6077, 7
  %v6079 = vsub.s32 0, %v6078
  %v6080 = vrot.slane %v6075, %v6079
  %v6081 = vlaneseq
  %v6082 = vshrl.u32 %v6081, 7
  %v6083 = vsub.s32 1, %v6082
  %v6084 = vrot.slane %v6075, %v6083
  %v6085 = vlaneseq
  %v6086 = vshrl.u32 %v6085, 7
  %v6087 = vsub.s32 2, %v6086
  %v6088 = vrot.slane %v6075, %v6087
  %v6089 = vlaneseq
  %v6090 = vshrl.u32 %v6089, 7
  %v6091 = vsub.s32 3, %v6090
  %v6092 = vrot.slane %v6075, %v6091
  %v6093 = vlaneseq
  %v6094 = vshrl.u32 %v6093, 7
  %v6095 = vsub.s32 4, %v6094
  %v6096 = vrot.slane %v6075, %v6095
  %v6097 = vlaneseq
  %v6098 = vshrl.u32 %v6097, 7
  %v6099 = vsub.s32 5, %v6098
  %v6100 = vrot.slane %v6075, %v6099
  %6107 = vmatprep.subr.bf16.mxu0 %v6028
  %6108 = vmatpush1.bf16.msra.mxu0 %v6027
  %6109 = vmatprep.subr.bf16.mxu0 %v6034
  %6110 = vmatpush1.bf16.msra.mxu0 %v6033
  %6111 = vmatprep.subr.bf16.mxu0 %v6040
  %6112 = vmatpush1.bf16.msra.mxu0 %v6039
  %6113 = vmatprep.subr.bf16.mxu0 %v6046
  %6114 = vmatpush1.bf16.msra.mxu0 %v6045
  %6115 = vmatprep.subr.bf16.mxu0 %v6052
  %6116 = vmatpush1.bf16.msra.mxu0 %v6051
  %6117 = vmatprep.subr.bf16.mxu0 %v6058
  %6118 = vmatpush1.bf16.msra.mxu0 %v6057
  %6119 = vmatprep.subr.bf16.mxu0 %v6064
  %6120 = vmatpush1.bf16.msra.mxu0 %v6063
  %6121 = vmatprep.subr.bf16.mxu0 %v6070
  %6122 = vmatpush1.bf16.msra.mxu0 %v6069
  %6123 = vmatprep.subr.bf16.mxu0 0
  %6124 = vmatpush1.bf16.msra.mxu0 0
  %6125 = vmatprep.subr.bf16.mxu0 0
  %6126 = vmatpush1.bf16.msra.mxu0 0
  %6127 = vmatprep.subr.bf16.mxu0 0
  %6128 = vmatpush1.bf16.msra.mxu0 0
  %6129 = vmatprep.subr.bf16.mxu0 0
  %6130 = vmatpush1.bf16.msra.mxu0 0
  %6131 = vmatprep.subr.bf16.mxu0 0
  %6132 = vmatpush1.bf16.msra.mxu0 0
  %6133 = vmatprep.subr.bf16.mxu0 0
  %6134 = vmatpush1.bf16.msra.mxu0 0
  %6135 = vmatprep.subr.bf16.mxu0 0
  %6136 = vmatpush1.bf16.msra.mxu0 0
  %6137 = vmatprep.subr.bf16.mxu0 0
  %6138 = vmatpush1.bf16.msra.mxu0 0
  %6139 = vmatprep.mubr.bf16.mxu0 0
  %6140 = vmatmul.mubr.bf16.gmra.mrb[0].mxu0 %v6023
  %v6141 = vpop.f32.mrb[0].mxu0
  %v6142 = vadd.f32 %v6080, %v6141
  %v6143 = vpop.f32.mrb[0].mxu0
  %v6144 = vadd.f32 %v6084, %v6143
  %v6145 = vpop.f32.mrb[0].mxu0
  %v6146 = vadd.f32 %v6080, %v6145
  %v6147 = vpop.f32.mrb[0].mxu0
  %v6148 = vadd.f32 %v6084, %v6147
  %6149 = vmatprep.mubr.bf16.mxu0 0
  %6150 = vmatmul.mubr.bf16.gmra.mrb[0].mxu0 %v6024
  %v6151 = vpop.f32.mrb[0].mxu0
  %v6152 = vadd.f32 %v6080, %v6151
  %v6153 = vpop.f32.mrb[0].mxu0
  %v6154 = vadd.f32 %v6084, %v6153
  %v6155 = vpop.f32.mrb[0].mxu0
  %v6156 = vadd.f32 %v6080, %v6155
  %v6157 = vpop.f32.mrb[0].mxu0
  %v6158 = vadd.f32 %v6084, %v6157
  %6159 = vmatprep.mubr.bf16.mxu0 0
  %6160 = vmatmul.mubr.bf16.gmra.mrb[0].mxu0 %v6025
  %v6161 = vpop.f32.mrb[0].mxu0
  %v6162 = vadd.f32 %v6080, %v6161
  %v6163 = vpop.f32.mrb[0].mxu0
  %v6164 = vadd.f32 %v6084, %v6163
  %v6165 = vpop.f32.mrb[0].mxu0
  %v6166 = vadd.f32 %v6080, %v6165
  %v6167 = vpop.f32.mrb[0].mxu0
  %v6168 = vadd.f32 %v6084, %v6167
  %6169 = vmatprep.mubr.bf16.mxu0 0
  %6170 = vmatmul.mubr.bf16.gmra.mrb[0].mxu0 %v6026
  %v6171 = vpop.f32.mrb[0].mxu0
  %v6172 = vadd.f32 %v6080, %v6171
  %v6173 = vpop.f32.mrb[0].mxu0
  %v6174 = vadd.f32 %v6084, %v6173
  %v6175 = vpop.f32.mrb[0].mxu0
  %v6176 = vadd.f32 %v6080, %v6175
  %v6177 = vpop.f32.mrb[0].mxu0
  %v6178 = vadd.f32 %v6084, %v6177
  %6179 = vdwg.mxu0
  %6180 = vmatprep.subr.bf16.mxu0 %v6030
  %6181 = vmatpush1.bf16.msra.mxu0 %v6029
  %6182 = vmatprep.subr.bf16.mxu0 %v6036
  %6183 = vmatpush1.bf16.msra.mxu0 %v6035
  %6184 = vmatprep.subr.bf16.mxu0 %v6042
  %6185 = vmatpush1.bf16.msra.mxu0 %v6041
  %6186 = vmatprep.subr.bf16.mxu0 %v6048
  %6187 = vmatpush1.bf16.msra.mxu0 %v6047
  %6188 = vmatprep.subr.bf16.mxu0 %v6054
  %6189 = vmatpush1.bf16.msra.mxu0 %v6053
  %6190 = vmatprep.subr.bf16.mxu0 %v6060
  %6191 = vmatpush1.bf16.msra.mxu0 %v6059
  %6192 = vmatprep.subr.bf16.mxu0 %v6066
  %6193 = vmatpush1.bf16.msra.mxu0 %v6065
  %6194 = vmatprep.subr.bf16.mxu0 %v6072
  %6195 = vmatpush1.bf16.msra.mxu0 %v6071
  %6196 = vmatprep.subr.bf16.mxu0 0
  %6197 = vmatpush1.bf16.msra.mxu0 0
  %6198 = vmatprep.subr.bf16.mxu0 0
  %6199 = vmatpush1.bf16.msra.mxu0 0
  %6200 = vmatprep.subr.bf16.mxu0 0
  %6201 = vmatpush1.bf16.msra.mxu0 0
  %6202 = vmatprep.subr.bf16.mxu0 0
  %6203 = vmatpush1.bf16.msra.mxu0 0
  %6204 = vmatprep.subr.bf16.mxu0 0
  %6205 = vmatpush1.bf16.msra.mxu0 0
  %6206 = vmatprep.subr.bf16.mxu0 0
  %6207 = vmatpush1.bf16.msra.mxu0 0
  %6208 = vmatprep.subr.bf16.mxu0 0
  %6209 = vmatpush1.bf16.msra.mxu0 0
  %6210 = vmatprep.subr.bf16.mxu0 0
  %6211 = vmatpush1.bf16.msra.mxu0 0
  %6212 = vmatprep.mubr.bf16.mxu0 0
  %6213 = vmatmul.mubr.bf16.gmra.mrb[0].mxu0 %v6023
  %v6214 = vpop.f32.mrb[0].mxu0
  %v6215 = vadd.f32 %v6088, %v6214
  %v6216 = vpop.f32.mrb[0].mxu0
  %v6217 = vadd.f32 %v6092, %v6216
  %v6218 = vpop.f32.mrb[0].mxu0
  %v6219 = vadd.f32 %v6088, %v6218
  %v6220 = vpop.f32.mrb[0].mxu0
  %v6221 = vadd.f32 %v6092, %v6220
  %6222 = vmatprep.mubr.bf16.mxu0 0
  %6223 = vmatmul.mubr.bf16.gmra.mrb[0].mxu0 %v6024
  %v6224 = vpop.f32.mrb[0].mxu0
  %v6225 = vadd.f32 %v6088, %v6224
  %v6226 = vpop.f32.mrb[0].mxu0
  %v6227 = vadd.f32 %v6092, %v6226
  %v6228 = vpop.f32.mrb[0].mxu0
  %v6229 = vadd.f32 %v6088, %v6228
  %v6230 = vpop.f32.mrb[0].mxu0
  %v6231 = vadd.f32 %v6092, %v6230
  %6232 = vmatprep.mubr.bf16.mxu0 0
  %6233 = vmatmul.mubr.bf16.gmra.mrb[0].mxu0 %v6025
  %v6234 = vpop.f32.mrb[0].mxu0
  %v6235 = vadd.f32 %v6088, %v6234
  %v6236 = vpop.f32.mrb[0].mxu0
  %v6237 = vadd.f32 %v6092, %v6236
  %v6238 = vpop.f32.mrb[0].mxu0
  %v6239 = vadd.f32 %v6088, %v6238
  %v6240 = vpop.f32.mrb[0].mxu0
  %v6241 = vadd.f32 %v6092, %v6240
  %6242 = vmatprep.mubr.bf16.mxu0 0
  %6243 = vmatmul.mubr.bf16.gmra.mrb[0].mxu0 %v6026
  %v6244 = vpop.f32.mrb[0].mxu0
  %v6245 = vadd.f32 %v6088, %v6244
  %v6246 = vpop.f32.mrb[0].mxu0
  %v6247 = vadd.f32 %v6092, %v6246
  %v6248 = vpop.f32.mrb[0].mxu0
  %v6249 = vadd.f32 %v6088, %v6248
  %v6250 = vpop.f32.mrb[0].mxu0
  %v6251 = vadd.f32 %v6092, %v6250
  %6252 = vdwg.mxu0
  %6253 = vmatprep.subr.bf16.mxu0 %v6032
  %6254 = vmatpush1.bf16.msra.mxu0 %v6031
  %6255 = vmatprep.subr.bf16.mxu0 %v6038
  %6256 = vmatpush1.bf16.msra.mxu0 %v6037
  %6257 = vmatprep.subr.bf16.mxu0 %v6044
  %6258 = vmatpush1.bf16.msra.mxu0 %v6043
  %6259 = vmatprep.subr.bf16.mxu0 %v6050
  %6260 = vmatpush1.bf16.msra.mxu0 %v6049
  %6261 = vmatprep.subr.bf16.mxu0 %v6056
  %6262 = vmatpush1.bf16.msra.mxu0 %v6055
  %6263 = vmatprep.subr.bf16.mxu0 %v6062
  %6264 = vmatpush1.bf16.msra.mxu0 %v6061
  %6265 = vmatprep.subr.bf16.mxu0 %v6068
  %6266 = vmatpush1.bf16.msra.mxu0 %v6067
  %6267 = vmatprep.subr.bf16.mxu0 %v6074
  %6268 = vmatpush1.bf16.msra.mxu0 %v6073
  %6269 = vmatprep.subr.bf16.mxu0 0
  %6270 = vmatpush1.bf16.msra.mxu0 0
  %6271 = vmatprep.subr.bf16.mxu0 0
  %6272 = vmatpush1.bf16.msra.mxu0 0
  %6273 = vmatprep.subr.bf16.mxu0 0
  %6274 = vmatpush1.bf16.msra.mxu0 0
  %6275 = vmatprep.subr.bf16.mxu0 0
  %6276 = vmatpush1.bf16.msra.mxu0 0
  %6277 = vmatprep.subr.bf16.mxu0 0
  %6278 = vmatpush1.bf16.msra.mxu0 0
  %6279 = vmatprep.subr.bf16.mxu0 0
  %6280 = vmatpush1.bf16.msra.mxu0 0
  %6281 = vmatprep.subr.bf16.mxu0 0
  %6282 = vmatpush1.bf16.msra.mxu0 0
  %6283 = vmatprep.subr.bf16.mxu0 0
  %6284 = vmatpush1.bf16.msra.mxu0 0
  %6285 = vmatprep.mubr.bf16.mxu0 0
  %6286 = vmatmul.mubr.bf16.gmra.mrb[0].mxu0 %v6023
  %v6287 = vpop.f32.mrb[0].mxu0
  %v6288 = vadd.f32 %v6096, %v6287
  %v6289 = vpop.f32.mrb[0].mxu0
  %v6290 = vadd.f32 %v6100, %v6289
  %v6291 = vpop.f32.mrb[0].mxu0
  %v6292 = vadd.f32 %v6096, %v6291
  %v6293 = vpop.f32.mrb[0].mxu0
  %v6294 = vadd.f32 %v6100, %v6293
  %6295 = vmatprep.mubr.bf16.mxu0 0
  %6296 = vmatmul.mubr.bf16.gmra.mrb[0].mxu0 %v6024
  %v6297 = vpop.f32.mrb[0].mxu0
  %v6298 = vadd.f32 %v6096, %v6297
  %v6299 = vpop.f32.mrb[0].mxu0
  %v6300 = vadd.f32 %v6100, %v6299
  %v6301 = vpop.f32.mrb[0].mxu0
  %v6302 = vadd.f32 %v6096, %v6301
  %v6303 = vpop.f32.mrb[0].mxu0
  %v6304 = vadd.f32 %v6100, %v6303
  %6305 = vmatprep.mubr.bf16.mxu0 0
  %6306 = vmatmul.mubr.bf16.gmra.mrb[0].mxu0 %v6025
  %v6307 = vpop.f32.mrb[0].mxu0
  %v6308 = vadd.f32 %v6096, %v6307
  %v6309 = vpop.f32.mrb[0].mxu0
  %v6310 = vadd.f32 %v6100, %v6309
  %v6311 = vpop.f32.mrb[0].mxu0
  %v6312 = vadd.f32 %v6096, %v6311
  %v6313 = vpop.f32.mrb[0].mxu0
  %v6314 = vadd.f32 %v6100, %v6313
  %6315 = vmatprep.mubr.bf16.mxu0 0
  %6316 = vmatmul.mubr.bf16.gmra.mrb[0].mxu0 %v6026
  %v6317 = vpop.f32.mrb[0].mxu0
  %v6318 = vadd.f32 %v6096, %v6317
  %v6319 = vpop.f32.mrb[0].mxu0
  %v6320 = vadd.f32 %v6100, %v6319
  %v6321 = vpop.f32.mrb[0].mxu0
  %v6322 = vadd.f32 %v6096, %v6321
  %v6323 = vpop.f32.mrb[0].mxu0
  %v6324 = vadd.f32 %v6100, %v6323
  %6325 = vdwg.mxu0
  %v6326 = vadd.f32 %v6142, %v1581
  %v6327 = vadd.f32 %v6144, %v1582
  %v6328 = vadd.f32 %v6215, %v1583
  %v6329 = vadd.f32 %v6217, %v1584
  %v6330 = vadd.f32 %v6288, %v1585
  %v6331 = vadd.f32 %v6290, %v1586
  %v6332 = vadd.f32 %v6146, %v1587
  %v6333 = vadd.f32 %v6148, %v1588
  %v6334 = vadd.f32 %v6219, %v1589
  %v6335 = vadd.f32 %v6221, %v1590
  %v6336 = vadd.f32 %v6292, %v1591
  %v6337 = vadd.f32 %v6294, %v1592
  %v6338 = vadd.f32 %v6152, %v1593
  %v6339 = vadd.f32 %v6154, %v1594
  %v6340 = vadd.f32 %v6225, %v1595
  %v6341 = vadd.f32 %v6227, %v1596
  %v6342 = vadd.f32 %v6298, %v1597
  %v6343 = vadd.f32 %v6300, %v1598
  %v6344 = vadd.f32 %v6156, %v1599
  %v6345 = vadd.f32 %v6158, %v1600
  %v6346 = vadd.f32 %v6229, %v1601
  %v6347 = vadd.f32 %v6231, %v1602
  %v6348 = vadd.f32 %v6302, %v1603
  %v6349 = vadd.f32 %v6304, %v1604
  %v6350 = vadd.f32 %v6162, %v1605
  %v6351 = vadd.f32 %v6164, %v1606
  %v6352 = vadd.f32 %v6235, %v1607
  %v6353 = vadd.f32 %v6237, %v1608
  %v6354 = vadd.f32 %v6308, %v1609
  %v6355 = vadd.f32 %v6310, %v1610
  %v6356 = vadd.f32 %v6166, %v1611
  %v6357 = vadd.f32 %v6168, %v1612
  %v6358 = vadd.f32 %v6239, %v1613
  %v6359 = vadd.f32 %v6241, %v1614
  %v6360 = vadd.f32 %v6312, %v1615
  %v6361 = vadd.f32 %v6314, %v1616
  %v6362 = vadd.f32 %v6172, %v1617
  %v6363 = vadd.f32 %v6174, %v1618
  %v6364 = vadd.f32 %v6245, %v1619
  %v6365 = vadd.f32 %v6247, %v1620
  %v6366 = vadd.f32 %v6318, %v1621
  %v6367 = vadd.f32 %v6320, %v1622
  %v6368 = vadd.f32 %v6176, %v1623
  %v6369 = vadd.f32 %v6178, %v1624
  %v6370 = vadd.f32 %v6249, %v1625
  %v6371 = vadd.f32 %v6251, %v1626
  %v6372 = vadd.f32 %v6322, %v1627
  %v6373 = vadd.f32 %v6324, %v1628
  %v6374 = vadd.f32 %v6326, %v6327
  %v6375 = vadd.f32 %v6374, %v6328
  %v6376 = vadd.f32 %v6375, %v6329
  %v6377 = vadd.f32 %v6376, %v6330
  %v6378 = vadd.f32 %v6377, %v6331
  %6379 = vadd.xlane.f32.xlu0 %v6378
  %v6380 = vpop.xlane.xlu0 %6379
  %v6381 = vadd.f32 %v6332, %v6333
  %v6382 = vadd.f32 %v6381, %v6334
  %v6383 = vadd.f32 %v6382, %v6335
  %v6384 = vadd.f32 %v6383, %v6336
  %v6385 = vadd.f32 %v6384, %v6337
  %6386 = vadd.xlane.f32.xlu0 %v6385
  %v6387 = vpop.xlane.xlu0 %6386
  %v6388 = vadd.f32 %v6338, %v6339
  %v6389 = vadd.f32 %v6388, %v6340
  %v6390 = vadd.f32 %v6389, %v6341
  %v6391 = vadd.f32 %v6390, %v6342
  %v6392 = vadd.f32 %v6391, %v6343
  %6393 = vadd.xlane.f32.xlu0 %v6392
  %v6394 = vpop.xlane.xlu0 %6393
  %v6395 = vadd.f32 %v6344, %v6345
  %v6396 = vadd.f32 %v6395, %v6346
  %v6397 = vadd.f32 %v6396, %v6347
  %v6398 = vadd.f32 %v6397, %v6348
  %v6399 = vadd.f32 %v6398, %v6349
  %6400 = vadd.xlane.f32.xlu0 %v6399
  %v6401 = vpop.xlane.xlu0 %6400
  %v6402 = vadd.f32 %v6350, %v6351
  %v6403 = vadd.f32 %v6402, %v6352
  %v6404 = vadd.f32 %v6403, %v6353
  %v6405 = vadd.f32 %v6404, %v6354
  %v6406 = vadd.f32 %v6405, %v6355
  %6407 = vadd.xlane.f32.xlu0 %v6406
  %v6408 = vpop.xlane.xlu0 %6407
  %v6409 = vadd.f32 %v6356, %v6357
  %v6410 = vadd.f32 %v6409, %v6358
  %v6411 = vadd.f32 %v6410, %v6359
  %v6412 = vadd.f32 %v6411, %v6360
  %v6413 = vadd.f32 %v6412, %v6361
  %6414 = vadd.xlane.f32.xlu0 %v6413
  %v6415 = vpop.xlane.xlu0 %6414
  %v6416 = vadd.f32 %v6362, %v6363
  %v6417 = vadd.f32 %v6416, %v6364
  %v6418 = vadd.f32 %v6417, %v6365
  %v6419 = vadd.f32 %v6418, %v6366
  %v6420 = vadd.f32 %v6419, %v6367
  %6421 = vadd.xlane.f32.xlu0 %v6420
  %v6422 = vpop.xlane.xlu0 %6421
  %v6423 = vadd.f32 %v6368, %v6369
  %v6424 = vadd.f32 %v6423, %v6370
  %v6425 = vadd.f32 %v6424, %v6371
  %v6426 = vadd.f32 %v6425, %v6372
  %v6427 = vadd.f32 %v6426, %v6373
  %6428 = vadd.xlane.f32.xlu0 %v6427
  %v6429 = vpop.xlane.xlu0 %6428
  %v6430 = vmul.f32 %v6380, %v4556
  %v6431 = vmul.f32 %v6387, %v4556
  %v6432 = vmul.f32 %v6394, %v4556
  %v6433 = vmul.f32 %v6401, %v4556
  %v6434 = vmul.f32 %v6408, %v4556
  %v6435 = vmul.f32 %v6415, %v4556
  %v6436 = vmul.f32 %v6422, %v4556
  %v6437 = vmul.f32 %v6429, %v4556
  %v6438 = vsub.f32 %v6326, %v6430
  %v6439 = vsub.f32 %v6327, %v6430
  %v6440 = vsub.f32 %v6328, %v6430
  %v6441 = vsub.f32 %v6329, %v6430
  %v6442 = vsub.f32 %v6330, %v6430
  %v6443 = vsub.f32 %v6331, %v6430
  %v6444 = vsub.f32 %v6332, %v6431
  %v6445 = vsub.f32 %v6333, %v6431
  %v6446 = vsub.f32 %v6334, %v6431
  %v6447 = vsub.f32 %v6335, %v6431
  %v6448 = vsub.f32 %v6336, %v6431
  %v6449 = vsub.f32 %v6337, %v6431
  %v6450 = vsub.f32 %v6338, %v6432
  %v6451 = vsub.f32 %v6339, %v6432
  %v6452 = vsub.f32 %v6340, %v6432
  %v6453 = vsub.f32 %v6341, %v6432
  %v6454 = vsub.f32 %v6342, %v6432
  %v6455 = vsub.f32 %v6343, %v6432
  %v6456 = vsub.f32 %v6344, %v6433
  %v6457 = vsub.f32 %v6345, %v6433
  %v6458 = vsub.f32 %v6346, %v6433
  %v6459 = vsub.f32 %v6347, %v6433
  %v6460 = vsub.f32 %v6348, %v6433
  %v6461 = vsub.f32 %v6349, %v6433
  %v6462 = vsub.f32 %v6350, %v6434
  %v6463 = vsub.f32 %v6351, %v6434
  %v6464 = vsub.f32 %v6352, %v6434
  %v6465 = vsub.f32 %v6353, %v6434
  %v6466 = vsub.f32 %v6354, %v6434
  %v6467 = vsub.f32 %v6355, %v6434
  %v6468 = vsub.f32 %v6356, %v6435
  %v6469 = vsub.f32 %v6357, %v6435
  %v6470 = vsub.f32 %v6358, %v6435
  %v6471 = vsub.f32 %v6359, %v6435
  %v6472 = vsub.f32 %v6360, %v6435
  %v6473 = vsub.f32 %v6361, %v6435
  %v6474 = vsub.f32 %v6362, %v6436
  %v6475 = vsub.f32 %v6363, %v6436
  %v6476 = vsub.f32 %v6364, %v6436
  %v6477 = vsub.f32 %v6365, %v6436
  %v6478 = vsub.f32 %v6366, %v6436
  %v6479 = vsub.f32 %v6367, %v6436
  %v6480 = vsub.f32 %v6368, %v6437
  %v6481 = vsub.f32 %v6369, %v6437
  %v6482 = vsub.f32 %v6370, %v6437
  %v6483 = vsub.f32 %v6371, %v6437
  %v6484 = vsub.f32 %v6372, %v6437
  %v6485 = vsub.f32 %v6373, %v6437
  %v6486 = vmul.f32 %v6438, %v6438
  %v6487 = vmul.f32 %v6439, %v6439
  %v6488 = vmul.f32 %v6440, %v6440
  %v6489 = vmul.f32 %v6441, %v6441
  %v6490 = vmul.f32 %v6442, %v6442
  %v6491 = vmul.f32 %v6443, %v6443
  %v6492 = vmul.f32 %v6444, %v6444
  %v6493 = vmul.f32 %v6445, %v6445
  %v6494 = vmul.f32 %v6446, %v6446
  %v6495 = vmul.f32 %v6447, %v6447
  %v6496 = vmul.f32 %v6448, %v6448
  %v6497 = vmul.f32 %v6449, %v6449
  %v6498 = vmul.f32 %v6450, %v6450
  %v6499 = vmul.f32 %v6451, %v6451
  %v6500 = vmul.f32 %v6452, %v6452
  %v6501 = vmul.f32 %v6453, %v6453
  %v6502 = vmul.f32 %v6454, %v6454
  %v6503 = vmul.f32 %v6455, %v6455
  %v6504 = vmul.f32 %v6456, %v6456
  %v6505 = vmul.f32 %v6457, %v6457
  %v6506 = vmul.f32 %v6458, %v6458
  %v6507 = vmul.f32 %v6459, %v6459
  %v6508 = vmul.f32 %v6460, %v6460
  %v6509 = vmul.f32 %v6461, %v6461
  %v6510 = vmul.f32 %v6462, %v6462
  %v6511 = vmul.f32 %v6463, %v6463
  %v6512 = vmul.f32 %v6464, %v6464
  %v6513 = vmul.f32 %v6465, %v6465
  %v6514 = vmul.f32 %v6466, %v6466
  %v6515 = vmul.f32 %v6467, %v6467
  %v6516 = vmul.f32 %v6468, %v6468
  %v6517 = vmul.f32 %v6469, %v6469
  %v6518 = vmul.f32 %v6470, %v6470
  %v6519 = vmul.f32 %v6471, %v6471
  %v6520 = vmul.f32 %v6472, %v6472
  %v6521 = vmul.f32 %v6473, %v6473
  %v6522 = vmul.f32 %v6474, %v6474
  %v6523 = vmul.f32 %v6475, %v6475
  %v6524 = vmul.f32 %v6476, %v6476
  %v6525 = vmul.f32 %v6477, %v6477
  %v6526 = vmul.f32 %v6478, %v6478
  %v6527 = vmul.f32 %v6479, %v6479
  %v6528 = vmul.f32 %v6480, %v6480
  %v6529 = vmul.f32 %v6481, %v6481
  %v6530 = vmul.f32 %v6482, %v6482
  %v6531 = vmul.f32 %v6483, %v6483
  %v6532 = vmul.f32 %v6484, %v6484
  %v6533 = vmul.f32 %v6485, %v6485
  %v6534 = vadd.f32 %v6486, %v6487
  %v6535 = vadd.f32 %v6534, %v6488
  %v6536 = vadd.f32 %v6535, %v6489
  %v6537 = vadd.f32 %v6536, %v6490
  %v6538 = vadd.f32 %v6537, %v6491
  %6539 = vadd.xlane.f32.xlu0 %v6538
  %v6540 = vpop.xlane.xlu0 %6539
  %v6541 = vadd.f32 %v6492, %v6493
  %v6542 = vadd.f32 %v6541, %v6494
  %v6543 = vadd.f32 %v6542, %v6495
  %v6544 = vadd.f32 %v6543, %v6496
  %v6545 = vadd.f32 %v6544, %v6497
  %6546 = vadd.xlane.f32.xlu0 %v6545
  %v6547 = vpop.xlane.xlu0 %6546
  %v6548 = vadd.f32 %v6498, %v6499
  %v6549 = vadd.f32 %v6548, %v6500
  %v6550 = vadd.f32 %v6549, %v6501
  %v6551 = vadd.f32 %v6550, %v6502
  %v6552 = vadd.f32 %v6551, %v6503
  %6553 = vadd.xlane.f32.xlu0 %v6552
  %v6554 = vpop.xlane.xlu0 %6553
  %v6555 = vadd.f32 %v6504, %v6505
  %v6556 = vadd.f32 %v6555, %v6506
  %v6557 = vadd.f32 %v6556, %v6507
  %v6558 = vadd.f32 %v6557, %v6508
  %v6559 = vadd.f32 %v6558, %v6509
  %6560 = vadd.xlane.f32.xlu0 %v6559
  %v6561 = vpop.xlane.xlu0 %6560
  %v6562 = vadd.f32 %v6510, %v6511
  %v6563 = vadd.f32 %v6562, %v6512
  %v6564 = vadd.f32 %v6563, %v6513
  %v6565 = vadd.f32 %v6564, %v6514
  %v6566 = vadd.f32 %v6565, %v6515
  %6567 = vadd.xlane.f32.xlu0 %v6566
  %v6568 = vpop.xlane.xlu0 %6567
  %v6569 = vadd.f32 %v6516, %v6517
  %v6570 = vadd.f32 %v6569, %v6518
  %v6571 = vadd.f32 %v6570, %v6519
  %v6572 = vadd.f32 %v6571, %v6520
  %v6573 = vadd.f32 %v6572, %v6521
  %6574 = vadd.xlane.f32.xlu0 %v6573
  %v6575 = vpop.xlane.xlu0 %6574
  %v6576 = vadd.f32 %v6522, %v6523
  %v6577 = vadd.f32 %v6576, %v6524
  %v6578 = vadd.f32 %v6577, %v6525
  %v6579 = vadd.f32 %v6578, %v6526
  %v6580 = vadd.f32 %v6579, %v6527
  %6581 = vadd.xlane.f32.xlu0 %v6580
  %v6582 = vpop.xlane.xlu0 %6581
  %v6583 = vadd.f32 %v6528, %v6529
  %v6584 = vadd.f32 %v6583, %v6530
  %v6585 = vadd.f32 %v6584, %v6531
  %v6586 = vadd.f32 %v6585, %v6532
  %v6587 = vadd.f32 %v6586, %v6533
  %6588 = vadd.xlane.f32.xlu0 %v6587
  %v6589 = vpop.xlane.xlu0 %6588
  %v6590 = vmul.f32 %v6540, %v4556
  %v6591 = vmul.f32 %v6547, %v4556
  %v6592 = vmul.f32 %v6554, %v4556
  %v6593 = vmul.f32 %v6561, %v4556
  %v6594 = vmul.f32 %v6568, %v4556
  %v6595 = vmul.f32 %v6575, %v4556
  %v6596 = vmul.f32 %v6582, %v4556
  %v6597 = vmul.f32 %v6589, %v4556
  %v6598 = vadd.f32 %v6590, 1e-05
  %v6599 = vadd.f32 %v6591, 1e-05
  %v6600 = vadd.f32 %v6592, 1e-05
  %v6601 = vadd.f32 %v6593, 1e-05
  %v6602 = vadd.f32 %v6594, 1e-05
  %v6603 = vadd.f32 %v6595, 1e-05
  %v6604 = vadd.f32 %v6596, 1e-05
  %v6605 = vadd.f32 %v6597, 1e-05
  %v6606 = vrsqrt.pop %v6598
  %v6607 = vrsqrt.pop %v6599
  %v6608 = vrsqrt.pop %v6600
  %v6609 = vrsqrt.pop %v6601
  %v6610 = vrsqrt.pop %v6602
  %v6611 = vrsqrt.pop %v6603
  %v6612 = vrsqrt.pop %v6604
  %v6613 = vrsqrt.pop %v6605
  %v6614 = vmul.f32 %v6438, %v6606
  %v6615 = vmul.f32 %v6439, %v6606
  %v6616 = vmul.f32 %v6440, %v6606
  %v6617 = vmul.f32 %v6441, %v6606
  %v6618 = vmul.f32 %v6442, %v6606
  %v6619 = vmul.f32 %v6443, %v6606
  %v6620 = vmul.f32 %v6444, %v6607
  %v6621 = vmul.f32 %v6445, %v6607
  %v6622 = vmul.f32 %v6446, %v6607
  %v6623 = vmul.f32 %v6447, %v6607
  %v6624 = vmul.f32 %v6448, %v6607
  %v6625 = vmul.f32 %v6449, %v6607
  %v6626 = vmul.f32 %v6450, %v6608
  %v6627 = vmul.f32 %v6451, %v6608
  %v6628 = vmul.f32 %v6452, %v6608
  %v6629 = vmul.f32 %v6453, %v6608
  %v6630 = vmul.f32 %v6454, %v6608
  %v6631 = vmul.f32 %v6455, %v6608
  %v6632 = vmul.f32 %v6456, %v6609
  %v6633 = vmul.f32 %v6457, %v6609
  %v6634 = vmul.f32 %v6458, %v6609
  %v6635 = vmul.f32 %v6459, %v6609
  %v6636 = vmul.f32 %v6460, %v6609
  %v6637 = vmul.f32 %v6461, %v6609
  %v6638 = vmul.f32 %v6462, %v6610
  %v6639 = vmul.f32 %v6463, %v6610
  %v6640 = vmul.f32 %v6464, %v6610
  %v6641 = vmul.f32 %v6465, %v6610
  %v6642 = vmul.f32 %v6466, %v6610
  %v6643 = vmul.f32 %v6467, %v6610
  %v6644 = vmul.f32 %v6468, %v6611
  %v6645 = vmul.f32 %v6469, %v6611
  %v6646 = vmul.f32 %v6470, %v6611
  %v6647 = vmul.f32 %v6471, %v6611
  %v6648 = vmul.f32 %v6472, %v6611
  %v6649 = vmul.f32 %v6473, %v6611
  %v6650 = vmul.f32 %v6474, %v6612
  %v6651 = vmul.f32 %v6475, %v6612
  %v6652 = vmul.f32 %v6476, %v6612
  %v6653 = vmul.f32 %v6477, %v6612
  %v6654 = vmul.f32 %v6478, %v6612
  %v6655 = vmul.f32 %v6479, %v6612
  %v6656 = vmul.f32 %v6480, %v6613
  %v6657 = vmul.f32 %v6481, %v6613
  %v6658 = vmul.f32 %v6482, %v6613
  %v6659 = vmul.f32 %v6483, %v6613
  %v6660 = vmul.f32 %v6484, %v6613
  %v6661 = vmul.f32 %v6485, %v6613
  %v6662 = vpack.c.bf16 %v4747, %v4741
  %v6663 = vpack.c.bf16 %v4748, %v4742
  %v6664 = vpack.c.bf16 %v4749, %v4743
  %v6665 = vpack.c.bf16 %v4750, %v4744
  %v6666 = vpack.c.bf16 %v4751, %v4745
  %v6667 = vpack.c.bf16 %v4752, %v4746
  %v6668 = vpack.c.bf16 %v4759, %v4753
  %v6669 = vpack.c.bf16 %v4760, %v4754
  %v6670 = vpack.c.bf16 %v4761, %v4755
  %v6671 = vpack.c.bf16 %v4762, %v4756
  %v6672 = vpack.c.bf16 %v4763, %v4757
  %v6673 = vpack.c.bf16 %v4764, %v4758
  %v6674 = vpack.c.bf16 %v4771, %v4765
  %v6675 = vpack.c.bf16 %v4772, %v4766
  %v6676 = vpack.c.bf16 %v4773, %v4767
  %v6677 = vpack.c.bf16 %v4774, %v4768
  %v6678 = vpack.c.bf16 %v4775, %v4769
  %v6679 = vpack.c.bf16 %v4776, %v4770
  %v6680 = vpack.c.bf16 %v4783, %v4777
  %v6681 = vpack.c.bf16 %v4784, %v4778
  %v6682 = vpack.c.bf16 %v4785, %v4779
  %v6683 = vpack.c.bf16 %v4786, %v4780
  %v6684 = vpack.c.bf16 %v4787, %v4781
  %v6685 = vpack.c.bf16 %v4788, %v4782
  %v6686 = vpack.c.bf16 %v6620, %v6614
  %v6687 = vpack.c.bf16 %v6621, %v6615
  %v6688 = vpack.c.bf16 %v6622, %v6616
  %v6689 = vpack.c.bf16 %v6623, %v6617
  %v6690 = vpack.c.bf16 %v6624, %v6618
  %v6691 = vpack.c.bf16 %v6625, %v6619
  %v6692 = vpack.c.bf16 %v6632, %v6626
  %v6693 = vpack.c.bf16 %v6633, %v6627
  %v6694 = vpack.c.bf16 %v6634, %v6628
  %v6695 = vpack.c.bf16 %v6635, %v6629
  %v6696 = vpack.c.bf16 %v6636, %v6630
  %v6697 = vpack.c.bf16 %v6637, %v6631
  %v6698 = vpack.c.bf16 %v6644, %v6638
  %v6699 = vpack.c.bf16 %v6645, %v6639
  %v6700 = vpack.c.bf16 %v6646, %v6640
  %v6701 = vpack.c.bf16 %v6647, %v6641
  %v6702 = vpack.c.bf16 %v6648, %v6642
  %v6703 = vpack.c.bf16 %v6649, %v6643
  %v6704 = vpack.c.bf16 %v6656, %v6650
  %v6705 = vpack.c.bf16 %v6657, %v6651
  %v6706 = vpack.c.bf16 %v6658, %v6652
  %v6707 = vpack.c.bf16 %v6659, %v6653
  %v6708 = vpack.c.bf16 %v6660, %v6654
  %v6709 = vpack.c.bf16 %v6661, %v6655
  %v6710 = vld [vmem:[%s4] sm:$0xf]
  %v6711 = vld [vmem:[%s4 + $0x4] sm:$0xf]
  %v6712 = vld [vmem:[%s4 + $0x8] sm:$0xf]
  %v6713 = vld [vmem:[%s4 + $0xc] sm:$0xf]
  %v6714 = vld [vmem:[%s4 + $0x10] sm:$0xf]
  %v6715 = vld [vmem:[%s4 + $0x14] sm:$0xf]
  %v6716 = vld [vmem:[%s4 + $0x18] sm:$0xf]
  %v6717 = vld [vmem:[%s4 + $0x1c] sm:$0xf]
  %v6718 = vld [vmem:[%s4 + $0x20] sm:$0xf]
  %v6719 = vld [vmem:[%s4 + $0x24] sm:$0xf]
  %v6720 = vld [vmem:[%s4 + $0x28] sm:$0xf]
  %v6721 = vld [vmem:[%s4 + $0x2c] sm:$0xf]
  %v6722 = vld [vmem:[%s4 + $0x30] sm:$0xf]
  %v6723 = vld [vmem:[%s4 + $0x34] sm:$0xf]
  %v6724 = vld [vmem:[%s4 + $0x38] sm:$0xf]
  %v6725 = vld [vmem:[%s4 + $0x3c] sm:$0xf]
  %v6726 = vld [vmem:[%s4 + $0x40] sm:$0xf]
  %v6727 = vld [vmem:[%s4 + $0x44] sm:$0xf]
  %v6728 = vld [vmem:[%s4 + $0x48] sm:$0xf]
  %v6729 = vld [vmem:[%s4 + $0x4c] sm:$0xf]
  %v6730 = vld [vmem:[%s4 + $0x50] sm:$0xf]
  %v6731 = vld [vmem:[%s4 + $0x54] sm:$0xf]
  %v6732 = vld [vmem:[%s4 + $0x58] sm:$0xf]
  %v6733 = vld [vmem:[%s4 + $0x5c] sm:$0xf]
  %v6734 = vld [vmem:[%s4 + $0x60] sm:$0xf]
  %v6735 = vld [vmem:[%s4 + $0x64] sm:$0xf]
  %v6736 = vld [vmem:[%s4 + $0x68] sm:$0xf]
  %v6737 = vld [vmem:[%s4 + $0x6c] sm:$0xf]
  %v6738 = vld [vmem:[%s4 + $0x70] sm:$0xf]
  %v6739 = vld [vmem:[%s4 + $0x74] sm:$0xf]
  %v6740 = vld [vmem:[%s4 + $0x78] sm:$0xf]
  %v6741 = vld [vmem:[%s4 + $0x7c] sm:$0xf]
  %v6742 = vld [vmem:[%s4 + $0x80] sm:$0xf]
  %v6743 = vld [vmem:[%s4 + $0x84] sm:$0xf]
  %v6744 = vld [vmem:[%s4 + $0x88] sm:$0xf]
  %v6745 = vld [vmem:[%s4 + $0x8c] sm:$0xf]
  %v6746 = vld [vmem:[%s4 + $0x90] sm:$0xf]
  %v6747 = vld [vmem:[%s4 + $0x94] sm:$0xf]
  %v6748 = vld [vmem:[%s4 + $0x98] sm:$0xf]
  %v6749 = vld [vmem:[%s4 + $0x9c] sm:$0xf]
  %v6750 = vld [vmem:[%s4 + $0xa0] sm:$0xf]
  %v6751 = vld [vmem:[%s4 + $0xa4] sm:$0xf]
  %v6752 = vld [vmem:[%s4 + $0xa8] sm:$0xf]
  %v6753 = vld [vmem:[%s4 + $0xac] sm:$0xf]
  %v6754 = vld [vmem:[%s4 + $0xb0] sm:$0xf]
  %v6755 = vld [vmem:[%s4 + $0xb4] sm:$0xf]
  %v6756 = vld [vmem:[%s4 + $0xb8] sm:$0xf]
  %v6757 = vld [vmem:[%s4 + $0xbc] sm:$0xf]
  %v6758 = vld [vmem:[%s4 + $0xc0] sm:$0xf]
  %v6759 = vld [vmem:[%s4 + $0xc4] sm:$0xf]
  %v6760 = vld [vmem:[%s4 + $0xc8] sm:$0xf]
  %v6761 = vld [vmem:[%s4 + $0xcc] sm:$0xf]
  %v6762 = vld [vmem:[%s4 + $0xd0] sm:$0xf]
  %v6763 = vld [vmem:[%s4 + $0xd4] sm:$0xf]
  %v6764 = vld [vmem:[%s4 + $0xd8] sm:$0xf]
  %v6765 = vld [vmem:[%s4 + $0xdc] sm:$0xf]
  %v6766 = vld [vmem:[%s4 + $0xe0] sm:$0xf]
  %v6767 = vld [vmem:[%s4 + $0xe4] sm:$0xf]
  %v6768 = vld [vmem:[%s4 + $0xe8] sm:$0xf]
  %v6769 = vld [vmem:[%s4 + $0xec] sm:$0xf]
  %v6770 = vld [vmem:[%s4 + $0xf0] sm:$0xf]
  %v6771 = vld [vmem:[%s4 + $0xf4] sm:$0xf]
  %v6772 = vld [vmem:[%s4 + $0xf8] sm:$0xf]
  %v6773 = vld [vmem:[%s4 + $0xfc] sm:$0xf]
  %v6774 = vld [vmem:[%s4 + $0x100] sm:$0xf]
  %v6775 = vld [vmem:[%s4 + $0x104] sm:$0xf]
  %v6776 = vld [vmem:[%s4 + $0x108] sm:$0xf]
  %v6777 = vld [vmem:[%s4 + $0x10c] sm:$0xf]
  %v6778 = vld [vmem:[%s4 + $0x110] sm:$0xf]
  %v6779 = vld [vmem:[%s4 + $0x114] sm:$0xf]
  %v6780 = vld [vmem:[%s4 + $0x118] sm:$0xf]
  %v6781 = vld [vmem:[%s4 + $0x11c] sm:$0xf]
  %v6782 = vld [vmem:[%s4 + $0x120] sm:$0xf]
  %v6783 = vld [vmem:[%s4 + $0x124] sm:$0xf]
  %v6784 = vld [vmem:[%s4 + $0x128] sm:$0xf]
  %v6785 = vld [vmem:[%s4 + $0x12c] sm:$0xf]
  %v6786 = vld [vmem:[%s4 + $0x130] sm:$0xf]
  %v6787 = vld [vmem:[%s4 + $0x134] sm:$0xf]
  %v6788 = vld [vmem:[%s4 + $0x138] sm:$0xf]
  %v6789 = vld [vmem:[%s4 + $0x13c] sm:$0xf]
  %v6790 = vld [vmem:[%s4 + $0x140] sm:$0xf]
  %v6791 = vld [vmem:[%s4 + $0x144] sm:$0xf]
  %v6792 = vld [vmem:[%s4 + $0x148] sm:$0xf]
  %v6793 = vld [vmem:[%s4 + $0x14c] sm:$0xf]
  %v6794 = vld [vmem:[%s4 + $0x150] sm:$0xf]
  %v6795 = vld [vmem:[%s4 + $0x154] sm:$0xf]
  %v6796 = vld [vmem:[%s4 + $0x158] sm:$0xf]
  %v6797 = vld [vmem:[%s4 + $0x15c] sm:$0xf]
  %v6798 = vld [vmem:[%s4 + $0x160] sm:$0xf]
  %v6799 = vld [vmem:[%s4 + $0x164] sm:$0xf]
  %v6800 = vld [vmem:[%s4 + $0x168] sm:$0xf]
  %v6801 = vld [vmem:[%s4 + $0x16c] sm:$0xf]
  %v6802 = vld [vmem:[%s4 + $0x170] sm:$0xf]
  %v6803 = vld [vmem:[%s4 + $0x174] sm:$0xf]
  %v6804 = vld [vmem:[%s4 + $0x178] sm:$0xf]
  %v6805 = vld [vmem:[%s4 + $0x17c] sm:$0xf]
  %v6806 = vld [vmem:[%s5] sm:$0x1]
  %v6808 = vlaneseq
  %v6809 = vshrl.u32 %v6808, 7
  %v6810 = vsub.s32 0, %v6809
  %v6811 = vrot.slane %v6806, %v6810
  %v6909 = vunpack.c.l.b16 %v6710
  %v6910 = vunpack.c.l.b16 %v6711
  %v6911 = vunpack.c.l.b16 %v6712
  %v6912 = vunpack.c.l.b16 %v6713
  %v6913 = vunpack.c.l.b16 %v6714
  %v6914 = vunpack.c.l.b16 %v6715
  %v6915 = vunpack.c.l.b16 %v6716
  %v6916 = vunpack.c.l.b16 %v6717
  %v6917 = vunpack.c.l.b16 %v6718
  %v6918 = vunpack.c.l.b16 %v6719
  %v6919 = vunpack.c.l.b16 %v6720
  %v6920 = vunpack.c.l.b16 %v6721
  %v6921 = vunpack.c.l.b16 %v6722
  %v6922 = vunpack.c.l.b16 %v6723
  %v6923 = vunpack.c.l.b16 %v6724
  %v6924 = vunpack.c.l.b16 %v6725
  %v6925 = vunpack.c.l.b16 %v6726
  %v6926 = vunpack.c.l.b16 %v6727
  %v6927 = vunpack.c.l.b16 %v6728
  %v6928 = vunpack.c.l.b16 %v6729
  %v6929 = vunpack.c.l.b16 %v6730
  %v6930 = vunpack.c.l.b16 %v6731
  %v6931 = vunpack.c.l.b16 %v6732
  %v6932 = vunpack.c.l.b16 %v6733
  %v6933 = vunpack.c.l.b16 %v6734
  %v6934 = vunpack.c.l.b16 %v6735
  %v6935 = vunpack.c.l.b16 %v6736
  %v6936 = vunpack.c.l.b16 %v6737
  %v6937 = vunpack.c.l.b16 %v6738
  %v6938 = vunpack.c.l.b16 %v6739
  %v6939 = vunpack.c.l.b16 %v6740
  %v6940 = vunpack.c.l.b16 %v6741
  %v6941 = vunpack.c.l.b16 %v6742
  %v6942 = vunpack.c.l.b16 %v6743
  %v6943 = vunpack.c.l.b16 %v6744
  %v6944 = vunpack.c.l.b16 %v6745
  %v6945 = vunpack.c.l.b16 %v6746
  %v6946 = vunpack.c.l.b16 %v6747
  %v6947 = vunpack.c.l.b16 %v6748
  %v6948 = vunpack.c.l.b16 %v6749
  %v6949 = vunpack.c.l.b16 %v6750
  %v6950 = vunpack.c.l.b16 %v6751
  %v6951 = vunpack.c.l.b16 %v6752
  %v6952 = vunpack.c.l.b16 %v6753
  %v6953 = vunpack.c.l.b16 %v6754
  %v6954 = vunpack.c.l.b16 %v6755
  %v6955 = vunpack.c.l.b16 %v6756
  %v6956 = vunpack.c.l.b16 %v6757
  %v6957 = vunpack.c.l.b16 %v6758
  %v6958 = vunpack.c.l.b16 %v6759
  %v6959 = vunpack.c.l.b16 %v6760
  %v6960 = vunpack.c.l.b16 %v6761
  %v6961 = vunpack.c.l.b16 %v6762
  %v6962 = vunpack.c.l.b16 %v6763
  %v6963 = vunpack.c.l.b16 %v6764
  %v6964 = vunpack.c.l.b16 %v6765
  %v6965 = vunpack.c.l.b16 %v6766
  %v6966 = vunpack.c.l.b16 %v6767
  %v6967 = vunpack.c.l.b16 %v6768
  %v6968 = vunpack.c.l.b16 %v6769
  %v6969 = vunpack.c.l.b16 %v6770
  %v6970 = vunpack.c.l.b16 %v6771
  %v6971 = vunpack.c.l.b16 %v6772
  %v6972 = vunpack.c.l.b16 %v6773
  %v6973 = vunpack.c.l.b16 %v6774
  %v6974 = vunpack.c.l.b16 %v6775
  %v6975 = vunpack.c.l.b16 %v6776
  %v6976 = vunpack.c.l.b16 %v6777
  %v6977 = vunpack.c.l.b16 %v6778
  %v6978 = vunpack.c.l.b16 %v6779
  %v6979 = vunpack.c.l.b16 %v6780
  %v6980 = vunpack.c.l.b16 %v6781
  %v6981 = vunpack.c.l.b16 %v6782
  %v6982 = vunpack.c.l.b16 %v6783
  %v6983 = vunpack.c.l.b16 %v6784
  %v6984 = vunpack.c.l.b16 %v6785
  %v6985 = vunpack.c.l.b16 %v6786
  %v6986 = vunpack.c.l.b16 %v6787
  %v6987 = vunpack.c.l.b16 %v6788
  %v6988 = vunpack.c.l.b16 %v6789
  %v6989 = vunpack.c.l.b16 %v6790
  %v6990 = vunpack.c.l.b16 %v6791
  %v6991 = vunpack.c.l.b16 %v6792
  %v6992 = vunpack.c.l.b16 %v6793
  %v6993 = vunpack.c.l.b16 %v6794
  %v6994 = vunpack.c.l.b16 %v6795
  %v6995 = vunpack.c.l.b16 %v6796
  %v6996 = vunpack.c.l.b16 %v6797
  %v6997 = vunpack.c.l.b16 %v6798
  %v6998 = vunpack.c.l.b16 %v6799
  %v6999 = vunpack.c.l.b16 %v6800
  %v7000 = vunpack.c.l.b16 %v6801
  %v7001 = vunpack.c.l.b16 %v6802
  %v7002 = vunpack.c.l.b16 %v6803
  %v7003 = vunpack.c.l.b16 %v6804
  %v7004 = vunpack.c.l.b16 %v6805
  %v7005 = vpack.c.b16 %v6910, %v6909
  %v7006 = vpack.c.b16 %v6912, %v6911
  %v7007 = vpack.c.b16 %v6914, %v6913
  %v7008 = vpack.c.b16 %v6916, %v6915
  %v7009 = vpack.c.b16 %v6918, %v6917
  %v7010 = vpack.c.b16 %v6920, %v6919
  %v7011 = vpack.c.b16 %v6922, %v6921
  %v7012 = vpack.c.b16 %v6924, %v6923
  %v7013 = vpack.c.b16 %v6926, %v6925
  %v7014 = vpack.c.b16 %v6928, %v6927
  %v7015 = vpack.c.b16 %v6930, %v6929
  %v7016 = vpack.c.b16 %v6932, %v6931
  %v7017 = vpack.c.b16 %v6934, %v6933
  %v7018 = vpack.c.b16 %v6936, %v6935
  %v7019 = vpack.c.b16 %v6938, %v6937
  %v7020 = vpack.c.b16 %v6940, %v6939
  %v7021 = vpack.c.b16 %v6942, %v6941
  %v7022 = vpack.c.b16 %v6944, %v6943
  %v7023 = vpack.c.b16 %v6946, %v6945
  %v7024 = vpack.c.b16 %v6948, %v6947
  %v7025 = vpack.c.b16 %v6950, %v6949
  %v7026 = vpack.c.b16 %v6952, %v6951
  %v7027 = vpack.c.b16 %v6954, %v6953
  %v7028 = vpack.c.b16 %v6956, %v6955
  %v7029 = vpack.c.b16 %v6958, %v6957
  %v7030 = vpack.c.b16 %v6960, %v6959
  %v7031 = vpack.c.b16 %v6962, %v6961
  %v7032 = vpack.c.b16 %v6964, %v6963
  %v7033 = vpack.c.b16 %v6966, %v6965
  %v7034 = vpack.c.b16 %v6968, %v6967
  %v7035 = vpack.c.b16 %v6970, %v6969
  %v7036 = vpack.c.b16 %v6972, %v6971
  %v7037 = vpack.c.b16 %v6974, %v6973
  %v7038 = vpack.c.b16 %v6976, %v6975
  %v7039 = vpack.c.b16 %v6978, %v6977
  %v7040 = vpack.c.b16 %v6980, %v6979
  %v7041 = vpack.c.b16 %v6982, %v6981
  %v7042 = vpack.c.b16 %v6984, %v6983
  %v7043 = vpack.c.b16 %v6986, %v6985
  %v7044 = vpack.c.b16 %v6988, %v6987
  %v7045 = vpack.c.b16 %v6990, %v6989
  %v7046 = vpack.c.b16 %v6992, %v6991
  %v7047 = vpack.c.b16 %v6994, %v6993
  %v7048 = vpack.c.b16 %v6996, %v6995
  %v7049 = vpack.c.b16 %v6998, %v6997
  %v7050 = vpack.c.b16 %v7000, %v6999
  %v7051 = vpack.c.b16 %v7002, %v7001
  %v7052 = vpack.c.b16 %v7004, %v7003
  %7101 = vmatprep.subr.bf16.mxu0 0
  %7102 = vmatpush1.bf16.msra.mxu0 %v7005
  %7103 = vmatprep.subr.bf16.mxu0 0
  %7104 = vmatpush1.bf16.msra.mxu0 %v7006
  %7105 = vmatprep.subr.bf16.mxu0 0
  %7106 = vmatpush1.bf16.msra.mxu0 %v7007
  %7107 = vmatprep.subr.bf16.mxu0 0
  %7108 = vmatpush1.bf16.msra.mxu0 %v7008
  %7109 = vmatprep.subr.bf16.mxu0 0
  %7110 = vmatpush1.bf16.msra.mxu0 %v7009
  %7111 = vmatprep.subr.bf16.mxu0 0
  %7112 = vmatpush1.bf16.msra.mxu0 %v7010
  %7113 = vmatprep.subr.bf16.mxu0 0
  %7114 = vmatpush1.bf16.msra.mxu0 %v7011
  %7115 = vmatprep.subr.bf16.mxu0 0
  %7116 = vmatpush1.bf16.msra.mxu0 %v7012
  %7117 = vmatprep.subr.bf16.mxu0 0
  %7118 = vmatpush1.bf16.msra.mxu0 %v7013
  %7119 = vmatprep.subr.bf16.mxu0 0
  %7120 = vmatpush1.bf16.msra.mxu0 %v7014
  %7121 = vmatprep.subr.bf16.mxu0 0
  %7122 = vmatpush1.bf16.msra.mxu0 %v7015
  %7123 = vmatprep.subr.bf16.mxu0 0
  %7124 = vmatpush1.bf16.msra.mxu0 %v7016
  %7125 = vmatprep.subr.bf16.mxu0 0
  %7126 = vmatpush1.bf16.msra.mxu0 %v7017
  %7127 = vmatprep.subr.bf16.mxu0 0
  %7128 = vmatpush1.bf16.msra.mxu0 %v7018
  %7129 = vmatprep.subr.bf16.mxu0 0
  %7130 = vmatpush1.bf16.msra.mxu0 %v7019
  %7131 = vmatprep.subr.bf16.mxu0 0
  %7132 = vmatpush1.bf16.msra.mxu0 %v7020
  %7133 = vmatprep.mubr.bf16.mxu0 %v6663
  %7134 = vmatmul.mubr.bf16.gmra.mrb[0].mxu0 %v6662
  %v7135 = vpop.f32.mrb[0].mxu0
  %v7136 = vadd.f32 %v6811, %v7135
  %v7137 = vpop.f32.mrb[0].mxu0
  %v7138 = vpop.f32.mrb[0].mxu0
  %v7139 = vadd.f32 %v6811, %v7138
  %v7140 = vpop.f32.mrb[0].mxu0
  %7141 = vmatprep.mubr.bf16.mxu0 %v6669
  %7142 = vmatmul.mubr.bf16.gmra.mrb[0].mxu0 %v6668
  %v7143 = vpop.f32.mrb[0].mxu0
  %v7144 = vadd.f32 %v6811, %v7143
  %v7145 = vpop.f32.mrb[0].mxu0
  %v7146 = vpop.f32.mrb[0].mxu0
  %v7147 = vadd.f32 %v6811, %v7146
  %v7148 = vpop.f32.mrb[0].mxu0
  %7149 = vmatprep.mubr.bf16.mxu0 %v6675
  %7150 = vmatmul.mubr.bf16.gmra.mrb[0].mxu0 %v6674
  %v7151 = vpop.f32.mrb[0].mxu0
  %v7152 = vadd.f32 %v6811, %v7151
  %v7153 = vpop.f32.mrb[0].mxu0
  %v7154 = vpop.f32.mrb[0].mxu0
  %v7155 = vadd.f32 %v6811, %v7154
  %v7156 = vpop.f32.mrb[0].mxu0
  %7157 = vmatprep.mubr.bf16.mxu0 %v6681
  %7158 = vmatmul.mubr.bf16.gmra.mrb[0].mxu0 %v6680
  %v7159 = vpop.f32.mrb[0].mxu0
  %v7160 = vadd.f32 %v6811, %v7159
  %v7161 = vpop.f32.mrb[0].mxu0
  %v7162 = vpop.f32.mrb[0].mxu0
  %v7163 = vadd.f32 %v6811, %v7162
  %v7164 = vpop.f32.mrb[0].mxu0
  %7165 = vdwg.mxu0
  %7166 = vmatprep.subr.bf16.mxu0 0
  %7167 = vmatpush1.bf16.msra.mxu0 %v7021
  %7168 = vmatprep.subr.bf16.mxu0 0
  %7169 = vmatpush1.bf16.msra.mxu0 %v7022
  %7170 = vmatprep.subr.bf16.mxu0 0
  %7171 = vmatpush1.bf16.msra.mxu0 %v7023
  %7172 = vmatprep.subr.bf16.mxu0 0
  %7173 = vmatpush1.bf16.msra.mxu0 %v7024
  %7174 = vmatprep.subr.bf16.mxu0 0
  %7175 = vmatpush1.bf16.msra.mxu0 %v7025
  %7176 = vmatprep.subr.bf16.mxu0 0
  %7177 = vmatpush1.bf16.msra.mxu0 %v7026
  %7178 = vmatprep.subr.bf16.mxu0 0
  %7179 = vmatpush1.bf16.msra.mxu0 %v7027
  %7180 = vmatprep.subr.bf16.mxu0 0
  %7181 = vmatpush1.bf16.msra.mxu0 %v7028
  %7182 = vmatprep.subr.bf16.mxu0 0
  %7183 = vmatpush1.bf16.msra.mxu0 %v7029
  %7184 = vmatprep.subr.bf16.mxu0 0
  %7185 = vmatpush1.bf16.msra.mxu0 %v7030
  %7186 = vmatprep.subr.bf16.mxu0 0
  %7187 = vmatpush1.bf16.msra.mxu0 %v7031
  %7188 = vmatprep.subr.bf16.mxu0 0
  %7189 = vmatpush1.bf16.msra.mxu0 %v7032
  %7190 = vmatprep.subr.bf16.mxu0 0
  %7191 = vmatpush1.bf16.msra.mxu0 %v7033
  %7192 = vmatprep.subr.bf16.mxu0 0
  %7193 = vmatpush1.bf16.msra.mxu0 %v7034
  %7194 = vmatprep.subr.bf16.mxu0 0
  %7195 = vmatpush1.bf16.msra.mxu0 %v7035
  %7196 = vmatprep.subr.bf16.mxu0 0
  %7197 = vmatpush1.bf16.msra.mxu0 %v7036
  %7198 = vmatprep.mubr.bf16.mxu0 %v6665
  %7199 = vmatmul.mubr.bf16.gmra.mrb[0].mxu0 %v6664
  %v7200 = vpop.f32.mrb[0].mxu0
  %v7201 = vadd.f32 %v7136, %v7200
  %v7202 = vpop.f32.mrb[0].mxu0
  %v7203 = vpop.f32.mrb[0].mxu0
  %v7204 = vadd.f32 %v7139, %v7203
  %v7205 = vpop.f32.mrb[0].mxu0
  %7206 = vmatprep.mubr.bf16.mxu0 %v6671
  %7207 = vmatmul.mubr.bf16.gmra.mrb[0].mxu0 %v6670
  %v7208 = vpop.f32.mrb[0].mxu0
  %v7209 = vadd.f32 %v7144, %v7208
  %v7210 = vpop.f32.mrb[0].mxu0
  %v7211 = vpop.f32.mrb[0].mxu0
  %v7212 = vadd.f32 %v7147, %v7211
  %v7213 = vpop.f32.mrb[0].mxu0
  %7214 = vmatprep.mubr.bf16.mxu0 %v6677
  %7215 = vmatmul.mubr.bf16.gmra.mrb[0].mxu0 %v6676
  %v7216 = vpop.f32.mrb[0].mxu0
  %v7217 = vadd.f32 %v7152, %v7216
  %v7218 = vpop.f32.mrb[0].mxu0
  %v7219 = vpop.f32.mrb[0].mxu0
  %v7220 = vadd.f32 %v7155, %v7219
  %v7221 = vpop.f32.mrb[0].mxu0
  %7222 = vmatprep.mubr.bf16.mxu0 %v6683
  %7223 = vmatmul.mubr.bf16.gmra.mrb[0].mxu0 %v6682
  %v7224 = vpop.f32.mrb[0].mxu0
  %v7225 = vadd.f32 %v7160, %v7224
  %v7226 = vpop.f32.mrb[0].mxu0
  %v7227 = vpop.f32.mrb[0].mxu0
  %v7228 = vadd.f32 %v7163, %v7227
  %v7229 = vpop.f32.mrb[0].mxu0
  %7230 = vdwg.mxu0
  %7231 = vmatprep.subr.bf16.mxu0 0
  %7232 = vmatpush1.bf16.msra.mxu0 %v7037
  %7233 = vmatprep.subr.bf16.mxu0 0
  %7234 = vmatpush1.bf16.msra.mxu0 %v7038
  %7235 = vmatprep.subr.bf16.mxu0 0
  %7236 = vmatpush1.bf16.msra.mxu0 %v7039
  %7237 = vmatprep.subr.bf16.mxu0 0
  %7238 = vmatpush1.bf16.msra.mxu0 %v7040
  %7239 = vmatprep.subr.bf16.mxu0 0
  %7240 = vmatpush1.bf16.msra.mxu0 %v7041
  %7241 = vmatprep.subr.bf16.mxu0 0
  %7242 = vmatpush1.bf16.msra.mxu0 %v7042
  %7243 = vmatprep.subr.bf16.mxu0 0
  %7244 = vmatpush1.bf16.msra.mxu0 %v7043
  %7245 = vmatprep.subr.bf16.mxu0 0
  %7246 = vmatpush1.bf16.msra.mxu0 %v7044
  %7247 = vmatprep.subr.bf16.mxu0 0
  %7248 = vmatpush1.bf16.msra.mxu0 %v7045
  %7249 = vmatprep.subr.bf16.mxu0 0
  %7250 = vmatpush1.bf16.msra.mxu0 %v7046
  %7251 = vmatprep.subr.bf16.mxu0 0
  %7252 = vmatpush1.bf16.msra.mxu0 %v7047
  %7253 = vmatprep.subr.bf16.mxu0 0
  %7254 = vmatpush1.bf16.msra.mxu0 %v7048
  %7255 = vmatprep.subr.bf16.mxu0 0
  %7256 = vmatpush1.bf16.msra.mxu0 %v7049
  %7257 = vmatprep.subr.bf16.mxu0 0
  %7258 = vmatpush1.bf16.msra.mxu0 %v7050
  %7259 = vmatprep.subr.bf16.mxu0 0
  %7260 = vmatpush1.bf16.msra.mxu0 %v7051
  %7261 = vmatprep.subr.bf16.mxu0 0
  %7262 = vmatpush1.bf16.msra.mxu0 %v7052
  %7263 = vmatprep.mubr.bf16.mxu0 %v6667
  %7264 = vmatmul.mubr.bf16.gmra.mrb[0].mxu0 %v6666
  %v7265 = vpop.f32.mrb[0].mxu0
  %v7266 = vadd.f32 %v7201, %v7265
  %v7267 = vpop.f32.mrb[0].mxu0
  %v7268 = vpop.f32.mrb[0].mxu0
  %v7269 = vadd.f32 %v7204, %v7268
  %v7270 = vpop.f32.mrb[0].mxu0
  %7271 = vmatprep.mubr.bf16.mxu0 %v6673
  %7272 = vmatmul.mubr.bf16.gmra.mrb[0].mxu0 %v6672
  %v7273 = vpop.f32.mrb[0].mxu0
  %v7274 = vadd.f32 %v7209, %v7273
  %v7275 = vpop.f32.mrb[0].mxu0
  %v7276 = vpop.f32.mrb[0].mxu0
  %v7277 = vadd.f32 %v7212, %v7276
  %v7278 = vpop.f32.mrb[0].mxu0
  %7279 = vmatprep.mubr.bf16.mxu0 %v6679
  %7280 = vmatmul.mubr.bf16.gmra.mrb[0].mxu0 %v6678
  %v7281 = vpop.f32.mrb[0].mxu0
  %v7282 = vadd.f32 %v7217, %v7281
  %v7283 = vpop.f32.mrb[0].mxu0
  %v7284 = vpop.f32.mrb[0].mxu0
  %v7285 = vadd.f32 %v7220, %v7284
  %v7286 = vpop.f32.mrb[0].mxu0
  %7287 = vmatprep.mubr.bf16.mxu0 %v6685
  %7288 = vmatmul.mubr.bf16.gmra.mrb[0].mxu0 %v6684
  %v7289 = vpop.f32.mrb[0].mxu0
  %v7290 = vadd.f32 %v7225, %v7289
  %v7291 = vpop.f32.mrb[0].mxu0
  %v7292 = vpop.f32.mrb[0].mxu0
  %v7293 = vadd.f32 %v7228, %v7292
  %v7294 = vpop.f32.mrb[0].mxu0
  %7295 = vdwg.mxu0
  %v7296 = vld [vmem:[%s6] sm:$0xff]
  %v7297 = vld [vmem:[%s6 + $0x8] sm:$0xff]
  %v7298 = vld [vmem:[%s6 + $0x10] sm:$0xff]
  %v7299 = vld [vmem:[%s6 + $0x18] sm:$0xff]
  %v7300 = vld [vmem:[%s6 + $0x20] sm:$0xff]
  %v7301 = vld [vmem:[%s6 + $0x28] sm:$0xff]
  %v7302 = vld [vmem:[%s6 + $0x30] sm:$0xff]
  %v7303 = vld [vmem:[%s6 + $0x38] sm:$0xff]
  %v7304 = vld [vmem:[%s6 + $0x40] sm:$0xff]
  %v7305 = vld [vmem:[%s6 + $0x48] sm:$0xff]
  %v7306 = vld [vmem:[%s6 + $0x50] sm:$0xff]
  %v7307 = vld [vmem:[%s6 + $0x58] sm:$0xff]
  %v7308 = vld [vmem:[%s6 + $0x60] sm:$0xff]
  %v7309 = vld [vmem:[%s6 + $0x68] sm:$0xff]
  %v7310 = vld [vmem:[%s6 + $0x70] sm:$0xff]
  %v7311 = vld [vmem:[%s6 + $0x78] sm:$0xff]
  %v7312 = vld [vmem:[%s6 + $0x80] sm:$0xff]
  %v7313 = vld [vmem:[%s6 + $0x88] sm:$0xff]
  %v7314 = vld [vmem:[%s6 + $0x90] sm:$0xff]
  %v7315 = vld [vmem:[%s6 + $0x98] sm:$0xff]
  %v7316 = vld [vmem:[%s6 + $0xa0] sm:$0xff]
  %v7317 = vld [vmem:[%s6 + $0xa8] sm:$0xff]
  %v7318 = vld [vmem:[%s6 + $0xb0] sm:$0xff]
  %v7319 = vld [vmem:[%s6 + $0xb8] sm:$0xff]
  %v7320 = vld [vmem:[%s6 + $0xc0] sm:$0xff]
  %v7321 = vld [vmem:[%s6 + $0xc8] sm:$0xff]
  %v7322 = vld [vmem:[%s6 + $0xd0] sm:$0xff]
  %v7323 = vld [vmem:[%s6 + $0xd8] sm:$0xff]
  %v7324 = vld [vmem:[%s6 + $0xe0] sm:$0xff]
  %v7325 = vld [vmem:[%s6 + $0xe8] sm:$0xff]
  %v7326 = vld [vmem:[%s6 + $0xf0] sm:$0xff]
  %v7327 = vld [vmem:[%s6 + $0xf8] sm:$0xff]
  %v7328 = vld [vmem:[%s6 + $0x100] sm:$0xff]
  %v7329 = vld [vmem:[%s6 + $0x108] sm:$0xff]
  %v7330 = vld [vmem:[%s6 + $0x110] sm:$0xff]
  %v7331 = vld [vmem:[%s6 + $0x118] sm:$0xff]
  %v7332 = vld [vmem:[%s6 + $0x120] sm:$0xff]
  %v7333 = vld [vmem:[%s6 + $0x128] sm:$0xff]
  %v7334 = vld [vmem:[%s6 + $0x130] sm:$0xff]
  %v7335 = vld [vmem:[%s6 + $0x138] sm:$0xff]
  %v7336 = vld [vmem:[%s6 + $0x140] sm:$0xff]
  %v7337 = vld [vmem:[%s6 + $0x148] sm:$0xff]
  %v7338 = vld [vmem:[%s6 + $0x150] sm:$0xff]
  %v7339 = vld [vmem:[%s6 + $0x158] sm:$0xff]
  %v7340 = vld [vmem:[%s6 + $0x160] sm:$0xff]
  %v7341 = vld [vmem:[%s6 + $0x168] sm:$0xff]
  %v7342 = vld [vmem:[%s6 + $0x170] sm:$0xff]
  %v7343 = vld [vmem:[%s6 + $0x178] sm:$0xff]
  %v7344 = vld [vmem:[%s6 + $0x180] sm:$0xff]
  %v7345 = vld [vmem:[%s6 + $0x188] sm:$0xff]
  %v7346 = vld [vmem:[%s6 + $0x190] sm:$0xff]
  %v7347 = vld [vmem:[%s6 + $0x198] sm:$0xff]
  %v7348 = vld [vmem:[%s6 + $0x1a0] sm:$0xff]
  %v7349 = vld [vmem:[%s6 + $0x1a8] sm:$0xff]
  %v7350 = vld [vmem:[%s6 + $0x1b0] sm:$0xff]
  %v7351 = vld [vmem:[%s6 + $0x1b8] sm:$0xff]
  %v7352 = vld [vmem:[%s6 + $0x1c0] sm:$0xff]
  %v7353 = vld [vmem:[%s6 + $0x1c8] sm:$0xff]
  %v7354 = vld [vmem:[%s6 + $0x1d0] sm:$0xff]
  %v7355 = vld [vmem:[%s6 + $0x1d8] sm:$0xff]
  %v7356 = vld [vmem:[%s6 + $0x1e0] sm:$0xff]
  %v7357 = vld [vmem:[%s6 + $0x1e8] sm:$0xff]
  %v7358 = vld [vmem:[%s6 + $0x1f0] sm:$0xff]
  %v7359 = vld [vmem:[%s6 + $0x1f8] sm:$0xff]
  %v7360 = vld [vmem:[%s6 + $0x200] sm:$0xff]
  %v7361 = vld [vmem:[%s6 + $0x208] sm:$0xff]
  %v7362 = vld [vmem:[%s6 + $0x210] sm:$0xff]
  %v7363 = vld [vmem:[%s6 + $0x218] sm:$0xff]
  %v7364 = vld [vmem:[%s6 + $0x220] sm:$0xff]
  %v7365 = vld [vmem:[%s6 + $0x228] sm:$0xff]
  %v7366 = vld [vmem:[%s6 + $0x230] sm:$0xff]
  %v7367 = vld [vmem:[%s6 + $0x238] sm:$0xff]
  %v7368 = vld [vmem:[%s6 + $0x240] sm:$0xff]
  %v7369 = vld [vmem:[%s6 + $0x248] sm:$0xff]
  %v7370 = vld [vmem:[%s6 + $0x250] sm:$0xff]
  %v7371 = vld [vmem:[%s6 + $0x258] sm:$0xff]
  %v7372 = vld [vmem:[%s6 + $0x260] sm:$0xff]
  %v7373 = vld [vmem:[%s6 + $0x268] sm:$0xff]
  %v7374 = vld [vmem:[%s6 + $0x270] sm:$0xff]
  %v7375 = vld [vmem:[%s6 + $0x278] sm:$0xff]
  %v7376 = vld [vmem:[%s6 + $0x280] sm:$0xff]
  %v7377 = vld [vmem:[%s6 + $0x288] sm:$0xff]
  %v7378 = vld [vmem:[%s6 + $0x290] sm:$0xff]
  %v7379 = vld [vmem:[%s6 + $0x298] sm:$0xff]
  %v7380 = vld [vmem:[%s6 + $0x2a0] sm:$0xff]
  %v7381 = vld [vmem:[%s6 + $0x2a8] sm:$0xff]
  %v7382 = vld [vmem:[%s6 + $0x2b0] sm:$0xff]
  %v7383 = vld [vmem:[%s6 + $0x2b8] sm:$0xff]
  %v7384 = vld [vmem:[%s6 + $0x2c0] sm:$0xff]
  %v7385 = vld [vmem:[%s6 + $0x2c8] sm:$0xff]
  %v7386 = vld [vmem:[%s6 + $0x2d0] sm:$0xff]
  %v7387 = vld [vmem:[%s6 + $0x2d8] sm:$0xff]
  %v7388 = vld [vmem:[%s6 + $0x2e0] sm:$0xff]
  %v7389 = vld [vmem:[%s6 + $0x2e8] sm:$0xff]
  %v7390 = vld [vmem:[%s6 + $0x2f0] sm:$0xff]
  %v7391 = vld [vmem:[%s6 + $0x2f8] sm:$0xff]
  %v7392 = vld [vmem:[%s7] sm:$0x3]
  %v7394 = vlaneseq
  %v7395 = vshrl.u32 %v7394, 7
  %v7396 = vsub.s32 0, %v7395
  %v7397 = vrot.slane %v7392, %v7396
  %v7398 = vlaneseq
  %v7399 = vshrl.u32 %v7398, 7
  %v7400 = vsub.s32 1, %v7399
  %v7401 = vrot.slane %v7392, %v7400
  %v7500 = vunpack.c.l.b16 %v7296
  %v7501 = vunpack.c.h.b16 %v7296
  %v7502 = vunpack.c.l.b16 %v7297
  %v7503 = vunpack.c.h.b16 %v7297
  %v7504 = vunpack.c.l.b16 %v7298
  %v7505 = vunpack.c.h.b16 %v7298
  %v7506 = vunpack.c.l.b16 %v7299
  %v7507 = vunpack.c.h.b16 %v7299
  %v7508 = vunpack.c.l.b16 %v7300
  %v7509 = vunpack.c.h.b16 %v7300
  %v7510 = vunpack.c.l.b16 %v7301
  %v7511 = vunpack.c.h.b16 %v7301
  %v7512 = vunpack.c.l.b16 %v7302
  %v7513 = vunpack.c.h.b16 %v7302
  %v7514 = vunpack.c.l.b16 %v7303
  %v7515 = vunpack.c.h.b16 %v7303
  %v7516 = vunpack.c.l.b16 %v7304
  %v7517 = vunpack.c.h.b16 %v7304
  %v7518 = vunpack.c.l.b16 %v7305
  %v7519 = vunpack.c.h.b16 %v7305
  %v7520 = vunpack.c.l.b16 %v7306
  %v7521 = vunpack.c.h.b16 %v7306
  %v7522 = vunpack.c.l.b16 %v7307
  %v7523 = vunpack.c.h.b16 %v7307
  %v7524 = vunpack.c.l.b16 %v7308
  %v7525 = vunpack.c.h.b16 %v7308
  %v7526 = vunpack.c.l.b16 %v7309
  %v7527 = vunpack.c.h.b16 %v7309
  %v7528 = vunpack.c.l.b16 %v7310
  %v7529 = vunpack.c.h.b16 %v7310
  %v7530 = vunpack.c.l.b16 %v7311
  %v7531 = vunpack.c.h.b16 %v7311
  %v7532 = vunpack.c.l.b16 %v7312
  %v7533 = vunpack.c.h.b16 %v7312
  %v7534 = vunpack.c.l.b16 %v7313
  %v7535 = vunpack.c.h.b16 %v7313
  %v7536 = vunpack.c.l.b16 %v7314
  %v7537 = vunpack.c.h.b16 %v7314
  %v7538 = vunpack.c.l.b16 %v7315
  %v7539 = vunpack.c.h.b16 %v7315
  %v7540 = vunpack.c.l.b16 %v7316
  %v7541 = vunpack.c.h.b16 %v7316
  %v7542 = vunpack.c.l.b16 %v7317
  %v7543 = vunpack.c.h.b16 %v7317
  %v7544 = vunpack.c.l.b16 %v7318
  %v7545 = vunpack.c.h.b16 %v7318
  %v7546 = vunpack.c.l.b16 %v7319
  %v7547 = vunpack.c.h.b16 %v7319
  %v7548 = vunpack.c.l.b16 %v7320
  %v7549 = vunpack.c.h.b16 %v7320
  %v7550 = vunpack.c.l.b16 %v7321
  %v7551 = vunpack.c.h.b16 %v7321
  %v7552 = vunpack.c.l.b16 %v7322
  %v7553 = vunpack.c.h.b16 %v7322
  %v7554 = vunpack.c.l.b16 %v7323
  %v7555 = vunpack.c.h.b16 %v7323
  %v7556 = vunpack.c.l.b16 %v7324
  %v7557 = vunpack.c.h.b16 %v7324
  %v7558 = vunpack.c.l.b16 %v7325
  %v7559 = vunpack.c.h.b16 %v7325
  %v7560 = vunpack.c.l.b16 %v7326
  %v7561 = vunpack.c.h.b16 %v7326
  %v7562 = vunpack.c.l.b16 %v7327
  %v7563 = vunpack.c.h.b16 %v7327
  %v7564 = vunpack.c.l.b16 %v7328
  %v7565 = vunpack.c.h.b16 %v7328
  %v7566 = vunpack.c.l.b16 %v7329
  %v7567 = vunpack.c.h.b16 %v7329
  %v7568 = vunpack.c.l.b16 %v7330
  %v7569 = vunpack.c.h.b16 %v7330
  %v7570 = vunpack.c.l.b16 %v7331
  %v7571 = vunpack.c.h.b16 %v7331
  %v7572 = vunpack.c.l.b16 %v7332
  %v7573 = vunpack.c.h.b16 %v7332
  %v7574 = vunpack.c.l.b16 %v7333
  %v7575 = vunpack.c.h.b16 %v7333
  %v7576 = vunpack.c.l.b16 %v7334
  %v7577 = vunpack.c.h.b16 %v7334
  %v7578 = vunpack.c.l.b16 %v7335
  %v7579 = vunpack.c.h.b16 %v7335
  %v7580 = vunpack.c.l.b16 %v7336
  %v7581 = vunpack.c.h.b16 %v7336
  %v7582 = vunpack.c.l.b16 %v7337
  %v7583 = vunpack.c.h.b16 %v7337
  %v7584 = vunpack.c.l.b16 %v7338
  %v7585 = vunpack.c.h.b16 %v7338
  %v7586 = vunpack.c.l.b16 %v7339
  %v7587 = vunpack.c.h.b16 %v7339
  %v7588 = vunpack.c.l.b16 %v7340
  %v7589 = vunpack.c.h.b16 %v7340
  %v7590 = vunpack.c.l.b16 %v7341
  %v7591 = vunpack.c.h.b16 %v7341
  %v7592 = vunpack.c.l.b16 %v7342
  %v7593 = vunpack.c.h.b16 %v7342
  %v7594 = vunpack.c.l.b16 %v7343
  %v7595 = vunpack.c.h.b16 %v7343
  %v7596 = vunpack.c.l.b16 %v7344
  %v7597 = vunpack.c.h.b16 %v7344
  %v7598 = vunpack.c.l.b16 %v7345
  %v7599 = vunpack.c.h.b16 %v7345
  %v7600 = vunpack.c.l.b16 %v7346
  %v7601 = vunpack.c.h.b16 %v7346
  %v7602 = vunpack.c.l.b16 %v7347
  %v7603 = vunpack.c.h.b16 %v7347
  %v7604 = vunpack.c.l.b16 %v7348
  %v7605 = vunpack.c.h.b16 %v7348
  %v7606 = vunpack.c.l.b16 %v7349
  %v7607 = vunpack.c.h.b16 %v7349
  %v7608 = vunpack.c.l.b16 %v7350
  %v7609 = vunpack.c.h.b16 %v7350
  %v7610 = vunpack.c.l.b16 %v7351
  %v7611 = vunpack.c.h.b16 %v7351
  %v7612 = vunpack.c.l.b16 %v7352
  %v7613 = vunpack.c.h.b16 %v7352
  %v7614 = vunpack.c.l.b16 %v7353
  %v7615 = vunpack.c.h.b16 %v7353
  %v7616 = vunpack.c.l.b16 %v7354
  %v7617 = vunpack.c.h.b16 %v7354
  %v7618 = vunpack.c.l.b16 %v7355
  %v7619 = vunpack.c.h.b16 %v7355
  %v7620 = vunpack.c.l.b16 %v7356
  %v7621 = vunpack.c.h.b16 %v7356
  %v7622 = vunpack.c.l.b16 %v7357
  %v7623 = vunpack.c.h.b16 %v7357
  %v7624 = vunpack.c.l.b16 %v7358
  %v7625 = vunpack.c.h.b16 %v7358
  %v7626 = vunpack.c.l.b16 %v7359
  %v7627 = vunpack.c.h.b16 %v7359
  %v7628 = vunpack.c.l.b16 %v7360
  %v7629 = vunpack.c.h.b16 %v7360
  %v7630 = vunpack.c.l.b16 %v7361
  %v7631 = vunpack.c.h.b16 %v7361
  %v7632 = vunpack.c.l.b16 %v7362
  %v7633 = vunpack.c.h.b16 %v7362
  %v7634 = vunpack.c.l.b16 %v7363
  %v7635 = vunpack.c.h.b16 %v7363
  %v7636 = vunpack.c.l.b16 %v7364
  %v7637 = vunpack.c.h.b16 %v7364
  %v7638 = vunpack.c.l.b16 %v7365
  %v7639 = vunpack.c.h.b16 %v7365
  %v7640 = vunpack.c.l.b16 %v7366
  %v7641 = vunpack.c.h.b16 %v7366
  %v7642 = vunpack.c.l.b16 %v7367
  %v7643 = vunpack.c.h.b16 %v7367
  %v7644 = vunpack.c.l.b16 %v7368
  %v7645 = vunpack.c.h.b16 %v7368
  %v7646 = vunpack.c.l.b16 %v7369
  %v7647 = vunpack.c.h.b16 %v7369
  %v7648 = vunpack.c.l.b16 %v7370
  %v7649 = vunpack.c.h.b16 %v7370
  %v7650 = vunpack.c.l.b16 %v7371
  %v7651 = vunpack.c.h.b16 %v7371
  %v7652 = vunpack.c.l.b16 %v7372
  %v7653 = vunpack.c.h.b16 %v7372
  %v7654 = vunpack.c.l.b16 %v7373
  %v7655 = vunpack.c.h.b16 %v7373
  %v7656 = vunpack.c.l.b16 %v7374
  %v7657 = vunpack.c.h.b16 %v7374
  %v7658 = vunpack.c.l.b16 %v7375
  %v7659 = vunpack.c.h.b16 %v7375
  %v7660 = vunpack.c.l.b16 %v7376
  %v7661 = vunpack.c.h.b16 %v7376
  %v7662 = vunpack.c.l.b16 %v7377
  %v7663 = vunpack.c.h.b16 %v7377
  %v7664 = vunpack.c.l.b16 %v7378
  %v7665 = vunpack.c.h.b16 %v7378
  %v7666 = vunpack.c.l.b16 %v7379
  %v7667 = vunpack.c.h.b16 %v7379
  %v7668 = vunpack.c.l.b16 %v7380
  %v7669 = vunpack.c.h.b16 %v7380
  %v7670 = vunpack.c.l.b16 %v7381
  %v7671 = vunpack.c.h.b16 %v7381
  %v7672 = vunpack.c.l.b16 %v7382
  %v7673 = vunpack.c.h.b16 %v7382
  %v7674 = vunpack.c.l.b16 %v7383
  %v7675 = vunpack.c.h.b16 %v7383
  %v7676 = vunpack.c.l.b16 %v7384
  %v7677 = vunpack.c.h.b16 %v7384
  %v7678 = vunpack.c.l.b16 %v7385
  %v7679 = vunpack.c.h.b16 %v7385
  %v7680 = vunpack.c.l.b16 %v7386
  %v7681 = vunpack.c.h.b16 %v7386
  %v7682 = vunpack.c.l.b16 %v7387
  %v7683 = vunpack.c.h.b16 %v7387
  %v7684 = vunpack.c.l.b16 %v7388
  %v7685 = vunpack.c.h.b16 %v7388
  %v7686 = vunpack.c.l.b16 %v7389
  %v7687 = vunpack.c.h.b16 %v7389
  %v7688 = vunpack.c.l.b16 %v7390
  %v7689 = vunpack.c.h.b16 %v7390
  %v7690 = vunpack.c.l.b16 %v7391
  %v7691 = vunpack.c.h.b16 %v7391
  %v7692 = vpack.c.b16 %v7502, %v7500
  %v7693 = vpack.c.b16 %v7503, %v7501
  %v7694 = vpack.c.b16 %v7506, %v7504
  %v7695 = vpack.c.b16 %v7507, %v7505
  %v7696 = vpack.c.b16 %v7510, %v7508
  %v7697 = vpack.c.b16 %v7511, %v7509
  %v7698 = vpack.c.b16 %v7514, %v7512
  %v7699 = vpack.c.b16 %v7515, %v7513
  %v7700 = vpack.c.b16 %v7518, %v7516
  %v7701 = vpack.c.b16 %v7519, %v7517
  %v7702 = vpack.c.b16 %v7522, %v7520
  %v7703 = vpack.c.b16 %v7523, %v7521
  %v7704 = vpack.c.b16 %v7526, %v7524
  %v7705 = vpack.c.b16 %v7527, %v7525
  %v7706 = vpack.c.b16 %v7530, %v7528
  %v7707 = vpack.c.b16 %v7531, %v7529
  %v7708 = vpack.c.b16 %v7534, %v7532
  %v7709 = vpack.c.b16 %v7535, %v7533
  %v7710 = vpack.c.b16 %v7538, %v7536
  %v7711 = vpack.c.b16 %v7539, %v7537
  %v7712 = vpack.c.b16 %v7542, %v7540
  %v7713 = vpack.c.b16 %v7543, %v7541
  %v7714 = vpack.c.b16 %v7546, %v7544
  %v7715 = vpack.c.b16 %v7547, %v7545
  %v7716 = vpack.c.b16 %v7550, %v7548
  %v7717 = vpack.c.b16 %v7551, %v7549
  %v7718 = vpack.c.b16 %v7554, %v7552
  %v7719 = vpack.c.b16 %v7555, %v7553
  %v7720 = vpack.c.b16 %v7558, %v7556
  %v7721 = vpack.c.b16 %v7559, %v7557
  %v7722 = vpack.c.b16 %v7562, %v7560
  %v7723 = vpack.c.b16 %v7563, %v7561
  %v7724 = vpack.c.b16 %v7566, %v7564
  %v7725 = vpack.c.b16 %v7567, %v7565
  %v7726 = vpack.c.b16 %v7570, %v7568
  %v7727 = vpack.c.b16 %v7571, %v7569
  %v7728 = vpack.c.b16 %v7574, %v7572
  %v7729 = vpack.c.b16 %v7575, %v7573
  %v7730 = vpack.c.b16 %v7578, %v7576
  %v7731 = vpack.c.b16 %v7579, %v7577
  %v7732 = vpack.c.b16 %v7582, %v7580
  %v7733 = vpack.c.b16 %v7583, %v7581
  %v7734 = vpack.c.b16 %v7586, %v7584
  %v7735 = vpack.c.b16 %v7587, %v7585
  %v7736 = vpack.c.b16 %v7590, %v7588
  %v7737 = vpack.c.b16 %v7591, %v7589
  %v7738 = vpack.c.b16 %v7594, %v7592
  %v7739 = vpack.c.b16 %v7595, %v7593
  %v7740 = vpack.c.b16 %v7598, %v7596
  %v7741 = vpack.c.b16 %v7599, %v7597
  %v7742 = vpack.c.b16 %v7602, %v7600
  %v7743 = vpack.c.b16 %v7603, %v7601
  %v7744 = vpack.c.b16 %v7606, %v7604
  %v7745 = vpack.c.b16 %v7607, %v7605
  %v7746 = vpack.c.b16 %v7610, %v7608
  %v7747 = vpack.c.b16 %v7611, %v7609
  %v7748 = vpack.c.b16 %v7614, %v7612
  %v7749 = vpack.c.b16 %v7615, %v7613
  %v7750 = vpack.c.b16 %v7618, %v7616
  %v7751 = vpack.c.b16 %v7619, %v7617
  %v7752 = vpack.c.b16 %v7622, %v7620
  %v7753 = vpack.c.b16 %v7623, %v7621
  %v7754 = vpack.c.b16 %v7626, %v7624
  %v7755 = vpack.c.b16 %v7627, %v7625
  %v7756 = vpack.c.b16 %v7630, %v7628
  %v7757 = vpack.c.b16 %v7631, %v7629
  %v7758 = vpack.c.b16 %v7634, %v7632
  %v7759 = vpack.c.b16 %v7635, %v7633
  %v7760 = vpack.c.b16 %v7638, %v7636
  %v7761 = vpack.c.b16 %v7639, %v7637
  %v7762 = vpack.c.b16 %v7642, %v7640
  %v7763 = vpack.c.b16 %v7643, %v7641
  %v7764 = vpack.c.b16 %v7646, %v7644
  %v7765 = vpack.c.b16 %v7647, %v7645
  %v7766 = vpack.c.b16 %v7650, %v7648
  %v7767 = vpack.c.b16 %v7651, %v7649
  %v7768 = vpack.c.b16 %v7654, %v7652
  %v7769 = vpack.c.b16 %v7655, %v7653
  %v7770 = vpack.c.b16 %v7658, %v7656
  %v7771 = vpack.c.b16 %v7659, %v7657
  %v7772 = vpack.c.b16 %v7662, %v7660
  %v7773 = vpack.c.b16 %v7663, %v7661
  %v7774 = vpack.c.b16 %v7666, %v7664
  %v7775 = vpack.c.b16 %v7667, %v7665
  %v7776 = vpack.c.b16 %v7670, %v7668
  %v7777 = vpack.c.b16 %v7671, %v7669
  %v7778 = vpack.c.b16 %v7674, %v7672
  %v7779 = vpack.c.b16 %v7675, %v7673
  %v7780 = vpack.c.b16 %v7678, %v7676
  %v7781 = vpack.c.b16 %v7679, %v7677
  %v7782 = vpack.c.b16 %v7682, %v7680
  %v7783 = vpack.c.b16 %v7683, %v7681
  %v7784 = vpack.c.b16 %v7686, %v7684
  %v7785 = vpack.c.b16 %v7687, %v7685
  %v7786 = vpack.c.b16 %v7690, %v7688
  %v7787 = vpack.c.b16 %v7691, %v7689
  %7884 = vmatprep.subr.bf16.mxu0 %v7693
  %7885 = vmatpush1.bf16.msra.mxu0 %v7692
  %7886 = vmatprep.subr.bf16.mxu0 %v7695
  %7887 = vmatpush1.bf16.msra.mxu0 %v7694
  %7888 = vmatprep.subr.bf16.mxu0 %v7697
  %7889 = vmatpush1.bf16.msra.mxu0 %v7696
  %7890 = vmatprep.subr.bf16.mxu0 %v7699
  %7891 = vmatpush1.bf16.msra.mxu0 %v7698
  %7892 = vmatprep.subr.bf16.mxu0 %v7701
  %7893 = vmatpush1.bf16.msra.mxu0 %v7700
  %7894 = vmatprep.subr.bf16.mxu0 %v7703
  %7895 = vmatpush1.bf16.msra.mxu0 %v7702
  %7896 = vmatprep.subr.bf16.mxu0 %v7705
  %7897 = vmatpush1.bf16.msra.mxu0 %v7704
  %7898 = vmatprep.subr.bf16.mxu0 %v7707
  %7899 = vmatpush1.bf16.msra.mxu0 %v7706
  %7900 = vmatprep.subr.bf16.mxu0 %v7709
  %7901 = vmatpush1.bf16.msra.mxu0 %v7708
  %7902 = vmatprep.subr.bf16.mxu0 %v7711
  %7903 = vmatpush1.bf16.msra.mxu0 %v7710
  %7904 = vmatprep.subr.bf16.mxu0 %v7713
  %7905 = vmatpush1.bf16.msra.mxu0 %v7712
  %7906 = vmatprep.subr.bf16.mxu0 %v7715
  %7907 = vmatpush1.bf16.msra.mxu0 %v7714
  %7908 = vmatprep.subr.bf16.mxu0 %v7717
  %7909 = vmatpush1.bf16.msra.mxu0 %v7716
  %7910 = vmatprep.subr.bf16.mxu0 %v7719
  %7911 = vmatpush1.bf16.msra.mxu0 %v7718
  %7912 = vmatprep.subr.bf16.mxu0 %v7721
  %7913 = vmatpush1.bf16.msra.mxu0 %v7720
  %7914 = vmatprep.subr.bf16.mxu0 %v7723
  %7915 = vmatpush1.bf16.msra.mxu0 %v7722
  %7916 = vmatprep.mubr.bf16.mxu0 %v6687
  %7917 = vmatmul.mubr.bf16.gmra.mrb[0].mxu0 %v6686
  %v7918 = vpop.f32.mrb[0].mxu0
  %v7919 = vadd.f32 %v7397, %v7918
  %v7920 = vpop.f32.mrb[0].mxu0
  %v7921 = vadd.f32 %v7401, %v7920
  %v7922 = vpop.f32.mrb[0].mxu0
  %v7923 = vadd.f32 %v7397, %v7922
  %v7924 = vpop.f32.mrb[0].mxu0
  %v7925 = vadd.f32 %v7401, %v7924
  %7926 = vmatprep.mubr.bf16.mxu0 %v6693
  %7927 = vmatmul.mubr.bf16.gmra.mrb[0].mxu0 %v6692
  %v7928 = vpop.f32.mrb[0].mxu0
  %v7929 = vadd.f32 %v7397, %v7928
  %v7930 = vpop.f32.mrb[0].mxu0
  %v7931 = vadd.f32 %v7401, %v7930
  %v7932 = vpop.f32.mrb[0].mxu0
  %v7933 = vadd.f32 %v7397, %v7932
  %v7934 = vpop.f32.mrb[0].mxu0
  %v7935 = vadd.f32 %v7401, %v7934
  %7936 = vmatprep.mubr.bf16.mxu0 %v6699
  %7937 = vmatmul.mubr.bf16.gmra.mrb[0].mxu0 %v6698
  %v7938 = vpop.f32.mrb[0].mxu0
  %v7939 = vadd.f32 %v7397, %v7938
  %v7940 = vpop.f32.mrb[0].mxu0
  %v7941 = vadd.f32 %v7401, %v7940
  %v7942 = vpop.f32.mrb[0].mxu0
  %v7943 = vadd.f32 %v7397, %v7942
  %v7944 = vpop.f32.mrb[0].mxu0
  %v7945 = vadd.f32 %v7401, %v7944
  %7946 = vmatprep.mubr.bf16.mxu0 %v6705
  %7947 = vmatmul.mubr.bf16.gmra.mrb[0].mxu0 %v6704
  %v7948 = vpop.f32.mrb[0].mxu0
  %v7949 = vadd.f32 %v7397, %v7948
  %v7950 = vpop.f32.mrb[0].mxu0
  %v7951 = vadd.f32 %v7401, %v7950
  %v7952 = vpop.f32.mrb[0].mxu0
  %v7953 = vadd.f32 %v7397, %v7952
  %v7954 = vpop.f32.mrb[0].mxu0
  %v7955 = vadd.f32 %v7401, %v7954
  %7956 = vdwg.mxu0
  %7957 = vmatprep.subr.bf16.mxu0 %v7725
  %7958 = vmatpush1.bf16.msra.mxu0 %v7724
  %7959 = vmatprep.subr.bf16.mxu0 %v7727
  %7960 = vmatpush1.bf16.msra.mxu0 %v7726
  %7961 = vmatprep.subr.bf16.mxu0 %v7729
  %7962 = vmatpush1.bf16.msra.mxu0 %v7728
  %7963 = vmatprep.subr.bf16.mxu0 %v7731
  %7964 = vmatpush1.bf16.msra.mxu0 %v7730
  %7965 = vmatprep.subr.bf16.mxu0 %v7733
  %7966 = vmatpush1.bf16.msra.mxu0 %v7732
  %7967 = vmatprep.subr.bf16.mxu0 %v7735
  %7968 = vmatpush1.bf16.msra.mxu0 %v7734
  %7969 = vmatprep.subr.bf16.mxu0 %v7737
  %7970 = vmatpush1.bf16.msra.mxu0 %v7736
  %7971 = vmatprep.subr.bf16.mxu0 %v7739
  %7972 = vmatpush1.bf16.msra.mxu0 %v7738
  %7973 = vmatprep.subr.bf16.mxu0 %v7741
  %7974 = vmatpush1.bf16.msra.mxu0 %v7740
  %7975 = vmatprep.subr.bf16.mxu0 %v7743
  %7976 = vmatpush1.bf16.msra.mxu0 %v7742
  %7977 = vmatprep.subr.bf16.mxu0 %v7745
  %7978 = vmatpush1.bf16.msra.mxu0 %v7744
  %7979 = vmatprep.subr.bf16.mxu0 %v7747
  %7980 = vmatpush1.bf16.msra.mxu0 %v7746
  %7981 = vmatprep.subr.bf16.mxu0 %v7749
  %7982 = vmatpush1.bf16.msra.mxu0 %v7748
  %7983 = vmatprep.subr.bf16.mxu0 %v7751
  %7984 = vmatpush1.bf16.msra.mxu0 %v7750
  %7985 = vmatprep.subr.bf16.mxu0 %v7753
  %7986 = vmatpush1.bf16.msra.mxu0 %v7752
  %7987 = vmatprep.subr.bf16.mxu0 %v7755
  %7988 = vmatpush1.bf16.msra.mxu0 %v7754
  %7989 = vmatprep.mubr.bf16.mxu0 %v6689
  %7990 = vmatmul.mubr.bf16.gmra.mrb[0].mxu0 %v6688
  %v7991 = vpop.f32.mrb[0].mxu0
  %v7992 = vadd.f32 %v7919, %v7991
  %v7993 = vpop.f32.mrb[0].mxu0
  %v7994 = vadd.f32 %v7921, %v7993
  %v7995 = vpop.f32.mrb[0].mxu0
  %v7996 = vadd.f32 %v7923, %v7995
  %v7997 = vpop.f32.mrb[0].mxu0
  %v7998 = vadd.f32 %v7925, %v7997
  %7999 = vmatprep.mubr.bf16.mxu0 %v6695
  %8000 = vmatmul.mubr.bf16.gmra.mrb[0].mxu0 %v6694
  %v8001 = vpop.f32.mrb[0].mxu0
  %v8002 = vadd.f32 %v7929, %v8001
  %v8003 = vpop.f32.mrb[0].mxu0
  %v8004 = vadd.f32 %v7931, %v8003
  %v8005 = vpop.f32.mrb[0].mxu0
  %v8006 = vadd.f32 %v7933, %v8005
  %v8007 = vpop.f32.mrb[0].mxu0
  %v8008 = vadd.f32 %v7935, %v8007
  %8009 = vmatprep.mubr.bf16.mxu0 %v6701
  %8010 = vmatmul.mubr.bf16.gmra.mrb[0].mxu0 %v6700
  %v8011 = vpop.f32.mrb[0].mxu0
  %v8012 = vadd.f32 %v7939, %v8011
  %v8013 = vpop.f32.mrb[0].mxu0
  %v8014 = vadd.f32 %v7941, %v8013
  %v8015 = vpop.f32.mrb[0].mxu0
  %v8016 = vadd.f32 %v7943, %v8015
  %v8017 = vpop.f32.mrb[0].mxu0
  %v8018 = vadd.f32 %v7945, %v8017
  %8019 = vmatprep.mubr.bf16.mxu0 %v6707
  %8020 = vmatmul.mubr.bf16.gmra.mrb[0].mxu0 %v6706
  %v8021 = vpop.f32.mrb[0].mxu0
  %v8022 = vadd.f32 %v7949, %v8021
  %v8023 = vpop.f32.mrb[0].mxu0
  %v8024 = vadd.f32 %v7951, %v8023
  %v8025 = vpop.f32.mrb[0].mxu0
  %v8026 = vadd.f32 %v7953, %v8025
  %v8027 = vpop.f32.mrb[0].mxu0
  %v8028 = vadd.f32 %v7955, %v8027
  %8029 = vdwg.mxu0
  %8030 = vmatprep.subr.bf16.mxu0 %v7757
  %8031 = vmatpush1.bf16.msra.mxu0 %v7756
  %8032 = vmatprep.subr.bf16.mxu0 %v7759
  %8033 = vmatpush1.bf16.msra.mxu0 %v7758
  %8034 = vmatprep.subr.bf16.mxu0 %v7761
  %8035 = vmatpush1.bf16.msra.mxu0 %v7760
  %8036 = vmatprep.subr.bf16.mxu0 %v7763
  %8037 = vmatpush1.bf16.msra.mxu0 %v7762
  %8038 = vmatprep.subr.bf16.mxu0 %v7765
  %8039 = vmatpush1.bf16.msra.mxu0 %v7764
  %8040 = vmatprep.subr.bf16.mxu0 %v7767
  %8041 = vmatpush1.bf16.msra.mxu0 %v7766
  %8042 = vmatprep.subr.bf16.mxu0 %v7769
  %8043 = vmatpush1.bf16.msra.mxu0 %v7768
  %8044 = vmatprep.subr.bf16.mxu0 %v7771
  %8045 = vmatpush1.bf16.msra.mxu0 %v7770
  %8046 = vmatprep.subr.bf16.mxu0 %v7773
  %8047 = vmatpush1.bf16.msra.mxu0 %v7772
  %8048 = vmatprep.subr.bf16.mxu0 %v7775
  %8049 = vmatpush1.bf16.msra.mxu0 %v7774
  %8050 = vmatprep.subr.bf16.mxu0 %v7777
  %8051 = vmatpush1.bf16.msra.mxu0 %v7776
  %8052 = vmatprep.subr.bf16.mxu0 %v7779
  %8053 = vmatpush1.bf16.msra.mxu0 %v7778
  %8054 = vmatprep.subr.bf16.mxu0 %v7781
  %8055 = vmatpush1.bf16.msra.mxu0 %v7780
  %8056 = vmatprep.subr.bf16.mxu0 %v7783
  %8057 = vmatpush1.bf16.msra.mxu0 %v7782
  %8058 = vmatprep.subr.bf16.mxu0 %v7785
  %8059 = vmatpush1.bf16.msra.mxu0 %v7784
  %8060 = vmatprep.subr.bf16.mxu0 %v7787
  %8061 = vmatpush1.bf16.msra.mxu0 %v7786
  %8062 = vmatprep.mubr.bf16.mxu0 %v6691
  %8063 = vmatmul.mubr.bf16.gmra.mrb[0].mxu0 %v6690
  %v8064 = vpop.f32.mrb[0].mxu0
  %v8065 = vadd.f32 %v7992, %v8064
  %v8066 = vpop.f32.mrb[0].mxu0
  %v8067 = vadd.f32 %v7994, %v8066
  %v8068 = vpop.f32.mrb[0].mxu0
  %v8069 = vadd.f32 %v7996, %v8068
  %v8070 = vpop.f32.mrb[0].mxu0
  %v8071 = vadd.f32 %v7998, %v8070
  %8072 = vmatprep.mubr.bf16.mxu0 %v6697
  %8073 = vmatmul.mubr.bf16.gmra.mrb[0].mxu0 %v6696
  %v8074 = vpop.f32.mrb[0].mxu0
  %v8075 = vadd.f32 %v8002, %v8074
  %v8076 = vpop.f32.mrb[0].mxu0
  %v8077 = vadd.f32 %v8004, %v8076
  %v8078 = vpop.f32.mrb[0].mxu0
  %v8079 = vadd.f32 %v8006, %v8078
  %v8080 = vpop.f32.mrb[0].mxu0
  %v8081 = vadd.f32 %v8008, %v8080
  %8082 = vmatprep.mubr.bf16.mxu0 %v6703
  %8083 = vmatmul.mubr.bf16.gmra.mrb[0].mxu0 %v6702
  %v8084 = vpop.f32.mrb[0].mxu0
  %v8085 = vadd.f32 %v8012, %v8084
  %v8086 = vpop.f32.mrb[0].mxu0
  %v8087 = vadd.f32 %v8014, %v8086
  %v8088 = vpop.f32.mrb[0].mxu0
  %v8089 = vadd.f32 %v8016, %v8088
  %v8090 = vpop.f32.mrb[0].mxu0
  %v8091 = vadd.f32 %v8018, %v8090
  %8092 = vmatprep.mubr.bf16.mxu0 %v6709
  %8093 = vmatmul.mubr.bf16.gmra.mrb[0].mxu0 %v6708
  %v8094 = vpop.f32.mrb[0].mxu0
  %v8095 = vadd.f32 %v8022, %v8094
  %v8096 = vpop.f32.mrb[0].mxu0
  %v8097 = vadd.f32 %v8024, %v8096
  %v8098 = vpop.f32.mrb[0].mxu0
  %v8099 = vadd.f32 %v8026, %v8098
  %v8100 = vpop.f32.mrb[0].mxu0
  %v8101 = vadd.f32 %v8028, %v8100
  %8102 = vdwg.mxu0
  %v8103 = vpack.c.bf16 %v7269, %v7266
  %v8104 = vpack.c.bf16 %v7277, %v7274
  %v8105 = vpack.c.bf16 %v7285, %v7282
  %v8106 = vpack.c.bf16 %v7293, %v7290
  %v8107 = vpack.c.bf16 %v8069, %v8065
  %v8108 = vpack.c.bf16 %v8079, %v8075
  %v8109 = vpack.c.bf16 %v8089, %v8085
  %v8110 = vpack.c.bf16 %v8099, %v8095
  %v8111 = vpack.c.bf16 %v8071, %v8067
  %v8112 = vpack.c.bf16 %v8081, %v8077
  %v8113 = vpack.c.bf16 %v8091, %v8087
  %v8114 = vpack.c.bf16 %v8101, %v8097
  %v8116 = vsel %vm3274, %v8103, 0
  %v8119 = vsel %vm3274, %v8104, 0
  %v8122 = vsel %vm3274, %v8105, 0
  %v8125 = vsel %vm3274, %v8106, 0
  %v8128 = vsel %vm3274, %v8107, 0
  %v8131 = vsel %vm3274, %v8108, 0
  %v8134 = vsel %vm3274, %v8109, 0
  %v8137 = vsel %vm3274, %v8110, 0
  %8139 = vmatprep.subr.bf16.mxu0 0
  %8140 = vmatpush1.bf16.xpose.msra.mxu0 %v8128
  %8141 = vmatprep.subr.bf16.mxu0 0
  %8142 = vmatpush1.bf16.xpose.msra.mxu0 %v8131
  %8143 = vmatprep.subr.bf16.mxu0 0
  %8144 = vmatpush1.bf16.xpose.msra.mxu0 %v8134
  %8145 = vmatprep.subr.bf16.mxu0 0
  %8146 = vmatpush1.bf16.xpose.msra.mxu0 %v8137
  %8147 = vmatprep.subr.bf16.mxu0 0
  %8148 = vmatpush1.bf16.xpose.msra.mxu0 0
  %8149 = vmatprep.subr.bf16.mxu0 0
  %8150 = vmatpush1.bf16.xpose.msra.mxu0 0
  %8151 = vmatprep.subr.bf16.mxu0 0
  %8152 = vmatpush1.bf16.xpose.msra.mxu0 0
  %8153 = vmatprep.subr.bf16.mxu0 0
  %8154 = vmatpush1.bf16.xpose.msra.mxu0 0
  %8155 = vmatprep.subr.bf16.mxu0 0
  %8156 = vmatpush1.bf16.xpose.msra.mxu0 0
  %8157 = vmatprep.subr.bf16.mxu0 0
  %8158 = vmatpush1.bf16.xpose.msra.mxu0 0
  %8159 = vmatprep.subr.bf16.mxu0 0
  %8160 = vmatpush1.bf16.xpose.msra.mxu0 0
  %8161 = vmatprep.subr.bf16.mxu0 0
  %8162 = vmatpush1.bf16.xpose.msra.mxu0 0
  %8163 = vmatprep.subr.bf16.mxu0 0
  %8164 = vmatpush1.bf16.xpose.msra.mxu0 0
  %8165 = vmatprep.subr.bf16.mxu0 0
  %8166 = vmatpush1.bf16.xpose.msra.mxu0 0
  %8167 = vmatprep.subr.bf16.mxu0 0
  %8168 = vmatpush1.bf16.xpose.msra.mxu0 0
  %8169 = vmatprep.subr.bf16.mxu0 0
  %8170 = vmatpush1.bf16.xpose.msra.mxu0 0
  %8171 = vmatprep.mubr.bf16.mxu0 0
  %8172 = vmatmul.mubr.bf16.gmra.mrb[0].mxu0 %v8116
  %v8173 = vpop.f32.mrb[0].mxu0
  %v8174 = vadd.f32 0.0, %v8173
  %v8175 = vpop.f32.mrb[0].mxu0
  %v8176 = vpop.f32.mrb[0].mxu0
  %v8177 = vadd.f32 0.0, %v8176
  %v8178 = vpop.f32.mrb[0].mxu0
  %8179 = vmatprep.mubr.bf16.mxu0 0
  %8180 = vmatmul.mubr.bf16.gmra.mrb[0].mxu0 %v8119
  %v8181 = vpop.f32.mrb[0].mxu0
  %v8182 = vadd.f32 0.0, %v8181
  %v8183 = vpop.f32.mrb[0].mxu0
  %v8184 = vpop.f32.mrb[0].mxu0
  %v8185 = vadd.f32 0.0, %v8184
  %v8186 = vpop.f32.mrb[0].mxu0
  %8187 = vmatprep.mubr.bf16.mxu0 0
  %8188 = vmatmul.mubr.bf16.gmra.mrb[0].mxu0 %v8122
  %v8189 = vpop.f32.mrb[0].mxu0
  %v8190 = vadd.f32 0.0, %v8189
  %v8191 = vpop.f32.mrb[0].mxu0
  %v8192 = vpop.f32.mrb[0].mxu0
  %v8193 = vadd.f32 0.0, %v8192
  %v8194 = vpop.f32.mrb[0].mxu0
  %8195 = vmatprep.mubr.bf16.mxu0 0
  %8196 = vmatmul.mubr.bf16.gmra.mrb[0].mxu0 %v8125
  %v8197 = vpop.f32.mrb[0].mxu0
  %v8198 = vadd.f32 0.0, %v8197
  %v8199 = vpop.f32.mrb[0].mxu0
  %v8200 = vpop.f32.mrb[0].mxu0
  %v8201 = vadd.f32 0.0, %v8200
  %v8202 = vpop.f32.mrb[0].mxu0
  %8203 = vdwg.mxu0
  %v8204 = vsel %vm3369, 1e-09, %v8174
  %v8205 = vsel %vm3369, 1e-09, %v8177
  %v8206 = vsel %vm3369, 1e-09, %v8182
  %v8207 = vsel %vm3369, 1e-09, %v8185
  %v8208 = vsel %vm3369, 1e-09, %v8190
  %v8209 = vsel %vm3369, 1e-09, %v8193
  %v8210 = vsel %vm3369, 1e-09, %v8198
  %v8211 = vsel %vm3369, 1e-09, %v8201
  %v8212 = vadd.f32 %v8204, %v1473
  %v8213 = vadd.f32 %v8205, %v1474
  %v8214 = vadd.f32 %v8206, %v1475
  %v8215 = vadd.f32 %v8207, %v1476
  %v8216 = vadd.f32 %v8208, %v1477
  %v8217 = vadd.f32 %v8209, %v1478
  %v8218 = vadd.f32 %v8210, %v1479
  %v8219 = vadd.f32 %v8211, %v1480
  %v8220 = vsel %vm3274, %v8212, -inf
  %8221 = vmax.xlane.f32.xlu0 %v8220
  %v8222 = vpop.xlane.xlu0 %8221
  %v8223 = vsel %vm3274, %v8213, -inf
  %8224 = vmax.xlane.f32.xlu0 %v8223
  %v8225 = vpop.xlane.xlu0 %8224
  %v8226 = vsel %vm3274, %v8214, -inf
  %8227 = vmax.xlane.f32.xlu0 %v8226
  %v8228 = vpop.xlane.xlu0 %8227
  %v8229 = vsel %vm3274, %v8215, -inf
  %8230 = vmax.xlane.f32.xlu0 %v8229
  %v8231 = vpop.xlane.xlu0 %8230
  %v8232 = vsel %vm3274, %v8216, -inf
  %8233 = vmax.xlane.f32.xlu0 %v8232
  %v8234 = vpop.xlane.xlu0 %8233
  %v8235 = vsel %vm3274, %v8217, -inf
  %8236 = vmax.xlane.f32.xlu0 %v8235
  %v8237 = vpop.xlane.xlu0 %8236
  %v8238 = vsel %vm3274, %v8218, -inf
  %8239 = vmax.xlane.f32.xlu0 %v8238
  %v8240 = vpop.xlane.xlu0 %8239
  %v8241 = vsel %vm3274, %v8219, -inf
  %8242 = vmax.xlane.f32.xlu0 %v8241
  %v8243 = vpop.xlane.xlu0 %8242
  %v8244 = vsub.f32 %v8212, %v8222
  %v8245 = vsub.f32 %v8213, %v8225
  %v8246 = vsub.f32 %v8214, %v8228
  %v8247 = vsub.f32 %v8215, %v8231
  %v8248 = vsub.f32 %v8216, %v8234
  %v8249 = vsub.f32 %v8217, %v8237
  %v8250 = vsub.f32 %v8218, %v8240
  %v8251 = vsub.f32 %v8219, %v8243
  %v8252 = vmul.f32 %v8244, 1.442695
  %v8253 = vpow.pop %v8252
  %v8254 = vmul.f32 %v8245, 1.442695
  %v8255 = vpow.pop %v8254
  %v8256 = vmul.f32 %v8246, 1.442695
  %v8257 = vpow.pop %v8256
  %v8258 = vmul.f32 %v8247, 1.442695
  %v8259 = vpow.pop %v8258
  %v8260 = vmul.f32 %v8248, 1.442695
  %v8261 = vpow.pop %v8260
  %v8262 = vmul.f32 %v8249, 1.442695
  %v8263 = vpow.pop %v8262
  %v8264 = vmul.f32 %v8250, 1.442695
  %v8265 = vpow.pop %v8264
  %v8266 = vmul.f32 %v8251, 1.442695
  %v8267 = vpow.pop %v8266
  %v8268 = vsel %vm3274, %v8253, 0.0
  %8269 = vadd.xlane.f32.xlu0 %v8268
  %v8270 = vpop.xlane.xlu0 %8269
  %v8271 = vsel %vm3274, %v8255, 0.0
  %8272 = vadd.xlane.f32.xlu0 %v8271
  %v8273 = vpop.xlane.xlu0 %8272
  %v8274 = vsel %vm3274, %v8257, 0.0
  %8275 = vadd.xlane.f32.xlu0 %v8274
  %v8276 = vpop.xlane.xlu0 %8275
  %v8277 = vsel %vm3274, %v8259, 0.0
  %8278 = vadd.xlane.f32.xlu0 %v8277
  %v8279 = vpop.xlane.xlu0 %8278
  %v8280 = vsel %vm3274, %v8261, 0.0
  %8281 = vadd.xlane.f32.xlu0 %v8280
  %v8282 = vpop.xlane.xlu0 %8281
  %v8283 = vsel %vm3274, %v8263, 0.0
  %8284 = vadd.xlane.f32.xlu0 %v8283
  %v8285 = vpop.xlane.xlu0 %8284
  %v8286 = vsel %vm3274, %v8265, 0.0
  %8287 = vadd.xlane.f32.xlu0 %v8286
  %v8288 = vpop.xlane.xlu0 %8287
  %v8289 = vsel %vm3274, %v8267, 0.0
  %8290 = vadd.xlane.f32.xlu0 %v8289
  %v8291 = vpop.xlane.xlu0 %8290
  %v8292 = vrcp.pop %v8270
  %v8293 = vrcp.pop %v8273
  %v8294 = vrcp.pop %v8276
  %v8295 = vrcp.pop %v8279
  %v8296 = vrcp.pop %v8282
  %v8297 = vrcp.pop %v8285
  %v8298 = vrcp.pop %v8288
  %v8299 = vrcp.pop %v8291
  %v8300 = vmul.f32 %v8253, %v8292
  %v8301 = vmul.f32 %v8255, %v8293
  %v8302 = vmul.f32 %v8257, %v8294
  %v8303 = vmul.f32 %v8259, %v8295
  %v8304 = vmul.f32 %v8261, %v8296
  %v8305 = vmul.f32 %v8263, %v8297
  %v8306 = vmul.f32 %v8265, %v8298
  %v8307 = vmul.f32 %v8267, %v8299
  %v8308 = vpack.c.bf16 %v8301, %v8300
  %v8309 = vpack.c.bf16 %v8303, %v8302
  %v8310 = vpack.c.bf16 %v8305, %v8304
  %v8311 = vpack.c.bf16 %v8307, %v8306
  %v8313 = vsel %vm3274, %v8308, 0
  %v8316 = vsel %vm3274, %v8309, 0
  %v8319 = vsel %vm3274, %v8310, 0
  %v8322 = vsel %vm3274, %v8311, 0
  %8324 = vmatprep.subr.bf16.mxu0 0
  %8325 = vmatpush1.bf16.msra.mxu0 %v8111
  %8326 = vmatprep.subr.bf16.mxu0 0
  %8327 = vmatpush1.bf16.msra.mxu0 %v8112
  %8328 = vmatprep.subr.bf16.mxu0 0
  %8329 = vmatpush1.bf16.msra.mxu0 %v8113
  %8330 = vmatprep.subr.bf16.mxu0 0
  %8331 = vmatpush1.bf16.msra.mxu0 %v8114
  %8332 = vmatprep.subr.bf16.mxu0 0
  %8333 = vmatpush1.bf16.msra.mxu0 0
  %8334 = vmatprep.subr.bf16.mxu0 0
  %8335 = vmatpush1.bf16.msra.mxu0 0
  %8336 = vmatprep.subr.bf16.mxu0 0
  %8337 = vmatpush1.bf16.msra.mxu0 0
  %8338 = vmatprep.subr.bf16.mxu0 0
  %8339 = vmatpush1.bf16.msra.mxu0 0
  %8340 = vmatprep.subr.bf16.mxu0 0
  %8341 = vmatpush1.bf16.msra.mxu0 0
  %8342 = vmatprep.subr.bf16.mxu0 0
  %8343 = vmatpush1.bf16.msra.mxu0 0
  %8344 = vmatprep.subr.bf16.mxu0 0
  %8345 = vmatpush1.bf16.msra.mxu0 0
  %8346 = vmatprep.subr.bf16.mxu0 0
  %8347 = vmatpush1.bf16.msra.mxu0 0
  %8348 = vmatprep.subr.bf16.mxu0 0
  %8349 = vmatpush1.bf16.msra.mxu0 0
  %8350 = vmatprep.subr.bf16.mxu0 0
  %8351 = vmatpush1.bf16.msra.mxu0 0
  %8352 = vmatprep.subr.bf16.mxu0 0
  %8353 = vmatpush1.bf16.msra.mxu0 0
  %8354 = vmatprep.subr.bf16.mxu0 0
  %8355 = vmatpush1.bf16.msra.mxu0 0
  %8356 = vmatprep.mubr.bf16.mxu0 0
  %8357 = vmatmul.mubr.bf16.gmra.mrb[0].mxu0 %v8313
  %v8358 = vpop.f32.mrb[0].mxu0
  %v8359 = vadd.f32 0.0, %v8358
  %v8360 = vpop.f32.mrb[0].mxu0
  %v8361 = vpop.f32.mrb[0].mxu0
  %v8362 = vadd.f32 0.0, %v8361
  %v8363 = vpop.f32.mrb[0].mxu0
  %8364 = vmatprep.mubr.bf16.mxu0 0
  %8365 = vmatmul.mubr.bf16.gmra.mrb[0].mxu0 %v8316
  %v8366 = vpop.f32.mrb[0].mxu0
  %v8367 = vadd.f32 0.0, %v8366
  %v8368 = vpop.f32.mrb[0].mxu0
  %v8369 = vpop.f32.mrb[0].mxu0
  %v8370 = vadd.f32 0.0, %v8369
  %v8371 = vpop.f32.mrb[0].mxu0
  %8372 = vmatprep.mubr.bf16.mxu0 0
  %8373 = vmatmul.mubr.bf16.gmra.mrb[0].mxu0 %v8319
  %v8374 = vpop.f32.mrb[0].mxu0
  %v8375 = vadd.f32 0.0, %v8374
  %v8376 = vpop.f32.mrb[0].mxu0
  %v8377 = vpop.f32.mrb[0].mxu0
  %v8378 = vadd.f32 0.0, %v8377
  %v8379 = vpop.f32.mrb[0].mxu0
  %8380 = vmatprep.mubr.bf16.mxu0 0
  %8381 = vmatmul.mubr.bf16.gmra.mrb[0].mxu0 %v8322
  %v8382 = vpop.f32.mrb[0].mxu0
  %v8383 = vadd.f32 0.0, %v8382
  %v8384 = vpop.f32.mrb[0].mxu0
  %v8385 = vpop.f32.mrb[0].mxu0
  %v8386 = vadd.f32 0.0, %v8385
  %v8387 = vpop.f32.mrb[0].mxu0
  %8388 = vdwg.mxu0
  %8393 = vrot.lane.b32.xlu0 %v8103, 64
  %v8394 = vpop.permute.xlu0 %8393
  %8395 = vrot.lane.b32.xlu0 %v8104, 64
  %v8396 = vpop.permute.xlu0 %8395
  %8397 = vrot.lane.b32.xlu0 %v8105, 64
  %v8398 = vpop.permute.xlu0 %8397
  %8399 = vrot.lane.b32.xlu0 %v8106, 64
  %v8400 = vpop.permute.xlu0 %8399
  %8405 = vrot.lane.b32.xlu0 %v8107, 64
  %v8406 = vpop.permute.xlu0 %8405
  %8407 = vrot.lane.b32.xlu0 %v8108, 64
  %v8408 = vpop.permute.xlu0 %8407
  %8409 = vrot.lane.b32.xlu0 %v8109, 64
  %v8410 = vpop.permute.xlu0 %8409
  %8411 = vrot.lane.b32.xlu0 %v8110, 64
  %v8412 = vpop.permute.xlu0 %8411
  %v8414 = vsel %vm3274, %v8394, 0
  %v8417 = vsel %vm3274, %v8396, 0
  %v8420 = vsel %vm3274, %v8398, 0
  %v8423 = vsel %vm3274, %v8400, 0
  %v8426 = vsel %vm3274, %v8406, 0
  %v8429 = vsel %vm3274, %v8408, 0
  %v8432 = vsel %vm3274, %v8410, 0
  %v8435 = vsel %vm3274, %v8412, 0
  %8437 = vmatprep.subr.bf16.mxu0 0
  %8438 = vmatpush1.bf16.xpose.msra.mxu0 %v8426
  %8439 = vmatprep.subr.bf16.mxu0 0
  %8440 = vmatpush1.bf16.xpose.msra.mxu0 %v8429
  %8441 = vmatprep.subr.bf16.mxu0 0
  %8442 = vmatpush1.bf16.xpose.msra.mxu0 %v8432
  %8443 = vmatprep.subr.bf16.mxu0 0
  %8444 = vmatpush1.bf16.xpose.msra.mxu0 %v8435
  %8445 = vmatprep.subr.bf16.mxu0 0
  %8446 = vmatpush1.bf16.xpose.msra.mxu0 0
  %8447 = vmatprep.subr.bf16.mxu0 0
  %8448 = vmatpush1.bf16.xpose.msra.mxu0 0
  %8449 = vmatprep.subr.bf16.mxu0 0
  %8450 = vmatpush1.bf16.xpose.msra.mxu0 0
  %8451 = vmatprep.subr.bf16.mxu0 0
  %8452 = vmatpush1.bf16.xpose.msra.mxu0 0
  %8453 = vmatprep.subr.bf16.mxu0 0
  %8454 = vmatpush1.bf16.xpose.msra.mxu0 0
  %8455 = vmatprep.subr.bf16.mxu0 0
  %8456 = vmatpush1.bf16.xpose.msra.mxu0 0
  %8457 = vmatprep.subr.bf16.mxu0 0
  %8458 = vmatpush1.bf16.xpose.msra.mxu0 0
  %8459 = vmatprep.subr.bf16.mxu0 0
  %8460 = vmatpush1.bf16.xpose.msra.mxu0 0
  %8461 = vmatprep.subr.bf16.mxu0 0
  %8462 = vmatpush1.bf16.xpose.msra.mxu0 0
  %8463 = vmatprep.subr.bf16.mxu0 0
  %8464 = vmatpush1.bf16.xpose.msra.mxu0 0
  %8465 = vmatprep.subr.bf16.mxu0 0
  %8466 = vmatpush1.bf16.xpose.msra.mxu0 0
  %8467 = vmatprep.subr.bf16.mxu0 0
  %8468 = vmatpush1.bf16.xpose.msra.mxu0 0
  %8469 = vmatprep.mubr.bf16.mxu0 0
  %8470 = vmatmul.mubr.bf16.gmra.mrb[0].mxu0 %v8414
  %v8471 = vpop.f32.mrb[0].mxu0
  %v8472 = vadd.f32 0.0, %v8471
  %v8473 = vpop.f32.mrb[0].mxu0
  %v8474 = vpop.f32.mrb[0].mxu0
  %v8475 = vadd.f32 0.0, %v8474
  %v8476 = vpop.f32.mrb[0].mxu0
  %8477 = vmatprep.mubr.bf16.mxu0 0
  %8478 = vmatmul.mubr.bf16.gmra.mrb[0].mxu0 %v8417
  %v8479 = vpop.f32.mrb[0].mxu0
  %v8480 = vadd.f32 0.0, %v8479
  %v8481 = vpop.f32.mrb[0].mxu0
  %v8482 = vpop.f32.mrb[0].mxu0
  %v8483 = vadd.f32 0.0, %v8482
  %v8484 = vpop.f32.mrb[0].mxu0
  %8485 = vmatprep.mubr.bf16.mxu0 0
  %8486 = vmatmul.mubr.bf16.gmra.mrb[0].mxu0 %v8420
  %v8487 = vpop.f32.mrb[0].mxu0
  %v8488 = vadd.f32 0.0, %v8487
  %v8489 = vpop.f32.mrb[0].mxu0
  %v8490 = vpop.f32.mrb[0].mxu0
  %v8491 = vadd.f32 0.0, %v8490
  %v8492 = vpop.f32.mrb[0].mxu0
  %8493 = vmatprep.mubr.bf16.mxu0 0
  %8494 = vmatmul.mubr.bf16.gmra.mrb[0].mxu0 %v8423
  %v8495 = vpop.f32.mrb[0].mxu0
  %v8496 = vadd.f32 0.0, %v8495
  %v8497 = vpop.f32.mrb[0].mxu0
  %v8498 = vpop.f32.mrb[0].mxu0
  %v8499 = vadd.f32 0.0, %v8498
  %v8500 = vpop.f32.mrb[0].mxu0
  %8501 = vdwg.mxu0
  %v8502 = vsel %vm3369, 1e-09, %v8472
  %v8503 = vsel %vm3369, 1e-09, %v8475
  %v8504 = vsel %vm3369, 1e-09, %v8480
  %v8505 = vsel %vm3369, 1e-09, %v8483
  %v8506 = vsel %vm3369, 1e-09, %v8488
  %v8507 = vsel %vm3369, 1e-09, %v8491
  %v8508 = vsel %vm3369, 1e-09, %v8496
  %v8509 = vsel %vm3369, 1e-09, %v8499
  %v8510 = vadd.f32 %v8502, %v1473
  %v8511 = vadd.f32 %v8503, %v1474
  %v8512 = vadd.f32 %v8504, %v1475
  %v8513 = vadd.f32 %v8505, %v1476
  %v8514 = vadd.f32 %v8506, %v1477
  %v8515 = vadd.f32 %v8507, %v1478
  %v8516 = vadd.f32 %v8508, %v1479
  %v8517 = vadd.f32 %v8509, %v1480
  %v8518 = vsel %vm3274, %v8510, -inf
  %8519 = vmax.xlane.f32.xlu0 %v8518
  %v8520 = vpop.xlane.xlu0 %8519
  %v8521 = vsel %vm3274, %v8511, -inf
  %8522 = vmax.xlane.f32.xlu0 %v8521
  %v8523 = vpop.xlane.xlu0 %8522
  %v8524 = vsel %vm3274, %v8512, -inf
  %8525 = vmax.xlane.f32.xlu0 %v8524
  %v8526 = vpop.xlane.xlu0 %8525
  %v8527 = vsel %vm3274, %v8513, -inf
  %8528 = vmax.xlane.f32.xlu0 %v8527
  %v8529 = vpop.xlane.xlu0 %8528
  %v8530 = vsel %vm3274, %v8514, -inf
  %8531 = vmax.xlane.f32.xlu0 %v8530
  %v8532 = vpop.xlane.xlu0 %8531
  %v8533 = vsel %vm3274, %v8515, -inf
  %8534 = vmax.xlane.f32.xlu0 %v8533
  %v8535 = vpop.xlane.xlu0 %8534
  %v8536 = vsel %vm3274, %v8516, -inf
  %8537 = vmax.xlane.f32.xlu0 %v8536
  %v8538 = vpop.xlane.xlu0 %8537
  %v8539 = vsel %vm3274, %v8517, -inf
  %8540 = vmax.xlane.f32.xlu0 %v8539
  %v8541 = vpop.xlane.xlu0 %8540
  %v8542 = vsub.f32 %v8510, %v8520
  %v8543 = vsub.f32 %v8511, %v8523
  %v8544 = vsub.f32 %v8512, %v8526
  %v8545 = vsub.f32 %v8513, %v8529
  %v8546 = vsub.f32 %v8514, %v8532
  %v8547 = vsub.f32 %v8515, %v8535
  %v8548 = vsub.f32 %v8516, %v8538
  %v8549 = vsub.f32 %v8517, %v8541
  %v8550 = vmul.f32 %v8542, 1.442695
  %v8551 = vpow.pop %v8550
  %v8552 = vmul.f32 %v8543, 1.442695
  %v8553 = vpow.pop %v8552
  %v8554 = vmul.f32 %v8544, 1.442695
  %v8555 = vpow.pop %v8554
  %v8556 = vmul.f32 %v8545, 1.442695
  %v8557 = vpow.pop %v8556
  %v8558 = vmul.f32 %v8546, 1.442695
  %v8559 = vpow.pop %v8558
  %v8560 = vmul.f32 %v8547, 1.442695
  %v8561 = vpow.pop %v8560
  %v8562 = vmul.f32 %v8548, 1.442695
  %v8563 = vpow.pop %v8562
  %v8564 = vmul.f32 %v8549, 1.442695
  %v8565 = vpow.pop %v8564
  %v8566 = vsel %vm3274, %v8551, 0.0
  %8567 = vadd.xlane.f32.xlu0 %v8566
  %v8568 = vpop.xlane.xlu0 %8567
  %v8569 = vsel %vm3274, %v8553, 0.0
  %8570 = vadd.xlane.f32.xlu0 %v8569
  %v8571 = vpop.xlane.xlu0 %8570
  %v8572 = vsel %vm3274, %v8555, 0.0
  %8573 = vadd.xlane.f32.xlu0 %v8572
  %v8574 = vpop.xlane.xlu0 %8573
  %v8575 = vsel %vm3274, %v8557, 0.0
  %8576 = vadd.xlane.f32.xlu0 %v8575
  %v8577 = vpop.xlane.xlu0 %8576
  %v8578 = vsel %vm3274, %v8559, 0.0
  %8579 = vadd.xlane.f32.xlu0 %v8578
  %v8580 = vpop.xlane.xlu0 %8579
  %v8581 = vsel %vm3274, %v8561, 0.0
  %8582 = vadd.xlane.f32.xlu0 %v8581
  %v8583 = vpop.xlane.xlu0 %8582
  %v8584 = vsel %vm3274, %v8563, 0.0
  %8585 = vadd.xlane.f32.xlu0 %v8584
  %v8586 = vpop.xlane.xlu0 %8585
  %v8587 = vsel %vm3274, %v8565, 0.0
  %8588 = vadd.xlane.f32.xlu0 %v8587
  %v8589 = vpop.xlane.xlu0 %8588
  %v8590 = vrcp.pop %v8568
  %v8591 = vrcp.pop %v8571
  %v8592 = vrcp.pop %v8574
  %v8593 = vrcp.pop %v8577
  %v8594 = vrcp.pop %v8580
  %v8595 = vrcp.pop %v8583
  %v8596 = vrcp.pop %v8586
  %v8597 = vrcp.pop %v8589
  %v8598 = vmul.f32 %v8551, %v8590
  %v8599 = vmul.f32 %v8553, %v8591
  %v8600 = vmul.f32 %v8555, %v8592
  %v8601 = vmul.f32 %v8557, %v8593
  %v8602 = vmul.f32 %v8559, %v8594
  %v8603 = vmul.f32 %v8561, %v8595
  %v8604 = vmul.f32 %v8563, %v8596
  %v8605 = vmul.f32 %v8565, %v8597
  %v8606 = vpack.c.bf16 %v8599, %v8598
  %v8607 = vpack.c.bf16 %v8601, %v8600
  %v8608 = vpack.c.bf16 %v8603, %v8602
  %v8609 = vpack.c.bf16 %v8605, %v8604
  %8614 = vrot.lane.b32.xlu0 %v8111, 64
  %v8615 = vpop.permute.xlu0 %8614
  %8616 = vrot.lane.b32.xlu0 %v8112, 64
  %v8617 = vpop.permute.xlu0 %8616
  %8618 = vrot.lane.b32.xlu0 %v8113, 64
  %v8619 = vpop.permute.xlu0 %8618
  %8620 = vrot.lane.b32.xlu0 %v8114, 64
  %v8621 = vpop.permute.xlu0 %8620
  %v8627 = vsel %vm3274, %v8606, 0
  %v8630 = vsel %vm3274, %v8607, 0
  %v8633 = vsel %vm3274, %v8608, 0
  %v8636 = vsel %vm3274, %v8609, 0
  %8638 = vmatprep.subr.bf16.mxu0 0
  %8639 = vmatpush1.bf16.msra.mxu0 %v8615
  %8640 = vmatprep.subr.bf16.mxu0 0
  %8641 = vmatpush1.bf16.msra.mxu0 %v8617
  %8642 = vmatprep.subr.bf16.mxu0 0
  %8643 = vmatpush1.bf16.msra.mxu0 %v8619
  %8644 = vmatprep.subr.bf16.mxu0 0
  %8645 = vmatpush1.bf16.msra.mxu0 %v8621
  %8646 = vmatprep.subr.bf16.mxu0 0
  %8647 = vmatpush1.bf16.msra.mxu0 0
  %8648 = vmatprep.subr.bf16.mxu0 0
  %8649 = vmatpush1.bf16.msra.mxu0 0
  %8650 = vmatprep.subr.bf16.mxu0 0
  %8651 = vmatpush1.bf16.msra.mxu0 0
  %8652 = vmatprep.subr.bf16.mxu0 0
  %8653 = vmatpush1.bf16.msra.mxu0 0
  %8654 = vmatprep.subr.bf16.mxu0 0
  %8655 = vmatpush1.bf16.msra.mxu0 0
  %8656 = vmatprep.subr.bf16.mxu0 0
  %8657 = vmatpush1.bf16.msra.mxu0 0
  %8658 = vmatprep.subr.bf16.mxu0 0
  %8659 = vmatpush1.bf16.msra.mxu0 0
  %8660 = vmatprep.subr.bf16.mxu0 0
  %8661 = vmatpush1.bf16.msra.mxu0 0
  %8662 = vmatprep.subr.bf16.mxu0 0
  %8663 = vmatpush1.bf16.msra.mxu0 0
  %8664 = vmatprep.subr.bf16.mxu0 0
  %8665 = vmatpush1.bf16.msra.mxu0 0
  %8666 = vmatprep.subr.bf16.mxu0 0
  %8667 = vmatpush1.bf16.msra.mxu0 0
  %8668 = vmatprep.subr.bf16.mxu0 0
  %8669 = vmatpush1.bf16.msra.mxu0 0
  %8670 = vmatprep.mubr.bf16.mxu0 0
  %8671 = vmatmul.mubr.bf16.gmra.mrb[0].mxu0 %v8627
  %v8672 = vpop.f32.mrb[0].mxu0
  %v8673 = vadd.f32 0.0, %v8672
  %v8674 = vpop.f32.mrb[0].mxu0
  %v8675 = vpop.f32.mrb[0].mxu0
  %v8676 = vadd.f32 0.0, %v8675
  %v8677 = vpop.f32.mrb[0].mxu0
  %8678 = vmatprep.mubr.bf16.mxu0 0
  %8679 = vmatmul.mubr.bf16.gmra.mrb[0].mxu0 %v8630
  %v8680 = vpop.f32.mrb[0].mxu0
  %v8681 = vadd.f32 0.0, %v8680
  %v8682 = vpop.f32.mrb[0].mxu0
  %v8683 = vpop.f32.mrb[0].mxu0
  %v8684 = vadd.f32 0.0, %v8683
  %v8685 = vpop.f32.mrb[0].mxu0
  %8686 = vmatprep.mubr.bf16.mxu0 0
  %8687 = vmatmul.mubr.bf16.gmra.mrb[0].mxu0 %v8633
  %v8688 = vpop.f32.mrb[0].mxu0
  %v8689 = vadd.f32 0.0, %v8688
  %v8690 = vpop.f32.mrb[0].mxu0
  %v8691 = vpop.f32.mrb[0].mxu0
  %v8692 = vadd.f32 0.0, %v8691
  %v8693 = vpop.f32.mrb[0].mxu0
  %8694 = vmatprep.mubr.bf16.mxu0 0
  %8695 = vmatmul.mubr.bf16.gmra.mrb[0].mxu0 %v8636
  %v8696 = vpop.f32.mrb[0].mxu0
  %v8697 = vadd.f32 0.0, %v8696
  %v8698 = vpop.f32.mrb[0].mxu0
  %v8699 = vpop.f32.mrb[0].mxu0
  %v8700 = vadd.f32 0.0, %v8699
  %v8701 = vpop.f32.mrb[0].mxu0
  %8702 = vdwg.mxu0
  %8711 = vrot.lane.b32.xlu0 %v8673, 64
  %v8712 = vpop.permute.xlu0 %8711
  %8713 = vrot.lane.b32.xlu0 %v8676, 64
  %v8714 = vpop.permute.xlu0 %8713
  %8715 = vrot.lane.b32.xlu0 %v8681, 64
  %v8716 = vpop.permute.xlu0 %8715
  %8717 = vrot.lane.b32.xlu0 %v8684, 64
  %v8718 = vpop.permute.xlu0 %8717
  %8719 = vrot.lane.b32.xlu0 %v8689, 64
  %v8720 = vpop.permute.xlu0 %8719
  %8721 = vrot.lane.b32.xlu0 %v8692, 64
  %v8722 = vpop.permute.xlu0 %8721
  %8723 = vrot.lane.b32.xlu0 %v8697, 64
  %v8724 = vpop.permute.xlu0 %8723
  %8725 = vrot.lane.b32.xlu0 %v8700, 64
  %v8726 = vpop.permute.xlu0 %8725
  %v8735 = vsel %vm3274, %v8359, %v8712
  %v8736 = vsel %vm3274, %v8362, %v8714
  %v8737 = vsel %vm3274, %v8367, %v8716
  %v8738 = vsel %vm3274, %v8370, %v8718
  %v8739 = vsel %vm3274, %v8375, %v8720
  %v8740 = vsel %vm3274, %v8378, %v8722
  %v8741 = vsel %vm3274, %v8383, %v8724
  %v8742 = vsel %vm3274, %v8386, %v8726
  %v8743 = vpack.c.bf16 %v8736, %v8735
  %v8744 = vpack.c.bf16 %v8738, %v8737
  %v8745 = vpack.c.bf16 %v8740, %v8739
  %v8746 = vpack.c.bf16 %v8742, %v8741
  %v8747 = vld [vmem:[%s8] sm:$0xff]
  %v8748 = vld [vmem:[%s8 + $0x8] sm:$0xff]
  %v8749 = vld [vmem:[%s8 + $0x10] sm:$0xff]
  %v8750 = vld [vmem:[%s8 + $0x18] sm:$0xff]
  %v8751 = vld [vmem:[%s8 + $0x20] sm:$0xff]
  %v8752 = vld [vmem:[%s8 + $0x28] sm:$0xff]
  %v8753 = vld [vmem:[%s8 + $0x30] sm:$0xff]
  %v8754 = vld [vmem:[%s8 + $0x38] sm:$0xff]
  %v8755 = vld [vmem:[%s8 + $0x40] sm:$0xff]
  %v8756 = vld [vmem:[%s8 + $0x48] sm:$0xff]
  %v8757 = vld [vmem:[%s8 + $0x50] sm:$0xff]
  %v8758 = vld [vmem:[%s8 + $0x58] sm:$0xff]
  %v8759 = vld [vmem:[%s8 + $0x60] sm:$0xff]
  %v8760 = vld [vmem:[%s8 + $0x68] sm:$0xff]
  %v8761 = vld [vmem:[%s8 + $0x70] sm:$0xff]
  %v8762 = vld [vmem:[%s8 + $0x78] sm:$0xff]
  %v8763 = vld [vmem:[%s8 + $0x80] sm:$0xff]
  %v8764 = vld [vmem:[%s8 + $0x88] sm:$0xff]
  %v8765 = vld [vmem:[%s8 + $0x90] sm:$0xff]
  %v8766 = vld [vmem:[%s8 + $0x98] sm:$0xff]
  %v8767 = vld [vmem:[%s8 + $0xa0] sm:$0xff]
  %v8768 = vld [vmem:[%s8 + $0xa8] sm:$0xff]
  %v8769 = vld [vmem:[%s8 + $0xb0] sm:$0xff]
  %v8770 = vld [vmem:[%s8 + $0xb8] sm:$0xff]
  %v8771 = vld [vmem:[%s8 + $0xc0] sm:$0xff]
  %v8772 = vld [vmem:[%s8 + $0xc8] sm:$0xff]
  %v8773 = vld [vmem:[%s8 + $0xd0] sm:$0xff]
  %v8774 = vld [vmem:[%s8 + $0xd8] sm:$0xff]
  %v8775 = vld [vmem:[%s8 + $0xe0] sm:$0xff]
  %v8776 = vld [vmem:[%s8 + $0xe8] sm:$0xff]
  %v8777 = vld [vmem:[%s8 + $0xf0] sm:$0xff]
  %v8778 = vld [vmem:[%s8 + $0xf8] sm:$0xff]
  %v8779 = vld [vmem:[%s8 + $0x100] sm:$0xff]
  %v8780 = vld [vmem:[%s8 + $0x108] sm:$0xff]
  %v8781 = vld [vmem:[%s8 + $0x110] sm:$0xff]
  %v8782 = vld [vmem:[%s8 + $0x118] sm:$0xff]
  %v8783 = vld [vmem:[%s8 + $0x120] sm:$0xff]
  %v8784 = vld [vmem:[%s8 + $0x128] sm:$0xff]
  %v8785 = vld [vmem:[%s8 + $0x130] sm:$0xff]
  %v8786 = vld [vmem:[%s8 + $0x138] sm:$0xff]
  %v8787 = vld [vmem:[%s8 + $0x140] sm:$0xff]
  %v8788 = vld [vmem:[%s8 + $0x148] sm:$0xff]
  %v8789 = vld [vmem:[%s8 + $0x150] sm:$0xff]
  %v8790 = vld [vmem:[%s8 + $0x158] sm:$0xff]
  %v8791 = vld [vmem:[%s8 + $0x160] sm:$0xff]
  %v8792 = vld [vmem:[%s8 + $0x168] sm:$0xff]
  %v8793 = vld [vmem:[%s8 + $0x170] sm:$0xff]
  %v8794 = vld [vmem:[%s8 + $0x178] sm:$0xff]
  %v8795 = vld [vmem:[%s9] sm:$0x3f]
  %v8797 = vlaneseq
  %v8798 = vshrl.u32 %v8797, 7
  %v8799 = vsub.s32 0, %v8798
  %v8800 = vrot.slane %v8795, %v8799
  %v8801 = vlaneseq
  %v8802 = vshrl.u32 %v8801, 7
  %v8803 = vsub.s32 1, %v8802
  %v8804 = vrot.slane %v8795, %v8803
  %v8805 = vlaneseq
  %v8806 = vshrl.u32 %v8805, 7
  %v8807 = vsub.s32 2, %v8806
  %v8808 = vrot.slane %v8795, %v8807
  %v8809 = vlaneseq
  %v8810 = vshrl.u32 %v8809, 7
  %v8811 = vsub.s32 3, %v8810
  %v8812 = vrot.slane %v8795, %v8811
  %v8813 = vlaneseq
  %v8814 = vshrl.u32 %v8813, 7
  %v8815 = vsub.s32 4, %v8814
  %v8816 = vrot.slane %v8795, %v8815
  %v8817 = vlaneseq
  %v8818 = vshrl.u32 %v8817, 7
  %v8819 = vsub.s32 5, %v8818
  %v8820 = vrot.slane %v8795, %v8819
  %v8875 = vunpack.c.l.b16 %v8747
  %v8876 = vunpack.c.h.b16 %v8747
  %v8877 = vunpack.c.l.b16 %v8748
  %v8878 = vunpack.c.h.b16 %v8748
  %v8879 = vunpack.c.l.b16 %v8749
  %v8880 = vunpack.c.h.b16 %v8749
  %v8881 = vunpack.c.l.b16 %v8750
  %v8882 = vunpack.c.h.b16 %v8750
  %v8883 = vunpack.c.l.b16 %v8751
  %v8884 = vunpack.c.h.b16 %v8751
  %v8885 = vunpack.c.l.b16 %v8752
  %v8886 = vunpack.c.h.b16 %v8752
  %v8887 = vunpack.c.l.b16 %v8753
  %v8888 = vunpack.c.h.b16 %v8753
  %v8889 = vunpack.c.l.b16 %v8754
  %v8890 = vunpack.c.h.b16 %v8754
  %v8891 = vunpack.c.l.b16 %v8755
  %v8892 = vunpack.c.h.b16 %v8755
  %v8893 = vunpack.c.l.b16 %v8756
  %v8894 = vunpack.c.h.b16 %v8756
  %v8895 = vunpack.c.l.b16 %v8757
  %v8896 = vunpack.c.h.b16 %v8757
  %v8897 = vunpack.c.l.b16 %v8758
  %v8898 = vunpack.c.h.b16 %v8758
  %v8899 = vunpack.c.l.b16 %v8759
  %v8900 = vunpack.c.h.b16 %v8759
  %v8901 = vunpack.c.l.b16 %v8760
  %v8902 = vunpack.c.h.b16 %v8760
  %v8903 = vunpack.c.l.b16 %v8761
  %v8904 = vunpack.c.h.b16 %v8761
  %v8905 = vunpack.c.l.b16 %v8762
  %v8906 = vunpack.c.h.b16 %v8762
  %v8907 = vunpack.c.l.b16 %v8763
  %v8908 = vunpack.c.h.b16 %v8763
  %v8909 = vunpack.c.l.b16 %v8764
  %v8910 = vunpack.c.h.b16 %v8764
  %v8911 = vunpack.c.l.b16 %v8765
  %v8912 = vunpack.c.h.b16 %v8765
  %v8913 = vunpack.c.l.b16 %v8766
  %v8914 = vunpack.c.h.b16 %v8766
  %v8915 = vunpack.c.l.b16 %v8767
  %v8916 = vunpack.c.h.b16 %v8767
  %v8917 = vunpack.c.l.b16 %v8768
  %v8918 = vunpack.c.h.b16 %v8768
  %v8919 = vunpack.c.l.b16 %v8769
  %v8920 = vunpack.c.h.b16 %v8769
  %v8921 = vunpack.c.l.b16 %v8770
  %v8922 = vunpack.c.h.b16 %v8770
  %v8923 = vunpack.c.l.b16 %v8771
  %v8924 = vunpack.c.h.b16 %v8771
  %v8925 = vunpack.c.l.b16 %v8772
  %v8926 = vunpack.c.h.b16 %v8772
  %v8927 = vunpack.c.l.b16 %v8773
  %v8928 = vunpack.c.h.b16 %v8773
  %v8929 = vunpack.c.l.b16 %v8774
  %v8930 = vunpack.c.h.b16 %v8774
  %v8931 = vunpack.c.l.b16 %v8775
  %v8932 = vunpack.c.h.b16 %v8775
  %v8933 = vunpack.c.l.b16 %v8776
  %v8934 = vunpack.c.h.b16 %v8776
  %v8935 = vunpack.c.l.b16 %v8777
  %v8936 = vunpack.c.h.b16 %v8777
  %v8937 = vunpack.c.l.b16 %v8778
  %v8938 = vunpack.c.h.b16 %v8778
  %v8939 = vunpack.c.l.b16 %v8779
  %v8940 = vunpack.c.h.b16 %v8779
  %v8941 = vunpack.c.l.b16 %v8780
  %v8942 = vunpack.c.h.b16 %v8780
  %v8943 = vunpack.c.l.b16 %v8781
  %v8944 = vunpack.c.h.b16 %v8781
  %v8945 = vunpack.c.l.b16 %v8782
  %v8946 = vunpack.c.h.b16 %v8782
  %v8947 = vunpack.c.l.b16 %v8783
  %v8948 = vunpack.c.h.b16 %v8783
  %v8949 = vunpack.c.l.b16 %v8784
  %v8950 = vunpack.c.h.b16 %v8784
  %v8951 = vunpack.c.l.b16 %v8785
  %v8952 = vunpack.c.h.b16 %v8785
  %v8953 = vunpack.c.l.b16 %v8786
  %v8954 = vunpack.c.h.b16 %v8786
  %v8955 = vunpack.c.l.b16 %v8787
  %v8956 = vunpack.c.h.b16 %v8787
  %v8957 = vunpack.c.l.b16 %v8788
  %v8958 = vunpack.c.h.b16 %v8788
  %v8959 = vunpack.c.l.b16 %v8789
  %v8960 = vunpack.c.h.b16 %v8789
  %v8961 = vunpack.c.l.b16 %v8790
  %v8962 = vunpack.c.h.b16 %v8790
  %v8963 = vunpack.c.l.b16 %v8791
  %v8964 = vunpack.c.h.b16 %v8791
  %v8965 = vunpack.c.l.b16 %v8792
  %v8966 = vunpack.c.h.b16 %v8792
  %v8967 = vunpack.c.l.b16 %v8793
  %v8968 = vunpack.c.h.b16 %v8793
  %v8969 = vunpack.c.l.b16 %v8794
  %v8970 = vunpack.c.h.b16 %v8794
  %v8971 = vpack.c.b16 %v8881, %v8875
  %v8972 = vpack.c.b16 %v8882, %v8876
  %v8973 = vpack.c.b16 %v8883, %v8877
  %v8974 = vpack.c.b16 %v8884, %v8878
  %v8975 = vpack.c.b16 %v8885, %v8879
  %v8976 = vpack.c.b16 %v8886, %v8880
  %v8977 = vpack.c.b16 %v8893, %v8887
  %v8978 = vpack.c.b16 %v8894, %v8888
  %v8979 = vpack.c.b16 %v8895, %v8889
  %v8980 = vpack.c.b16 %v8896, %v8890
  %v8981 = vpack.c.b16 %v8897, %v8891
  %v8982 = vpack.c.b16 %v8898, %v8892
  %v8983 = vpack.c.b16 %v8905, %v8899
  %v8984 = vpack.c.b16 %v8906, %v8900
  %v8985 = vpack.c.b16 %v8907, %v8901
  %v8986 = vpack.c.b16 %v8908, %v8902
  %v8987 = vpack.c.b16 %v8909, %v8903
  %v8988 = vpack.c.b16 %v8910, %v8904
  %v8989 = vpack.c.b16 %v8917, %v8911
  %v8990 = vpack.c.b16 %v8918, %v8912
  %v8991 = vpack.c.b16 %v8919, %v8913
  %v8992 = vpack.c.b16 %v8920, %v8914
  %v8993 = vpack.c.b16 %v8921, %v8915
  %v8994 = vpack.c.b16 %v8922, %v8916
  %v8995 = vpack.c.b16 %v8929, %v8923
  %v8996 = vpack.c.b16 %v8930, %v8924
  %v8997 = vpack.c.b16 %v8931, %v8925
  %v8998 = vpack.c.b16 %v8932, %v8926
  %v8999 = vpack.c.b16 %v8933, %v8927
  %v9000 = vpack.c.b16 %v8934, %v8928
  %v9001 = vpack.c.b16 %v8941, %v8935
  %v9002 = vpack.c.b16 %v8942, %v8936
  %v9003 = vpack.c.b16 %v8943, %v8937
  %v9004 = vpack.c.b16 %v8944, %v8938
  %v9005 = vpack.c.b16 %v8945, %v8939
  %v9006 = vpack.c.b16 %v8946, %v8940
  %v9007 = vpack.c.b16 %v8953, %v8947
  %v9008 = vpack.c.b16 %v8954, %v8948
  %v9009 = vpack.c.b16 %v8955, %v8949
  %v9010 = vpack.c.b16 %v8956, %v8950
  %v9011 = vpack.c.b16 %v8957, %v8951
  %v9012 = vpack.c.b16 %v8958, %v8952
  %v9013 = vpack.c.b16 %v8965, %v8959
  %v9014 = vpack.c.b16 %v8966, %v8960
  %v9015 = vpack.c.b16 %v8967, %v8961
  %v9016 = vpack.c.b16 %v8968, %v8962
  %v9017 = vpack.c.b16 %v8969, %v8963
  %v9018 = vpack.c.b16 %v8970, %v8964
  %9067 = vmatprep.subr.bf16.mxu0 %v8972
  %9068 = vmatpush1.bf16.msra.mxu0 %v8971
  %9069 = vmatprep.subr.bf16.mxu0 %v8978
  %9070 = vmatpush1.bf16.msra.mxu0 %v8977
  %9071 = vmatprep.subr.bf16.mxu0 %v8984
  %9072 = vmatpush1.bf16.msra.mxu0 %v8983
  %9073 = vmatprep.subr.bf16.mxu0 %v8990
  %9074 = vmatpush1.bf16.msra.mxu0 %v8989
  %9075 = vmatprep.subr.bf16.mxu0 %v8996
  %9076 = vmatpush1.bf16.msra.mxu0 %v8995
  %9077 = vmatprep.subr.bf16.mxu0 %v9002
  %9078 = vmatpush1.bf16.msra.mxu0 %v9001
  %9079 = vmatprep.subr.bf16.mxu0 %v9008
  %9080 = vmatpush1.bf16.msra.mxu0 %v9007
  %9081 = vmatprep.subr.bf16.mxu0 %v9014
  %9082 = vmatpush1.bf16.msra.mxu0 %v9013
  %9083 = vmatprep.subr.bf16.mxu0 0
  %9084 = vmatpush1.bf16.msra.mxu0 0
  %9085 = vmatprep.subr.bf16.mxu0 0
  %9086 = vmatpush1.bf16.msra.mxu0 0
  %9087 = vmatprep.subr.bf16.mxu0 0
  %9088 = vmatpush1.bf16.msra.mxu0 0
  %9089 = vmatprep.subr.bf16.mxu0 0
  %9090 = vmatpush1.bf16.msra.mxu0 0
  %9091 = vmatprep.subr.bf16.mxu0 0
  %9092 = vmatpush1.bf16.msra.mxu0 0
  %9093 = vmatprep.subr.bf16.mxu0 0
  %9094 = vmatpush1.bf16.msra.mxu0 0
  %9095 = vmatprep.subr.bf16.mxu0 0
  %9096 = vmatpush1.bf16.msra.mxu0 0
  %9097 = vmatprep.subr.bf16.mxu0 0
  %9098 = vmatpush1.bf16.msra.mxu0 0
  %9099 = vmatprep.mubr.bf16.mxu0 0
  %9100 = vmatmul.mubr.bf16.gmra.mrb[0].mxu0 %v8743
  %v9101 = vpop.f32.mrb[0].mxu0
  %v9102 = vadd.f32 %v8800, %v9101
  %v9103 = vpop.f32.mrb[0].mxu0
  %v9104 = vadd.f32 %v8804, %v9103
  %v9105 = vpop.f32.mrb[0].mxu0
  %v9106 = vadd.f32 %v8800, %v9105
  %v9107 = vpop.f32.mrb[0].mxu0
  %v9108 = vadd.f32 %v8804, %v9107
  %9109 = vmatprep.mubr.bf16.mxu0 0
  %9110 = vmatmul.mubr.bf16.gmra.mrb[0].mxu0 %v8744
  %v9111 = vpop.f32.mrb[0].mxu0
  %v9112 = vadd.f32 %v8800, %v9111
  %v9113 = vpop.f32.mrb[0].mxu0
  %v9114 = vadd.f32 %v8804, %v9113
  %v9115 = vpop.f32.mrb[0].mxu0
  %v9116 = vadd.f32 %v8800, %v9115
  %v9117 = vpop.f32.mrb[0].mxu0
  %v9118 = vadd.f32 %v8804, %v9117
  %9119 = vmatprep.mubr.bf16.mxu0 0
  %9120 = vmatmul.mubr.bf16.gmra.mrb[0].mxu0 %v8745
  %v9121 = vpop.f32.mrb[0].mxu0
  %v9122 = vadd.f32 %v8800, %v9121
  %v9123 = vpop.f32.mrb[0].mxu0
  %v9124 = vadd.f32 %v8804, %v9123
  %v9125 = vpop.f32.mrb[0].mxu0
  %v9126 = vadd.f32 %v8800, %v9125
  %v9127 = vpop.f32.mrb[0].mxu0
  %v9128 = vadd.f32 %v8804, %v9127
  %9129 = vmatprep.mubr.bf16.mxu0 0
  %9130 = vmatmul.mubr.bf16.gmra.mrb[0].mxu0 %v8746
  %v9131 = vpop.f32.mrb[0].mxu0
  %v9132 = vadd.f32 %v8800, %v9131
  %v9133 = vpop.f32.mrb[0].mxu0
  %v9134 = vadd.f32 %v8804, %v9133
  %v9135 = vpop.f32.mrb[0].mxu0
  %v9136 = vadd.f32 %v8800, %v9135
  %v9137 = vpop.f32.mrb[0].mxu0
  %v9138 = vadd.f32 %v8804, %v9137
  %9139 = vdwg.mxu0
  %9140 = vmatprep.subr.bf16.mxu0 %v8974
  %9141 = vmatpush1.bf16.msra.mxu0 %v8973
  %9142 = vmatprep.subr.bf16.mxu0 %v8980
  %9143 = vmatpush1.bf16.msra.mxu0 %v8979
  %9144 = vmatprep.subr.bf16.mxu0 %v8986
  %9145 = vmatpush1.bf16.msra.mxu0 %v8985
  %9146 = vmatprep.subr.bf16.mxu0 %v8992
  %9147 = vmatpush1.bf16.msra.mxu0 %v8991
  %9148 = vmatprep.subr.bf16.mxu0 %v8998
  %9149 = vmatpush1.bf16.msra.mxu0 %v8997
  %9150 = vmatprep.subr.bf16.mxu0 %v9004
  %9151 = vmatpush1.bf16.msra.mxu0 %v9003
  %9152 = vmatprep.subr.bf16.mxu0 %v9010
  %9153 = vmatpush1.bf16.msra.mxu0 %v9009
  %9154 = vmatprep.subr.bf16.mxu0 %v9016
  %9155 = vmatpush1.bf16.msra.mxu0 %v9015
  %9156 = vmatprep.subr.bf16.mxu0 0
  %9157 = vmatpush1.bf16.msra.mxu0 0
  %9158 = vmatprep.subr.bf16.mxu0 0
  %9159 = vmatpush1.bf16.msra.mxu0 0
  %9160 = vmatprep.subr.bf16.mxu0 0
  %9161 = vmatpush1.bf16.msra.mxu0 0
  %9162 = vmatprep.subr.bf16.mxu0 0
  %9163 = vmatpush1.bf16.msra.mxu0 0
  %9164 = vmatprep.subr.bf16.mxu0 0
  %9165 = vmatpush1.bf16.msra.mxu0 0
  %9166 = vmatprep.subr.bf16.mxu0 0
  %9167 = vmatpush1.bf16.msra.mxu0 0
  %9168 = vmatprep.subr.bf16.mxu0 0
  %9169 = vmatpush1.bf16.msra.mxu0 0
  %9170 = vmatprep.subr.bf16.mxu0 0
  %9171 = vmatpush1.bf16.msra.mxu0 0
  %9172 = vmatprep.mubr.bf16.mxu0 0
  %9173 = vmatmul.mubr.bf16.gmra.mrb[0].mxu0 %v8743
  %v9174 = vpop.f32.mrb[0].mxu0
  %v9175 = vadd.f32 %v8808, %v9174
  %v9176 = vpop.f32.mrb[0].mxu0
  %v9177 = vadd.f32 %v8812, %v9176
  %v9178 = vpop.f32.mrb[0].mxu0
  %v9179 = vadd.f32 %v8808, %v9178
  %v9180 = vpop.f32.mrb[0].mxu0
  %v9181 = vadd.f32 %v8812, %v9180
  %9182 = vmatprep.mubr.bf16.mxu0 0
  %9183 = vmatmul.mubr.bf16.gmra.mrb[0].mxu0 %v8744
  %v9184 = vpop.f32.mrb[0].mxu0
  %v9185 = vadd.f32 %v8808, %v9184
  %v9186 = vpop.f32.mrb[0].mxu0
  %v9187 = vadd.f32 %v8812, %v9186
  %v9188 = vpop.f32.mrb[0].mxu0
  %v9189 = vadd.f32 %v8808, %v9188
  %v9190 = vpop.f32.mrb[0].mxu0
  %v9191 = vadd.f32 %v8812, %v9190
  %9192 = vmatprep.mubr.bf16.mxu0 0
  %9193 = vmatmul.mubr.bf16.gmra.mrb[0].mxu0 %v8745
  %v9194 = vpop.f32.mrb[0].mxu0
  %v9195 = vadd.f32 %v8808, %v9194
  %v9196 = vpop.f32.mrb[0].mxu0
  %v9197 = vadd.f32 %v8812, %v9196
  %v9198 = vpop.f32.mrb[0].mxu0
  %v9199 = vadd.f32 %v8808, %v9198
  %v9200 = vpop.f32.mrb[0].mxu0
  %v9201 = vadd.f32 %v8812, %v9200
  %9202 = vmatprep.mubr.bf16.mxu0 0
  %9203 = vmatmul.mubr.bf16.gmra.mrb[0].mxu0 %v8746
  %v9204 = vpop.f32.mrb[0].mxu0
  %v9205 = vadd.f32 %v8808, %v9204
  %v9206 = vpop.f32.mrb[0].mxu0
  %v9207 = vadd.f32 %v8812, %v9206
  %v9208 = vpop.f32.mrb[0].mxu0
  %v9209 = vadd.f32 %v8808, %v9208
  %v9210 = vpop.f32.mrb[0].mxu0
  %v9211 = vadd.f32 %v8812, %v9210
  %9212 = vdwg.mxu0
  %9213 = vmatprep.subr.bf16.mxu0 %v8976
  %9214 = vmatpush1.bf16.msra.mxu0 %v8975
  %9215 = vmatprep.subr.bf16.mxu0 %v8982
  %9216 = vmatpush1.bf16.msra.mxu0 %v8981
  %9217 = vmatprep.subr.bf16.mxu0 %v8988
  %9218 = vmatpush1.bf16.msra.mxu0 %v8987
  %9219 = vmatprep.subr.bf16.mxu0 %v8994
  %9220 = vmatpush1.bf16.msra.mxu0 %v8993
  %9221 = vmatprep.subr.bf16.mxu0 %v9000
  %9222 = vmatpush1.bf16.msra.mxu0 %v8999
  %9223 = vmatprep.subr.bf16.mxu0 %v9006
  %9224 = vmatpush1.bf16.msra.mxu0 %v9005
  %9225 = vmatprep.subr.bf16.mxu0 %v9012
  %9226 = vmatpush1.bf16.msra.mxu0 %v9011
  %9227 = vmatprep.subr.bf16.mxu0 %v9018
  %9228 = vmatpush1.bf16.msra.mxu0 %v9017
  %9229 = vmatprep.subr.bf16.mxu0 0
  %9230 = vmatpush1.bf16.msra.mxu0 0
  %9231 = vmatprep.subr.bf16.mxu0 0
  %9232 = vmatpush1.bf16.msra.mxu0 0
  %9233 = vmatprep.subr.bf16.mxu0 0
  %9234 = vmatpush1.bf16.msra.mxu0 0
  %9235 = vmatprep.subr.bf16.mxu0 0
  %9236 = vmatpush1.bf16.msra.mxu0 0
  %9237 = vmatprep.subr.bf16.mxu0 0
  %9238 = vmatpush1.bf16.msra.mxu0 0
  %9239 = vmatprep.subr.bf16.mxu0 0
  %9240 = vmatpush1.bf16.msra.mxu0 0
  %9241 = vmatprep.subr.bf16.mxu0 0
  %9242 = vmatpush1.bf16.msra.mxu0 0
  %9243 = vmatprep.subr.bf16.mxu0 0
  %9244 = vmatpush1.bf16.msra.mxu0 0
  %9245 = vmatprep.mubr.bf16.mxu0 0
  %9246 = vmatmul.mubr.bf16.gmra.mrb[0].mxu0 %v8743
  %v9247 = vpop.f32.mrb[0].mxu0
  %v9248 = vadd.f32 %v8816, %v9247
  %v9249 = vpop.f32.mrb[0].mxu0
  %v9250 = vadd.f32 %v8820, %v9249
  %v9251 = vpop.f32.mrb[0].mxu0
  %v9252 = vadd.f32 %v8816, %v9251
  %v9253 = vpop.f32.mrb[0].mxu0
  %v9254 = vadd.f32 %v8820, %v9253
  %9255 = vmatprep.mubr.bf16.mxu0 0
  %9256 = vmatmul.mubr.bf16.gmra.mrb[0].mxu0 %v8744
  %v9257 = vpop.f32.mrb[0].mxu0
  %v9258 = vadd.f32 %v8816, %v9257
  %v9259 = vpop.f32.mrb[0].mxu0
  %v9260 = vadd.f32 %v8820, %v9259
  %v9261 = vpop.f32.mrb[0].mxu0
  %v9262 = vadd.f32 %v8816, %v9261
  %v9263 = vpop.f32.mrb[0].mxu0
  %v9264 = vadd.f32 %v8820, %v9263
  %9265 = vmatprep.mubr.bf16.mxu0 0
  %9266 = vmatmul.mubr.bf16.gmra.mrb[0].mxu0 %v8745
  %v9267 = vpop.f32.mrb[0].mxu0
  %v9268 = vadd.f32 %v8816, %v9267
  %v9269 = vpop.f32.mrb[0].mxu0
  %v9270 = vadd.f32 %v8820, %v9269
  %v9271 = vpop.f32.mrb[0].mxu0
  %v9272 = vadd.f32 %v8816, %v9271
  %v9273 = vpop.f32.mrb[0].mxu0
  %v9274 = vadd.f32 %v8820, %v9273
  %9275 = vmatprep.mubr.bf16.mxu0 0
  %9276 = vmatmul.mubr.bf16.gmra.mrb[0].mxu0 %v8746
  %v9277 = vpop.f32.mrb[0].mxu0
  %v9278 = vadd.f32 %v8816, %v9277
  %v9279 = vpop.f32.mrb[0].mxu0
  %v9280 = vadd.f32 %v8820, %v9279
  %v9281 = vpop.f32.mrb[0].mxu0
  %v9282 = vadd.f32 %v8816, %v9281
  %v9283 = vpop.f32.mrb[0].mxu0
  %v9284 = vadd.f32 %v8820, %v9283
  %9285 = vdwg.mxu0
  %v9286 = vadd.f32 %v9102, %v4741
  %v9287 = vadd.f32 %v9104, %v4742
  %v9288 = vadd.f32 %v9175, %v4743
  %v9289 = vadd.f32 %v9177, %v4744
  %v9290 = vadd.f32 %v9248, %v4745
  %v9291 = vadd.f32 %v9250, %v4746
  %v9292 = vadd.f32 %v9106, %v4747
  %v9293 = vadd.f32 %v9108, %v4748
  %v9294 = vadd.f32 %v9179, %v4749
  %v9295 = vadd.f32 %v9181, %v4750
  %v9296 = vadd.f32 %v9252, %v4751
  %v9297 = vadd.f32 %v9254, %v4752
  %v9298 = vadd.f32 %v9112, %v4753
  %v9299 = vadd.f32 %v9114, %v4754
  %v9300 = vadd.f32 %v9185, %v4755
  %v9301 = vadd.f32 %v9187, %v4756
  %v9302 = vadd.f32 %v9258, %v4757
  %v9303 = vadd.f32 %v9260, %v4758
  %v9304 = vadd.f32 %v9116, %v4759
  %v9305 = vadd.f32 %v9118, %v4760
  %v9306 = vadd.f32 %v9189, %v4761
  %v9307 = vadd.f32 %v9191, %v4762
  %v9308 = vadd.f32 %v9262, %v4763
  %v9309 = vadd.f32 %v9264, %v4764
  %v9310 = vadd.f32 %v9122, %v4765
  %v9311 = vadd.f32 %v9124, %v4766
  %v9312 = vadd.f32 %v9195, %v4767
  %v9313 = vadd.f32 %v9197, %v4768
  %v9314 = vadd.f32 %v9268, %v4769
  %v9315 = vadd.f32 %v9270, %v4770
  %v9316 = vadd.f32 %v9126, %v4771
  %v9317 = vadd.f32 %v9128, %v4772
  %v9318 = vadd.f32 %v9199, %v4773
  %v9319 = vadd.f32 %v9201, %v4774
  %v9320 = vadd.f32 %v9272, %v4775
  %v9321 = vadd.f32 %v9274, %v4776
  %v9322 = vadd.f32 %v9132, %v4777
  %v9323 = vadd.f32 %v9134, %v4778
  %v9324 = vadd.f32 %v9205, %v4779
  %v9325 = vadd.f32 %v9207, %v4780
  %v9326 = vadd.f32 %v9278, %v4781
  %v9327 = vadd.f32 %v9280, %v4782
  %v9328 = vadd.f32 %v9136, %v4783
  %v9329 = vadd.f32 %v9138, %v4784
  %v9330 = vadd.f32 %v9209, %v4785
  %v9331 = vadd.f32 %v9211, %v4786
  %v9332 = vadd.f32 %v9282, %v4787
  %v9333 = vadd.f32 %v9284, %v4788
  %v9334 = vadd.f32 %v9286, %v9287
  %v9335 = vadd.f32 %v9334, %v9288
  %v9336 = vadd.f32 %v9335, %v9289
  %v9337 = vadd.f32 %v9336, %v9290
  %v9338 = vadd.f32 %v9337, %v9291
  %9339 = vadd.xlane.f32.xlu0 %v9338
  %v9340 = vpop.xlane.xlu0 %9339
  %v9341 = vadd.f32 %v9292, %v9293
  %v9342 = vadd.f32 %v9341, %v9294
  %v9343 = vadd.f32 %v9342, %v9295
  %v9344 = vadd.f32 %v9343, %v9296
  %v9345 = vadd.f32 %v9344, %v9297
  %9346 = vadd.xlane.f32.xlu0 %v9345
  %v9347 = vpop.xlane.xlu0 %9346
  %v9348 = vadd.f32 %v9298, %v9299
  %v9349 = vadd.f32 %v9348, %v9300
  %v9350 = vadd.f32 %v9349, %v9301
  %v9351 = vadd.f32 %v9350, %v9302
  %v9352 = vadd.f32 %v9351, %v9303
  %9353 = vadd.xlane.f32.xlu0 %v9352
  %v9354 = vpop.xlane.xlu0 %9353
  %v9355 = vadd.f32 %v9304, %v9305
  %v9356 = vadd.f32 %v9355, %v9306
  %v9357 = vadd.f32 %v9356, %v9307
  %v9358 = vadd.f32 %v9357, %v9308
  %v9359 = vadd.f32 %v9358, %v9309
  %9360 = vadd.xlane.f32.xlu0 %v9359
  %v9361 = vpop.xlane.xlu0 %9360
  %v9362 = vadd.f32 %v9310, %v9311
  %v9363 = vadd.f32 %v9362, %v9312
  %v9364 = vadd.f32 %v9363, %v9313
  %v9365 = vadd.f32 %v9364, %v9314
  %v9366 = vadd.f32 %v9365, %v9315
  %9367 = vadd.xlane.f32.xlu0 %v9366
  %v9368 = vpop.xlane.xlu0 %9367
  %v9369 = vadd.f32 %v9316, %v9317
  %v9370 = vadd.f32 %v9369, %v9318
  %v9371 = vadd.f32 %v9370, %v9319
  %v9372 = vadd.f32 %v9371, %v9320
  %v9373 = vadd.f32 %v9372, %v9321
  %9374 = vadd.xlane.f32.xlu0 %v9373
  %v9375 = vpop.xlane.xlu0 %9374
  %v9376 = vadd.f32 %v9322, %v9323
  %v9377 = vadd.f32 %v9376, %v9324
  %v9378 = vadd.f32 %v9377, %v9325
  %v9379 = vadd.f32 %v9378, %v9326
  %v9380 = vadd.f32 %v9379, %v9327
  %9381 = vadd.xlane.f32.xlu0 %v9380
  %v9382 = vpop.xlane.xlu0 %9381
  %v9383 = vadd.f32 %v9328, %v9329
  %v9384 = vadd.f32 %v9383, %v9330
  %v9385 = vadd.f32 %v9384, %v9331
  %v9386 = vadd.f32 %v9385, %v9332
  %v9387 = vadd.f32 %v9386, %v9333
  %9388 = vadd.xlane.f32.xlu0 %v9387
  %v9389 = vpop.xlane.xlu0 %9388
  %v9390 = vmul.f32 %v9340, %v4556
  %v9391 = vmul.f32 %v9347, %v4556
  %v9392 = vmul.f32 %v9354, %v4556
  %v9393 = vmul.f32 %v9361, %v4556
  %v9394 = vmul.f32 %v9368, %v4556
  %v9395 = vmul.f32 %v9375, %v4556
  %v9396 = vmul.f32 %v9382, %v4556
  %v9397 = vmul.f32 %v9389, %v4556
  %v9398 = vsub.f32 %v9286, %v9390
  %v9399 = vsub.f32 %v9287, %v9390
  %v9400 = vsub.f32 %v9288, %v9390
  %v9401 = vsub.f32 %v9289, %v9390
  %v9402 = vsub.f32 %v9290, %v9390
  %v9403 = vsub.f32 %v9291, %v9390
  %v9404 = vsub.f32 %v9292, %v9391
  %v9405 = vsub.f32 %v9293, %v9391
  %v9406 = vsub.f32 %v9294, %v9391
  %v9407 = vsub.f32 %v9295, %v9391
  %v9408 = vsub.f32 %v9296, %v9391
  %v9409 = vsub.f32 %v9297, %v9391
  %v9410 = vsub.f32 %v9298, %v9392
  %v9411 = vsub.f32 %v9299, %v9392
  %v9412 = vsub.f32 %v9300, %v9392
  %v9413 = vsub.f32 %v9301, %v9392
  %v9414 = vsub.f32 %v9302, %v9392
  %v9415 = vsub.f32 %v9303, %v9392
  %v9416 = vsub.f32 %v9304, %v9393
  %v9417 = vsub.f32 %v9305, %v9393
  %v9418 = vsub.f32 %v9306, %v9393
  %v9419 = vsub.f32 %v9307, %v9393
  %v9420 = vsub.f32 %v9308, %v9393
  %v9421 = vsub.f32 %v9309, %v9393
  %v9422 = vsub.f32 %v9310, %v9394
  %v9423 = vsub.f32 %v9311, %v9394
  %v9424 = vsub.f32 %v9312, %v9394
  %v9425 = vsub.f32 %v9313, %v9394
  %v9426 = vsub.f32 %v9314, %v9394
  %v9427 = vsub.f32 %v9315, %v9394
  %v9428 = vsub.f32 %v9316, %v9395
  %v9429 = vsub.f32 %v9317, %v9395
  %v9430 = vsub.f32 %v9318, %v9395
  %v9431 = vsub.f32 %v9319, %v9395
  %v9432 = vsub.f32 %v9320, %v9395
  %v9433 = vsub.f32 %v9321, %v9395
  %v9434 = vsub.f32 %v9322, %v9396
  %v9435 = vsub.f32 %v9323, %v9396
  %v9436 = vsub.f32 %v9324, %v9396
  %v9437 = vsub.f32 %v9325, %v9396
  %v9438 = vsub.f32 %v9326, %v9396
  %v9439 = vsub.f32 %v9327, %v9396
  %v9440 = vsub.f32 %v9328, %v9397
  %v9441 = vsub.f32 %v9329, %v9397
  %v9442 = vsub.f32 %v9330, %v9397
  %v9443 = vsub.f32 %v9331, %v9397
  %v9444 = vsub.f32 %v9332, %v9397
  %v9445 = vsub.f32 %v9333, %v9397
  %v9446 = vmul.f32 %v9398, %v9398
  %v9447 = vmul.f32 %v9399, %v9399
  %v9448 = vmul.f32 %v9400, %v9400
  %v9449 = vmul.f32 %v9401, %v9401
  %v9450 = vmul.f32 %v9402, %v9402
  %v9451 = vmul.f32 %v9403, %v9403
  %v9452 = vmul.f32 %v9404, %v9404
  %v9453 = vmul.f32 %v9405, %v9405
  %v9454 = vmul.f32 %v9406, %v9406
  %v9455 = vmul.f32 %v9407, %v9407
  %v9456 = vmul.f32 %v9408, %v9408
  %v9457 = vmul.f32 %v9409, %v9409
  %v9458 = vmul.f32 %v9410, %v9410
  %v9459 = vmul.f32 %v9411, %v9411
  %v9460 = vmul.f32 %v9412, %v9412
  %v9461 = vmul.f32 %v9413, %v9413
  %v9462 = vmul.f32 %v9414, %v9414
  %v9463 = vmul.f32 %v9415, %v9415
  %v9464 = vmul.f32 %v9416, %v9416
  %v9465 = vmul.f32 %v9417, %v9417
  %v9466 = vmul.f32 %v9418, %v9418
  %v9467 = vmul.f32 %v9419, %v9419
  %v9468 = vmul.f32 %v9420, %v9420
  %v9469 = vmul.f32 %v9421, %v9421
  %v9470 = vmul.f32 %v9422, %v9422
  %v9471 = vmul.f32 %v9423, %v9423
  %v9472 = vmul.f32 %v9424, %v9424
  %v9473 = vmul.f32 %v9425, %v9425
  %v9474 = vmul.f32 %v9426, %v9426
  %v9475 = vmul.f32 %v9427, %v9427
  %v9476 = vmul.f32 %v9428, %v9428
  %v9477 = vmul.f32 %v9429, %v9429
  %v9478 = vmul.f32 %v9430, %v9430
  %v9479 = vmul.f32 %v9431, %v9431
  %v9480 = vmul.f32 %v9432, %v9432
  %v9481 = vmul.f32 %v9433, %v9433
  %v9482 = vmul.f32 %v9434, %v9434
  %v9483 = vmul.f32 %v9435, %v9435
  %v9484 = vmul.f32 %v9436, %v9436
  %v9485 = vmul.f32 %v9437, %v9437
  %v9486 = vmul.f32 %v9438, %v9438
  %v9487 = vmul.f32 %v9439, %v9439
  %v9488 = vmul.f32 %v9440, %v9440
  %v9489 = vmul.f32 %v9441, %v9441
  %v9490 = vmul.f32 %v9442, %v9442
  %v9491 = vmul.f32 %v9443, %v9443
  %v9492 = vmul.f32 %v9444, %v9444
  %v9493 = vmul.f32 %v9445, %v9445
  %v9494 = vadd.f32 %v9446, %v9447
  %v9495 = vadd.f32 %v9494, %v9448
  %v9496 = vadd.f32 %v9495, %v9449
  %v9497 = vadd.f32 %v9496, %v9450
  %v9498 = vadd.f32 %v9497, %v9451
  %9499 = vadd.xlane.f32.xlu0 %v9498
  %v9500 = vpop.xlane.xlu0 %9499
  %v9501 = vadd.f32 %v9452, %v9453
  %v9502 = vadd.f32 %v9501, %v9454
  %v9503 = vadd.f32 %v9502, %v9455
  %v9504 = vadd.f32 %v9503, %v9456
  %v9505 = vadd.f32 %v9504, %v9457
  %9506 = vadd.xlane.f32.xlu0 %v9505
  %v9507 = vpop.xlane.xlu0 %9506
  %v9508 = vadd.f32 %v9458, %v9459
  %v9509 = vadd.f32 %v9508, %v9460
  %v9510 = vadd.f32 %v9509, %v9461
  %v9511 = vadd.f32 %v9510, %v9462
  %v9512 = vadd.f32 %v9511, %v9463
  %9513 = vadd.xlane.f32.xlu0 %v9512
  %v9514 = vpop.xlane.xlu0 %9513
  %v9515 = vadd.f32 %v9464, %v9465
  %v9516 = vadd.f32 %v9515, %v9466
  %v9517 = vadd.f32 %v9516, %v9467
  %v9518 = vadd.f32 %v9517, %v9468
  %v9519 = vadd.f32 %v9518, %v9469
  %9520 = vadd.xlane.f32.xlu0 %v9519
  %v9521 = vpop.xlane.xlu0 %9520
  %v9522 = vadd.f32 %v9470, %v9471
  %v9523 = vadd.f32 %v9522, %v9472
  %v9524 = vadd.f32 %v9523, %v9473
  %v9525 = vadd.f32 %v9524, %v9474
  %v9526 = vadd.f32 %v9525, %v9475
  %9527 = vadd.xlane.f32.xlu0 %v9526
  %v9528 = vpop.xlane.xlu0 %9527
  %v9529 = vadd.f32 %v9476, %v9477
  %v9530 = vadd.f32 %v9529, %v9478
  %v9531 = vadd.f32 %v9530, %v9479
  %v9532 = vadd.f32 %v9531, %v9480
  %v9533 = vadd.f32 %v9532, %v9481
  %9534 = vadd.xlane.f32.xlu0 %v9533
  %v9535 = vpop.xlane.xlu0 %9534
  %v9536 = vadd.f32 %v9482, %v9483
  %v9537 = vadd.f32 %v9536, %v9484
  %v9538 = vadd.f32 %v9537, %v9485
  %v9539 = vadd.f32 %v9538, %v9486
  %v9540 = vadd.f32 %v9539, %v9487
  %9541 = vadd.xlane.f32.xlu0 %v9540
  %v9542 = vpop.xlane.xlu0 %9541
  %v9543 = vadd.f32 %v9488, %v9489
  %v9544 = vadd.f32 %v9543, %v9490
  %v9545 = vadd.f32 %v9544, %v9491
  %v9546 = vadd.f32 %v9545, %v9492
  %v9547 = vadd.f32 %v9546, %v9493
  %9548 = vadd.xlane.f32.xlu0 %v9547
  %v9549 = vpop.xlane.xlu0 %9548
  %v9550 = vmul.f32 %v9500, %v4556
  %v9551 = vmul.f32 %v9507, %v4556
  %v9552 = vmul.f32 %v9514, %v4556
  %v9553 = vmul.f32 %v9521, %v4556
  %v9554 = vmul.f32 %v9528, %v4556
  %v9555 = vmul.f32 %v9535, %v4556
  %v9556 = vmul.f32 %v9542, %v4556
  %v9557 = vmul.f32 %v9549, %v4556
  %v9558 = vadd.f32 %v9550, 1e-05
  %v9559 = vadd.f32 %v9551, 1e-05
  %v9560 = vadd.f32 %v9552, 1e-05
  %v9561 = vadd.f32 %v9553, 1e-05
  %v9562 = vadd.f32 %v9554, 1e-05
  %v9563 = vadd.f32 %v9555, 1e-05
  %v9564 = vadd.f32 %v9556, 1e-05
  %v9565 = vadd.f32 %v9557, 1e-05
  %v9566 = vrsqrt.pop %v9558
  %v9567 = vrsqrt.pop %v9559
  %v9568 = vrsqrt.pop %v9560
  %v9569 = vrsqrt.pop %v9561
  %v9570 = vrsqrt.pop %v9562
  %v9571 = vrsqrt.pop %v9563
  %v9572 = vrsqrt.pop %v9564
  %v9573 = vrsqrt.pop %v9565
  %v9574 = vmul.f32 %v9398, %v9566
  %v9575 = vmul.f32 %v9399, %v9566
  %v9576 = vmul.f32 %v9400, %v9566
  %v9577 = vmul.f32 %v9401, %v9566
  %v9578 = vmul.f32 %v9402, %v9566
  %v9579 = vmul.f32 %v9403, %v9566
  %v9580 = vmul.f32 %v9404, %v9567
  %v9581 = vmul.f32 %v9405, %v9567
  %v9582 = vmul.f32 %v9406, %v9567
  %v9583 = vmul.f32 %v9407, %v9567
  %v9584 = vmul.f32 %v9408, %v9567
  %v9585 = vmul.f32 %v9409, %v9567
  %v9586 = vmul.f32 %v9410, %v9568
  %v9587 = vmul.f32 %v9411, %v9568
  %v9588 = vmul.f32 %v9412, %v9568
  %v9589 = vmul.f32 %v9413, %v9568
  %v9590 = vmul.f32 %v9414, %v9568
  %v9591 = vmul.f32 %v9415, %v9568
  %v9592 = vmul.f32 %v9416, %v9569
  %v9593 = vmul.f32 %v9417, %v9569
  %v9594 = vmul.f32 %v9418, %v9569
  %v9595 = vmul.f32 %v9419, %v9569
  %v9596 = vmul.f32 %v9420, %v9569
  %v9597 = vmul.f32 %v9421, %v9569
  %v9598 = vmul.f32 %v9422, %v9570
  %v9599 = vmul.f32 %v9423, %v9570
  %v9600 = vmul.f32 %v9424, %v9570
  %v9601 = vmul.f32 %v9425, %v9570
  %v9602 = vmul.f32 %v9426, %v9570
  %v9603 = vmul.f32 %v9427, %v9570
  %v9604 = vmul.f32 %v9428, %v9571
  %v9605 = vmul.f32 %v9429, %v9571
  %v9606 = vmul.f32 %v9430, %v9571
  %v9607 = vmul.f32 %v9431, %v9571
  %v9608 = vmul.f32 %v9432, %v9571
  %v9609 = vmul.f32 %v9433, %v9571
  %v9610 = vmul.f32 %v9434, %v9572
  %v9611 = vmul.f32 %v9435, %v9572
  %v9612 = vmul.f32 %v9436, %v9572
  %v9613 = vmul.f32 %v9437, %v9572
  %v9614 = vmul.f32 %v9438, %v9572
  %v9615 = vmul.f32 %v9439, %v9572
  %v9616 = vmul.f32 %v9440, %v9573
  %v9617 = vmul.f32 %v9441, %v9573
  %v9618 = vmul.f32 %v9442, %v9573
  %v9619 = vmul.f32 %v9443, %v9573
  %v9620 = vmul.f32 %v9444, %v9573
  %v9621 = vmul.f32 %v9445, %v9573
  %v9622 = vpack.c.bf16 %v9580, %v9574
  %v9623 = vpack.c.bf16 %v9581, %v9575
  %v9624 = vpack.c.bf16 %v9582, %v9576
  %v9625 = vpack.c.bf16 %v9583, %v9577
  %v9626 = vpack.c.bf16 %v9584, %v9578
  %v9627 = vpack.c.bf16 %v9585, %v9579
  %v9628 = vpack.c.bf16 %v9592, %v9586
  %v9629 = vpack.c.bf16 %v9593, %v9587
  %v9630 = vpack.c.bf16 %v9594, %v9588
  %v9631 = vpack.c.bf16 %v9595, %v9589
  %v9632 = vpack.c.bf16 %v9596, %v9590
  %v9633 = vpack.c.bf16 %v9597, %v9591
  %v9634 = vpack.c.bf16 %v9604, %v9598
  %v9635 = vpack.c.bf16 %v9605, %v9599
  %v9636 = vpack.c.bf16 %v9606, %v9600
  %v9637 = vpack.c.bf16 %v9607, %v9601
  %v9638 = vpack.c.bf16 %v9608, %v9602
  %v9639 = vpack.c.bf16 %v9609, %v9603
  %v9640 = vpack.c.bf16 %v9616, %v9610
  %v9641 = vpack.c.bf16 %v9617, %v9611
  %v9642 = vpack.c.bf16 %v9618, %v9612
  %v9643 = vpack.c.bf16 %v9619, %v9613
  %v9644 = vpack.c.bf16 %v9620, %v9614
  %v9645 = vpack.c.bf16 %v9621, %v9615
  %9646 = vmatprep.subr.bf16.mxu0 0
  %9647 = vmatpush1.bf16.msra.mxu0 %v4800
  %9648 = vmatprep.subr.bf16.mxu0 0
  %9649 = vmatpush1.bf16.msra.mxu0 %v4801
  %9650 = vmatprep.subr.bf16.mxu0 0
  %9651 = vmatpush1.bf16.msra.mxu0 %v4802
  %9652 = vmatprep.subr.bf16.mxu0 0
  %9653 = vmatpush1.bf16.msra.mxu0 %v4803
  %9654 = vmatprep.subr.bf16.mxu0 0
  %9655 = vmatpush1.bf16.msra.mxu0 %v4804
  %9656 = vmatprep.subr.bf16.mxu0 0
  %9657 = vmatpush1.bf16.msra.mxu0 %v4805
  %9658 = vmatprep.subr.bf16.mxu0 0
  %9659 = vmatpush1.bf16.msra.mxu0 %v4806
  %9660 = vmatprep.subr.bf16.mxu0 0
  %9661 = vmatpush1.bf16.msra.mxu0 %v4807
  %9662 = vmatprep.subr.bf16.mxu0 0
  %9663 = vmatpush1.bf16.msra.mxu0 %v4808
  %9664 = vmatprep.subr.bf16.mxu0 0
  %9665 = vmatpush1.bf16.msra.mxu0 %v4809
  %9666 = vmatprep.subr.bf16.mxu0 0
  %9667 = vmatpush1.bf16.msra.mxu0 %v4810
  %9668 = vmatprep.subr.bf16.mxu0 0
  %9669 = vmatpush1.bf16.msra.mxu0 %v4811
  %9670 = vmatprep.subr.bf16.mxu0 0
  %9671 = vmatpush1.bf16.msra.mxu0 %v4812
  %9672 = vmatprep.subr.bf16.mxu0 0
  %9673 = vmatpush1.bf16.msra.mxu0 %v4813
  %9674 = vmatprep.subr.bf16.mxu0 0
  %9675 = vmatpush1.bf16.msra.mxu0 %v4814
  %9676 = vmatprep.subr.bf16.mxu0 0
  %9677 = vmatpush1.bf16.msra.mxu0 %v4815
  %9678 = vmatprep.mubr.bf16.mxu0 %v6687
  %9679 = vmatmul.mubr.bf16.gmra.mrb[0].mxu0 %v6686
  %v9680 = vpop.f32.mrb[0].mxu0
  %v9681 = vadd.f32 %v4853, %v9680
  %v9682 = vpop.f32.mrb[0].mxu0
  %v9683 = vpop.f32.mrb[0].mxu0
  %v9684 = vadd.f32 %v4853, %v9683
  %v9685 = vpop.f32.mrb[0].mxu0
  %9686 = vmatprep.mubr.bf16.mxu0 %v6693
  %9687 = vmatmul.mubr.bf16.gmra.mrb[0].mxu0 %v6692
  %v9688 = vpop.f32.mrb[0].mxu0
  %v9689 = vadd.f32 %v4853, %v9688
  %v9690 = vpop.f32.mrb[0].mxu0
  %v9691 = vpop.f32.mrb[0].mxu0
  %v9692 = vadd.f32 %v4853, %v9691
  %v9693 = vpop.f32.mrb[0].mxu0
  %9694 = vmatprep.mubr.bf16.mxu0 %v6699
  %9695 = vmatmul.mubr.bf16.gmra.mrb[0].mxu0 %v6698
  %v9696 = vpop.f32.mrb[0].mxu0
  %v9697 = vadd.f32 %v4853, %v9696
  %v9698 = vpop.f32.mrb[0].mxu0
  %v9699 = vpop.f32.mrb[0].mxu0
  %v9700 = vadd.f32 %v4853, %v9699
  %v9701 = vpop.f32.mrb[0].mxu0
  %9702 = vmatprep.mubr.bf16.mxu0 %v6705
  %9703 = vmatmul.mubr.bf16.gmra.mrb[0].mxu0 %v6704
  %v9704 = vpop.f32.mrb[0].mxu0
  %v9705 = vadd.f32 %v4853, %v9704
  %v9706 = vpop.f32.mrb[0].mxu0
  %v9707 = vpop.f32.mrb[0].mxu0
  %v9708 = vadd.f32 %v4853, %v9707
  %v9709 = vpop.f32.mrb[0].mxu0
  %9710 = vdwg.mxu0
  %9711 = vmatprep.subr.bf16.mxu0 0
  %9712 = vmatpush1.bf16.msra.mxu0 %v4816
  %9713 = vmatprep.subr.bf16.mxu0 0
  %9714 = vmatpush1.bf16.msra.mxu0 %v4817
  %9715 = vmatprep.subr.bf16.mxu0 0
  %9716 = vmatpush1.bf16.msra.mxu0 %v4818
  %9717 = vmatprep.subr.bf16.mxu0 0
  %9718 = vmatpush1.bf16.msra.mxu0 %v4819
  %9719 = vmatprep.subr.bf16.mxu0 0
  %9720 = vmatpush1.bf16.msra.mxu0 %v4820
  %9721 = vmatprep.subr.bf16.mxu0 0
  %9722 = vmatpush1.bf16.msra.mxu0 %v4821
  %9723 = vmatprep.subr.bf16.mxu0 0
  %9724 = vmatpush1.bf16.msra.mxu0 %v4822
  %9725 = vmatprep.subr.bf16.mxu0 0
  %9726 = vmatpush1.bf16.msra.mxu0 %v4823
  %9727 = vmatprep.subr.bf16.mxu0 0
  %9728 = vmatpush1.bf16.msra.mxu0 %v4824
  %9729 = vmatprep.subr.bf16.mxu0 0
  %9730 = vmatpush1.bf16.msra.mxu0 %v4825
  %9731 = vmatprep.subr.bf16.mxu0 0
  %9732 = vmatpush1.bf16.msra.mxu0 %v4826
  %9733 = vmatprep.subr.bf16.mxu0 0
  %9734 = vmatpush1.bf16.msra.mxu0 %v4827
  %9735 = vmatprep.subr.bf16.mxu0 0
  %9736 = vmatpush1.bf16.msra.mxu0 %v4828
  %9737 = vmatprep.subr.bf16.mxu0 0
  %9738 = vmatpush1.bf16.msra.mxu0 %v4829
  %9739 = vmatprep.subr.bf16.mxu0 0
  %9740 = vmatpush1.bf16.msra.mxu0 %v4830
  %9741 = vmatprep.subr.bf16.mxu0 0
  %9742 = vmatpush1.bf16.msra.mxu0 %v4831
  %9743 = vmatprep.mubr.bf16.mxu0 %v6689
  %9744 = vmatmul.mubr.bf16.gmra.mrb[0].mxu0 %v6688
  %v9745 = vpop.f32.mrb[0].mxu0
  %v9746 = vadd.f32 %v9681, %v9745
  %v9747 = vpop.f32.mrb[0].mxu0
  %v9748 = vpop.f32.mrb[0].mxu0
  %v9749 = vadd.f32 %v9684, %v9748
  %v9750 = vpop.f32.mrb[0].mxu0
  %9751 = vmatprep.mubr.bf16.mxu0 %v6695
  %9752 = vmatmul.mubr.bf16.gmra.mrb[0].mxu0 %v6694
  %v9753 = vpop.f32.mrb[0].mxu0
  %v9754 = vadd.f32 %v9689, %v9753
  %v9755 = vpop.f32.mrb[0].mxu0
  %v9756 = vpop.f32.mrb[0].mxu0
  %v9757 = vadd.f32 %v9692, %v9756
  %v9758 = vpop.f32.mrb[0].mxu0
  %9759 = vmatprep.mubr.bf16.mxu0 %v6701
  %9760 = vmatmul.mubr.bf16.gmra.mrb[0].mxu0 %v6700
  %v9761 = vpop.f32.mrb[0].mxu0
  %v9762 = vadd.f32 %v9697, %v9761
  %v9763 = vpop.f32.mrb[0].mxu0
  %v9764 = vpop.f32.mrb[0].mxu0
  %v9765 = vadd.f32 %v9700, %v9764
  %v9766 = vpop.f32.mrb[0].mxu0
  %9767 = vmatprep.mubr.bf16.mxu0 %v6707
  %9768 = vmatmul.mubr.bf16.gmra.mrb[0].mxu0 %v6706
  %v9769 = vpop.f32.mrb[0].mxu0
  %v9770 = vadd.f32 %v9705, %v9769
  %v9771 = vpop.f32.mrb[0].mxu0
  %v9772 = vpop.f32.mrb[0].mxu0
  %v9773 = vadd.f32 %v9708, %v9772
  %v9774 = vpop.f32.mrb[0].mxu0
  %9775 = vdwg.mxu0
  %9776 = vmatprep.subr.bf16.mxu0 0
  %9777 = vmatpush1.bf16.msra.mxu0 %v4832
  %9778 = vmatprep.subr.bf16.mxu0 0
  %9779 = vmatpush1.bf16.msra.mxu0 %v4833
  %9780 = vmatprep.subr.bf16.mxu0 0
  %9781 = vmatpush1.bf16.msra.mxu0 %v4834
  %9782 = vmatprep.subr.bf16.mxu0 0
  %9783 = vmatpush1.bf16.msra.mxu0 %v4835
  %9784 = vmatprep.subr.bf16.mxu0 0
  %9785 = vmatpush1.bf16.msra.mxu0 %v4836
  %9786 = vmatprep.subr.bf16.mxu0 0
  %9787 = vmatpush1.bf16.msra.mxu0 %v4837
  %9788 = vmatprep.subr.bf16.mxu0 0
  %9789 = vmatpush1.bf16.msra.mxu0 %v4838
  %9790 = vmatprep.subr.bf16.mxu0 0
  %9791 = vmatpush1.bf16.msra.mxu0 %v4839
  %9792 = vmatprep.subr.bf16.mxu0 0
  %9793 = vmatpush1.bf16.msra.mxu0 %v4840
  %9794 = vmatprep.subr.bf16.mxu0 0
  %9795 = vmatpush1.bf16.msra.mxu0 %v4841
  %9796 = vmatprep.subr.bf16.mxu0 0
  %9797 = vmatpush1.bf16.msra.mxu0 %v4842
  %9798 = vmatprep.subr.bf16.mxu0 0
  %9799 = vmatpush1.bf16.msra.mxu0 %v4843
  %9800 = vmatprep.subr.bf16.mxu0 0
  %9801 = vmatpush1.bf16.msra.mxu0 %v4844
  %9802 = vmatprep.subr.bf16.mxu0 0
  %9803 = vmatpush1.bf16.msra.mxu0 %v4845
  %9804 = vmatprep.subr.bf16.mxu0 0
  %9805 = vmatpush1.bf16.msra.mxu0 %v4846
  %9806 = vmatprep.subr.bf16.mxu0 0
  %9807 = vmatpush1.bf16.msra.mxu0 %v4847
  %9808 = vmatprep.mubr.bf16.mxu0 %v6691
  %9809 = vmatmul.mubr.bf16.gmra.mrb[0].mxu0 %v6690
  %v9810 = vpop.f32.mrb[0].mxu0
  %v9811 = vadd.f32 %v9746, %v9810
  %v9812 = vpop.f32.mrb[0].mxu0
  %v9813 = vpop.f32.mrb[0].mxu0
  %v9814 = vadd.f32 %v9749, %v9813
  %v9815 = vpop.f32.mrb[0].mxu0
  %9816 = vmatprep.mubr.bf16.mxu0 %v6697
  %9817 = vmatmul.mubr.bf16.gmra.mrb[0].mxu0 %v6696
  %v9818 = vpop.f32.mrb[0].mxu0
  %v9819 = vadd.f32 %v9754, %v9818
  %v9820 = vpop.f32.mrb[0].mxu0
  %v9821 = vpop.f32.mrb[0].mxu0
  %v9822 = vadd.f32 %v9757, %v9821
  %v9823 = vpop.f32.mrb[0].mxu0
  %9824 = vmatprep.mubr.bf16.mxu0 %v6703
  %9825 = vmatmul.mubr.bf16.gmra.mrb[0].mxu0 %v6702
  %v9826 = vpop.f32.mrb[0].mxu0
  %v9827 = vadd.f32 %v9762, %v9826
  %v9828 = vpop.f32.mrb[0].mxu0
  %v9829 = vpop.f32.mrb[0].mxu0
  %v9830 = vadd.f32 %v9765, %v9829
  %v9831 = vpop.f32.mrb[0].mxu0
  %9832 = vmatprep.mubr.bf16.mxu0 %v6709
  %9833 = vmatmul.mubr.bf16.gmra.mrb[0].mxu0 %v6708
  %v9834 = vpop.f32.mrb[0].mxu0
  %v9835 = vadd.f32 %v9770, %v9834
  %v9836 = vpop.f32.mrb[0].mxu0
  %v9837 = vpop.f32.mrb[0].mxu0
  %v9838 = vadd.f32 %v9773, %v9837
  %v9839 = vpop.f32.mrb[0].mxu0
  %9840 = vdwg.mxu0
  %9841 = vmatprep.subr.bf16.mxu0 %v5051
  %9842 = vmatpush1.bf16.msra.mxu0 %v5050
  %9843 = vmatprep.subr.bf16.mxu0 %v5053
  %9844 = vmatpush1.bf16.msra.mxu0 %v5052
  %9845 = vmatprep.subr.bf16.mxu0 %v5055
  %9846 = vmatpush1.bf16.msra.mxu0 %v5054
  %9847 = vmatprep.subr.bf16.mxu0 %v5057
  %9848 = vmatpush1.bf16.msra.mxu0 %v5056
  %9849 = vmatprep.subr.bf16.mxu0 %v5059
  %9850 = vmatpush1.bf16.msra.mxu0 %v5058
  %9851 = vmatprep.subr.bf16.mxu0 %v5061
  %9852 = vmatpush1.bf16.msra.mxu0 %v5060
  %9853 = vmatprep.subr.bf16.mxu0 %v5063
  %9854 = vmatpush1.bf16.msra.mxu0 %v5062
  %9855 = vmatprep.subr.bf16.mxu0 %v5065
  %9856 = vmatpush1.bf16.msra.mxu0 %v5064
  %9857 = vmatprep.subr.bf16.mxu0 %v5067
  %9858 = vmatpush1.bf16.msra.mxu0 %v5066
  %9859 = vmatprep.subr.bf16.mxu0 %v5069
  %9860 = vmatpush1.bf16.msra.mxu0 %v5068
  %9861 = vmatprep.subr.bf16.mxu0 %v5071
  %9862 = vmatpush1.bf16.msra.mxu0 %v5070
  %9863 = vmatprep.subr.bf16.mxu0 %v5073
  %9864 = vmatpush1.bf16.msra.mxu0 %v5072
  %9865 = vmatprep.subr.bf16.mxu0 %v5075
  %9866 = vmatpush1.bf16.msra.mxu0 %v5074
  %9867 = vmatprep.subr.bf16.mxu0 %v5077
  %9868 = vmatpush1.bf16.msra.mxu0 %v5076
  %9869 = vmatprep.subr.bf16.mxu0 %v5079
  %9870 = vmatpush1.bf16.msra.mxu0 %v5078
  %9871 = vmatprep.subr.bf16.mxu0 %v5081
  %9872 = vmatpush1.bf16.msra.mxu0 %v5080
  %9873 = vmatprep.mubr.bf16.mxu0 %v9623
  %9874 = vmatmul.mubr.bf16.gmra.mrb[0].mxu0 %v9622
  %v9875 = vpop.f32.mrb[0].mxu0
  %v9876 = vadd.f32 %v5151, %v9875
  %v9877 = vpop.f32.mrb[0].mxu0
  %v9878 = vadd.f32 %v5155, %v9877
  %v9879 = vpop.f32.mrb[0].mxu0
  %v9880 = vadd.f32 %v5151, %v9879
  %v9881 = vpop.f32.mrb[0].mxu0
  %v9882 = vadd.f32 %v5155, %v9881
  %9883 = vmatprep.mubr.bf16.mxu0 %v9629
  %9884 = vmatmul.mubr.bf16.gmra.mrb[0].mxu0 %v9628
  %v9885 = vpop.f32.mrb[0].mxu0
  %v9886 = vadd.f32 %v5151, %v9885
  %v9887 = vpop.f32.mrb[0].mxu0
  %v9888 = vadd.f32 %v5155, %v9887
  %v9889 = vpop.f32.mrb[0].mxu0
  %v9890 = vadd.f32 %v5151, %v9889
  %v9891 = vpop.f32.mrb[0].mxu0
  %v9892 = vadd.f32 %v5155, %v9891
  %9893 = vmatprep.mubr.bf16.mxu0 %v9635
  %9894 = vmatmul.mubr.bf16.gmra.mrb[0].mxu0 %v9634
  %v9895 = vpop.f32.mrb[0].mxu0
  %v9896 = vadd.f32 %v5151, %v9895
  %v9897 = vpop.f32.mrb[0].mxu0
  %v9898 = vadd.f32 %v5155, %v9897
  %v9899 = vpop.f32.mrb[0].mxu0
  %v9900 = vadd.f32 %v5151, %v9899
  %v9901 = vpop.f32.mrb[0].mxu0
  %v9902 = vadd.f32 %v5155, %v9901
  %9903 = vmatprep.mubr.bf16.mxu0 %v9641
  %9904 = vmatmul.mubr.bf16.gmra.mrb[0].mxu0 %v9640
  %v9905 = vpop.f32.mrb[0].mxu0
  %v9906 = vadd.f32 %v5151, %v9905
  %v9907 = vpop.f32.mrb[0].mxu0
  %v9908 = vadd.f32 %v5155, %v9907
  %v9909 = vpop.f32.mrb[0].mxu0
  %v9910 = vadd.f32 %v5151, %v9909
  %v9911 = vpop.f32.mrb[0].mxu0
  %v9912 = vadd.f32 %v5155, %v9911
  %9913 = vdwg.mxu0
  %9914 = vmatprep.subr.bf16.mxu0 %v5083
  %9915 = vmatpush1.bf16.msra.mxu0 %v5082
  %9916 = vmatprep.subr.bf16.mxu0 %v5085
  %9917 = vmatpush1.bf16.msra.mxu0 %v5084
  %9918 = vmatprep.subr.bf16.mxu0 %v5087
  %9919 = vmatpush1.bf16.msra.mxu0 %v5086
  %9920 = vmatprep.subr.bf16.mxu0 %v5089
  %9921 = vmatpush1.bf16.msra.mxu0 %v5088
  %9922 = vmatprep.subr.bf16.mxu0 %v5091
  %9923 = vmatpush1.bf16.msra.mxu0 %v5090
  %9924 = vmatprep.subr.bf16.mxu0 %v5093
  %9925 = vmatpush1.bf16.msra.mxu0 %v5092
  %9926 = vmatprep.subr.bf16.mxu0 %v5095
  %9927 = vmatpush1.bf16.msra.mxu0 %v5094
  %9928 = vmatprep.subr.bf16.mxu0 %v5097
  %9929 = vmatpush1.bf16.msra.mxu0 %v5096
  %9930 = vmatprep.subr.bf16.mxu0 %v5099
  %9931 = vmatpush1.bf16.msra.mxu0 %v5098
  %9932 = vmatprep.subr.bf16.mxu0 %v5101
  %9933 = vmatpush1.bf16.msra.mxu0 %v5100
  %9934 = vmatprep.subr.bf16.mxu0 %v5103
  %9935 = vmatpush1.bf16.msra.mxu0 %v5102
  %9936 = vmatprep.subr.bf16.mxu0 %v5105
  %9937 = vmatpush1.bf16.msra.mxu0 %v5104
  %9938 = vmatprep.subr.bf16.mxu0 %v5107
  %9939 = vmatpush1.bf16.msra.mxu0 %v5106
  %9940 = vmatprep.subr.bf16.mxu0 %v5109
  %9941 = vmatpush1.bf16.msra.mxu0 %v5108
  %9942 = vmatprep.subr.bf16.mxu0 %v5111
  %9943 = vmatpush1.bf16.msra.mxu0 %v5110
  %9944 = vmatprep.subr.bf16.mxu0 %v5113
  %9945 = vmatpush1.bf16.msra.mxu0 %v5112
  %9946 = vmatprep.mubr.bf16.mxu0 %v9625
  %9947 = vmatmul.mubr.bf16.gmra.mrb[0].mxu0 %v9624
  %v9948 = vpop.f32.mrb[0].mxu0
  %v9949 = vadd.f32 %v9876, %v9948
  %v9950 = vpop.f32.mrb[0].mxu0
  %v9951 = vadd.f32 %v9878, %v9950
  %v9952 = vpop.f32.mrb[0].mxu0
  %v9953 = vadd.f32 %v9880, %v9952
  %v9954 = vpop.f32.mrb[0].mxu0
  %v9955 = vadd.f32 %v9882, %v9954
  %9956 = vmatprep.mubr.bf16.mxu0 %v9631
  %9957 = vmatmul.mubr.bf16.gmra.mrb[0].mxu0 %v9630
  %v9958 = vpop.f32.mrb[0].mxu0
  %v9959 = vadd.f32 %v9886, %v9958
  %v9960 = vpop.f32.mrb[0].mxu0
  %v9961 = vadd.f32 %v9888, %v9960
  %v9962 = vpop.f32.mrb[0].mxu0
  %v9963 = vadd.f32 %v9890, %v9962
  %v9964 = vpop.f32.mrb[0].mxu0
  %v9965 = vadd.f32 %v9892, %v9964
  %9966 = vmatprep.mubr.bf16.mxu0 %v9637
  %9967 = vmatmul.mubr.bf16.gmra.mrb[0].mxu0 %v9636
  %v9968 = vpop.f32.mrb[0].mxu0
  %v9969 = vadd.f32 %v9896, %v9968
  %v9970 = vpop.f32.mrb[0].mxu0
  %v9971 = vadd.f32 %v9898, %v9970
  %v9972 = vpop.f32.mrb[0].mxu0
  %v9973 = vadd.f32 %v9900, %v9972
  %v9974 = vpop.f32.mrb[0].mxu0
  %v9975 = vadd.f32 %v9902, %v9974
  %9976 = vmatprep.mubr.bf16.mxu0 %v9643
  %9977 = vmatmul.mubr.bf16.gmra.mrb[0].mxu0 %v9642
  %v9978 = vpop.f32.mrb[0].mxu0
  %v9979 = vadd.f32 %v9906, %v9978
  %v9980 = vpop.f32.mrb[0].mxu0
  %v9981 = vadd.f32 %v9908, %v9980
  %v9982 = vpop.f32.mrb[0].mxu0
  %v9983 = vadd.f32 %v9910, %v9982
  %v9984 = vpop.f32.mrb[0].mxu0
  %v9985 = vadd.f32 %v9912, %v9984
  %9986 = vdwg.mxu0
  %9987 = vmatprep.subr.bf16.mxu0 %v5115
  %9988 = vmatpush1.bf16.msra.mxu0 %v5114
  %9989 = vmatprep.subr.bf16.mxu0 %v5117
  %9990 = vmatpush1.bf16.msra.mxu0 %v5116
  %9991 = vmatprep.subr.bf16.mxu0 %v5119
  %9992 = vmatpush1.bf16.msra.mxu0 %v5118
  %9993 = vmatprep.subr.bf16.mxu0 %v5121
  %9994 = vmatpush1.bf16.msra.mxu0 %v5120
  %9995 = vmatprep.subr.bf16.mxu0 %v5123
  %9996 = vmatpush1.bf16.msra.mxu0 %v5122
  %9997 = vmatprep.subr.bf16.mxu0 %v5125
  %9998 = vmatpush1.bf16.msra.mxu0 %v5124
  %9999 = vmatprep.subr.bf16.mxu0 %v5127
  %10000 = vmatpush1.bf16.msra.mxu0 %v5126
  %10001 = vmatprep.subr.bf16.mxu0 %v5129
  %10002 = vmatpush1.bf16.msra.mxu0 %v5128
  %10003 = vmatprep.subr.bf16.mxu0 %v5131
  %10004 = vmatpush1.bf16.msra.mxu0 %v5130
  %10005 = vmatprep.subr.bf16.mxu0 %v5133
  %10006 = vmatpush1.bf16.msra.mxu0 %v5132
  %10007 = vmatprep.subr.bf16.mxu0 %v5135
  %10008 = vmatpush1.bf16.msra.mxu0 %v5134
  %10009 = vmatprep.subr.bf16.mxu0 %v5137
  %10010 = vmatpush1.bf16.msra.mxu0 %v5136
  %10011 = vmatprep.subr.bf16.mxu0 %v5139
  %10012 = vmatpush1.bf16.msra.mxu0 %v5138
  %10013 = vmatprep.subr.bf16.mxu0 %v5141
  %10014 = vmatpush1.bf16.msra.mxu0 %v5140
  %10015 = vmatprep.subr.bf16.mxu0 %v5143
  %10016 = vmatpush1.bf16.msra.mxu0 %v5142
  %10017 = vmatprep.subr.bf16.mxu0 %v5145
  %10018 = vmatpush1.bf16.msra.mxu0 %v5144
  %10019 = vmatprep.mubr.bf16.mxu0 %v9627
  %10020 = vmatmul.mubr.bf16.gmra.mrb[0].mxu0 %v9626
  %v10021 = vpop.f32.mrb[0].mxu0
  %v10022 = vadd.f32 %v9949, %v10021
  %v10023 = vpop.f32.mrb[0].mxu0
  %v10024 = vadd.f32 %v9951, %v10023
  %v10025 = vpop.f32.mrb[0].mxu0
  %v10026 = vadd.f32 %v9953, %v10025
  %v10027 = vpop.f32.mrb[0].mxu0
  %v10028 = vadd.f32 %v9955, %v10027
  %10029 = vmatprep.mubr.bf16.mxu0 %v9633
  %10030 = vmatmul.mubr.bf16.gmra.mrb[0].mxu0 %v9632
  %v10031 = vpop.f32.mrb[0].mxu0
  %v10032 = vadd.f32 %v9959, %v10031
  %v10033 = vpop.f32.mrb[0].mxu0
  %v10034 = vadd.f32 %v9961, %v10033
  %v10035 = vpop.f32.mrb[0].mxu0
  %v10036 = vadd.f32 %v9963, %v10035
  %v10037 = vpop.f32.mrb[0].mxu0
  %v10038 = vadd.f32 %v9965, %v10037
  %10039 = vmatprep.mubr.bf16.mxu0 %v9639
  %10040 = vmatmul.mubr.bf16.gmra.mrb[0].mxu0 %v9638
  %v10041 = vpop.f32.mrb[0].mxu0
  %v10042 = vadd.f32 %v9969, %v10041
  %v10043 = vpop.f32.mrb[0].mxu0
  %v10044 = vadd.f32 %v9971, %v10043
  %v10045 = vpop.f32.mrb[0].mxu0
  %v10046 = vadd.f32 %v9973, %v10045
  %v10047 = vpop.f32.mrb[0].mxu0
  %v10048 = vadd.f32 %v9975, %v10047
  %10049 = vmatprep.mubr.bf16.mxu0 %v9645
  %10050 = vmatmul.mubr.bf16.gmra.mrb[0].mxu0 %v9644
  %v10051 = vpop.f32.mrb[0].mxu0
  %v10052 = vadd.f32 %v9979, %v10051
  %v10053 = vpop.f32.mrb[0].mxu0
  %v10054 = vadd.f32 %v9981, %v10053
  %v10055 = vpop.f32.mrb[0].mxu0
  %v10056 = vadd.f32 %v9983, %v10055
  %v10057 = vpop.f32.mrb[0].mxu0
  %v10058 = vadd.f32 %v9985, %v10057
  %10059 = vdwg.mxu0
  %v10060 = vpack.c.bf16 %v9814, %v9811
  %v10061 = vpack.c.bf16 %v9822, %v9819
  %v10062 = vpack.c.bf16 %v9830, %v9827
  %v10063 = vpack.c.bf16 %v9838, %v9835
  %v10064 = vpack.c.bf16 %v10026, %v10022
  %v10065 = vpack.c.bf16 %v10036, %v10032
  %v10066 = vpack.c.bf16 %v10046, %v10042
  %v10067 = vpack.c.bf16 %v10056, %v10052
  %v10068 = vpack.c.bf16 %v10028, %v10024
  %v10069 = vpack.c.bf16 %v10038, %v10034
  %v10070 = vpack.c.bf16 %v10048, %v10044
  %v10071 = vpack.c.bf16 %v10058, %v10054
  %v10073 = vsel %vm3274, %v10060, 0
  %v10076 = vsel %vm3274, %v10061, 0
  %v10079 = vsel %vm3274, %v10062, 0
  %v10082 = vsel %vm3274, %v10063, 0
  %v10085 = vsel %vm3274, %v10064, 0
  %v10088 = vsel %vm3274, %v10065, 0
  %v10091 = vsel %vm3274, %v10066, 0
  %v10094 = vsel %vm3274, %v10067, 0
  %10096 = vmatprep.subr.bf16.mxu0 0
  %10097 = vmatpush1.bf16.xpose.msra.mxu0 %v10085
  %10098 = vmatprep.subr.bf16.mxu0 0
  %10099 = vmatpush1.bf16.xpose.msra.mxu0 %v10088
  %10100 = vmatprep.subr.bf16.mxu0 0
  %10101 = vmatpush1.bf16.xpose.msra.mxu0 %v10091
  %10102 = vmatprep.subr.bf16.mxu0 0
  %10103 = vmatpush1.bf16.xpose.msra.mxu0 %v10094
  %10104 = vmatprep.subr.bf16.mxu0 0
  %10105 = vmatpush1.bf16.xpose.msra.mxu0 0
  %10106 = vmatprep.subr.bf16.mxu0 0
  %10107 = vmatpush1.bf16.xpose.msra.mxu0 0
  %10108 = vmatprep.subr.bf16.mxu0 0
  %10109 = vmatpush1.bf16.xpose.msra.mxu0 0
  %10110 = vmatprep.subr.bf16.mxu0 0
  %10111 = vmatpush1.bf16.xpose.msra.mxu0 0
  %10112 = vmatprep.subr.bf16.mxu0 0
  %10113 = vmatpush1.bf16.xpose.msra.mxu0 0
  %10114 = vmatprep.subr.bf16.mxu0 0
  %10115 = vmatpush1.bf16.xpose.msra.mxu0 0
  %10116 = vmatprep.subr.bf16.mxu0 0
  %10117 = vmatpush1.bf16.xpose.msra.mxu0 0
  %10118 = vmatprep.subr.bf16.mxu0 0
  %10119 = vmatpush1.bf16.xpose.msra.mxu0 0
  %10120 = vmatprep.subr.bf16.mxu0 0
  %10121 = vmatpush1.bf16.xpose.msra.mxu0 0
  %10122 = vmatprep.subr.bf16.mxu0 0
  %10123 = vmatpush1.bf16.xpose.msra.mxu0 0
  %10124 = vmatprep.subr.bf16.mxu0 0
  %10125 = vmatpush1.bf16.xpose.msra.mxu0 0
  %10126 = vmatprep.subr.bf16.mxu0 0
  %10127 = vmatpush1.bf16.xpose.msra.mxu0 0
  %10128 = vmatprep.mubr.bf16.mxu0 0
  %10129 = vmatmul.mubr.bf16.gmra.mrb[0].mxu0 %v10073
  %v10130 = vpop.f32.mrb[0].mxu0
  %v10131 = vadd.f32 0.0, %v10130
  %v10132 = vpop.f32.mrb[0].mxu0
  %v10133 = vpop.f32.mrb[0].mxu0
  %v10134 = vadd.f32 0.0, %v10133
  %v10135 = vpop.f32.mrb[0].mxu0
  %10136 = vmatprep.mubr.bf16.mxu0 0
  %10137 = vmatmul.mubr.bf16.gmra.mrb[0].mxu0 %v10076
  %v10138 = vpop.f32.mrb[0].mxu0
  %v10139 = vadd.f32 0.0, %v10138
  %v10140 = vpop.f32.mrb[0].mxu0
  %v10141 = vpop.f32.mrb[0].mxu0
  %v10142 = vadd.f32 0.0, %v10141
  %v10143 = vpop.f32.mrb[0].mxu0
  %10144 = vmatprep.mubr.bf16.mxu0 0
  %10145 = vmatmul.mubr.bf16.gmra.mrb[0].mxu0 %v10079
  %v10146 = vpop.f32.mrb[0].mxu0
  %v10147 = vadd.f32 0.0, %v10146
  %v10148 = vpop.f32.mrb[0].mxu0
  %v10149 = vpop.f32.mrb[0].mxu0
  %v10150 = vadd.f32 0.0, %v10149
  %v10151 = vpop.f32.mrb[0].mxu0
  %10152 = vmatprep.mubr.bf16.mxu0 0
  %10153 = vmatmul.mubr.bf16.gmra.mrb[0].mxu0 %v10082
  %v10154 = vpop.f32.mrb[0].mxu0
  %v10155 = vadd.f32 0.0, %v10154
  %v10156 = vpop.f32.mrb[0].mxu0
  %v10157 = vpop.f32.mrb[0].mxu0
  %v10158 = vadd.f32 0.0, %v10157
  %v10159 = vpop.f32.mrb[0].mxu0
  %10160 = vdwg.mxu0
  %v10161 = vsel %vm5483, 1e-09, %v10131
  %v10162 = vsel %vm5483, 1e-09, %v10134
  %v10163 = vsel %vm5483, 1e-09, %v10139
  %v10164 = vsel %vm5483, 1e-09, %v10142
  %v10165 = vsel %vm5483, 1e-09, %v10147
  %v10166 = vsel %vm5483, 1e-09, %v10150
  %v10167 = vsel %vm5483, 1e-09, %v10155
  %v10168 = vsel %vm5483, 1e-09, %v10158
  %v10169 = vadd.f32 %v10161, %v1473
  %v10170 = vadd.f32 %v10162, %v1474
  %v10171 = vadd.f32 %v10163, %v1475
  %v10172 = vadd.f32 %v10164, %v1476
  %v10173 = vadd.f32 %v10165, %v1477
  %v10174 = vadd.f32 %v10166, %v1478
  %v10175 = vadd.f32 %v10167, %v1479
  %v10176 = vadd.f32 %v10168, %v1480
  %v10177 = vsel %vm3274, %v10169, -inf
  %10178 = vmax.xlane.f32.xlu0 %v10177
  %v10179 = vpop.xlane.xlu0 %10178
  %v10180 = vsel %vm3274, %v10170, -inf
  %10181 = vmax.xlane.f32.xlu0 %v10180
  %v10182 = vpop.xlane.xlu0 %10181
  %v10183 = vsel %vm3274, %v10171, -inf
  %10184 = vmax.xlane.f32.xlu0 %v10183
  %v10185 = vpop.xlane.xlu0 %10184
  %v10186 = vsel %vm3274, %v10172, -inf
  %10187 = vmax.xlane.f32.xlu0 %v10186
  %v10188 = vpop.xlane.xlu0 %10187
  %v10189 = vsel %vm3274, %v10173, -inf
  %10190 = vmax.xlane.f32.xlu0 %v10189
  %v10191 = vpop.xlane.xlu0 %10190
  %v10192 = vsel %vm3274, %v10174, -inf
  %10193 = vmax.xlane.f32.xlu0 %v10192
  %v10194 = vpop.xlane.xlu0 %10193
  %v10195 = vsel %vm3274, %v10175, -inf
  %10196 = vmax.xlane.f32.xlu0 %v10195
  %v10197 = vpop.xlane.xlu0 %10196
  %v10198 = vsel %vm3274, %v10176, -inf
  %10199 = vmax.xlane.f32.xlu0 %v10198
  %v10200 = vpop.xlane.xlu0 %10199
  %v10201 = vsub.f32 %v10169, %v10179
  %v10202 = vsub.f32 %v10170, %v10182
  %v10203 = vsub.f32 %v10171, %v10185
  %v10204 = vsub.f32 %v10172, %v10188
  %v10205 = vsub.f32 %v10173, %v10191
  %v10206 = vsub.f32 %v10174, %v10194
  %v10207 = vsub.f32 %v10175, %v10197
  %v10208 = vsub.f32 %v10176, %v10200
  %v10209 = vmul.f32 %v10201, 1.442695
  %v10210 = vpow.pop %v10209
  %v10211 = vmul.f32 %v10202, 1.442695
  %v10212 = vpow.pop %v10211
  %v10213 = vmul.f32 %v10203, 1.442695
  %v10214 = vpow.pop %v10213
  %v10215 = vmul.f32 %v10204, 1.442695
  %v10216 = vpow.pop %v10215
  %v10217 = vmul.f32 %v10205, 1.442695
  %v10218 = vpow.pop %v10217
  %v10219 = vmul.f32 %v10206, 1.442695
  %v10220 = vpow.pop %v10219
  %v10221 = vmul.f32 %v10207, 1.442695
  %v10222 = vpow.pop %v10221
  %v10223 = vmul.f32 %v10208, 1.442695
  %v10224 = vpow.pop %v10223
  %v10225 = vsel %vm3274, %v10210, 0.0
  %10226 = vadd.xlane.f32.xlu0 %v10225
  %v10227 = vpop.xlane.xlu0 %10226
  %v10228 = vsel %vm3274, %v10212, 0.0
  %10229 = vadd.xlane.f32.xlu0 %v10228
  %v10230 = vpop.xlane.xlu0 %10229
  %v10231 = vsel %vm3274, %v10214, 0.0
  %10232 = vadd.xlane.f32.xlu0 %v10231
  %v10233 = vpop.xlane.xlu0 %10232
  %v10234 = vsel %vm3274, %v10216, 0.0
  %10235 = vadd.xlane.f32.xlu0 %v10234
  %v10236 = vpop.xlane.xlu0 %10235
  %v10237 = vsel %vm3274, %v10218, 0.0
  %10238 = vadd.xlane.f32.xlu0 %v10237
  %v10239 = vpop.xlane.xlu0 %10238
  %v10240 = vsel %vm3274, %v10220, 0.0
  %10241 = vadd.xlane.f32.xlu0 %v10240
  %v10242 = vpop.xlane.xlu0 %10241
  %v10243 = vsel %vm3274, %v10222, 0.0
  %10244 = vadd.xlane.f32.xlu0 %v10243
  %v10245 = vpop.xlane.xlu0 %10244
  %v10246 = vsel %vm3274, %v10224, 0.0
  %10247 = vadd.xlane.f32.xlu0 %v10246
  %v10248 = vpop.xlane.xlu0 %10247
  %v10249 = vrcp.pop %v10227
  %v10250 = vrcp.pop %v10230
  %v10251 = vrcp.pop %v10233
  %v10252 = vrcp.pop %v10236
  %v10253 = vrcp.pop %v10239
  %v10254 = vrcp.pop %v10242
  %v10255 = vrcp.pop %v10245
  %v10256 = vrcp.pop %v10248
  %v10257 = vmul.f32 %v10210, %v10249
  %v10258 = vmul.f32 %v10212, %v10250
  %v10259 = vmul.f32 %v10214, %v10251
  %v10260 = vmul.f32 %v10216, %v10252
  %v10261 = vmul.f32 %v10218, %v10253
  %v10262 = vmul.f32 %v10220, %v10254
  %v10263 = vmul.f32 %v10222, %v10255
  %v10264 = vmul.f32 %v10224, %v10256
  %v10265 = vpack.c.bf16 %v10258, %v10257
  %v10266 = vpack.c.bf16 %v10260, %v10259
  %v10267 = vpack.c.bf16 %v10262, %v10261
  %v10268 = vpack.c.bf16 %v10264, %v10263
  %v10270 = vsel %vm3274, %v10265, 0
  %v10273 = vsel %vm3274, %v10266, 0
  %v10276 = vsel %vm3274, %v10267, 0
  %v10279 = vsel %vm3274, %v10268, 0
  %10281 = vmatprep.subr.bf16.mxu0 0
  %10282 = vmatpush1.bf16.msra.mxu0 %v10068
  %10283 = vmatprep.subr.bf16.mxu0 0
  %10284 = vmatpush1.bf16.msra.mxu0 %v10069
  %10285 = vmatprep.subr.bf16.mxu0 0
  %10286 = vmatpush1.bf16.msra.mxu0 %v10070
  %10287 = vmatprep.subr.bf16.mxu0 0
  %10288 = vmatpush1.bf16.msra.mxu0 %v10071
  %10289 = vmatprep.subr.bf16.mxu0 0
  %10290 = vmatpush1.bf16.msra.mxu0 0
  %10291 = vmatprep.subr.bf16.mxu0 0
  %10292 = vmatpush1.bf16.msra.mxu0 0
  %10293 = vmatprep.subr.bf16.mxu0 0
  %10294 = vmatpush1.bf16.msra.mxu0 0
  %10295 = vmatprep.subr.bf16.mxu0 0
  %10296 = vmatpush1.bf16.msra.mxu0 0
  %10297 = vmatprep.subr.bf16.mxu0 0
  %10298 = vmatpush1.bf16.msra.mxu0 0
  %10299 = vmatprep.subr.bf16.mxu0 0
  %10300 = vmatpush1.bf16.msra.mxu0 0
  %10301 = vmatprep.subr.bf16.mxu0 0
  %10302 = vmatpush1.bf16.msra.mxu0 0
  %10303 = vmatprep.subr.bf16.mxu0 0
  %10304 = vmatpush1.bf16.msra.mxu0 0
  %10305 = vmatprep.subr.bf16.mxu0 0
  %10306 = vmatpush1.bf16.msra.mxu0 0
  %10307 = vmatprep.subr.bf16.mxu0 0
  %10308 = vmatpush1.bf16.msra.mxu0 0
  %10309 = vmatprep.subr.bf16.mxu0 0
  %10310 = vmatpush1.bf16.msra.mxu0 0
  %10311 = vmatprep.subr.bf16.mxu0 0
  %10312 = vmatpush1.bf16.msra.mxu0 0
  %10313 = vmatprep.mubr.bf16.mxu0 0
  %10314 = vmatmul.mubr.bf16.gmra.mrb[0].mxu0 %v10270
  %v10315 = vpop.f32.mrb[0].mxu0
  %v10316 = vadd.f32 0.0, %v10315
  %v10317 = vpop.f32.mrb[0].mxu0
  %v10318 = vpop.f32.mrb[0].mxu0
  %v10319 = vadd.f32 0.0, %v10318
  %v10320 = vpop.f32.mrb[0].mxu0
  %10321 = vmatprep.mubr.bf16.mxu0 0
  %10322 = vmatmul.mubr.bf16.gmra.mrb[0].mxu0 %v10273
  %v10323 = vpop.f32.mrb[0].mxu0
  %v10324 = vadd.f32 0.0, %v10323
  %v10325 = vpop.f32.mrb[0].mxu0
  %v10326 = vpop.f32.mrb[0].mxu0
  %v10327 = vadd.f32 0.0, %v10326
  %v10328 = vpop.f32.mrb[0].mxu0
  %10329 = vmatprep.mubr.bf16.mxu0 0
  %10330 = vmatmul.mubr.bf16.gmra.mrb[0].mxu0 %v10276
  %v10331 = vpop.f32.mrb[0].mxu0
  %v10332 = vadd.f32 0.0, %v10331
  %v10333 = vpop.f32.mrb[0].mxu0
  %v10334 = vpop.f32.mrb[0].mxu0
  %v10335 = vadd.f32 0.0, %v10334
  %v10336 = vpop.f32.mrb[0].mxu0
  %10337 = vmatprep.mubr.bf16.mxu0 0
  %10338 = vmatmul.mubr.bf16.gmra.mrb[0].mxu0 %v10279
  %v10339 = vpop.f32.mrb[0].mxu0
  %v10340 = vadd.f32 0.0, %v10339
  %v10341 = vpop.f32.mrb[0].mxu0
  %v10342 = vpop.f32.mrb[0].mxu0
  %v10343 = vadd.f32 0.0, %v10342
  %v10344 = vpop.f32.mrb[0].mxu0
  %10345 = vdwg.mxu0
  %10350 = vrot.lane.b32.xlu0 %v10060, 64
  %v10351 = vpop.permute.xlu0 %10350
  %10352 = vrot.lane.b32.xlu0 %v10061, 64
  %v10353 = vpop.permute.xlu0 %10352
  %10354 = vrot.lane.b32.xlu0 %v10062, 64
  %v10355 = vpop.permute.xlu0 %10354
  %10356 = vrot.lane.b32.xlu0 %v10063, 64
  %v10357 = vpop.permute.xlu0 %10356
  %10362 = vrot.lane.b32.xlu0 %v10064, 64
  %v10363 = vpop.permute.xlu0 %10362
  %10364 = vrot.lane.b32.xlu0 %v10065, 64
  %v10365 = vpop.permute.xlu0 %10364
  %10366 = vrot.lane.b32.xlu0 %v10066, 64
  %v10367 = vpop.permute.xlu0 %10366
  %10368 = vrot.lane.b32.xlu0 %v10067, 64
  %v10369 = vpop.permute.xlu0 %10368
  %v10371 = vsel %vm3274, %v10351, 0
  %v10374 = vsel %vm3274, %v10353, 0
  %v10377 = vsel %vm3274, %v10355, 0
  %v10380 = vsel %vm3274, %v10357, 0
  %v10383 = vsel %vm3274, %v10363, 0
  %v10386 = vsel %vm3274, %v10365, 0
  %v10389 = vsel %vm3274, %v10367, 0
  %v10392 = vsel %vm3274, %v10369, 0
  %10394 = vmatprep.subr.bf16.mxu0 0
  %10395 = vmatpush1.bf16.xpose.msra.mxu0 %v10383
  %10396 = vmatprep.subr.bf16.mxu0 0
  %10397 = vmatpush1.bf16.xpose.msra.mxu0 %v10386
  %10398 = vmatprep.subr.bf16.mxu0 0
  %10399 = vmatpush1.bf16.xpose.msra.mxu0 %v10389
  %10400 = vmatprep.subr.bf16.mxu0 0
  %10401 = vmatpush1.bf16.xpose.msra.mxu0 %v10392
  %10402 = vmatprep.subr.bf16.mxu0 0
  %10403 = vmatpush1.bf16.xpose.msra.mxu0 0
  %10404 = vmatprep.subr.bf16.mxu0 0
  %10405 = vmatpush1.bf16.xpose.msra.mxu0 0
  %10406 = vmatprep.subr.bf16.mxu0 0
  %10407 = vmatpush1.bf16.xpose.msra.mxu0 0
  %10408 = vmatprep.subr.bf16.mxu0 0
  %10409 = vmatpush1.bf16.xpose.msra.mxu0 0
  %10410 = vmatprep.subr.bf16.mxu0 0
  %10411 = vmatpush1.bf16.xpose.msra.mxu0 0
  %10412 = vmatprep.subr.bf16.mxu0 0
  %10413 = vmatpush1.bf16.xpose.msra.mxu0 0
  %10414 = vmatprep.subr.bf16.mxu0 0
  %10415 = vmatpush1.bf16.xpose.msra.mxu0 0
  %10416 = vmatprep.subr.bf16.mxu0 0
  %10417 = vmatpush1.bf16.xpose.msra.mxu0 0
  %10418 = vmatprep.subr.bf16.mxu0 0
  %10419 = vmatpush1.bf16.xpose.msra.mxu0 0
  %10420 = vmatprep.subr.bf16.mxu0 0
  %10421 = vmatpush1.bf16.xpose.msra.mxu0 0
  %10422 = vmatprep.subr.bf16.mxu0 0
  %10423 = vmatpush1.bf16.xpose.msra.mxu0 0
  %10424 = vmatprep.subr.bf16.mxu0 0
  %10425 = vmatpush1.bf16.xpose.msra.mxu0 0
  %10426 = vmatprep.mubr.bf16.mxu0 0
  %10427 = vmatmul.mubr.bf16.gmra.mrb[0].mxu0 %v10371
  %v10428 = vpop.f32.mrb[0].mxu0
  %v10429 = vadd.f32 0.0, %v10428
  %v10430 = vpop.f32.mrb[0].mxu0
  %v10431 = vpop.f32.mrb[0].mxu0
  %v10432 = vadd.f32 0.0, %v10431
  %v10433 = vpop.f32.mrb[0].mxu0
  %10434 = vmatprep.mubr.bf16.mxu0 0
  %10435 = vmatmul.mubr.bf16.gmra.mrb[0].mxu0 %v10374
  %v10436 = vpop.f32.mrb[0].mxu0
  %v10437 = vadd.f32 0.0, %v10436
  %v10438 = vpop.f32.mrb[0].mxu0
  %v10439 = vpop.f32.mrb[0].mxu0
  %v10440 = vadd.f32 0.0, %v10439
  %v10441 = vpop.f32.mrb[0].mxu0
  %10442 = vmatprep.mubr.bf16.mxu0 0
  %10443 = vmatmul.mubr.bf16.gmra.mrb[0].mxu0 %v10377
  %v10444 = vpop.f32.mrb[0].mxu0
  %v10445 = vadd.f32 0.0, %v10444
  %v10446 = vpop.f32.mrb[0].mxu0
  %v10447 = vpop.f32.mrb[0].mxu0
  %v10448 = vadd.f32 0.0, %v10447
  %v10449 = vpop.f32.mrb[0].mxu0
  %10450 = vmatprep.mubr.bf16.mxu0 0
  %10451 = vmatmul.mubr.bf16.gmra.mrb[0].mxu0 %v10380
  %v10452 = vpop.f32.mrb[0].mxu0
  %v10453 = vadd.f32 0.0, %v10452
  %v10454 = vpop.f32.mrb[0].mxu0
  %v10455 = vpop.f32.mrb[0].mxu0
  %v10456 = vadd.f32 0.0, %v10455
  %v10457 = vpop.f32.mrb[0].mxu0
  %10458 = vdwg.mxu0
  %v10459 = vsel %vm5483, 1e-09, %v10429
  %v10460 = vsel %vm5483, 1e-09, %v10432
  %v10461 = vsel %vm5483, 1e-09, %v10437
  %v10462 = vsel %vm5483, 1e-09, %v10440
  %v10463 = vsel %vm5483, 1e-09, %v10445
  %v10464 = vsel %vm5483, 1e-09, %v10448
  %v10465 = vsel %vm5483, 1e-09, %v10453
  %v10466 = vsel %vm5483, 1e-09, %v10456
  %v10467 = vadd.f32 %v10459, %v1473
  %v10468 = vadd.f32 %v10460, %v1474
  %v10469 = vadd.f32 %v10461, %v1475
  %v10470 = vadd.f32 %v10462, %v1476
  %v10471 = vadd.f32 %v10463, %v1477
  %v10472 = vadd.f32 %v10464, %v1478
  %v10473 = vadd.f32 %v10465, %v1479
  %v10474 = vadd.f32 %v10466, %v1480
  %v10475 = vsel %vm3274, %v10467, -inf
  %10476 = vmax.xlane.f32.xlu0 %v10475
  %v10477 = vpop.xlane.xlu0 %10476
  %v10478 = vsel %vm3274, %v10468, -inf
  %10479 = vmax.xlane.f32.xlu0 %v10478
  %v10480 = vpop.xlane.xlu0 %10479
  %v10481 = vsel %vm3274, %v10469, -inf
  %10482 = vmax.xlane.f32.xlu0 %v10481
  %v10483 = vpop.xlane.xlu0 %10482
  %v10484 = vsel %vm3274, %v10470, -inf
  %10485 = vmax.xlane.f32.xlu0 %v10484
  %v10486 = vpop.xlane.xlu0 %10485
  %v10487 = vsel %vm3274, %v10471, -inf
  %10488 = vmax.xlane.f32.xlu0 %v10487
  %v10489 = vpop.xlane.xlu0 %10488
  %v10490 = vsel %vm3274, %v10472, -inf
  %10491 = vmax.xlane.f32.xlu0 %v10490
  %v10492 = vpop.xlane.xlu0 %10491
  %v10493 = vsel %vm3274, %v10473, -inf
  %10494 = vmax.xlane.f32.xlu0 %v10493
  %v10495 = vpop.xlane.xlu0 %10494
  %v10496 = vsel %vm3274, %v10474, -inf
  %10497 = vmax.xlane.f32.xlu0 %v10496
  %v10498 = vpop.xlane.xlu0 %10497
  %v10499 = vsub.f32 %v10467, %v10477
  %v10500 = vsub.f32 %v10468, %v10480
  %v10501 = vsub.f32 %v10469, %v10483
  %v10502 = vsub.f32 %v10470, %v10486
  %v10503 = vsub.f32 %v10471, %v10489
  %v10504 = vsub.f32 %v10472, %v10492
  %v10505 = vsub.f32 %v10473, %v10495
  %v10506 = vsub.f32 %v10474, %v10498
  %v10507 = vmul.f32 %v10499, 1.442695
  %v10508 = vpow.pop %v10507
  %v10509 = vmul.f32 %v10500, 1.442695
  %v10510 = vpow.pop %v10509
  %v10511 = vmul.f32 %v10501, 1.442695
  %v10512 = vpow.pop %v10511
  %v10513 = vmul.f32 %v10502, 1.442695
  %v10514 = vpow.pop %v10513
  %v10515 = vmul.f32 %v10503, 1.442695
  %v10516 = vpow.pop %v10515
  %v10517 = vmul.f32 %v10504, 1.442695
  %v10518 = vpow.pop %v10517
  %v10519 = vmul.f32 %v10505, 1.442695
  %v10520 = vpow.pop %v10519
  %v10521 = vmul.f32 %v10506, 1.442695
  %v10522 = vpow.pop %v10521
  %v10523 = vsel %vm3274, %v10508, 0.0
  %10524 = vadd.xlane.f32.xlu0 %v10523
  %v10525 = vpop.xlane.xlu0 %10524
  %v10526 = vsel %vm3274, %v10510, 0.0
  %10527 = vadd.xlane.f32.xlu0 %v10526
  %v10528 = vpop.xlane.xlu0 %10527
  %v10529 = vsel %vm3274, %v10512, 0.0
  %10530 = vadd.xlane.f32.xlu0 %v10529
  %v10531 = vpop.xlane.xlu0 %10530
  %v10532 = vsel %vm3274, %v10514, 0.0
  %10533 = vadd.xlane.f32.xlu0 %v10532
  %v10534 = vpop.xlane.xlu0 %10533
  %v10535 = vsel %vm3274, %v10516, 0.0
  %10536 = vadd.xlane.f32.xlu0 %v10535
  %v10537 = vpop.xlane.xlu0 %10536
  %v10538 = vsel %vm3274, %v10518, 0.0
  %10539 = vadd.xlane.f32.xlu0 %v10538
  %v10540 = vpop.xlane.xlu0 %10539
  %v10541 = vsel %vm3274, %v10520, 0.0
  %10542 = vadd.xlane.f32.xlu0 %v10541
  %v10543 = vpop.xlane.xlu0 %10542
  %v10544 = vsel %vm3274, %v10522, 0.0
  %10545 = vadd.xlane.f32.xlu0 %v10544
  %v10546 = vpop.xlane.xlu0 %10545
  %v10547 = vrcp.pop %v10525
  %v10548 = vrcp.pop %v10528
  %v10549 = vrcp.pop %v10531
  %v10550 = vrcp.pop %v10534
  %v10551 = vrcp.pop %v10537
  %v10552 = vrcp.pop %v10540
  %v10553 = vrcp.pop %v10543
  %v10554 = vrcp.pop %v10546
  %v10555 = vmul.f32 %v10508, %v10547
  %v10556 = vmul.f32 %v10510, %v10548
  %v10557 = vmul.f32 %v10512, %v10549
  %v10558 = vmul.f32 %v10514, %v10550
  %v10559 = vmul.f32 %v10516, %v10551
  %v10560 = vmul.f32 %v10518, %v10552
  %v10561 = vmul.f32 %v10520, %v10553
  %v10562 = vmul.f32 %v10522, %v10554
  %v10563 = vpack.c.bf16 %v10556, %v10555
  %v10564 = vpack.c.bf16 %v10558, %v10557
  %v10565 = vpack.c.bf16 %v10560, %v10559
  %v10566 = vpack.c.bf16 %v10562, %v10561
  %10571 = vrot.lane.b32.xlu0 %v10068, 64
  %v10572 = vpop.permute.xlu0 %10571
  %10573 = vrot.lane.b32.xlu0 %v10069, 64
  %v10574 = vpop.permute.xlu0 %10573
  %10575 = vrot.lane.b32.xlu0 %v10070, 64
  %v10576 = vpop.permute.xlu0 %10575
  %10577 = vrot.lane.b32.xlu0 %v10071, 64
  %v10578 = vpop.permute.xlu0 %10577
  %v10584 = vsel %vm3274, %v10563, 0
  %v10587 = vsel %vm3274, %v10564, 0
  %v10590 = vsel %vm3274, %v10565, 0
  %v10593 = vsel %vm3274, %v10566, 0
  %10595 = vmatprep.subr.bf16.mxu0 0
  %10596 = vmatpush1.bf16.msra.mxu0 %v10572
  %10597 = vmatprep.subr.bf16.mxu0 0
  %10598 = vmatpush1.bf16.msra.mxu0 %v10574
  %10599 = vmatprep.subr.bf16.mxu0 0
  %10600 = vmatpush1.bf16.msra.mxu0 %v10576
  %10601 = vmatprep.subr.bf16.mxu0 0
  %10602 = vmatpush1.bf16.msra.mxu0 %v10578
  %10603 = vmatprep.subr.bf16.mxu0 0
  %10604 = vmatpush1.bf16.msra.mxu0 0
  %10605 = vmatprep.subr.bf16.mxu0 0
  %10606 = vmatpush1.bf16.msra.mxu0 0
  %10607 = vmatprep.subr.bf16.mxu0 0
  %10608 = vmatpush1.bf16.msra.mxu0 0
  %10609 = vmatprep.subr.bf16.mxu0 0
  %10610 = vmatpush1.bf16.msra.mxu0 0
  %10611 = vmatprep.subr.bf16.mxu0 0
  %10612 = vmatpush1.bf16.msra.mxu0 0
  %10613 = vmatprep.subr.bf16.mxu0 0
  %10614 = vmatpush1.bf16.msra.mxu0 0
  %10615 = vmatprep.subr.bf16.mxu0 0
  %10616 = vmatpush1.bf16.msra.mxu0 0
  %10617 = vmatprep.subr.bf16.mxu0 0
  %10618 = vmatpush1.bf16.msra.mxu0 0
  %10619 = vmatprep.subr.bf16.mxu0 0
  %10620 = vmatpush1.bf16.msra.mxu0 0
  %10621 = vmatprep.subr.bf16.mxu0 0
  %10622 = vmatpush1.bf16.msra.mxu0 0
  %10623 = vmatprep.subr.bf16.mxu0 0
  %10624 = vmatpush1.bf16.msra.mxu0 0
  %10625 = vmatprep.subr.bf16.mxu0 0
  %10626 = vmatpush1.bf16.msra.mxu0 0
  %10627 = vmatprep.mubr.bf16.mxu0 0
  %10628 = vmatmul.mubr.bf16.gmra.mrb[0].mxu0 %v10584
  %v10629 = vpop.f32.mrb[0].mxu0
  %v10630 = vadd.f32 0.0, %v10629
  %v10631 = vpop.f32.mrb[0].mxu0
  %v10632 = vpop.f32.mrb[0].mxu0
  %v10633 = vadd.f32 0.0, %v10632
  %v10634 = vpop.f32.mrb[0].mxu0
  %10635 = vmatprep.mubr.bf16.mxu0 0
  %10636 = vmatmul.mubr.bf16.gmra.mrb[0].mxu0 %v10587
  %v10637 = vpop.f32.mrb[0].mxu0
  %v10638 = vadd.f32 0.0, %v10637
  %v10639 = vpop.f32.mrb[0].mxu0
  %v10640 = vpop.f32.mrb[0].mxu0
  %v10641 = vadd.f32 0.0, %v10640
  %v10642 = vpop.f32.mrb[0].mxu0
  %10643 = vmatprep.mubr.bf16.mxu0 0
  %10644 = vmatmul.mubr.bf16.gmra.mrb[0].mxu0 %v10590
  %v10645 = vpop.f32.mrb[0].mxu0
  %v10646 = vadd.f32 0.0, %v10645
  %v10647 = vpop.f32.mrb[0].mxu0
  %v10648 = vpop.f32.mrb[0].mxu0
  %v10649 = vadd.f32 0.0, %v10648
  %v10650 = vpop.f32.mrb[0].mxu0
  %10651 = vmatprep.mubr.bf16.mxu0 0
  %10652 = vmatmul.mubr.bf16.gmra.mrb[0].mxu0 %v10593
  %v10653 = vpop.f32.mrb[0].mxu0
  %v10654 = vadd.f32 0.0, %v10653
  %v10655 = vpop.f32.mrb[0].mxu0
  %v10656 = vpop.f32.mrb[0].mxu0
  %v10657 = vadd.f32 0.0, %v10656
  %v10658 = vpop.f32.mrb[0].mxu0
  %10659 = vdwg.mxu0
  %10668 = vrot.lane.b32.xlu0 %v10630, 64
  %v10669 = vpop.permute.xlu0 %10668
  %10670 = vrot.lane.b32.xlu0 %v10633, 64
  %v10671 = vpop.permute.xlu0 %10670
  %10672 = vrot.lane.b32.xlu0 %v10638, 64
  %v10673 = vpop.permute.xlu0 %10672
  %10674 = vrot.lane.b32.xlu0 %v10641, 64
  %v10675 = vpop.permute.xlu0 %10674
  %10676 = vrot.lane.b32.xlu0 %v10646, 64
  %v10677 = vpop.permute.xlu0 %10676
  %10678 = vrot.lane.b32.xlu0 %v10649, 64
  %v10679 = vpop.permute.xlu0 %10678
  %10680 = vrot.lane.b32.xlu0 %v10654, 64
  %v10681 = vpop.permute.xlu0 %10680
  %10682 = vrot.lane.b32.xlu0 %v10657, 64
  %v10683 = vpop.permute.xlu0 %10682
  %v10692 = vsel %vm3274, %v10316, %v10669
  %v10693 = vsel %vm3274, %v10319, %v10671
  %v10694 = vsel %vm3274, %v10324, %v10673
  %v10695 = vsel %vm3274, %v10327, %v10675
  %v10696 = vsel %vm3274, %v10332, %v10677
  %v10697 = vsel %vm3274, %v10335, %v10679
  %v10698 = vsel %vm3274, %v10340, %v10681
  %v10699 = vsel %vm3274, %v10343, %v10683
  %v10700 = vpack.c.bf16 %v10693, %v10692
  %v10701 = vpack.c.bf16 %v10695, %v10694
  %v10702 = vpack.c.bf16 %v10697, %v10696
  %v10703 = vpack.c.bf16 %v10699, %v10698
  %10704 = vmatprep.subr.bf16.mxu0 %v6028
  %10705 = vmatpush1.bf16.msra.mxu0 %v6027
  %10706 = vmatprep.subr.bf16.mxu0 %v6034
  %10707 = vmatpush1.bf16.msra.mxu0 %v6033
  %10708 = vmatprep.subr.bf16.mxu0 %v6040
  %10709 = vmatpush1.bf16.msra.mxu0 %v6039
  %10710 = vmatprep.subr.bf16.mxu0 %v6046
  %10711 = vmatpush1.bf16.msra.mxu0 %v6045
  %10712 = vmatprep.subr.bf16.mxu0 %v6052
  %10713 = vmatpush1.bf16.msra.mxu0 %v6051
  %10714 = vmatprep.subr.bf16.mxu0 %v6058
  %10715 = vmatpush1.bf16.msra.mxu0 %v6057
  %10716 = vmatprep.subr.bf16.mxu0 %v6064
  %10717 = vmatpush1.bf16.msra.mxu0 %v6063
  %10718 = vmatprep.subr.bf16.mxu0 %v6070
  %10719 = vmatpush1.bf16.msra.mxu0 %v6069
  %10720 = vmatprep.subr.bf16.mxu0 0
  %10721 = vmatpush1.bf16.msra.mxu0 0
  %10722 = vmatprep.subr.bf16.mxu0 0
  %10723 = vmatpush1.bf16.msra.mxu0 0
  %10724 = vmatprep.subr.bf16.mxu0 0
  %10725 = vmatpush1.bf16.msra.mxu0 0
  %10726 = vmatprep.subr.bf16.mxu0 0
  %10727 = vmatpush1.bf16.msra.mxu0 0
  %10728 = vmatprep.subr.bf16.mxu0 0
  %10729 = vmatpush1.bf16.msra.mxu0 0
  %10730 = vmatprep.subr.bf16.mxu0 0
  %10731 = vmatpush1.bf16.msra.mxu0 0
  %10732 = vmatprep.subr.bf16.mxu0 0
  %10733 = vmatpush1.bf16.msra.mxu0 0
  %10734 = vmatprep.subr.bf16.mxu0 0
  %10735 = vmatpush1.bf16.msra.mxu0 0
  %10736 = vmatprep.mubr.bf16.mxu0 0
  %10737 = vmatmul.mubr.bf16.gmra.mrb[0].mxu0 %v10700
  %v10738 = vpop.f32.mrb[0].mxu0
  %v10739 = vadd.f32 %v6080, %v10738
  %v10740 = vpop.f32.mrb[0].mxu0
  %v10741 = vadd.f32 %v6084, %v10740
  %v10742 = vpop.f32.mrb[0].mxu0
  %v10743 = vadd.f32 %v6080, %v10742
  %v10744 = vpop.f32.mrb[0].mxu0
  %v10745 = vadd.f32 %v6084, %v10744
  %10746 = vmatprep.mubr.bf16.mxu0 0
  %10747 = vmatmul.mubr.bf16.gmra.mrb[0].mxu0 %v10701
  %v10748 = vpop.f32.mrb[0].mxu0
  %v10749 = vadd.f32 %v6080, %v10748
  %v10750 = vpop.f32.mrb[0].mxu0
  %v10751 = vadd.f32 %v6084, %v10750
  %v10752 = vpop.f32.mrb[0].mxu0
  %v10753 = vadd.f32 %v6080, %v10752
  %v10754 = vpop.f32.mrb[0].mxu0
  %v10755 = vadd.f32 %v6084, %v10754
  %10756 = vmatprep.mubr.bf16.mxu0 0
  %10757 = vmatmul.mubr.bf16.gmra.mrb[0].mxu0 %v10702
  %v10758 = vpop.f32.mrb[0].mxu0
  %v10759 = vadd.f32 %v6080, %v10758
  %v10760 = vpop.f32.mrb[0].mxu0
  %v10761 = vadd.f32 %v6084, %v10760
  %v10762 = vpop.f32.mrb[0].mxu0
  %v10763 = vadd.f32 %v6080, %v10762
  %v10764 = vpop.f32.mrb[0].mxu0
  %v10765 = vadd.f32 %v6084, %v10764
  %10766 = vmatprep.mubr.bf16.mxu0 0
  %10767 = vmatmul.mubr.bf16.gmra.mrb[0].mxu0 %v10703
  %v10768 = vpop.f32.mrb[0].mxu0
  %v10769 = vadd.f32 %v6080, %v10768
  %v10770 = vpop.f32.mrb[0].mxu0
  %v10771 = vadd.f32 %v6084, %v10770
  %v10772 = vpop.f32.mrb[0].mxu0
  %v10773 = vadd.f32 %v6080, %v10772
  %v10774 = vpop.f32.mrb[0].mxu0
  %v10775 = vadd.f32 %v6084, %v10774
  %10776 = vdwg.mxu0
  %10777 = vmatprep.subr.bf16.mxu0 %v6030
  %10778 = vmatpush1.bf16.msra.mxu0 %v6029
  %10779 = vmatprep.subr.bf16.mxu0 %v6036
  %10780 = vmatpush1.bf16.msra.mxu0 %v6035
  %10781 = vmatprep.subr.bf16.mxu0 %v6042
  %10782 = vmatpush1.bf16.msra.mxu0 %v6041
  %10783 = vmatprep.subr.bf16.mxu0 %v6048
  %10784 = vmatpush1.bf16.msra.mxu0 %v6047
  %10785 = vmatprep.subr.bf16.mxu0 %v6054
  %10786 = vmatpush1.bf16.msra.mxu0 %v6053
  %10787 = vmatprep.subr.bf16.mxu0 %v6060
  %10788 = vmatpush1.bf16.msra.mxu0 %v6059
  %10789 = vmatprep.subr.bf16.mxu0 %v6066
  %10790 = vmatpush1.bf16.msra.mxu0 %v6065
  %10791 = vmatprep.subr.bf16.mxu0 %v6072
  %10792 = vmatpush1.bf16.msra.mxu0 %v6071
  %10793 = vmatprep.subr.bf16.mxu0 0
  %10794 = vmatpush1.bf16.msra.mxu0 0
  %10795 = vmatprep.subr.bf16.mxu0 0
  %10796 = vmatpush1.bf16.msra.mxu0 0
  %10797 = vmatprep.subr.bf16.mxu0 0
  %10798 = vmatpush1.bf16.msra.mxu0 0
  %10799 = vmatprep.subr.bf16.mxu0 0
  %10800 = vmatpush1.bf16.msra.mxu0 0
  %10801 = vmatprep.subr.bf16.mxu0 0
  %10802 = vmatpush1.bf16.msra.mxu0 0
  %10803 = vmatprep.subr.bf16.mxu0 0
  %10804 = vmatpush1.bf16.msra.mxu0 0
  %10805 = vmatprep.subr.bf16.mxu0 0
  %10806 = vmatpush1.bf16.msra.mxu0 0
  %10807 = vmatprep.subr.bf16.mxu0 0
  %10808 = vmatpush1.bf16.msra.mxu0 0
  %10809 = vmatprep.mubr.bf16.mxu0 0
  %10810 = vmatmul.mubr.bf16.gmra.mrb[0].mxu0 %v10700
  %v10811 = vpop.f32.mrb[0].mxu0
  %v10812 = vadd.f32 %v6088, %v10811
  %v10813 = vpop.f32.mrb[0].mxu0
  %v10814 = vadd.f32 %v6092, %v10813
  %v10815 = vpop.f32.mrb[0].mxu0
  %v10816 = vadd.f32 %v6088, %v10815
  %v10817 = vpop.f32.mrb[0].mxu0
  %v10818 = vadd.f32 %v6092, %v10817
  %10819 = vmatprep.mubr.bf16.mxu0 0
  %10820 = vmatmul.mubr.bf16.gmra.mrb[0].mxu0 %v10701
  %v10821 = vpop.f32.mrb[0].mxu0
  %v10822 = vadd.f32 %v6088, %v10821
  %v10823 = vpop.f32.mrb[0].mxu0
  %v10824 = vadd.f32 %v6092, %v10823
  %v10825 = vpop.f32.mrb[0].mxu0
  %v10826 = vadd.f32 %v6088, %v10825
  %v10827 = vpop.f32.mrb[0].mxu0
  %v10828 = vadd.f32 %v6092, %v10827
  %10829 = vmatprep.mubr.bf16.mxu0 0
  %10830 = vmatmul.mubr.bf16.gmra.mrb[0].mxu0 %v10702
  %v10831 = vpop.f32.mrb[0].mxu0
  %v10832 = vadd.f32 %v6088, %v10831
  %v10833 = vpop.f32.mrb[0].mxu0
  %v10834 = vadd.f32 %v6092, %v10833
  %v10835 = vpop.f32.mrb[0].mxu0
  %v10836 = vadd.f32 %v6088, %v10835
  %v10837 = vpop.f32.mrb[0].mxu0
  %v10838 = vadd.f32 %v6092, %v10837
  %10839 = vmatprep.mubr.bf16.mxu0 0
  %10840 = vmatmul.mubr.bf16.gmra.mrb[0].mxu0 %v10703
  %v10841 = vpop.f32.mrb[0].mxu0
  %v10842 = vadd.f32 %v6088, %v10841
  %v10843 = vpop.f32.mrb[0].mxu0
  %v10844 = vadd.f32 %v6092, %v10843
  %v10845 = vpop.f32.mrb[0].mxu0
  %v10846 = vadd.f32 %v6088, %v10845
  %v10847 = vpop.f32.mrb[0].mxu0
  %v10848 = vadd.f32 %v6092, %v10847
  %10849 = vdwg.mxu0
  %10850 = vmatprep.subr.bf16.mxu0 %v6032
  %10851 = vmatpush1.bf16.msra.mxu0 %v6031
  %10852 = vmatprep.subr.bf16.mxu0 %v6038
  %10853 = vmatpush1.bf16.msra.mxu0 %v6037
  %10854 = vmatprep.subr.bf16.mxu0 %v6044
  %10855 = vmatpush1.bf16.msra.mxu0 %v6043
  %10856 = vmatprep.subr.bf16.mxu0 %v6050
  %10857 = vmatpush1.bf16.msra.mxu0 %v6049
  %10858 = vmatprep.subr.bf16.mxu0 %v6056
  %10859 = vmatpush1.bf16.msra.mxu0 %v6055
  %10860 = vmatprep.subr.bf16.mxu0 %v6062
  %10861 = vmatpush1.bf16.msra.mxu0 %v6061
  %10862 = vmatprep.subr.bf16.mxu0 %v6068
  %10863 = vmatpush1.bf16.msra.mxu0 %v6067
  %10864 = vmatprep.subr.bf16.mxu0 %v6074
  %10865 = vmatpush1.bf16.msra.mxu0 %v6073
  %10866 = vmatprep.subr.bf16.mxu0 0
  %10867 = vmatpush1.bf16.msra.mxu0 0
  %10868 = vmatprep.subr.bf16.mxu0 0
  %10869 = vmatpush1.bf16.msra.mxu0 0
  %10870 = vmatprep.subr.bf16.mxu0 0
  %10871 = vmatpush1.bf16.msra.mxu0 0
  %10872 = vmatprep.subr.bf16.mxu0 0
  %10873 = vmatpush1.bf16.msra.mxu0 0
  %10874 = vmatprep.subr.bf16.mxu0 0
  %10875 = vmatpush1.bf16.msra.mxu0 0
  %10876 = vmatprep.subr.bf16.mxu0 0
  %10877 = vmatpush1.bf16.msra.mxu0 0
  %10878 = vmatprep.subr.bf16.mxu0 0
  %10879 = vmatpush1.bf16.msra.mxu0 0
  %10880 = vmatprep.subr.bf16.mxu0 0
  %10881 = vmatpush1.bf16.msra.mxu0 0
  %10882 = vmatprep.mubr.bf16.mxu0 0
  %10883 = vmatmul.mubr.bf16.gmra.mrb[0].mxu0 %v10700
  %v10884 = vpop.f32.mrb[0].mxu0
  %v10885 = vadd.f32 %v6096, %v10884
  %v10886 = vpop.f32.mrb[0].mxu0
  %v10887 = vadd.f32 %v6100, %v10886
  %v10888 = vpop.f32.mrb[0].mxu0
  %v10889 = vadd.f32 %v6096, %v10888
  %v10890 = vpop.f32.mrb[0].mxu0
  %v10891 = vadd.f32 %v6100, %v10890
  %10892 = vmatprep.mubr.bf16.mxu0 0
  %10893 = vmatmul.mubr.bf16.gmra.mrb[0].mxu0 %v10701
  %v10894 = vpop.f32.mrb[0].mxu0
  %v10895 = vadd.f32 %v6096, %v10894
  %v10896 = vpop.f32.mrb[0].mxu0
  %v10897 = vadd.f32 %v6100, %v10896
  %v10898 = vpop.f32.mrb[0].mxu0
  %v10899 = vadd.f32 %v6096, %v10898
  %v10900 = vpop.f32.mrb[0].mxu0
  %v10901 = vadd.f32 %v6100, %v10900
  %10902 = vmatprep.mubr.bf16.mxu0 0
  %10903 = vmatmul.mubr.bf16.gmra.mrb[0].mxu0 %v10702
  %v10904 = vpop.f32.mrb[0].mxu0
  %v10905 = vadd.f32 %v6096, %v10904
  %v10906 = vpop.f32.mrb[0].mxu0
  %v10907 = vadd.f32 %v6100, %v10906
  %v10908 = vpop.f32.mrb[0].mxu0
  %v10909 = vadd.f32 %v6096, %v10908
  %v10910 = vpop.f32.mrb[0].mxu0
  %v10911 = vadd.f32 %v6100, %v10910
  %10912 = vmatprep.mubr.bf16.mxu0 0
  %10913 = vmatmul.mubr.bf16.gmra.mrb[0].mxu0 %v10703
  %v10914 = vpop.f32.mrb[0].mxu0
  %v10915 = vadd.f32 %v6096, %v10914
  %v10916 = vpop.f32.mrb[0].mxu0
  %v10917 = vadd.f32 %v6100, %v10916
  %v10918 = vpop.f32.mrb[0].mxu0
  %v10919 = vadd.f32 %v6096, %v10918
  %v10920 = vpop.f32.mrb[0].mxu0
  %v10921 = vadd.f32 %v6100, %v10920
  %10922 = vdwg.mxu0
  %v10923 = vadd.f32 %v10739, %v6614
  %v10924 = vadd.f32 %v10741, %v6615
  %v10925 = vadd.f32 %v10812, %v6616
  %v10926 = vadd.f32 %v10814, %v6617
  %v10927 = vadd.f32 %v10885, %v6618
  %v10928 = vadd.f32 %v10887, %v6619
  %v10929 = vadd.f32 %v10743, %v6620
  %v10930 = vadd.f32 %v10745, %v6621
  %v10931 = vadd.f32 %v10816, %v6622
  %v10932 = vadd.f32 %v10818, %v6623
  %v10933 = vadd.f32 %v10889, %v6624
  %v10934 = vadd.f32 %v10891, %v6625
  %v10935 = vadd.f32 %v10749, %v6626
  %v10936 = vadd.f32 %v10751, %v6627
  %v10937 = vadd.f32 %v10822, %v6628
  %v10938 = vadd.f32 %v10824, %v6629
  %v10939 = vadd.f32 %v10895, %v6630
  %v10940 = vadd.f32 %v10897, %v6631
  %v10941 = vadd.f32 %v10753, %v6632
  %v10942 = vadd.f32 %v10755, %v6633
  %v10943 = vadd.f32 %v10826, %v6634
  %v10944 = vadd.f32 %v10828, %v6635
  %v10945 = vadd.f32 %v10899, %v6636
  %v10946 = vadd.f32 %v10901, %v6637
  %v10947 = vadd.f32 %v10759, %v6638
  %v10948 = vadd.f32 %v10761, %v6639
  %v10949 = vadd.f32 %v10832, %v6640
  %v10950 = vadd.f32 %v10834, %v6641
  %v10951 = vadd.f32 %v10905, %v6642
  %v10952 = vadd.f32 %v10907, %v6643
  %v10953 = vadd.f32 %v10763, %v6644
  %v10954 = vadd.f32 %v10765, %v6645
  %v10955 = vadd.f32 %v10836, %v6646
  %v10956 = vadd.f32 %v10838, %v6647
  %v10957 = vadd.f32 %v10909, %v6648
  %v10958 = vadd.f32 %v10911, %v6649
  %v10959 = vadd.f32 %v10769, %v6650
  %v10960 = vadd.f32 %v10771, %v6651
  %v10961 = vadd.f32 %v10842, %v6652
  %v10962 = vadd.f32 %v10844, %v6653
  %v10963 = vadd.f32 %v10915, %v6654
  %v10964 = vadd.f32 %v10917, %v6655
  %v10965 = vadd.f32 %v10773, %v6656
  %v10966 = vadd.f32 %v10775, %v6657
  %v10967 = vadd.f32 %v10846, %v6658
  %v10968 = vadd.f32 %v10848, %v6659
  %v10969 = vadd.f32 %v10919, %v6660
  %v10970 = vadd.f32 %v10921, %v6661
  %v10971 = vadd.f32 %v10923, %v10924
  %v10972 = vadd.f32 %v10971, %v10925
  %v10973 = vadd.f32 %v10972, %v10926
  %v10974 = vadd.f32 %v10973, %v10927
  %v10975 = vadd.f32 %v10974, %v10928
  %10976 = vadd.xlane.f32.xlu0 %v10975
  %v10977 = vpop.xlane.xlu0 %10976
  %v10978 = vadd.f32 %v10929, %v10930
  %v10979 = vadd.f32 %v10978, %v10931
  %v10980 = vadd.f32 %v10979, %v10932
  %v10981 = vadd.f32 %v10980, %v10933
  %v10982 = vadd.f32 %v10981, %v10934
  %10983 = vadd.xlane.f32.xlu0 %v10982
  %v10984 = vpop.xlane.xlu0 %10983
  %v10985 = vadd.f32 %v10935, %v10936
  %v10986 = vadd.f32 %v10985, %v10937
  %v10987 = vadd.f32 %v10986, %v10938
  %v10988 = vadd.f32 %v10987, %v10939
  %v10989 = vadd.f32 %v10988, %v10940
  %10990 = vadd.xlane.f32.xlu0 %v10989
  %v10991 = vpop.xlane.xlu0 %10990
  %v10992 = vadd.f32 %v10941, %v10942
  %v10993 = vadd.f32 %v10992, %v10943
  %v10994 = vadd.f32 %v10993, %v10944
  %v10995 = vadd.f32 %v10994, %v10945
  %v10996 = vadd.f32 %v10995, %v10946
  %10997 = vadd.xlane.f32.xlu0 %v10996
  %v10998 = vpop.xlane.xlu0 %10997
  %v10999 = vadd.f32 %v10947, %v10948
  %v11000 = vadd.f32 %v10999, %v10949
  %v11001 = vadd.f32 %v11000, %v10950
  %v11002 = vadd.f32 %v11001, %v10951
  %v11003 = vadd.f32 %v11002, %v10952
  %11004 = vadd.xlane.f32.xlu0 %v11003
  %v11005 = vpop.xlane.xlu0 %11004
  %v11006 = vadd.f32 %v10953, %v10954
  %v11007 = vadd.f32 %v11006, %v10955
  %v11008 = vadd.f32 %v11007, %v10956
  %v11009 = vadd.f32 %v11008, %v10957
  %v11010 = vadd.f32 %v11009, %v10958
  %11011 = vadd.xlane.f32.xlu0 %v11010
  %v11012 = vpop.xlane.xlu0 %11011
  %v11013 = vadd.f32 %v10959, %v10960
  %v11014 = vadd.f32 %v11013, %v10961
  %v11015 = vadd.f32 %v11014, %v10962
  %v11016 = vadd.f32 %v11015, %v10963
  %v11017 = vadd.f32 %v11016, %v10964
  %11018 = vadd.xlane.f32.xlu0 %v11017
  %v11019 = vpop.xlane.xlu0 %11018
  %v11020 = vadd.f32 %v10965, %v10966
  %v11021 = vadd.f32 %v11020, %v10967
  %v11022 = vadd.f32 %v11021, %v10968
  %v11023 = vadd.f32 %v11022, %v10969
  %v11024 = vadd.f32 %v11023, %v10970
  %11025 = vadd.xlane.f32.xlu0 %v11024
  %v11026 = vpop.xlane.xlu0 %11025
  %v11027 = vmul.f32 %v10977, %v4556
  %v11028 = vmul.f32 %v10984, %v4556
  %v11029 = vmul.f32 %v10991, %v4556
  %v11030 = vmul.f32 %v10998, %v4556
  %v11031 = vmul.f32 %v11005, %v4556
  %v11032 = vmul.f32 %v11012, %v4556
  %v11033 = vmul.f32 %v11019, %v4556
  %v11034 = vmul.f32 %v11026, %v4556
  %v11035 = vsub.f32 %v10923, %v11027
  %v11036 = vsub.f32 %v10924, %v11027
  %v11037 = vsub.f32 %v10925, %v11027
  %v11038 = vsub.f32 %v10926, %v11027
  %v11039 = vsub.f32 %v10927, %v11027
  %v11040 = vsub.f32 %v10928, %v11027
  %v11041 = vsub.f32 %v10929, %v11028
  %v11042 = vsub.f32 %v10930, %v11028
  %v11043 = vsub.f32 %v10931, %v11028
  %v11044 = vsub.f32 %v10932, %v11028
  %v11045 = vsub.f32 %v10933, %v11028
  %v11046 = vsub.f32 %v10934, %v11028
  %v11047 = vsub.f32 %v10935, %v11029
  %v11048 = vsub.f32 %v10936, %v11029
  %v11049 = vsub.f32 %v10937, %v11029
  %v11050 = vsub.f32 %v10938, %v11029
  %v11051 = vsub.f32 %v10939, %v11029
  %v11052 = vsub.f32 %v10940, %v11029
  %v11053 = vsub.f32 %v10941, %v11030
  %v11054 = vsub.f32 %v10942, %v11030
  %v11055 = vsub.f32 %v10943, %v11030
  %v11056 = vsub.f32 %v10944, %v11030
  %v11057 = vsub.f32 %v10945, %v11030
  %v11058 = vsub.f32 %v10946, %v11030
  %v11059 = vsub.f32 %v10947, %v11031
  %v11060 = vsub.f32 %v10948, %v11031
  %v11061 = vsub.f32 %v10949, %v11031
  %v11062 = vsub.f32 %v10950, %v11031
  %v11063 = vsub.f32 %v10951, %v11031
  %v11064 = vsub.f32 %v10952, %v11031
  %v11065 = vsub.f32 %v10953, %v11032
  %v11066 = vsub.f32 %v10954, %v11032
  %v11067 = vsub.f32 %v10955, %v11032
  %v11068 = vsub.f32 %v10956, %v11032
  %v11069 = vsub.f32 %v10957, %v11032
  %v11070 = vsub.f32 %v10958, %v11032
  %v11071 = vsub.f32 %v10959, %v11033
  %v11072 = vsub.f32 %v10960, %v11033
  %v11073 = vsub.f32 %v10961, %v11033
  %v11074 = vsub.f32 %v10962, %v11033
  %v11075 = vsub.f32 %v10963, %v11033
  %v11076 = vsub.f32 %v10964, %v11033
  %v11077 = vsub.f32 %v10965, %v11034
  %v11078 = vsub.f32 %v10966, %v11034
  %v11079 = vsub.f32 %v10967, %v11034
  %v11080 = vsub.f32 %v10968, %v11034
  %v11081 = vsub.f32 %v10969, %v11034
  %v11082 = vsub.f32 %v10970, %v11034
  %v11083 = vmul.f32 %v11035, %v11035
  %v11084 = vmul.f32 %v11036, %v11036
  %v11085 = vmul.f32 %v11037, %v11037
  %v11086 = vmul.f32 %v11038, %v11038
  %v11087 = vmul.f32 %v11039, %v11039
  %v11088 = vmul.f32 %v11040, %v11040
  %v11089 = vmul.f32 %v11041, %v11041
  %v11090 = vmul.f32 %v11042, %v11042
  %v11091 = vmul.f32 %v11043, %v11043
  %v11092 = vmul.f32 %v11044, %v11044
  %v11093 = vmul.f32 %v11045, %v11045
  %v11094 = vmul.f32 %v11046, %v11046
  %v11095 = vmul.f32 %v11047, %v11047
  %v11096 = vmul.f32 %v11048, %v11048
  %v11097 = vmul.f32 %v11049, %v11049
  %v11098 = vmul.f32 %v11050, %v11050
  %v11099 = vmul.f32 %v11051, %v11051
  %v11100 = vmul.f32 %v11052, %v11052
  %v11101 = vmul.f32 %v11053, %v11053
  %v11102 = vmul.f32 %v11054, %v11054
  %v11103 = vmul.f32 %v11055, %v11055
  %v11104 = vmul.f32 %v11056, %v11056
  %v11105 = vmul.f32 %v11057, %v11057
  %v11106 = vmul.f32 %v11058, %v11058
  %v11107 = vmul.f32 %v11059, %v11059
  %v11108 = vmul.f32 %v11060, %v11060
  %v11109 = vmul.f32 %v11061, %v11061
  %v11110 = vmul.f32 %v11062, %v11062
  %v11111 = vmul.f32 %v11063, %v11063
  %v11112 = vmul.f32 %v11064, %v11064
  %v11113 = vmul.f32 %v11065, %v11065
  %v11114 = vmul.f32 %v11066, %v11066
  %v11115 = vmul.f32 %v11067, %v11067
  %v11116 = vmul.f32 %v11068, %v11068
  %v11117 = vmul.f32 %v11069, %v11069
  %v11118 = vmul.f32 %v11070, %v11070
  %v11119 = vmul.f32 %v11071, %v11071
  %v11120 = vmul.f32 %v11072, %v11072
  %v11121 = vmul.f32 %v11073, %v11073
  %v11122 = vmul.f32 %v11074, %v11074
  %v11123 = vmul.f32 %v11075, %v11075
  %v11124 = vmul.f32 %v11076, %v11076
  %v11125 = vmul.f32 %v11077, %v11077
  %v11126 = vmul.f32 %v11078, %v11078
  %v11127 = vmul.f32 %v11079, %v11079
  %v11128 = vmul.f32 %v11080, %v11080
  %v11129 = vmul.f32 %v11081, %v11081
  %v11130 = vmul.f32 %v11082, %v11082
  %v11131 = vadd.f32 %v11083, %v11084
  %v11132 = vadd.f32 %v11131, %v11085
  %v11133 = vadd.f32 %v11132, %v11086
  %v11134 = vadd.f32 %v11133, %v11087
  %v11135 = vadd.f32 %v11134, %v11088
  %11136 = vadd.xlane.f32.xlu0 %v11135
  %v11137 = vpop.xlane.xlu0 %11136
  %v11138 = vadd.f32 %v11089, %v11090
  %v11139 = vadd.f32 %v11138, %v11091
  %v11140 = vadd.f32 %v11139, %v11092
  %v11141 = vadd.f32 %v11140, %v11093
  %v11142 = vadd.f32 %v11141, %v11094
  %11143 = vadd.xlane.f32.xlu0 %v11142
  %v11144 = vpop.xlane.xlu0 %11143
  %v11145 = vadd.f32 %v11095, %v11096
  %v11146 = vadd.f32 %v11145, %v11097
  %v11147 = vadd.f32 %v11146, %v11098
  %v11148 = vadd.f32 %v11147, %v11099
  %v11149 = vadd.f32 %v11148, %v11100
  %11150 = vadd.xlane.f32.xlu0 %v11149
  %v11151 = vpop.xlane.xlu0 %11150
  %v11152 = vadd.f32 %v11101, %v11102
  %v11153 = vadd.f32 %v11152, %v11103
  %v11154 = vadd.f32 %v11153, %v11104
  %v11155 = vadd.f32 %v11154, %v11105
  %v11156 = vadd.f32 %v11155, %v11106
  %11157 = vadd.xlane.f32.xlu0 %v11156
  %v11158 = vpop.xlane.xlu0 %11157
  %v11159 = vadd.f32 %v11107, %v11108
  %v11160 = vadd.f32 %v11159, %v11109
  %v11161 = vadd.f32 %v11160, %v11110
  %v11162 = vadd.f32 %v11161, %v11111
  %v11163 = vadd.f32 %v11162, %v11112
  %11164 = vadd.xlane.f32.xlu0 %v11163
  %v11165 = vpop.xlane.xlu0 %11164
  %v11166 = vadd.f32 %v11113, %v11114
  %v11167 = vadd.f32 %v11166, %v11115
  %v11168 = vadd.f32 %v11167, %v11116
  %v11169 = vadd.f32 %v11168, %v11117
  %v11170 = vadd.f32 %v11169, %v11118
  %11171 = vadd.xlane.f32.xlu0 %v11170
  %v11172 = vpop.xlane.xlu0 %11171
  %v11173 = vadd.f32 %v11119, %v11120
  %v11174 = vadd.f32 %v11173, %v11121
  %v11175 = vadd.f32 %v11174, %v11122
  %v11176 = vadd.f32 %v11175, %v11123
  %v11177 = vadd.f32 %v11176, %v11124
  %11178 = vadd.xlane.f32.xlu0 %v11177
  %v11179 = vpop.xlane.xlu0 %11178
  %v11180 = vadd.f32 %v11125, %v11126
  %v11181 = vadd.f32 %v11180, %v11127
  %v11182 = vadd.f32 %v11181, %v11128
  %v11183 = vadd.f32 %v11182, %v11129
  %v11184 = vadd.f32 %v11183, %v11130
  %11185 = vadd.xlane.f32.xlu0 %v11184
  %v11186 = vpop.xlane.xlu0 %11185
  %v11187 = vmul.f32 %v11137, %v4556
  %v11188 = vmul.f32 %v11144, %v4556
  %v11189 = vmul.f32 %v11151, %v4556
  %v11190 = vmul.f32 %v11158, %v4556
  %v11191 = vmul.f32 %v11165, %v4556
  %v11192 = vmul.f32 %v11172, %v4556
  %v11193 = vmul.f32 %v11179, %v4556
  %v11194 = vmul.f32 %v11186, %v4556
  %v11195 = vadd.f32 %v11187, 1e-05
  %v11196 = vadd.f32 %v11188, 1e-05
  %v11197 = vadd.f32 %v11189, 1e-05
  %v11198 = vadd.f32 %v11190, 1e-05
  %v11199 = vadd.f32 %v11191, 1e-05
  %v11200 = vadd.f32 %v11192, 1e-05
  %v11201 = vadd.f32 %v11193, 1e-05
  %v11202 = vadd.f32 %v11194, 1e-05
  %v11203 = vrsqrt.pop %v11195
  %v11204 = vrsqrt.pop %v11196
  %v11205 = vrsqrt.pop %v11197
  %v11206 = vrsqrt.pop %v11198
  %v11207 = vrsqrt.pop %v11199
  %v11208 = vrsqrt.pop %v11200
  %v11209 = vrsqrt.pop %v11201
  %v11210 = vrsqrt.pop %v11202
  %v11211 = vmul.f32 %v11035, %v11203
  %v11212 = vmul.f32 %v11036, %v11203
  %v11213 = vmul.f32 %v11037, %v11203
  %v11214 = vmul.f32 %v11038, %v11203
  %v11215 = vmul.f32 %v11039, %v11203
  %v11216 = vmul.f32 %v11040, %v11203
  %v11217 = vmul.f32 %v11041, %v11204
  %v11218 = vmul.f32 %v11042, %v11204
  %v11219 = vmul.f32 %v11043, %v11204
  %v11220 = vmul.f32 %v11044, %v11204
  %v11221 = vmul.f32 %v11045, %v11204
  %v11222 = vmul.f32 %v11046, %v11204
  %v11223 = vmul.f32 %v11047, %v11205
  %v11224 = vmul.f32 %v11048, %v11205
  %v11225 = vmul.f32 %v11049, %v11205
  %v11226 = vmul.f32 %v11050, %v11205
  %v11227 = vmul.f32 %v11051, %v11205
  %v11228 = vmul.f32 %v11052, %v11205
  %v11229 = vmul.f32 %v11053, %v11206
  %v11230 = vmul.f32 %v11054, %v11206
  %v11231 = vmul.f32 %v11055, %v11206
  %v11232 = vmul.f32 %v11056, %v11206
  %v11233 = vmul.f32 %v11057, %v11206
  %v11234 = vmul.f32 %v11058, %v11206
  %v11235 = vmul.f32 %v11059, %v11207
  %v11236 = vmul.f32 %v11060, %v11207
  %v11237 = vmul.f32 %v11061, %v11207
  %v11238 = vmul.f32 %v11062, %v11207
  %v11239 = vmul.f32 %v11063, %v11207
  %v11240 = vmul.f32 %v11064, %v11207
  %v11241 = vmul.f32 %v11065, %v11208
  %v11242 = vmul.f32 %v11066, %v11208
  %v11243 = vmul.f32 %v11067, %v11208
  %v11244 = vmul.f32 %v11068, %v11208
  %v11245 = vmul.f32 %v11069, %v11208
  %v11246 = vmul.f32 %v11070, %v11208
  %v11247 = vmul.f32 %v11071, %v11209
  %v11248 = vmul.f32 %v11072, %v11209
  %v11249 = vmul.f32 %v11073, %v11209
  %v11250 = vmul.f32 %v11074, %v11209
  %v11251 = vmul.f32 %v11075, %v11209
  %v11252 = vmul.f32 %v11076, %v11209
  %v11253 = vmul.f32 %v11077, %v11210
  %v11254 = vmul.f32 %v11078, %v11210
  %v11255 = vmul.f32 %v11079, %v11210
  %v11256 = vmul.f32 %v11080, %v11210
  %v11257 = vmul.f32 %v11081, %v11210
  %v11258 = vmul.f32 %v11082, %v11210
  %vm11259 = vcmp.eq.s32.totalorder %v1446, %v1464
  %v11260 = vsel %vm11259, 0.125, 0.0
  %v11261 = vpack.c.bf16 %v11260, %v11260
  %v11263 = vsel %vm3274, %v11261, 0
  %11265 = vmatprep.subr.bf16.mxu0 %v9623
  %11266 = vmatpush1.bf16.msra.mxu0 %v9622
  %11267 = vmatprep.subr.bf16.mxu0 %v9629
  %11268 = vmatpush1.bf16.msra.mxu0 %v9628
  %11269 = vmatprep.subr.bf16.mxu0 %v9635
  %11270 = vmatpush1.bf16.msra.mxu0 %v9634
  %11271 = vmatprep.subr.bf16.mxu0 %v9641
  %11272 = vmatpush1.bf16.msra.mxu0 %v9640
  %11273 = vmatprep.subr.bf16.mxu0 0
  %11274 = vmatpush1.bf16.msra.mxu0 0
  %11275 = vmatprep.subr.bf16.mxu0 0
  %11276 = vmatpush1.bf16.msra.mxu0 0
  %11277 = vmatprep.subr.bf16.mxu0 0
  %11278 = vmatpush1.bf16.msra.mxu0 0
  %11279 = vmatprep.subr.bf16.mxu0 0
  %11280 = vmatpush1.bf16.msra.mxu0 0
  %11281 = vmatprep.subr.bf16.mxu0 0
  %11282 = vmatpush1.bf16.msra.mxu0 0
  %11283 = vmatprep.subr.bf16.mxu0 0
  %11284 = vmatpush1.bf16.msra.mxu0 0
  %11285 = vmatprep.subr.bf16.mxu0 0
  %11286 = vmatpush1.bf16.msra.mxu0 0
  %11287 = vmatprep.subr.bf16.mxu0 0
  %11288 = vmatpush1.bf16.msra.mxu0 0
  %11289 = vmatprep.subr.bf16.mxu0 0
  %11290 = vmatpush1.bf16.msra.mxu0 0
  %11291 = vmatprep.subr.bf16.mxu0 0
  %11292 = vmatpush1.bf16.msra.mxu0 0
  %11293 = vmatprep.subr.bf16.mxu0 0
  %11294 = vmatpush1.bf16.msra.mxu0 0
  %11295 = vmatprep.subr.bf16.mxu0 0
  %11296 = vmatpush1.bf16.msra.mxu0 0
  %11297 = vmatprep.mubr.bf16.mxu0 0
  %11298 = vmatmul.mubr.bf16.gmra.mrb[0].mxu0 %v11263
  %v11299 = vpop.f32.mrb[0].mxu0
  %v11300 = vadd.f32 0.0, %v11299
  %v11301 = vpop.f32.mrb[0].mxu0
  %v11302 = vadd.f32 0.0, %v11301
  %v11303 = vpop.f32.mrb[0].mxu0
  %v11304 = vpop.f32.mrb[0].mxu0
  %11305 = vdwg.mxu0
  %11306 = vmatprep.subr.bf16.mxu0 %v9625
  %11307 = vmatpush1.bf16.msra.mxu0 %v9624
  %11308 = vmatprep.subr.bf16.mxu0 %v9631
  %11309 = vmatpush1.bf16.msra.mxu0 %v9630
  %11310 = vmatprep.subr.bf16.mxu0 %v9637
  %11311 = vmatpush1.bf16.msra.mxu0 %v9636
  %11312 = vmatprep.subr.bf16.mxu0 %v9643
  %11313 = vmatpush1.bf16.msra.mxu0 %v9642
  %11314 = vmatprep.subr.bf16.mxu0 0
  %11315 = vmatpush1.bf16.msra.mxu0 0
  %11316 = vmatprep.subr.bf16.mxu0 0
  %11317 = vmatpush1.bf16.msra.mxu0 0
  %11318 = vmatprep.subr.bf16.mxu0 0
  %11319 = vmatpush1.bf16.msra.mxu0 0
  %11320 = vmatprep.subr.bf16.mxu0 0
  %11321 = vmatpush1.bf16.msra.mxu0 0
  %11322 = vmatprep.subr.bf16.mxu0 0
  %11323 = vmatpush1.bf16.msra.mxu0 0
  %11324 = vmatprep.subr.bf16.mxu0 0
  %11325 = vmatpush1.bf16.msra.mxu0 0
  %11326 = vmatprep.subr.bf16.mxu0 0
  %11327 = vmatpush1.bf16.msra.mxu0 0
  %11328 = vmatprep.subr.bf16.mxu0 0
  %11329 = vmatpush1.bf16.msra.mxu0 0
  %11330 = vmatprep.subr.bf16.mxu0 0
  %11331 = vmatpush1.bf16.msra.mxu0 0
  %11332 = vmatprep.subr.bf16.mxu0 0
  %11333 = vmatpush1.bf16.msra.mxu0 0
  %11334 = vmatprep.subr.bf16.mxu0 0
  %11335 = vmatpush1.bf16.msra.mxu0 0
  %11336 = vmatprep.subr.bf16.mxu0 0
  %11337 = vmatpush1.bf16.msra.mxu0 0
  %11338 = vmatprep.mubr.bf16.mxu0 0
  %11339 = vmatmul.mubr.bf16.gmra.mrb[0].mxu0 %v11263
  %v11340 = vpop.f32.mrb[0].mxu0
  %v11341 = vadd.f32 0.0, %v11340
  %v11342 = vpop.f32.mrb[0].mxu0
  %v11343 = vadd.f32 0.0, %v11342
  %v11344 = vpop.f32.mrb[0].mxu0
  %v11345 = vpop.f32.mrb[0].mxu0
  %11346 = vdwg.mxu0
  %11347 = vmatprep.subr.bf16.mxu0 %v9627
  %11348 = vmatpush1.bf16.msra.mxu0 %v9626
  %11349 = vmatprep.subr.bf16.mxu0 %v9633
  %11350 = vmatpush1.bf16.msra.mxu0 %v9632
  %11351 = vmatprep.subr.bf16.mxu0 %v9639
  %11352 = vmatpush1.bf16.msra.mxu0 %v9638
  %11353 = vmatprep.subr.bf16.mxu0 %v9645
  %11354 = vmatpush1.bf16.msra.mxu0 %v9644
  %11355 = vmatprep.subr.bf16.mxu0 0
  %11356 = vmatpush1.bf16.msra.mxu0 0
  %11357 = vmatprep.subr.bf16.mxu0 0
  %11358 = vmatpush1.bf16.msra.mxu0 0
  %11359 = vmatprep.subr.bf16.mxu0 0
  %11360 = vmatpush1.bf16.msra.mxu0 0
  %11361 = vmatprep.subr.bf16.mxu0 0
  %11362 = vmatpush1.bf16.msra.mxu0 0
  %11363 = vmatprep.subr.bf16.mxu0 0
  %11364 = vmatpush1.bf16.msra.mxu0 0
  %11365 = vmatprep.subr.bf16.mxu0 0
  %11366 = vmatpush1.bf16.msra.mxu0 0
  %11367 = vmatprep.subr.bf16.mxu0 0
  %11368 = vmatpush1.bf16.msra.mxu0 0
  %11369 = vmatprep.subr.bf16.mxu0 0
  %11370 = vmatpush1.bf16.msra.mxu0 0
  %11371 = vmatprep.subr.bf16.mxu0 0
  %11372 = vmatpush1.bf16.msra.mxu0 0
  %11373 = vmatprep.subr.bf16.mxu0 0
  %11374 = vmatpush1.bf16.msra.mxu0 0
  %11375 = vmatprep.subr.bf16.mxu0 0
  %11376 = vmatpush1.bf16.msra.mxu0 0
  %11377 = vmatprep.subr.bf16.mxu0 0
  %11378 = vmatpush1.bf16.msra.mxu0 0
  %11379 = vmatprep.mubr.bf16.mxu0 0
  %11380 = vmatmul.mubr.bf16.gmra.mrb[0].mxu0 %v11263
  %v11381 = vpop.f32.mrb[0].mxu0
  %v11382 = vadd.f32 0.0, %v11381
  %v11383 = vpop.f32.mrb[0].mxu0
  %v11384 = vadd.f32 0.0, %v11383
  %v11385 = vpop.f32.mrb[0].mxu0
  %v11386 = vpop.f32.mrb[0].mxu0
  %11387 = vdwg.mxu0
  %v11388 = vpack.c.bf16 %v11217, %v11211
  %v11389 = vpack.c.bf16 %v11218, %v11212
  %v11390 = vpack.c.bf16 %v11219, %v11213
  %v11391 = vpack.c.bf16 %v11220, %v11214
  %v11392 = vpack.c.bf16 %v11221, %v11215
  %v11393 = vpack.c.bf16 %v11222, %v11216
  %v11394 = vpack.c.bf16 %v11229, %v11223
  %v11395 = vpack.c.bf16 %v11230, %v11224
  %v11396 = vpack.c.bf16 %v11231, %v11225
  %v11397 = vpack.c.bf16 %v11232, %v11226
  %v11398 = vpack.c.bf16 %v11233, %v11227
  %v11399 = vpack.c.bf16 %v11234, %v11228
  %v11400 = vpack.c.bf16 %v11241, %v11235
  %v11401 = vpack.c.bf16 %v11242, %v11236
  %v11402 = vpack.c.bf16 %v11243, %v11237
  %v11403 = vpack.c.bf16 %v11244, %v11238
  %v11404 = vpack.c.bf16 %v11245, %v11239
  %v11405 = vpack.c.bf16 %v11246, %v11240
  %v11406 = vpack.c.bf16 %v11253, %v11247
  %v11407 = vpack.c.bf16 %v11254, %v11248
  %v11408 = vpack.c.bf16 %v11255, %v11249
  %v11409 = vpack.c.bf16 %v11256, %v11250
  %v11410 = vpack.c.bf16 %v11257, %v11251
  %v11411 = vpack.c.bf16 %v11258, %v11252
  %11412 = vmatprep.subr.bf16.mxu0 %v11389
  %11413 = vmatpush1.bf16.msra.mxu0 %v11388
  %11414 = vmatprep.subr.bf16.mxu0 %v11395
  %11415 = vmatpush1.bf16.msra.mxu0 %v11394
  %11416 = vmatprep.subr.bf16.mxu0 %v11401
  %11417 = vmatpush1.bf16.msra.mxu0 %v11400
  %11418 = vmatprep.subr.bf16.mxu0 %v11407
  %11419 = vmatpush1.bf16.msra.mxu0 %v11406
  %11420 = vmatprep.subr.bf16.mxu0 0
  %11421 = vmatpush1.bf16.msra.mxu0 0
  %11422 = vmatprep.subr.bf16.mxu0 0
  %11423 = vmatpush1.bf16.msra.mxu0 0
  %11424 = vmatprep.subr.bf16.mxu0 0
  %11425 = vmatpush1.bf16.msra.mxu0 0
  %11426 = vmatprep.subr.bf16.mxu0 0
  %11427 = vmatpush1.bf16.msra.mxu0 0
  %11428 = vmatprep.subr.bf16.mxu0 0
  %11429 = vmatpush1.bf16.msra.mxu0 0
  %11430 = vmatprep.subr.bf16.mxu0 0
  %11431 = vmatpush1.bf16.msra.mxu0 0
  %11432 = vmatprep.subr.bf16.mxu0 0
  %11433 = vmatpush1.bf16.msra.mxu0 0
  %11434 = vmatprep.subr.bf16.mxu0 0
  %11435 = vmatpush1.bf16.msra.mxu0 0
  %11436 = vmatprep.subr.bf16.mxu0 0
  %11437 = vmatpush1.bf16.msra.mxu0 0
  %11438 = vmatprep.subr.bf16.mxu0 0
  %11439 = vmatpush1.bf16.msra.mxu0 0
  %11440 = vmatprep.subr.bf16.mxu0 0
  %11441 = vmatpush1.bf16.msra.mxu0 0
  %11442 = vmatprep.subr.bf16.mxu0 0
  %11443 = vmatpush1.bf16.msra.mxu0 0
  %11444 = vmatprep.mubr.bf16.mxu0 0
  %11445 = vmatmul.mubr.bf16.gmra.mrb[0].mxu0 %v11263
  %v11446 = vpop.f32.mrb[0].mxu0
  %v11447 = vadd.f32 0.0, %v11446
  %v11448 = vpop.f32.mrb[0].mxu0
  %v11449 = vadd.f32 0.0, %v11448
  %v11450 = vpop.f32.mrb[0].mxu0
  %v11451 = vpop.f32.mrb[0].mxu0
  %11452 = vdwg.mxu0
  %11453 = vmatprep.subr.bf16.mxu0 %v11391
  %11454 = vmatpush1.bf16.msra.mxu0 %v11390
  %11455 = vmatprep.subr.bf16.mxu0 %v11397
  %11456 = vmatpush1.bf16.msra.mxu0 %v11396
  %11457 = vmatprep.subr.bf16.mxu0 %v11403
  %11458 = vmatpush1.bf16.msra.mxu0 %v11402
  %11459 = vmatprep.subr.bf16.mxu0 %v11409
  %11460 = vmatpush1.bf16.msra.mxu0 %v11408
  %11461 = vmatprep.subr.bf16.mxu0 0
  %11462 = vmatpush1.bf16.msra.mxu0 0
  %11463 = vmatprep.subr.bf16.mxu0 0
  %11464 = vmatpush1.bf16.msra.mxu0 0
  %11465 = vmatprep.subr.bf16.mxu0 0
  %11466 = vmatpush1.bf16.msra.mxu0 0
  %11467 = vmatprep.subr.bf16.mxu0 0
  %11468 = vmatpush1.bf16.msra.mxu0 0
  %11469 = vmatprep.subr.bf16.mxu0 0
  %11470 = vmatpush1.bf16.msra.mxu0 0
  %11471 = vmatprep.subr.bf16.mxu0 0
  %11472 = vmatpush1.bf16.msra.mxu0 0
  %11473 = vmatprep.subr.bf16.mxu0 0
  %11474 = vmatpush1.bf16.msra.mxu0 0
  %11475 = vmatprep.subr.bf16.mxu0 0
  %11476 = vmatpush1.bf16.msra.mxu0 0
  %11477 = vmatprep.subr.bf16.mxu0 0
  %11478 = vmatpush1.bf16.msra.mxu0 0
  %11479 = vmatprep.subr.bf16.mxu0 0
  %11480 = vmatpush1.bf16.msra.mxu0 0
  %11481 = vmatprep.subr.bf16.mxu0 0
  %11482 = vmatpush1.bf16.msra.mxu0 0
  %11483 = vmatprep.subr.bf16.mxu0 0
  %11484 = vmatpush1.bf16.msra.mxu0 0
  %11485 = vmatprep.mubr.bf16.mxu0 0
  %11486 = vmatmul.mubr.bf16.gmra.mrb[0].mxu0 %v11263
  %v11487 = vpop.f32.mrb[0].mxu0
  %v11488 = vadd.f32 0.0, %v11487
  %v11489 = vpop.f32.mrb[0].mxu0
  %v11490 = vadd.f32 0.0, %v11489
  %v11491 = vpop.f32.mrb[0].mxu0
  %v11492 = vpop.f32.mrb[0].mxu0
  %11493 = vdwg.mxu0
  %11494 = vmatprep.subr.bf16.mxu0 %v11393
  %11495 = vmatpush1.bf16.msra.mxu0 %v11392
  %11496 = vmatprep.subr.bf16.mxu0 %v11399
  %11497 = vmatpush1.bf16.msra.mxu0 %v11398
  %11498 = vmatprep.subr.bf16.mxu0 %v11405
  %11499 = vmatpush1.bf16.msra.mxu0 %v11404
  %11500 = vmatprep.subr.bf16.mxu0 %v11411
  %11501 = vmatpush1.bf16.msra.mxu0 %v11410
  %11502 = vmatprep.subr.bf16.mxu0 0
  %11503 = vmatpush1.bf16.msra.mxu0 0
  %11504 = vmatprep.subr.bf16.mxu0 0
  %11505 = vmatpush1.bf16.msra.mxu0 0
  %11506 = vmatprep.subr.bf16.mxu0 0
  %11507 = vmatpush1.bf16.msra.mxu0 0
  %11508 = vmatprep.subr.bf16.mxu0 0
  %11509 = vmatpush1.bf16.msra.mxu0 0
  %11510 = vmatprep.subr.bf16.mxu0 0
  %11511 = vmatpush1.bf16.msra.mxu0 0
  %11512 = vmatprep.subr.bf16.mxu0 0
  %11513 = vmatpush1.bf16.msra.mxu0 0
  %11514 = vmatprep.subr.bf16.mxu0 0
  %11515 = vmatpush1.bf16.msra.mxu0 0
  %11516 = vmatprep.subr.bf16.mxu0 0
  %11517 = vmatpush1.bf16.msra.mxu0 0
  %11518 = vmatprep.subr.bf16.mxu0 0
  %11519 = vmatpush1.bf16.msra.mxu0 0
  %11520 = vmatprep.subr.bf16.mxu0 0
  %11521 = vmatpush1.bf16.msra.mxu0 0
  %11522 = vmatprep.subr.bf16.mxu0 0
  %11523 = vmatpush1.bf16.msra.mxu0 0
  %11524 = vmatprep.subr.bf16.mxu0 0
  %11525 = vmatpush1.bf16.msra.mxu0 0
  %11526 = vmatprep.mubr.bf16.mxu0 0
  %11527 = vmatmul.mubr.bf16.gmra.mrb[0].mxu0 %v11263
  %v11528 = vpop.f32.mrb[0].mxu0
  %v11529 = vadd.f32 0.0, %v11528
  %v11530 = vpop.f32.mrb[0].mxu0
  %v11531 = vadd.f32 0.0, %v11530
  %v11532 = vpop.f32.mrb[0].mxu0
  %v11533 = vpop.f32.mrb[0].mxu0
  %11534 = vdwg.mxu0
  %v11535 = vld [vmem:[%s16] sm:$0x3f]
  %v11537 = vlaneseq
  %v11538 = vshrl.u32 %v11537, 7
  %v11539 = vsub.s32 0, %v11538
  %v11540 = vrot.slane %v11535, %v11539
  %v11541 = vlaneseq
  %v11542 = vshrl.u32 %v11541, 7
  %v11543 = vsub.s32 1, %v11542
  %v11544 = vrot.slane %v11535, %v11543
  %v11545 = vlaneseq
  %v11546 = vshrl.u32 %v11545, 7
  %v11547 = vsub.s32 2, %v11546
  %v11548 = vrot.slane %v11535, %v11547
  %v11549 = vlaneseq
  %v11550 = vshrl.u32 %v11549, 7
  %v11551 = vsub.s32 3, %v11550
  %v11552 = vrot.slane %v11535, %v11551
  %v11553 = vlaneseq
  %v11554 = vshrl.u32 %v11553, 7
  %v11555 = vsub.s32 4, %v11554
  %v11556 = vrot.slane %v11535, %v11555
  %v11557 = vlaneseq
  %v11558 = vshrl.u32 %v11557, 7
  %v11559 = vsub.s32 5, %v11558
  %v11560 = vrot.slane %v11535, %v11559
  %v11567 = vmul.f32 %v11300, %v11540
  %v11568 = vmul.f32 %v11302, %v11544
  %v11569 = vmul.f32 %v11341, %v11548
  %v11570 = vmul.f32 %v11343, %v11552
  %v11571 = vmul.f32 %v11382, %v11556
  %v11572 = vmul.f32 %v11384, %v11560
  %v11573 = vadd.f32 %v11567, %v11568
  %v11574 = vadd.f32 %v11573, %v11569
  %v11575 = vadd.f32 %v11574, %v11570
  %v11576 = vadd.f32 %v11575, %v11571
  %v11577 = vadd.f32 %v11576, %v11572
  %11578 = vadd.xlane.f32.xlu0 %v11577
  %v11579 = vpop.xlane.xlu0 %11578
  %v11580 = vld [vmem:[%s17] sm:$0x3f]
  %v11582 = vlaneseq
  %v11583 = vshrl.u32 %v11582, 7
  %v11584 = vsub.s32 0, %v11583
  %v11585 = vrot.slane %v11580, %v11584
  %v11586 = vlaneseq
  %v11587 = vshrl.u32 %v11586, 7
  %v11588 = vsub.s32 1, %v11587
  %v11589 = vrot.slane %v11580, %v11588
  %v11590 = vlaneseq
  %v11591 = vshrl.u32 %v11590, 7
  %v11592 = vsub.s32 2, %v11591
  %v11593 = vrot.slane %v11580, %v11592
  %v11594 = vlaneseq
  %v11595 = vshrl.u32 %v11594, 7
  %v11596 = vsub.s32 3, %v11595
  %v11597 = vrot.slane %v11580, %v11596
  %v11598 = vlaneseq
  %v11599 = vshrl.u32 %v11598, 7
  %v11600 = vsub.s32 4, %v11599
  %v11601 = vrot.slane %v11580, %v11600
  %v11602 = vlaneseq
  %v11603 = vshrl.u32 %v11602, 7
  %v11604 = vsub.s32 5, %v11603
  %v11605 = vrot.slane %v11580, %v11604
  %v11612 = vmul.f32 %v11447, %v11585
  %v11613 = vmul.f32 %v11449, %v11589
  %v11614 = vmul.f32 %v11488, %v11593
  %v11615 = vmul.f32 %v11490, %v11597
  %v11616 = vmul.f32 %v11529, %v11601
  %v11617 = vmul.f32 %v11531, %v11605
  %v11618 = vadd.f32 %v11612, %v11613
  %v11619 = vadd.f32 %v11618, %v11614
  %v11620 = vadd.f32 %v11619, %v11615
  %v11621 = vadd.f32 %v11620, %v11616
  %v11622 = vadd.f32 %v11621, %v11617
  %11623 = vadd.xlane.f32.xlu0 %v11622
  %v11624 = vpop.xlane.xlu0 %11623
  %v11625 = vadd.f32 %v11579, %v11624
  %v11626 = vld [vmem:[#allocation6] sm:$0x1]
  %v11628 = vlaneseq
  %v11629 = vshrl.u32 %v11628, 7
  %v11630 = vsub.s32 0, %v11629
  %v11631 = vrot.slane %v11626, %v11630
  %v11633 = vadd.f32 %v11625, %v11631
  %vm11634 = vcmask 7168
  %v11635 = vsel %vm11634, %v11633, -inf
  %v11636 = vrot.slane %v11635, 4
  %v11637 = vmax.f32 %v11635, %v11636
  %v11638 = vrot.slane %v11637, 2
  %v11639 = vmax.f32 %v11637, %v11638
  %v11640 = vrot.slane %v11639, 1
  %v11641 = vmax.f32 %v11639, %v11640
  %v11642 = vsub.f32 %v11633, %v11641
  %v11643 = vmul.f32 %v11642, 1.442695
  %v11644 = vpow.pop %v11643
  %v11645 = vshra.s32 %v1446, 2
  %v11646 = vshra.s32 %v1463, 2
  %vm11647 = vcmp.eq.s32.totalorder %v11645, %v11646
  %v11648 = vsel %vm11647, 1.0, 0.0
  %vm11649 = vcmask 64512
  %v11651 = vsel %vm11649, %v11648, 0
  %11653 = vmatprep.subr.mxu0 0.0
  %11654 = vmatpush1.msra.mxu0 %v11644
  %11655 = vmatprep.subr.mxu0 0.0
  %11656 = vmatpush1.msra.mxu0 0.0
  %11657 = vmatprep.subr.mxu0 0.0
  %11658 = vmatpush1.msra.mxu0 0.0
  %11659 = vmatprep.subr.mxu0 0.0
  %11660 = vmatpush1.msra.mxu0 0.0
  %11661 = vmatprep.subr.mxu0 0.0
  %11662 = vmatpush1.msra.mxu0 0.0
  %11663 = vmatprep.subr.mxu0 0.0
  %11664 = vmatpush1.msra.mxu0 0.0
  %11665 = vmatprep.subr.mxu0 0.0
  %11666 = vmatpush1.msra.mxu0 0.0
  %11667 = vmatprep.subr.mxu0 0.0
  %11668 = vmatpush1.msra.mxu0 0.0
  %11669 = vmatprep.subr.mxu0 0.0
  %11670 = vmatpush1.msra.mxu0 0.0
  %11671 = vmatprep.subr.mxu0 0.0
  %11672 = vmatpush1.msra.mxu0 0.0
  %11673 = vmatprep.subr.mxu0 0.0
  %11674 = vmatpush1.msra.mxu0 0.0
  %11675 = vmatprep.subr.mxu0 0.0
  %11676 = vmatpush1.msra.mxu0 0.0
  %11677 = vmatprep.subr.mxu0 0.0
  %11678 = vmatpush1.msra.mxu0 0.0
  %11679 = vmatprep.subr.mxu0 0.0
  %11680 = vmatpush1.msra.mxu0 0.0
  %11681 = vmatprep.subr.mxu0 0.0
  %11682 = vmatpush1.msra.mxu0 0.0
  %11683 = vmatprep.subr.mxu0 0.0
  %11684 = vmatpush1.msra.mxu0 0.0
  %11685 = vmatprep.subr.mxu0 0.0
  %11686 = vmatpush1.msra.mxu0 0.0
  %11687 = vmatprep.subr.mxu0 0.0
  %11688 = vmatpush1.msra.mxu0 0.0
  %11689 = vmatprep.subr.mxu0 0.0
  %11690 = vmatpush1.msra.mxu0 0.0
  %11691 = vmatprep.subr.mxu0 0.0
  %11692 = vmatpush1.msra.mxu0 0.0
  %11693 = vmatprep.subr.mxu0 0.0
  %11694 = vmatpush1.msra.mxu0 0.0
  %11695 = vmatprep.subr.mxu0 0.0
  %11696 = vmatpush1.msra.mxu0 0.0
  %11697 = vmatprep.subr.mxu0 0.0
  %11698 = vmatpush1.msra.mxu0 0.0
  %11699 = vmatprep.subr.mxu0 0.0
  %11700 = vmatpush1.msra.mxu0 0.0
  %11701 = vmatprep.subr.mxu0 0.0
  %11702 = vmatpush1.msra.mxu0 0.0
  %11703 = vmatprep.subr.mxu0 0.0
  %11704 = vmatpush1.msra.mxu0 0.0
  %11705 = vmatprep.subr.mxu0 0.0
  %11706 = vmatpush1.msra.mxu0 0.0
  %11707 = vmatprep.subr.mxu0 0.0
  %11708 = vmatpush1.msra.mxu0 0.0
  %11709 = vmatprep.subr.mxu0 0.0
  %11710 = vmatpush1.msra.mxu0 0.0
  %11711 = vmatprep.subr.mxu0 0.0
  %11712 = vmatpush1.msra.mxu0 0.0
  %11713 = vmatprep.subr.mxu0 0.0
  %11714 = vmatpush1.msra.mxu0 0.0
  %11715 = vmatprep.subr.mxu0 0.0
  %11716 = vmatpush1.msra.mxu0 0.0
  %11717 = vmatprep.mubr.f32.mxu0 0.0
  %11718 = vmatmul.mubr.f32.gmra.mrb[0].mxu0 %v11651
  %v11719 = vpop.f32.mrb[0].mxu0
  %v11720 = vadd.f32 0.0, %v11719
  %v11721 = vpop.f32.mrb[0].mxu0
  %11722 = vdwg.mxu0
  %v11723 = vrcp.pop %v11720
  %v11724 = vmul.f32 %v11644, %v11723
  %11725 = vst.msk [vmem:[%s19] sm:$0xff] %vm11634, %v11724
  // Predicated region
  $region174: #{duma_forward.1} parent=0 // pred_check
    _
  $region175: #{duma_forward.1} parent=0 // pred_check_branch
    %11727 = sbr.rel (0) target = $region177
  $region176: #{duma_forward.1} parent=0 // pred_region
    _
  $region177: #{duma_forward.1} parent=0 // pred_fallthru
    _
  // Predicated region
  $region178: #{duma_forward.1} parent=0 // pred_check
    _
  $region179: #{duma_forward.1} parent=0 // pred_check_branch
    %11729 = sbr.rel (0) target = $region181
  $region180: #{duma_forward.1} parent=0 // pred_region
    _
  $region181: #{duma_forward.1} parent=0 // pred_fallthru
    _
  %11730 = vsyncmov [#allocation5]
  %s11731 = vpop.sfrf %11730
  %p11732 = scmp.eq.s32.totalorder %s11731, 0
  %p11733 = pneg %p11732
  %11735 = shalt.err (%p11733)
  %s11736 = scalar_lea.sflag [#allocation5], 1
  %11737 = vsyncmov %s11736
  %s11738 = vpop.sfrf %11737
  %p11739 = scmp.eq.s32.totalorder %s11738, 0
  %p11740 = pneg %p11739
  %11742 = shalt.err (%p11740)
  %s11743 = scalar_lea.sflag [#allocation5], 2
  %11744 = vsyncmov %s11743
  %s11745 = vpop.sfrf %11744
  %p11746 = scmp.eq.s32.totalorder %s11745, 0
  %p11747 = pneg %p11746
  %11749 = shalt.err (%p11747)

</llo_original>
